<compile_context>
chip_gen: v6e
topology: v6e:2x2x1
jax: 0.10.0
libtpu: 0.0.40
codegen_flags: <defaults>
</compile_context>

<pallas_src>
import jax
import jax.numpy as jnp
from jax import lax
from jax.experimental import pallas as pl
from jax.experimental.pallas import tpu as pltpu

_MIB = 1024 * 1024


# --------------------------------------------------------------------------- #
# Kernel
# --------------------------------------------------------------------------- #
def _make_kernel(*, tq, c, c8, n_valid, n_pad, cache_kv):
    mask_cols = n_pad != n_valid

    def kernel(gamma_ref, src_ref, feat_ref, wq_ref, bq_ref, wkv_ref, bkv_ref,
               out_ref, attn_ref, *scratch):
        # Blocks (channels-first, pixels on the 128-wide lane axis):
        #   src_ref  : (1, C,  TQ)    q-row tile of `source`
        #   feat_ref : (1, C,  Npad)  full `feat` for this batch (resident across q tiles)
        #   wq/bq    : (C8, C) / (C8, 1)
        #   wkv/bkv  : (C+C8, C) / (C+C8, 1)   stacked [V; K] projection
        #   out_ref  : (1, C,  TQ)
        #   attn_ref : (1, TQ, Npad)
        i = pl.program_id(1)

        # ---- 1x1 convolutions (W @ x + b) + ReLU, on the MXU.
        # TODO(synk): the module's `activation` is a constructor argument; ReLU assumed.
        src_t = src_ref[0]                                               # (C, TQ)
        q = jnp.maximum(
            jnp.dot(wq_ref[...], src_t, preferred_element_type=jnp.float32)
            + bq_ref[...], 0.0)                                          # (C8, TQ)

        def project_kv():
            kv = jnp.maximum(
                jnp.dot(wkv_ref[...], feat_ref[0],
                        preferred_element_type=jnp.float32)
                + bkv_ref[...], 0.0)                                     # (C+C8, Npad)
            return kv[:c], kv[c:]                                        # V, K

        if cache_kv:
            # K/V are identical for every q tile of a batch: compute once per
            # batch into VMEM scratch (q-tile axis is "arbitrary" / sequential).
            v_scr, k_scr = scratch

            @pl.when(i == 0)
            def _():
                v_new, k_new = project_kv()
                v_scr[...] = v_new
                k_scr[...] = k_new

            v = v_scr[...]
            k = k_scr[...]
        else:
            v, k = project_kv()

        # ---- energy[i, j] = <q[:, i], k[:, j]>   (== bmm(query^T, key)).
        energy = lax.dot_general(q, k, (((0,), (0,)), ((), ())),
                                 preferred_element_type=jnp.float32)     # (TQ, Npad)
        if mask_cols:
            col = lax.broadcasted_iota(jnp.int32, energy.shape, 1)
            energy = jnp.where(col < n_valid, energy, -1e30)

        # ---- row-wise softmax over the key axis (fp32, numerically stable).
        m = jnp.max(energy, axis=-1, keepdims=True)
        e = jnp.exp(energy - m)
        inv = pl.reciprocal(jnp.sum(e, axis=-1, keepdims=True), approx=False)
        attn = e * inv                                                   # fp32, feeds the MXU
        attn_ref[0] = attn.astype(attn_ref.dtype)                        # bf16 writeback by default

        # ---- out[c, i] = sum_j v[c, j] * attn[i, j]   (== bmm(value, attention^T)).
        out = lax.dot_general(v, attn, (((1,), (1,)), ((), ())),
                              preferred_element_type=jnp.float32)        # (C, TQ)

        # Residual tile straight from the resident feat block (no duplicate input).
        start = pl.multiple_of(i * tq, 128)
        res = feat_ref[0, :, pl.ds(start, tq)]                           # (C, TQ)
        out_ref[0] = (gamma_ref[0] * out + res).astype(out_ref.dtype)

    return kernel


# --------------------------------------------------------------------------- #
# Tiling / VMEM budgeting
# --------------------------------------------------------------------------- #
def _vmem_budget_bytes():
    """Chip-aware scoped-VMEM budget for this kernel."""
    cap = 64 * _MIB                       # conservative default (v7x physical VMEM)
    try:
        cap = pltpu.get_tpu_info().vmem_capacity_bytes
    except Exception:
        pass
    # Leave headroom for Mosaic internal scratch: ~52 MiB on v7x (64 MiB
    # physical), ~100 MiB on v5e/v6e (128 MiB physical).
    return int(min(cap - 12 * _MIB, 100 * _MIB))


def _footprint_bytes(tq, n_pad, c, c8, attn_bytes):
    """Approximate per-step VMEM footprint (dominant terms only)."""
    slab = tq * n_pad
    fp = slab * (2 * attn_bytes + 3 * 4)   # attn-out double buffer + fp32 energy/e/attn temps
    fp += 2 * c * n_pad * 4                # resident feat block (double-buffered across batches)
    fp += (c + c8) * n_pad * 4             # K/V (live values or scratch)
    fp += 4 * c * tq * 4                   # source + out tiles (double-buffered)
    return fp


def _pick_q_tile(n_pad, c, c8, attn_bytes, budget):
    cands = [t for t in (512, 256, 128) if n_pad % t == 0]
    for t in cands:
        if _footprint_bytes(t, n_pad, c, c8, attn_bytes) <= budget:
            return t
    return cands[-1] if cands else n_pad


# --------------------------------------------------------------------------- #
# Wrapper
# --------------------------------------------------------------------------- #
def depth_aware_attention(source, feat, params, *,
                          attn_dtype=jnp.bfloat16,
                          cache_kv=None,
                          q_tile=None):
    """source, feat: (B, C, W, H) float32.

    Returns (out (B, C, W, H), attention (B, N, N)) with N = W*H, matching the
    PyTorch DepthAwareAttention forward with activation = ReLU.

    attn_dtype defaults to bfloat16: softmax and the `out` path are computed in
    fp32 (so `out` keeps ~1e-4 parity with the fp32 reference) but the returned
    attention matrix is stored in bf16, halving the dominant B*N^2 HBM
    writeback.  Pass attn_dtype=jnp.float32 for exact-parity attention.
    """
    B, C, W, H = source.shape
    N = W * H
    C8 = params["wq"].shape[0]
    if cache_kv is None:
        cache_kv = C >= 64            # K/V recompute only matters for large C

    # NCHW -> (B, C, N) is a pure reshape; pad the pixel axis to a lane multiple
    # so q tiles and the attention slab are lane-dense (unmasked vst).
    n_pad = ((N + 127) // 128) * 128
    src_flat = source.reshape(B, C, N)
    feat_flat = feat.reshape(B, C, N)
    if n_pad != N:
        pad = ((0, 0), (0, 0), (0, n_pad - N))
        src_flat = jnp.pad(src_flat, pad)
        feat_flat = jnp.pad(feat_flat, pad)

    # Stack the V and K projections ([V; K] keeps both row slices sublane-aligned
    # when C % 8 == 0) so one MXU pass produces both.
    w_kv = jnp.concatenate([params["wv"], params["wk"]], axis=0)   # (C+C8, C)
    b_kv = jnp.concatenate([params["bv"], params["bk"]], axis=0)   # (C+C8, 1)

    attn_bytes = jnp.dtype(attn_dtype).itemsize
    budget = _vmem_budget_bytes()
    tq = q_tile if q_tile is not None else _pick_q_tile(n_pad, C, C8, attn_bytes, budget)
    assert n_pad % tq == 0 and tq % 128 == 0, (tq, n_pad)
    n_q = n_pad // tq

    kernel = _make_kernel(tq=tq, c=C, c8=C8, n_valid=N, n_pad=n_pad,
                          cache_kv=cache_kv)

    const = lambda shape: pl.BlockSpec(shape, lambda b, i: (0,) * len(shape))

    out_flat, attn = pl.pallas_call(
        kernel,
        out_shape=(
            jax.ShapeDtypeStruct((B, C, n_pad), source.dtype),
            jax.ShapeDtypeStruct((B, n_pad, n_pad), attn_dtype),
        ),
        grid_spec=pltpu.PrefetchScalarGridSpec(
            num_scalar_prefetch=0,
            grid=(B, n_q),
            in_specs=[
                pl.BlockSpec(memory_space=pltpu.MemorySpace.SMEM),     # gamma (1,)
                pl.BlockSpec((1, C, tq), lambda b, i: (b, 0, i)),      # source q-row tile
                pl.BlockSpec((1, C, n_pad), lambda b, i: (b, 0, 0)),   # feat (resident across q tiles)
                const((C8, C)), const((C8, 1)),                        # Wq, bq
                const((C + C8, C)), const((C + C8, 1)),                # [Wv;Wk], [bv;bk]
            ],
            out_specs=[
                pl.BlockSpec((1, C, tq), lambda b, i: (b, 0, i)),      # out tile (lane-dense)
                pl.BlockSpec((1, tq, n_pad), lambda b, i: (b, i, 0)),  # attention slab (lane-dense)
            ],
            scratch_shapes=(
                [pltpu.VMEM((C, n_pad), jnp.float32),                  # cached V
                 pltpu.VMEM((C8, n_pad), jnp.float32)]                 # cached K
                if cache_kv else []),
        ),
        compiler_params=pltpu.CompilerParams(
            # Batch axis always megacore-parallel; the q-tile axis carries the
            # K/V cache when cache_kv is on, so it must stay "arbitrary" then.
            dimension_semantics=("parallel",
                                 "arbitrary" if cache_kv else "parallel"),
            vmem_limit_bytes=budget,
        ),
    )(params["gamma"], src_flat, feat_flat,
      params["wq"], params["bq"], w_kv, b_kv)

    out = out_flat[:, :, :N].reshape(B, C, W, H)
    attn = attn[:, :N, :N]
    return out, attn


# --------------------------------------------------------------------------- #
# Pure-JAX reference (mirrors the PyTorch forward, activation = ReLU)
# --------------------------------------------------------------------------- #
def _reference(source, feat, params):
    B, C, W, H = source.shape
    N = W * H
    src = source.reshape(B, C, N)
    ft = feat.reshape(B, C, N)
    relu = jax.nn.relu
    q = relu(jnp.einsum("oc,bcn->bon", params["wq"], src) + params["bq"][None])
    k = relu(jnp.einsum("oc,bcn->bon", params["wk"], ft) + params["bk"][None])
    v = relu(jnp.einsum("oc,bcn->bon", params["wv"], ft) + params["bv"][None])
    energy = jnp.einsum("bci,bcj->bij", q, k)
    attn = jax.nn.softmax(energy, axis=-1)
    out = jnp.einsum("bcj,bij->bci", v, attn)
    out = params["gamma"][0] * out + ft
    return out.reshape(B, C, W, H), attn


def _make_params(key, c, c8):
    ks = jax.random.split(key, 6)
    return {
        # PyTorch Conv2d weights (C_out, C_in, 1, 1) squeezed to (C_out, C_in);
        # biases stored as (C_out, 1) so they broadcast over the pixel axis.
        "wq": 0.1 * jax.random.normal(ks[0], (c8, c), dtype=jnp.float32),
        "bq": 0.1 * jax.random.normal(ks[1], (c8, 1), dtype=jnp.float32),
        "wk": 0.1 * jax.random.normal(ks[2], (c8, c), dtype=jnp.float32),
        "bk": 0.1 * jax.random.normal(ks[3], (c8, 1), dtype=jnp.float32),
        "wv": 0.1 * jax.random.normal(ks[4], (c, c), dtype=jnp.float32),
        "bv": 0.1 * jax.random.normal(ks[5], (c, 1), dtype=jnp.float32),
        # nn.Parameter(torch.zeros(1)); nonzero so the residual path is exercised.
        "gamma": jnp.array([0.5], dtype=jnp.float32),
    }


if __name__ == "__main__":
    key = jax.random.PRNGKey(0)

    # --- Test 1: lane-multiple N, default bf16 attention writeback ----------
    B, C, W, H = 2, 16, 32, 32            # N = 1024 -> multi q-tile grid
    C8 = C // 8
    k0, k1, k2 = jax.random.split(key, 3)
    source = jax.random.normal(k0, (B, C, W, H), dtype=jnp.float32)
    feat = jax.random.normal(k1, (B, C, W, H), dtype=jnp.float32)
    params = _make_params(k2, C, C8)

    out, attn = depth_aware_attention(source, feat, params)
    jax.block_until_ready((out, attn))

    out_ref, attn_ref = _reference(source, feat, params)
    assert out.shape == (B, C, W, H) and attn.shape == (B, W * H, W * H)
    assert jnp.allclose(out, out_ref, atol=1e-4, rtol=1e-4)
    # Attention is returned in bf16 (HBM-writeback optimization) -> looser tolerance.
    assert jnp.allclose(attn.astype(jnp.float32), attn_ref, atol=2e-3, rtol=2e-2)

    # --- Test 2: N not a multiple of 128 (pad + mask), fp32 attention,
    #     forced small q tile + K/V-caching path ------------------------------
    B2, C2, W2, H2 = 1, 8, 20, 20         # N = 400 -> padded to 512
    C8b = max(C2 // 8, 1)
    k3, k4, k5 = jax.random.split(k2, 3)
    source2 = jax.random.normal(k3, (B2, C2, W2, H2), dtype=jnp.float32)
    feat2 = jax.random.normal(k4, (B2, C2, W2, H2), dtype=jnp.float32)
    params2 = _make_params(k5, C2, C8b)

    out2, attn2 = depth_aware_attention(source2, feat2, params2,
                                        attn_dtype=jnp.float32,
                                        cache_kv=True, q_tile=128)
    jax.block_until_ready((out2, attn2))
    out2_ref, attn2_ref = _reference(source2, feat2, params2)
    assert out2.shape == (B2, C2, W2, H2) and attn2.shape == (B2, 400, 400)
    assert jnp.allclose(out2, out2_ref, atol=1e-4, rtol=1e-4)
    assert jnp.allclose(attn2, attn2_ref, atol=1e-4, rtol=1e-4)

    print("KERNEL_OK")
</pallas_src>

<mosaic_0001>
module attributes {stable_mosaic.version = 11 : i64} {
  func.func @kernel(%arg0: i32, %arg1: i32, %arg2: memref<1xf32, #tpu.memory_space<smem>>, %arg3: memref<1x16x512xf32, #tpu.memory_space<vmem>>, %arg4: memref<1x16x1024xf32, #tpu.memory_space<vmem>>, %arg5: memref<2x16xf32, #tpu.memory_space<vmem>>, %arg6: memref<2x1xf32, #tpu.memory_space<vmem>>, %arg7: memref<18x16xf32, #tpu.memory_space<vmem>>, %arg8: memref<18x1xf32, #tpu.memory_space<vmem>>, %arg9: memref<1x16x512xf32, #tpu.memory_space<vmem>>, %arg10: memref<1x512x1024xbf16, #tpu.memory_space<vmem>>) attributes {dimension_semantics = [#tpu.dimension_semantics<parallel>, #tpu.dimension_semantics<parallel>], iteration_bounds = array<i64: 2, 2>, scalar_prefetch = 0 : i64, scratch_operands = 0 : i64, tpu.core_type = #tpu.core_type<tc>, window_params = [{transform_indices = @transform_0, window_bounds = array<i64: 1>}, {transform_indices = @transform_1, window_bounds = array<i64: 1, 16, 512>}, {transform_indices = @transform_2, window_bounds = array<i64: 1, 16, 1024>}, {pipeline_mode = #tpu.pipeline_mode<synchronous>, transform_indices = @transform_3, window_bounds = array<i64: 2, 16>}, {pipeline_mode = #tpu.pipeline_mode<synchronous>, transform_indices = @transform_4, window_bounds = array<i64: 2, 1>}, {pipeline_mode = #tpu.pipeline_mode<synchronous>, transform_indices = @transform_5, window_bounds = array<i64: 18, 16>}, {pipeline_mode = #tpu.pipeline_mode<synchronous>, transform_indices = @transform_6, window_bounds = array<i64: 18, 1>}, {transform_indices = @transform_7, window_bounds = array<i64: 1, 16, 512>}, {transform_indices = @transform_8, window_bounds = array<i64: 1, 512, 1024>}]} {
    %c0 = arith.constant 0 : index
    %c0_0 = arith.constant 0 : index
    %c0_1 = arith.constant 0 : index
    %0 = vector.load %arg3[%c0, %c0_0, %c0_1] : memref<1x16x512xf32, #tpu.memory_space<vmem>>, vector<1x16x512xf32>
    %1 = vector.shape_cast %0 : vector<1x16x512xf32> to vector<16x512xf32>
    %c0_2 = arith.constant 0 : index
    %c0_3 = arith.constant 0 : index
    %2 = vector.load %arg5[%c0_2, %c0_3] : memref<2x16xf32, #tpu.memory_space<vmem>>, vector<2x16xf32>
    %cst = arith.constant dense<0.000000e+00> : vector<2x512xf32>
    %3 = tpu.matmul %2, %1, %cst {dimension_numbers = #tpu.dot_dimension_numbers<[1], [0], [0], [1], [0, 0, 1, 1], [], []>} : vector<2x16xf32>, vector<16x512xf32>, vector<2x512xf32> -> vector<2x512xf32>
    %c0_4 = arith.constant 0 : index
    %c0_5 = arith.constant 0 : index
    %4 = vector.load %arg6[%c0_4, %c0_5] : memref<2x1xf32, #tpu.memory_space<vmem>>, vector<2x1xf32>
    %5 = vector.broadcast %4 : vector<2x1xf32> to vector<2x512xf32>
    %6 = arith.addf %3, %5 : vector<2x512xf32>
    %cst_6 = arith.constant 0.000000e+00 : f32
    %7 = vector.broadcast %cst_6 : f32 to vector<2x512xf32>
    %8 = arith.maximumf %6, %7 : vector<2x512xf32>
    %c0_7 = arith.constant 0 : index
    %c0_8 = arith.constant 0 : index
    %9 = vector.load %arg7[%c0_7, %c0_8] : memref<18x16xf32, #tpu.memory_space<vmem>>, vector<18x16xf32>
    %c0_9 = arith.constant 0 : index
    %c0_10 = arith.constant 0 : index
    %c0_11 = arith.constant 0 : index
    %10 = vector.load %arg4[%c0_9, %c0_10, %c0_11] : memref<1x16x1024xf32, #tpu.memory_space<vmem>>, vector<1x16x1024xf32>
    %11 = vector.shape_cast %10 : vector<1x16x1024xf32> to vector<16x1024xf32>
    %cst_12 = arith.constant dense<0.000000e+00> : vector<18x1024xf32>
    %12 = tpu.matmul %9, %11, %cst_12 {dimension_numbers = #tpu.dot_dimension_numbers<[1], [0], [0], [1], [0, 0, 1, 1], [], []>} : vector<18x16xf32>, vector<16x1024xf32>, vector<18x1024xf32> -> vector<18x1024xf32>
    %c0_13 = arith.constant 0 : index
    %c0_14 = arith.constant 0 : index
    %13 = vector.load %arg8[%c0_13, %c0_14] : memref<18x1xf32, #tpu.memory_space<vmem>>, vector<18x1xf32>
    %14 = vector.broadcast %13 : vector<18x1xf32> to vector<18x1024xf32>
    %15 = arith.addf %12, %14 : vector<18x1024xf32>
    %cst_15 = arith.constant 0.000000e+00 : f32
    %16 = vector.broadcast %cst_15 : f32 to vector<18x1024xf32>
    %17 = arith.maximumf %15, %16 : vector<18x1024xf32>
    %18 = vector.extract_strided_slice %17 {offsets = [0, 0], sizes = [16, 1024], strides = [1, 1]} : vector<18x1024xf32> to vector<16x1024xf32>
    %19 = vector.extract_strided_slice %17 {offsets = [16, 0], sizes = [2, 1024], strides = [1, 1]} : vector<18x1024xf32> to vector<2x1024xf32>
    %cst_16 = arith.constant dense<0.000000e+00> : vector<512x1024xf32>
    %20 = tpu.matmul %8, %19, %cst_16 {dimension_numbers = #tpu.dot_dimension_numbers<[0], [0], [1], [1], [0, 1, 1, 1], [], []>} : vector<2x512xf32>, vector<2x1024xf32>, vector<512x1024xf32> -> vector<512x1024xf32>
    %cst_17 = arith.constant dense<0xFF800000> : vector<512xf32>
    %21 = vector.multi_reduction <maximumf>, %20, %cst_17 [1] : vector<512x1024xf32> to vector<512xf32>
    %22 = vector.shape_cast %21 : vector<512xf32> to vector<512x1xf32>
    %23 = vector.broadcast %22 : vector<512x1xf32> to vector<512x1024xf32>
    %24 = arith.subf %20, %23 : vector<512x1024xf32>
    %25 = math.exp %24 : vector<512x1024xf32>
    %cst_18 = arith.constant dense<0.000000e+00> : vector<512xf32>
    %26 = vector.multi_reduction <add>, %25, %cst_18 [1] : vector<512x1024xf32> to vector<512xf32>
    %27 = vector.shape_cast %26 : vector<512xf32> to vector<512x1xf32>
    %28 = tpu.reciprocal %27 : vector<512x1xf32> -> vector<512x1xf32>
    %29 = vector.broadcast %28 : vector<512x1xf32> to vector<512x1024xf32>
    %30 = arith.mulf %25, %29 : vector<512x1024xf32>
    %31 = arith.truncf %30 : vector<512x1024xf32> to vector<512x1024xbf16>
    %c0_19 = arith.constant 0 : index
    %c0_20 = arith.constant 0 : index
    %c0_21 = arith.constant 0 : index
    %32 = vector.load %arg10[%c0_19, %c0_20, %c0_21] : memref<1x512x1024xbf16, #tpu.memory_space<vmem>>, vector<1x512x1024xbf16>
    %33 = vector.shape_cast %32 : vector<1x512x1024xbf16> to vector<512x1024xbf16>
    %34 = vector.shape_cast %31 : vector<512x1024xbf16> to vector<1x512x1024xbf16>
    tpu.vector_store %arg10[%c0_19, %c0_20, %c0_21], %34 {strides = array<i32>} : memref<1x512x1024xbf16, #tpu.memory_space<vmem>>, vector<1x512x1024xbf16>,
    %cst_22 = arith.constant dense<0.000000e+00> : vector<16x512xf32>
    %35 = tpu.matmul %18, %30, %cst_22 {dimension_numbers = #tpu.dot_dimension_numbers<[1], [1], [0], [0], [0, 0, 1, 0], [], []>} : vector<16x1024xf32>, vector<512x1024xf32>, vector<16x512xf32> -> vector<16x512xf32>
    %c512_i32 = arith.constant 512 : i32
    %36 = arith.muli %arg1, %c512_i32 : i32
    %37 = tpu.assume_multiple %36, 128 : i32
    %c0_23 = arith.constant 0 : index
    %c0_24 = arith.constant 0 : index
    %38 = arith.index_cast %37 : i32 to index
    %39 = vector.load %arg4[%c0_23, %c0_24, %38] : memref<1x16x1024xf32, #tpu.memory_space<vmem>>, vector<1x16x512xf32>
    %40 = vector.shape_cast %39 : vector<1x16x512xf32> to vector<16x512xf32>
    %c0_25 = arith.constant 0 : index
    %41 = memref.load %arg2[%c0_25] : memref<1xf32, #tpu.memory_space<smem>>
    %42 = vector.broadcast %41 : f32 to vector<16x512xf32>
    %43 = arith.mulf %42, %35 : vector<16x512xf32>
    %44 = arith.addf %43, %40 : vector<16x512xf32>
    %c0_26 = arith.constant 0 : index
    %c0_27 = arith.constant 0 : index
    %c0_28 = arith.constant 0 : index
    %45 = vector.load %arg9[%c0_26, %c0_27, %c0_28] : memref<1x16x512xf32, #tpu.memory_space<vmem>>, vector<1x16x512xf32>
    %46 = vector.shape_cast %45 : vector<1x16x512xf32> to vector<16x512xf32>
    %47 = vector.shape_cast %44 : vector<16x512xf32> to vector<1x16x512xf32>
    tpu.vector_store %arg9[%c0_26, %c0_27, %c0_28], %47 {strides = array<i32>} : memref<1x16x512xf32, #tpu.memory_space<vmem>>, vector<1x16x512xf32>,
    return
  }
  func.func @transform_0(%arg0: i32, %arg1: i32) -> i32 {
    %c0_i32 = arith.constant 0 : i32
    %c0_i32_0 = arith.constant 0 : i32
    return %c0_i32 : i32
  }
  func.func @transform_1(%arg0: i32, %arg1: i32) -> (i32, i32, i32) {
    %c0_i32 = arith.constant 0 : i32
    %c0_i32_0 = arith.constant 0 : i32
    return %arg0, %c0_i32, %arg1 : i32, i32, i32
  }
  func.func @transform_2(%arg0: i32, %arg1: i32) -> (i32, i32, i32) {
    %c0_i32 = arith.constant 0 : i32
    %c0_i32_0 = arith.constant 0 : i32
    %c0_i32_1 = arith.constant 0 : i32
    return %arg0, %c0_i32, %c0_i32_0 : i32, i32, i32
  }
  func.func @transform_3(%arg0: i32, %arg1: i32) -> (i32, i32) {
    %c0_i32 = arith.constant 0 : i32
    %c0_i32_0 = arith.constant 0 : i32
    %c0_i32_1 = arith.constant 0 : i32
    return %c0_i32, %c0_i32_0 : i32, i32
  }
  func.func @transform_4(%arg0: i32, %arg1: i32) -> (i32, i32) {
    %c0_i32 = arith.constant 0 : i32
    %c0_i32_0 = arith.constant 0 : i32
    %c0_i32_1 = arith.constant 0 : i32
    return %c0_i32, %c0_i32_0 : i32, i32
  }
  func.func @transform_5(%arg0: i32, %arg1: i32) -> (i32, i32) {
    %c0_i32 = arith.constant 0 : i32
    %c0_i32_0 = arith.constant 0 : i32
    %c0_i32_1 = arith.constant 0 : i32
    return %c0_i32, %c0_i32_0 : i32, i32
  }
  func.func @transform_6(%arg0: i32, %arg1: i32) -> (i32, i32) {
    %c0_i32 = arith.constant 0 : i32
    %c0_i32_0 = arith.constant 0 : i32
    %c0_i32_1 = arith.constant 0 : i32
    return %c0_i32, %c0_i32_0 : i32, i32
  }
  func.func @transform_7(%arg0: i32, %arg1: i32) -> (i32, i32, i32) {
    %c0_i32 = arith.constant 0 : i32
    %c0_i32_0 = arith.constant 0 : i32
    return %arg0, %c0_i32, %arg1 : i32, i32, i32
  }
  func.func @transform_8(%arg0: i32, %arg1: i32) -> (i32, i32, i32) {
    %c0_i32 = arith.constant 0 : i32
    %c0_i32_0 = arith.constant 0 : i32
    return %arg0, %arg1, %c0_i32 : i32, i32, i32
  }
}

</mosaic_0001>

<llo_original>
// kernel: tpu_custom_call.1
$region0: #{tpu_custom_call.1}
  #allocation0 [shape = 'u32[]', space=smem, size = 0x4, offset = 0x4, fixed_abs, tag = 'smem constant byte address 0x4 - core index']
  #allocation1 [shape = 'u32[144,128]{1,0:T(1,128)}', space=vmem, size = 0x12000, scoped, tag = 'internal scratch']
  #allocation2 [shape = 'f32[1]{0:T(128)S(6)}', space=smem, size = 0x200, scoped, tag = 'scoped memory for tpu_custom_call.1']
  %s0 = inlined_call_operand.<no memory space> [shape: f32[1], index: 0, kind: input, shape index: {}]
  %s1 = inlined_call_operand.hbm [shape: f32[2,16,1024], index: 1, kind: input, shape index: {}]
  %s2 = inlined_call_operand.hbm [shape: f32[2,16,1024], index: 2, kind: input, shape index: {}]
  %s3 = inlined_call_operand.hbm [shape: f32[2,16], index: 3, kind: input, shape index: {}]
  %s4 = inlined_call_operand.vmem [shape: f32[2,1], index: 4, kind: input, shape index: {}]
  %s5 = inlined_call_operand.vmem [shape: f32[18,16], index: 5, kind: input, shape index: {}]
  %s6 = inlined_call_operand.vmem [shape: f32[18,1], index: 6, kind: input, shape index: {}]
  %s7 = inlined_call_operand.hbm [shape: f32[2,16,1024], index: 7, kind: output, shape index: {0}]
  %s8 = inlined_call_operand.hbm [shape: bf16[2,1024,1024], index: 8, kind: output, shape index: {1}]
  %9 = xla_tuple %s7, %s8
  %s10 = sld [smem:[#allocation0]]
  $region81: #{tpu_custom_call.1} parent=0
    _
  %s12 = ssub.s32 1, %s10
  %s13 = scalar_select 0, %s12, %s10
  %14 = sst [smem:[#allocation2]] %s0
  $region1: #{tpu_custom_call.1} parent=0
    #allocation3 [shape = 'u8[65536]{0}', space=vmem, size = 0x10000, scoped, tag = 'input window, operand 1']
    #allocation4 [shape = 's32[2]{0}', space=sflag, size = 0x8, scoped, tag = 'scoped memory for tpu_custom_call.1']
    #allocation5 [shape = 's32[2]{0}', space=sflag, size = 0x8, scoped, tag = 'scoped memory for tpu_custom_call.1']
    #allocation6 [shape = 'u8[131072]{0}', space=vmem, size = 0x20000, scoped, tag = 'input window, operand 2']
    #allocation7 [shape = 's32[2]{0}', space=sflag, size = 0x8, scoped, tag = 'scoped memory for tpu_custom_call.1']
    #allocation8 [shape = 'u8[1024]{0}', space=vmem, size = 0x400, scoped, tag = 'input window, operand 3, single buffered']
    #allocation9 [shape = 'u8[65536]{0}', space=vmem, size = 0x10000, scoped, tag = 'output window, operand 0']
    #allocation10 [shape = 'u8[2097152]{0}', space=vmem, size = 0x200000, scoped, tag = 'output window, operand 1']
    #allocation11 [shape = 's32[2]{0}', space=sflag, size = 0x8, scoped, tag = 'scoped memory for tpu_custom_call.1']
    %15 = vsyncpa [#allocation4], 0
    %s16 = scalar_lea.sflag [#allocation4], 1
    %17 = vsyncpa %s16, 0
    %18 = vsyncpa [#allocation7], 0
    %s19 = scalar_lea.sflag [#allocation7], 1
    %20 = vsyncpa %s19, 0
    %21 = vsyncpa [#allocation5], 0
    %s22 = scalar_lea.sflag [#allocation5], 1
    %23 = vsyncpa %s22, 0
    %24 = vsyncpa [#allocation11], 0
    %s25 = scalar_lea.sflag [#allocation11], 1
    %26 = vsyncpa %s25, 0
    loop: start=0, step=1, limit=6
    $region2: #{tpu_custom_call.1} parent=1 // loop_pre_header
      _
    $region3: #{tpu_custom_call.1} parent=1 // loop_header
      %s28 = sphi 0, %s32
      %p29 = scmp.ge.s32.totalorder %s28, 6
      %s35 = sphi 0, %s47
      %s36 = sphi 0, %s43
      %s37 = sphi 0, %s35
      %s38 = sphi 0, %s36
      %s39 = sphi 0, %s37
      %s40 = sphi 0, %s38
      %s48 = sphi 0, %s48
      %s50 = sphi 0, %s48
      %s51 = sphi 0, %s50
      %s65 = sphi 0, %s51
      %s73 = sphi 0, %s75
      %s76 = sphi 0, %s73
      %s77 = sphi 0, %s76
      %s93 = sphi 0, %s77
      %s99 = sphi 0, %s101
      %s102 = sphi 0, %s99
      %s103 = sphi 0, %s102
      %s119 = sphi 0, %s103
      %s123 = sphi 0, %s123
      %s125 = sphi 0, %s123
      %s126 = sphi 0, %s125
      %s140 = sphi 0, %s126
      %s144 = sphi 0, %s144
      %s146 = sphi 0, %s144
      %s147 = sphi 0, %s146
      %s161 = sphi 0, %s147
      %s165 = sphi 0, %s165
      %s167 = sphi 0, %s165
      %s168 = sphi 0, %s167
      %s182 = sphi 0, %s168
      %s186 = sphi 0, %s186
      %s188 = sphi 0, %s186
      %s189 = sphi 0, %s188
      %s203 = sphi 0, %s189
      %s211 = sphi 0, %s213
      %s214 = sphi 0, %s211
      %s215 = sphi 0, %s214
      %s231 = sphi 0, %s215
      %s239 = sphi 0, %s241
      %s242 = sphi 0, %s239
      %s243 = sphi 0, %s242
      %s259 = sphi 0, %s243
    $region4: #{tpu_custom_call.1} parent=1 // loop_header_branch
      %31 = sbr.rel (%p29) target = $region8
    $region5: #{tpu_custom_call.1} parent=1 // loop_body
      %s33 = ssub.s32 %s28, 1
      %s34 = ssub.s32 %s28, 2
      %s41 = sadd.s32 1, %s36
      %p42 = scmp.ge.s32.totalorder %s41, 2
      %s43 = scalar_select %p42, 0, %s41
      %s44 = sadd.s32 1, %s35
      %s45 = scalar_select %p42, %s44, %s35
      %p46 = scmp.ge.s32.totalorder %s45, 2
      %s47 = scalar_select %p46, 0, %s45
      %s49 = sadd.s32 %s48, 1
      %p52 = scmp.eq.s32.totalorder %s28, 3
      %p53 = scmp.ne.s32.totalorder %s48, %s50
      %p54 = scmp.eq.s32.totalorder %s28, 0
      %p55 = por %p53, %p54
      %p56 = scmp.ne.s32.totalorder %s48, %s50
      %p57 = scmp.eq.s32.totalorder %s33, 3
      %p58 = por %p56, %p57
      %p59 = scmp.ne.s32.totalorder %s50, %s51
      %p60 = scmp.eq.s32.totalorder %s33, 0
      %p61 = por %p59, %p60
      %p62 = scmp.ne.s32.totalorder %s50, %s51
      %p63 = scmp.eq.s32.totalorder %s34, 3
      %p64 = por %p62, %p63
      %p66 = scmp.ne.s32.totalorder %s51, %s65
      %p67 = scmp.eq.s32.totalorder %s34, 0
      %p68 = por %p66, %p67
      %s69 = ssub.s32 %s35, %s47
      %s70 = ssub.s32 %s36, %s43
      %s71 = sor.u32 %s69, %s70
      %p72 = scmp.eq.s32.totalorder %s71, 0
      %s74 = sadd.s32 %s73, 1
      %s75 = scalar_select %p72, %s73, %s74
      %p78 = pneg %p72
      %p79 = scmp.eq.s32.totalorder %s28, 3
      %p80 = por %p78, %p79
      %p81 = scmp.ne.s32.totalorder %s73, %s76
      %p82 = scmp.eq.s32.totalorder %s28, 0
      %p83 = por %p81, %p82
      %p84 = scmp.ne.s32.totalorder %s73, %s76
      %p85 = scmp.eq.s32.totalorder %s33, 3
      %p86 = por %p84, %p85
      %p87 = scmp.ne.s32.totalorder %s76, %s77
      %p88 = scmp.eq.s32.totalorder %s33, 0
      %p89 = por %p87, %p88
      %p90 = scmp.ne.s32.totalorder %s76, %s77
      %p91 = scmp.eq.s32.totalorder %s34, 3
      %p92 = por %p90, %p91
      %p94 = scmp.ne.s32.totalorder %s77, %s93
      %p95 = scmp.eq.s32.totalorder %s34, 0
      %p96 = por %p94, %p95
      %s97 = ssub.s32 %s35, %s47
      %p98 = scmp.eq.s32.totalorder %s97, 0
      %s100 = sadd.s32 %s99, 1
      %s101 = scalar_select %p98, %s99, %s100
      %p104 = pneg %p98
      %p105 = scmp.eq.s32.totalorder %s28, 3
      %p106 = por %p104, %p105
      %p107 = scmp.ne.s32.totalorder %s99, %s102
      %p108 = scmp.eq.s32.totalorder %s28, 0
      %p109 = por %p107, %p108
      %p110 = scmp.ne.s32.totalorder %s99, %s102
      %p111 = scmp.eq.s32.totalorder %s33, 3
      %p112 = por %p110, %p111
      %p113 = scmp.ne.s32.totalorder %s102, %s103
      %p114 = scmp.eq.s32.totalorder %s33, 0
      %p115 = por %p113, %p114
      %p116 = scmp.ne.s32.totalorder %s102, %s103
      %p117 = scmp.eq.s32.totalorder %s34, 3
      %p118 = por %p116, %p117
      %p120 = scmp.ne.s32.totalorder %s103, %s119
      %p121 = scmp.eq.s32.totalorder %s34, 0
      %p122 = por %p120, %p121
      %s124 = sadd.s32 %s123, 1
      %p127 = scmp.eq.s32.totalorder %s28, 3
      %p128 = scmp.ne.s32.totalorder %s123, %s125
      %p129 = scmp.eq.s32.totalorder %s28, 0
      %p130 = por %p128, %p129
      %p131 = scmp.ne.s32.totalorder %s123, %s125
      %p132 = scmp.eq.s32.totalorder %s33, 3
      %p133 = por %p131, %p132
      %p134 = scmp.ne.s32.totalorder %s125, %s126
      %p135 = scmp.eq.s32.totalorder %s33, 0
      %p136 = por %p134, %p135
      %p137 = scmp.ne.s32.totalorder %s125, %s126
      %p138 = scmp.eq.s32.totalorder %s34, 3
      %p139 = por %p137, %p138
      %p141 = scmp.ne.s32.totalorder %s126, %s140
      %p142 = scmp.eq.s32.totalorder %s34, 0
      %p143 = por %p141, %p142
      %s145 = sadd.s32 %s144, 1
      %p148 = scmp.eq.s32.totalorder %s28, 3
      %p149 = scmp.ne.s32.totalorder %s144, %s146
      %p150 = scmp.eq.s32.totalorder %s28, 0
      %p151 = por %p149, %p150
      %p152 = scmp.ne.s32.totalorder %s144, %s146
      %p153 = scmp.eq.s32.totalorder %s33, 3
      %p154 = por %p152, %p153
      %p155 = scmp.ne.s32.totalorder %s146, %s147
      %p156 = scmp.eq.s32.totalorder %s33, 0
      %p157 = por %p155, %p156
      %p158 = scmp.ne.s32.totalorder %s146, %s147
      %p159 = scmp.eq.s32.totalorder %s34, 3
      %p160 = por %p158, %p159
      %p162 = scmp.ne.s32.totalorder %s147, %s161
      %p163 = scmp.eq.s32.totalorder %s34, 0
      %p164 = por %p162, %p163
      %s166 = sadd.s32 %s165, 1
      %p169 = scmp.eq.s32.totalorder %s28, 3
      %p170 = scmp.ne.s32.totalorder %s165, %s167
      %p171 = scmp.eq.s32.totalorder %s28, 0
      %p172 = por %p170, %p171
      %p173 = scmp.ne.s32.totalorder %s165, %s167
      %p174 = scmp.eq.s32.totalorder %s33, 3
      %p175 = por %p173, %p174
      %p176 = scmp.ne.s32.totalorder %s167, %s168
      %p177 = scmp.eq.s32.totalorder %s33, 0
      %p178 = por %p176, %p177
      %p179 = scmp.ne.s32.totalorder %s167, %s168
      %p180 = scmp.eq.s32.totalorder %s34, 3
      %p181 = por %p179, %p180
      %p183 = scmp.ne.s32.totalorder %s168, %s182
      %p184 = scmp.eq.s32.totalorder %s34, 0
      %p185 = por %p183, %p184
      %s187 = sadd.s32 %s186, 1
      %p190 = scmp.eq.s32.totalorder %s28, 3
      %p191 = scmp.ne.s32.totalorder %s186, %s188
      %p192 = scmp.eq.s32.totalorder %s28, 0
      %p193 = por %p191, %p192
      %p194 = scmp.ne.s32.totalorder %s186, %s188
      %p195 = scmp.eq.s32.totalorder %s33, 3
      %p196 = por %p194, %p195
      %p197 = scmp.ne.s32.totalorder %s188, %s189
      %p198 = scmp.eq.s32.totalorder %s33, 0
      %p199 = por %p197, %p198
      %p200 = scmp.ne.s32.totalorder %s188, %s189
      %p201 = scmp.eq.s32.totalorder %s34, 3
      %p202 = por %p200, %p201
      %p204 = scmp.ne.s32.totalorder %s189, %s203
      %p205 = scmp.eq.s32.totalorder %s34, 0
      %p206 = por %p204, %p205
      %s207 = ssub.s32 %s35, %s47
      %s208 = ssub.s32 %s36, %s43
      %s209 = sor.u32 %s207, %s208
      %p210 = scmp.eq.s32.totalorder %s209, 0
      %s212 = sadd.s32 %s211, 1
      %s213 = scalar_select %p210, %s211, %s212
      %p216 = pneg %p210
      %p217 = scmp.eq.s32.totalorder %s28, 3
      %p218 = por %p216, %p217
      %p219 = scmp.ne.s32.totalorder %s211, %s214
      %p220 = scmp.eq.s32.totalorder %s28, 0
      %p221 = por %p219, %p220
      %p222 = scmp.ne.s32.totalorder %s211, %s214
      %p223 = scmp.eq.s32.totalorder %s33, 3
      %p224 = por %p222, %p223
      %p225 = scmp.ne.s32.totalorder %s214, %s215
      %p226 = scmp.eq.s32.totalorder %s33, 0
      %p227 = por %p225, %p226
      %p228 = scmp.ne.s32.totalorder %s214, %s215
      %p229 = scmp.eq.s32.totalorder %s34, 3
      %p230 = por %p228, %p229
      %p232 = scmp.ne.s32.totalorder %s215, %s231
      %p233 = scmp.eq.s32.totalorder %s34, 0
      %p234 = por %p232, %p233
      %s235 = ssub.s32 %s35, %s47
      %s236 = ssub.s32 %s36, %s43
      %s237 = sor.u32 %s235, %s236
      %p238 = scmp.eq.s32.totalorder %s237, 0
      %s240 = sadd.s32 %s239, 1
      %s241 = scalar_select %p238, %s239, %s240
      %p244 = pneg %p238
      %p245 = scmp.eq.s32.totalorder %s28, 3
      %p246 = por %p244, %p245
      %p247 = scmp.ne.s32.totalorder %s239, %s242
      %p248 = scmp.eq.s32.totalorder %s28, 0
      %p249 = por %p247, %p248
      %p250 = scmp.ne.s32.totalorder %s239, %s242
      %p251 = scmp.eq.s32.totalorder %s33, 3
      %p252 = por %p250, %p251
      %p253 = scmp.ne.s32.totalorder %s242, %s243
      %p254 = scmp.eq.s32.totalorder %s33, 0
      %p255 = por %p253, %p254
      %p256 = scmp.ne.s32.totalorder %s242, %s243
      %p257 = scmp.eq.s32.totalorder %s34, 3
      %p258 = por %p256, %p257
      %p260 = scmp.ne.s32.totalorder %s243, %s259
      %p261 = scmp.eq.s32.totalorder %s34, 0
      %p262 = por %p260, %p261
      %p263 = scmp.le.s32.totalorder 1, %s28
      %p264 = scmp.lt.s32.totalorder %s28, 5
      %p265 = pnand %p263, %p264
      %p266 = pneg %p265
      // Predicated region
      $region9: #{tpu_custom_call.1} parent=5 // pred_check
        _
      $region10: #{tpu_custom_call.1} parent=5 // pred_check_branch
        %268 = sbr.rel (%p265) target = $region12
      $region11: #{tpu_custom_call.1} parent=5 // pred_region
        %s269 = ssub.s32 %s28, 1
        // Predicated region
        $region13: #{tpu_custom_call.1} parent=11 // pred_check
          %p270 = pneg %p61
        $region14: #{tpu_custom_call.1} parent=11 // pred_check_branch
          %272 = sbr.rel (%p270) target = $region16
        $region15: #{tpu_custom_call.1} parent=11 // pred_region
          _
        $region16: #{tpu_custom_call.1} parent=11 // pred_fallthru
          _
        // Predicated region
        $region17: #{tpu_custom_call.1} parent=11 // pred_check
          %p273 = pneg %p136
        $region18: #{tpu_custom_call.1} parent=11 // pred_check_branch
          %275 = sbr.rel (%p273) target = $region20
        $region19: #{tpu_custom_call.1} parent=11 // pred_region
          %s277 = ssub.s32 32, 32
          %278 = vsyncadd [#allocation7], %s277
          %s280 = sshll.u32 [#allocation8], 4
          %s281 = int_to_ptr.vmem [resolvable:$true] %s280
          %283 = dma.hbm_to_vmem [thread:$0]  %s3, 32, %s281, [#allocation7]
        $region20: #{tpu_custom_call.1} parent=11 // pred_fallthru
          _
        // Predicated region
        $region21: #{tpu_custom_call.1} parent=11 // pred_check
          %p284 = pneg %p157
        $region22: #{tpu_custom_call.1} parent=11 // pred_check_branch
          %286 = sbr.rel (%p284) target = $region24
        $region23: #{tpu_custom_call.1} parent=11 // pred_region
          _
        $region24: #{tpu_custom_call.1} parent=11 // pred_fallthru
          _
        // Predicated region
        $region25: #{tpu_custom_call.1} parent=11 // pred_check
          %p287 = pneg %p178
        $region26: #{tpu_custom_call.1} parent=11 // pred_check_branch
          %289 = sbr.rel (%p287) target = $region28
        $region27: #{tpu_custom_call.1} parent=11 // pred_region
          _
        $region28: #{tpu_custom_call.1} parent=11 // pred_fallthru
          _
        // Predicated region
        $region29: #{tpu_custom_call.1} parent=11 // pred_check
          %p290 = pneg %p199
        $region30: #{tpu_custom_call.1} parent=11 // pred_check_branch
          %292 = sbr.rel (%p290) target = $region32
        $region31: #{tpu_custom_call.1} parent=11 // pred_region
          _
        $region32: #{tpu_custom_call.1} parent=11 // pred_fallthru
          _
      $region12: #{tpu_custom_call.1} parent=5 // pred_fallthru
        _
      %p293 = scmp.lt.s32.totalorder %s28, 4
      // Predicated region
      $region33: #{tpu_custom_call.1} parent=5 // pred_check
        %p294 = pneg %p293
      $region34: #{tpu_custom_call.1} parent=5 // pred_check_branch
        %296 = sbr.rel (%p294) target = $region36
      $region35: #{tpu_custom_call.1} parent=5 // pred_region
        // Predicated region
        $region37: #{tpu_custom_call.1} parent=35 // pred_check
          %p297 = pneg %p83
        $region38: #{tpu_custom_call.1} parent=35 // pred_check_branch
          %299 = sbr.rel (%p297) target = $region40
        $region39: #{tpu_custom_call.1} parent=35 // pred_region
          %s300 = sand.u32 %s73, 1
          %s301 = scalar_lea.sflag [#allocation4], %s300
          %s302 = sand.u32 %s73, 1
          %s303 = smul.addr %s302, 64
          %s304 = scalar_lea.vmem [#allocation3], %s303
          %s305 = smul.u32 4, %s36
          %s307 = ssub.s32 1024, 1024
          %308 = vsyncadd %s301, %s307
          %s309 = smul.addr %s35, 16
          %s310 = sadd.s32 %s305, %s309
          %s311 = smul.addr %s310, 128
          %s312 = scalar_lea.hbm %s1, %s311
          %s313 = sshll.u32 %s304, 4
          %s314 = int_to_ptr.vmem [resolvable:$true] %s313
          %319 = dma.hbm_to_vmem [thread:$0]  %s312, 1024, %s314, %s301, 1024, 512, 32
        $region40: #{tpu_custom_call.1} parent=35 // pred_fallthru
          _
        // Predicated region
        $region41: #{tpu_custom_call.1} parent=35 // pred_check
          %p320 = pneg %p109
        $region42: #{tpu_custom_call.1} parent=35 // pred_check_branch
          %322 = sbr.rel (%p320) target = $region44
        $region43: #{tpu_custom_call.1} parent=35 // pred_region
          %s323 = sand.u32 %s28, 1
          %s324 = scalar_lea.sflag [#allocation7], %s323
          %s325 = sand.u32 %s99, 1
          %s326 = smul.addr %s325, 128
          %s327 = scalar_lea.vmem [#allocation6], %s326
          %s329 = ssub.s32 2048, 2048
          %330 = vsyncadd %s324, %s329
          %s331 = smul.addr %s35, 16
          %s332 = smul.addr %s331, 128
          %s333 = scalar_lea.hbm %s2, %s332
          %s334 = sshll.u32 %s327, 4
          %s335 = int_to_ptr.vmem [resolvable:$true] %s334
          %340 = dma.hbm_to_vmem [thread:$0]  %s333, 2048, %s335, %s324, 1024, 1024, 64
        $region44: #{tpu_custom_call.1} parent=35 // pred_fallthru
          _
      $region36: #{tpu_custom_call.1} parent=5 // pred_fallthru
        _
      %p341 = scmp.le.s32.totalorder 1, %s28
      %p342 = scmp.lt.s32.totalorder %s28, 5
      %p343 = pnand %p341, %p342
      %p344 = pneg %p343
      // Predicated region
      $region45: #{tpu_custom_call.1} parent=5 // pred_check
        _
      $region46: #{tpu_custom_call.1} parent=5 // pred_check_branch
        %346 = sbr.rel (%p343) target = $region48
      $region47: #{tpu_custom_call.1} parent=5 // pred_region
        %s347 = ssub.s32 %s28, 1
        %s348 = sand.u32 %s76, 1
        %s349 = scalar_lea.sflag [#allocation4], %s348
        %s350 = sand.u32 %s76, 1
        %s351 = smul.addr %s350, 64
        %s352 = scalar_lea.vmem [#allocation3], %s351
        // Predicated region
        $region49: #{tpu_custom_call.1} parent=47 // pred_check
          %p353 = pneg %p89
        $region50: #{tpu_custom_call.1} parent=47 // pred_check_branch
          %355 = sbr.rel (%p353) target = $region52
        $region51: #{tpu_custom_call.1} parent=47 // pred_region
          %356 = dma.done %s349, 1024
        $region52: #{tpu_custom_call.1} parent=47 // pred_fallthru
          _
        %s357 = sand.u32 %s33, 1
        %s358 = scalar_lea.sflag [#allocation7], %s357
        %s359 = sand.u32 %s102, 1
        %s360 = smul.addr %s359, 128
        %s361 = scalar_lea.vmem [#allocation6], %s360
        // Predicated region
        $region53: #{tpu_custom_call.1} parent=47 // pred_check
          %p362 = pneg %p115
        $region54: #{tpu_custom_call.1} parent=47 // pred_check_branch
          %364 = sbr.rel (%p362) target = $region56
        $region55: #{tpu_custom_call.1} parent=47 // pred_region
          %365 = dma.done %s358, 2048
        $region56: #{tpu_custom_call.1} parent=47 // pred_fallthru
          _
        // Predicated region
        $region57: #{tpu_custom_call.1} parent=47 // pred_check
          %p366 = pneg %p136
        $region58: #{tpu_custom_call.1} parent=47 // pred_check_branch
          %368 = sbr.rel (%p366) target = $region60
        $region59: #{tpu_custom_call.1} parent=47 // pred_region
          %369 = dma.done [#allocation7], 32
        $region60: #{tpu_custom_call.1} parent=47 // pred_fallthru
          _
        %p370 = pneg %p61
        %p371 = pneg %p58
        %s372 = sand.u32 %s76, 1
        %s373 = scalar_lea.sflag [#allocation4], %s372
        %s374 = sand.u32 %s76, 1
        %s375 = smul.addr %s374, 64
        %s376 = scalar_lea.vmem [#allocation3], %s375
        %p377 = pneg %p89
        %p378 = pneg %p86
        %s379 = sand.u32 %s33, 1
        %s380 = scalar_lea.sflag [#allocation7], %s379
        %s381 = sand.u32 %s102, 1
        %s382 = smul.addr %s381, 128
        %s383 = scalar_lea.vmem [#allocation6], %s382
        %p384 = pneg %p115
        %p385 = pneg %p112
        %p386 = pneg %p136
        %p387 = pneg %p133
        %p388 = pneg %p157
        %p389 = pneg %p154
        %p390 = pneg %p178
        %p391 = pneg %p175
        %p392 = pneg %p199
        %p393 = pneg %p196
        %p394 = pneg %p227
        %p395 = pneg %p224
        %s396 = sand.u32 %s214, 1
        %s397 = scalar_lea.sflag [#allocation5], %s396
        %s398 = sand.u32 %s214, 1
        %s399 = smul.addr %s398, 64
        %s400 = scalar_lea.vmem [#allocation9], %s399
        %p401 = pneg %p255
        %p402 = pneg %p252
        %s403 = sand.u32 %s242, 1
        %s404 = scalar_lea.sflag [#allocation11], %s403
        %s405 = sand.u32 %s242, 1
        %s406 = smul.addr %s405, 2048
        %s407 = scalar_lea.vmem [#allocation10], %s406
        %s408 = smul.u32 4, %s38
        %s409 = smul.u32 4, %s38
        %s410 = smul.u32 64, %s38
        %v411 = vld [vmem:[%s352] sm:$0xff]
        %v412 = vld [vmem:[%s352 + $0x8] sm:$0xff]
        %v413 = vld [vmem:[%s352 + $0x10] sm:$0xff]
        %v414 = vld [vmem:[%s352 + $0x18] sm:$0xff]
        %v415 = vld [vmem:[%s352 + $0x20] sm:$0xff]
        %v416 = vld [vmem:[%s352 + $0x28] sm:$0xff]
        %v417 = vld [vmem:[%s352 + $0x30] sm:$0xff]
        %v418 = vld [vmem:[%s352 + $0x38] sm:$0xff]
        %v419 = vld [vmem:[#allocation8] sm:$0x3]
        %v420 = vld [vmem:[%s4] sm:$0x3]
        %422 = vset.pattern.permute.xlu0 0
        %423 = vperm.xlu0 %422, %v420
        %v424 = vpop.permute.xlu0 %423
        %vm426 = vcmask 130048
        %v428 = vsel %vm426, %v419, 0
        %430 = vmatprep.subr.mxu0 0.0
        %431 = vmatpush1.msra.mxu0 0.0
        %432 = vmatprep.subr.mxu0 0.0
        %433 = vmatpush1.msra.mxu0 0.0
        %434 = vmatprep.subr.mxu0 0.0
        %435 = vmatpush1.msra.mxu0 0.0
        %436 = vmatprep.subr.mxu0 0.0
        %437 = vmatpush1.msra.mxu0 0.0
        %438 = vmatprep.subr.mxu0 0.0
        %439 = vmatpush1.msra.mxu0 0.0
        %440 = vmatprep.subr.mxu0 0.0
        %441 = vmatpush1.msra.mxu0 0.0
        %442 = vmatprep.subr.mxu0 0.0
        %443 = vmatpush1.msra.mxu0 0.0
        %444 = vmatprep.subr.mxu0 0.0
        %445 = vmatpush1.msra.mxu0 0.0
        %446 = vmatprep.subr.mxu0 0.0
        %447 = vmatpush1.msra.mxu0 0.0
        %448 = vmatprep.subr.mxu0 0.0
        %449 = vmatpush1.msra.mxu0 0.0
        %450 = vmatprep.subr.mxu0 0.0
        %451 = vmatpush1.msra.mxu0 0.0
        %452 = vmatprep.subr.mxu0 0.0
        %453 = vmatpush1.msra.mxu0 0.0
        %454 = vmatprep.subr.mxu0 0.0
        %455 = vmatpush1.msra.mxu0 0.0
        %456 = vmatprep.subr.mxu0 0.0
        %457 = vmatpush1.msra.mxu0 0.0
        %458 = vmatprep.subr.mxu0 %v416
        %459 = vmatpush1.msra.mxu0 %v415
        %460 = vmatprep.subr.mxu0 %v412
        %461 = vmatpush1.msra.mxu0 %v411
        %462 = vmatprep.subr.mxu0 0.0
        %463 = vmatpush2.msra.mxu0 0.0
        %464 = vmatprep.subr.mxu0 0.0
        %465 = vmatpush2.msra.mxu0 0.0
        %466 = vmatprep.subr.mxu0 0.0
        %467 = vmatpush2.msra.mxu0 0.0
        %468 = vmatprep.subr.mxu0 0.0
        %469 = vmatpush2.msra.mxu0 0.0
        %470 = vmatprep.subr.mxu0 0.0
        %471 = vmatpush2.msra.mxu0 0.0
        %472 = vmatprep.subr.mxu0 0.0
        %473 = vmatpush2.msra.mxu0 0.0
        %474 = vmatprep.subr.mxu0 0.0
        %475 = vmatpush2.msra.mxu0 0.0
        %476 = vmatprep.subr.mxu0 0.0
        %477 = vmatpush2.msra.mxu0 0.0
        %478 = vmatprep.subr.mxu0 0.0
        %479 = vmatpush2.msra.mxu0 0.0
        %480 = vmatprep.subr.mxu0 0.0
        %481 = vmatpush2.msra.mxu0 0.0
        %482 = vmatprep.subr.mxu0 0.0
        %483 = vmatpush2.msra.mxu0 0.0
        %484 = vmatprep.subr.mxu0 0.0
        %485 = vmatpush2.msra.mxu0 0.0
        %486 = vmatprep.subr.mxu0 0.0
        %487 = vmatpush2.msra.mxu0 0.0
        %488 = vmatprep.subr.mxu0 0.0
        %489 = vmatpush2.msra.mxu0 0.0
        %490 = vmatprep.subr.mxu0 0.0
        %491 = vmatpush2.msra.mxu0 0.0
        %492 = vmatprep.subr.mxu0 0.0
        %493 = vmatpush2.msra.mxu0 0.0
        %494 = vmatprep.mubr.f32.mxu0 0.0
        %495 = vmatmul.mubr.f32.gmra.mxu0 %v428
        %v496 = vpop.f32.mrf.mxu0
        %v497 = vadd.f32 %v424, %v496
        %v498 = vpop.f32.mrf.mxu0
        %v499 = vadd.f32 %v424, %v498
        %500 = vdwg.mxu0
        %501 = vmatprep.subr.mxu0 0.0
        %502 = vmatpush1.msra.mxu0 0.0
        %503 = vmatprep.subr.mxu0 0.0
        %504 = vmatpush1.msra.mxu0 0.0
        %505 = vmatprep.subr.mxu0 0.0
        %506 = vmatpush1.msra.mxu0 0.0
        %507 = vmatprep.subr.mxu0 0.0
        %508 = vmatpush1.msra.mxu0 0.0
        %509 = vmatprep.subr.mxu0 0.0
        %510 = vmatpush1.msra.mxu0 0.0
        %511 = vmatprep.subr.mxu0 0.0
        %512 = vmatpush1.msra.mxu0 0.0
        %513 = vmatprep.subr.mxu0 0.0
        %514 = vmatpush1.msra.mxu0 0.0
        %515 = vmatprep.subr.mxu0 0.0
        %516 = vmatpush1.msra.mxu0 0.0
        %517 = vmatprep.subr.mxu0 0.0
        %518 = vmatpush1.msra.mxu0 0.0
        %519 = vmatprep.subr.mxu0 0.0
        %520 = vmatpush1.msra.mxu0 0.0
        %521 = vmatprep.subr.mxu0 0.0
        %522 = vmatpush1.msra.mxu0 0.0
        %523 = vmatprep.subr.mxu0 0.0
        %524 = vmatpush1.msra.mxu0 0.0
        %525 = vmatprep.subr.mxu0 0.0
        %526 = vmatpush1.msra.mxu0 0.0
        %527 = vmatprep.subr.mxu0 0.0
        %528 = vmatpush1.msra.mxu0 0.0
        %529 = vmatprep.subr.mxu0 %v418
        %530 = vmatpush1.msra.mxu0 %v417
        %531 = vmatprep.subr.mxu0 %v414
        %532 = vmatpush1.msra.mxu0 %v413
        %533 = vmatprep.subr.mxu0 0.0
        %534 = vmatpush2.msra.mxu0 0.0
        %535 = vmatprep.subr.mxu0 0.0
        %536 = vmatpush2.msra.mxu0 0.0
        %537 = vmatprep.subr.mxu0 0.0
        %538 = vmatpush2.msra.mxu0 0.0
        %539 = vmatprep.subr.mxu0 0.0
        %540 = vmatpush2.msra.mxu0 0.0
        %541 = vmatprep.subr.mxu0 0.0
        %542 = vmatpush2.msra.mxu0 0.0
        %543 = vmatprep.subr.mxu0 0.0
        %544 = vmatpush2.msra.mxu0 0.0
        %545 = vmatprep.subr.mxu0 0.0
        %546 = vmatpush2.msra.mxu0 0.0
        %547 = vmatprep.subr.mxu0 0.0
        %548 = vmatpush2.msra.mxu0 0.0
        %549 = vmatprep.subr.mxu0 0.0
        %550 = vmatpush2.msra.mxu0 0.0
        %551 = vmatprep.subr.mxu0 0.0
        %552 = vmatpush2.msra.mxu0 0.0
        %553 = vmatprep.subr.mxu0 0.0
        %554 = vmatpush2.msra.mxu0 0.0
        %555 = vmatprep.subr.mxu0 0.0
        %556 = vmatpush2.msra.mxu0 0.0
        %557 = vmatprep.subr.mxu0 0.0
        %558 = vmatpush2.msra.mxu0 0.0
        %559 = vmatprep.subr.mxu0 0.0
        %560 = vmatpush2.msra.mxu0 0.0
        %561 = vmatprep.subr.mxu0 0.0
        %562 = vmatpush2.msra.mxu0 0.0
        %563 = vmatprep.subr.mxu0 0.0
        %564 = vmatpush2.msra.mxu0 0.0
        %565 = vmatprep.mubr.f32.mxu0 0.0
        %566 = vmatmul.mubr.f32.gmra.mxu0 %v428
        %v567 = vpop.f32.mrf.mxu0
        %v568 = vadd.f32 %v424, %v567
        %v569 = vpop.f32.mrf.mxu0
        %v570 = vadd.f32 %v424, %v569
        %571 = vdwg.mxu0
        %v572 = vmax.f32 %v497, 0.0
        %v573 = vmax.f32 %v499, 0.0
        %v574 = vmax.f32 %v568, 0.0
        %v575 = vmax.f32 %v570, 0.0
        %v576 = vld [vmem:[%s5] sm:$0xff]
        %v577 = vld [vmem:[%s5 + $0x8] sm:$0xff]
        %v578 = vld [vmem:[%s5 + $0x10] sm:$0x3]
        %v579 = vld [vmem:[%s361] sm:$0xff]
        %v580 = vld [vmem:[%s361 + $0x8] sm:$0xff]
        %v581 = vld [vmem:[%s361 + $0x10] sm:$0xff]
        %v582 = vld [vmem:[%s361 + $0x18] sm:$0xff]
        %v583 = vld [vmem:[%s361 + $0x20] sm:$0xff]
        %v584 = vld [vmem:[%s361 + $0x28] sm:$0xff]
        %v585 = vld [vmem:[%s361 + $0x30] sm:$0xff]
        %v586 = vld [vmem:[%s361 + $0x38] sm:$0xff]
        %v587 = vld [vmem:[%s361 + $0x40] sm:$0xff]
        %v588 = vld [vmem:[%s361 + $0x48] sm:$0xff]
        %v589 = vld [vmem:[%s361 + $0x50] sm:$0xff]
        %v590 = vld [vmem:[%s361 + $0x58] sm:$0xff]
        %v591 = vld [vmem:[%s361 + $0x60] sm:$0xff]
        %v592 = vld [vmem:[%s361 + $0x68] sm:$0xff]
        %v593 = vld [vmem:[%s361 + $0x70] sm:$0xff]
        %v594 = vld [vmem:[%s361 + $0x78] sm:$0xff]
        %v595 = vld [vmem:[%s6] sm:$0xff]
        %v596 = vld [vmem:[%s6 + $0x8] sm:$0xff]
        %v597 = vld [vmem:[%s6 + $0x10] sm:$0x3]
        %599 = vset.pattern.permute.xlu0 0
        %600 = vperm.xlu0 %599, %v595
        %v601 = vpop.permute.xlu0 %600
        %604 = vset.pattern.permute.xlu0 0
        %605 = vperm.xlu0 %604, %v596
        %v606 = vpop.permute.xlu0 %605
        %609 = vset.pattern.permute.xlu0 0
        %610 = vperm.xlu0 %609, %v597
        %v611 = vpop.permute.xlu0 %610
        %v614 = vsel %vm426, %v576, 0
        %v617 = vsel %vm426, %v577, 0
        %v620 = vsel %vm426, %v578, 0
        %622 = vmatprep.subr.mxu0 0.0
        %623 = vmatpush1.msra.mxu0 0.0
        %624 = vmatprep.subr.mxu0 0.0
        %625 = vmatpush1.msra.mxu0 0.0
        %626 = vmatprep.subr.mxu0 0.0
        %627 = vmatpush1.msra.mxu0 0.0
        %628 = vmatprep.subr.mxu0 0.0
        %629 = vmatpush1.msra.mxu0 0.0
        %630 = vmatprep.subr.mxu0 0.0
        %631 = vmatpush1.msra.mxu0 0.0
        %632 = vmatprep.subr.mxu0 0.0
        %633 = vmatpush1.msra.mxu0 0.0
        %634 = vmatprep.subr.mxu0 0.0
        %635 = vmatpush1.msra.mxu0 0.0
        %636 = vmatprep.subr.mxu0 0.0
        %637 = vmatpush1.msra.mxu0 0.0
        %638 = vmatprep.subr.mxu0 0.0
        %639 = vmatpush1.msra.mxu0 0.0
        %640 = vmatprep.subr.mxu0 0.0
        %641 = vmatpush1.msra.mxu0 0.0
        %642 = vmatprep.subr.mxu0 0.0
        %643 = vmatpush1.msra.mxu0 0.0
        %644 = vmatprep.subr.mxu0 0.0
        %645 = vmatpush1.msra.mxu0 0.0
        %646 = vmatprep.subr.mxu0 0.0
        %647 = vmatpush1.msra.mxu0 0.0
        %648 = vmatprep.subr.mxu0 0.0
        %649 = vmatpush1.msra.mxu0 0.0
        %650 = vmatprep.subr.mxu0 %v588
        %651 = vmatpush1.msra.mxu0 %v587
        %652 = vmatprep.subr.mxu0 %v580
        %653 = vmatpush1.msra.mxu0 %v579
        %654 = vmatprep.subr.mxu0 0.0
        %655 = vmatpush2.msra.mxu0 0.0
        %656 = vmatprep.subr.mxu0 0.0
        %657 = vmatpush2.msra.mxu0 0.0
        %658 = vmatprep.subr.mxu0 0.0
        %659 = vmatpush2.msra.mxu0 0.0
        %660 = vmatprep.subr.mxu0 0.0
        %661 = vmatpush2.msra.mxu0 0.0
        %662 = vmatprep.subr.mxu0 0.0
        %663 = vmatpush2.msra.mxu0 0.0
        %664 = vmatprep.subr.mxu0 0.0
        %665 = vmatpush2.msra.mxu0 0.0
        %666 = vmatprep.subr.mxu0 0.0
        %667 = vmatpush2.msra.mxu0 0.0
        %668 = vmatprep.subr.mxu0 0.0
        %669 = vmatpush2.msra.mxu0 0.0
        %670 = vmatprep.subr.mxu0 0.0
        %671 = vmatpush2.msra.mxu0 0.0
        %672 = vmatprep.subr.mxu0 0.0
        %673 = vmatpush2.msra.mxu0 0.0
        %674 = vmatprep.subr.mxu0 0.0
        %675 = vmatpush2.msra.mxu0 0.0
        %676 = vmatprep.subr.mxu0 0.0
        %677 = vmatpush2.msra.mxu0 0.0
        %678 = vmatprep.subr.mxu0 0.0
        %679 = vmatpush2.msra.mxu0 0.0
        %680 = vmatprep.subr.mxu0 0.0
        %681 = vmatpush2.msra.mxu0 0.0
        %682 = vmatprep.subr.mxu0 0.0
        %683 = vmatpush2.msra.mxu0 0.0
        %684 = vmatprep.subr.mxu0 0.0
        %685 = vmatpush2.msra.mxu0 0.0
        %686 = vmatprep.mubr.f32.mxu0 0.0
        %687 = vmatmul.mubr.f32.gmra.mxu0 %v614
        %v688 = vpop.f32.mrf.mxu0
        %v689 = vadd.f32 %v601, %v688
        %v690 = vpop.f32.mrf.mxu0
        %v691 = vadd.f32 %v601, %v690
        %692 = vmatprep.mubr.f32.mxu0 0.0
        %693 = vmatmul.mubr.f32.gmra.mxu0 %v617
        %v694 = vpop.f32.mrf.mxu0
        %v695 = vadd.f32 %v606, %v694
        %v696 = vpop.f32.mrf.mxu0
        %v697 = vadd.f32 %v606, %v696
        %698 = vmatprep.mubr.f32.mxu0 0.0
        %699 = vmatmul.mubr.f32.gmra.mxu0 %v620
        %v700 = vpop.f32.mrf.mxu0
        %v701 = vadd.f32 %v611, %v700
        %v702 = vpop.f32.mrf.mxu0
        %v703 = vadd.f32 %v611, %v702
        %704 = vdwg.mxu0
        %705 = vmatprep.subr.mxu0 0.0
        %706 = vmatpush1.msra.mxu0 0.0
        %707 = vmatprep.subr.mxu0 0.0
        %708 = vmatpush1.msra.mxu0 0.0
        %709 = vmatprep.subr.mxu0 0.0
        %710 = vmatpush1.msra.mxu0 0.0
        %711 = vmatprep.subr.mxu0 0.0
        %712 = vmatpush1.msra.mxu0 0.0
        %713 = vmatprep.subr.mxu0 0.0
        %714 = vmatpush1.msra.mxu0 0.0
        %715 = vmatprep.subr.mxu0 0.0
        %716 = vmatpush1.msra.mxu0 0.0
        %717 = vmatprep.subr.mxu0 0.0
        %718 = vmatpush1.msra.mxu0 0.0
        %719 = vmatprep.subr.mxu0 0.0
        %720 = vmatpush1.msra.mxu0 0.0
        %721 = vmatprep.subr.mxu0 0.0
        %722 = vmatpush1.msra.mxu0 0.0
        %723 = vmatprep.subr.mxu0 0.0
        %724 = vmatpush1.msra.mxu0 0.0
        %725 = vmatprep.subr.mxu0 0.0
        %726 = vmatpush1.msra.mxu0 0.0
        %727 = vmatprep.subr.mxu0 0.0
        %728 = vmatpush1.msra.mxu0 0.0
        %729 = vmatprep.subr.mxu0 0.0
        %730 = vmatpush1.msra.mxu0 0.0
        %731 = vmatprep.subr.mxu0 0.0
        %732 = vmatpush1.msra.mxu0 0.0
        %733 = vmatprep.subr.mxu0 %v590
        %734 = vmatpush1.msra.mxu0 %v589
        %735 = vmatprep.subr.mxu0 %v582
        %736 = vmatpush1.msra.mxu0 %v581
        %737 = vmatprep.subr.mxu0 0.0
        %738 = vmatpush2.msra.mxu0 0.0
        %739 = vmatprep.subr.mxu0 0.0
        %740 = vmatpush2.msra.mxu0 0.0
        %741 = vmatprep.subr.mxu0 0.0
        %742 = vmatpush2.msra.mxu0 0.0
        %743 = vmatprep.subr.mxu0 0.0
        %744 = vmatpush2.msra.mxu0 0.0
        %745 = vmatprep.subr.mxu0 0.0
        %746 = vmatpush2.msra.mxu0 0.0
        %747 = vmatprep.subr.mxu0 0.0
        %748 = vmatpush2.msra.mxu0 0.0
        %749 = vmatprep.subr.mxu0 0.0
        %750 = vmatpush2.msra.mxu0 0.0
        %751 = vmatprep.subr.mxu0 0.0
        %752 = vmatpush2.msra.mxu0 0.0
        %753 = vmatprep.subr.mxu0 0.0
        %754 = vmatpush2.msra.mxu0 0.0
        %755 = vmatprep.subr.mxu0 0.0
        %756 = vmatpush2.msra.mxu0 0.0
        %757 = vmatprep.subr.mxu0 0.0
        %758 = vmatpush2.msra.mxu0 0.0
        %759 = vmatprep.subr.mxu0 0.0
        %760 = vmatpush2.msra.mxu0 0.0
        %761 = vmatprep.subr.mxu0 0.0
        %762 = vmatpush2.msra.mxu0 0.0
        %763 = vmatprep.subr.mxu0 0.0
        %764 = vmatpush2.msra.mxu0 0.0
        %765 = vmatprep.subr.mxu0 0.0
        %766 = vmatpush2.msra.mxu0 0.0
        %767 = vmatprep.subr.mxu0 0.0
        %768 = vmatpush2.msra.mxu0 0.0
        %769 = vmatprep.mubr.f32.mxu0 0.0
        %770 = vmatmul.mubr.f32.gmra.mxu0 %v614
        %v771 = vpop.f32.mrf.mxu0
        %v772 = vadd.f32 %v601, %v771
        %v773 = vpop.f32.mrf.mxu0
        %v774 = vadd.f32 %v601, %v773
        %775 = vmatprep.mubr.f32.mxu0 0.0
        %776 = vmatmul.mubr.f32.gmra.mxu0 %v617
        %v777 = vpop.f32.mrf.mxu0
        %v778 = vadd.f32 %v606, %v777
        %v779 = vpop.f32.mrf.mxu0
        %v780 = vadd.f32 %v606, %v779
        %781 = vmatprep.mubr.f32.mxu0 0.0
        %782 = vmatmul.mubr.f32.gmra.mxu0 %v620
        %v783 = vpop.f32.mrf.mxu0
        %v784 = vadd.f32 %v611, %v783
        %v785 = vpop.f32.mrf.mxu0
        %v786 = vadd.f32 %v611, %v785
        %787 = vdwg.mxu0
        %788 = vmatprep.subr.mxu0 0.0
        %789 = vmatpush1.msra.mxu0 0.0
        %790 = vmatprep.subr.mxu0 0.0
        %791 = vmatpush1.msra.mxu0 0.0
        %792 = vmatprep.subr.mxu0 0.0
        %793 = vmatpush1.msra.mxu0 0.0
        %794 = vmatprep.subr.mxu0 0.0
        %795 = vmatpush1.msra.mxu0 0.0
        %796 = vmatprep.subr.mxu0 0.0
        %797 = vmatpush1.msra.mxu0 0.0
        %798 = vmatprep.subr.mxu0 0.0
        %799 = vmatpush1.msra.mxu0 0.0
        %800 = vmatprep.subr.mxu0 0.0
        %801 = vmatpush1.msra.mxu0 0.0
        %802 = vmatprep.subr.mxu0 0.0
        %803 = vmatpush1.msra.mxu0 0.0
        %804 = vmatprep.subr.mxu0 0.0
        %805 = vmatpush1.msra.mxu0 0.0
        %806 = vmatprep.subr.mxu0 0.0
        %807 = vmatpush1.msra.mxu0 0.0
        %808 = vmatprep.subr.mxu0 0.0
        %809 = vmatpush1.msra.mxu0 0.0
        %810 = vmatprep.subr.mxu0 0.0
        %811 = vmatpush1.msra.mxu0 0.0
        %812 = vmatprep.subr.mxu0 0.0
        %813 = vmatpush1.msra.mxu0 0.0
        %814 = vmatprep.subr.mxu0 0.0
        %815 = vmatpush1.msra.mxu0 0.0
        %816 = vmatprep.subr.mxu0 %v592
        %817 = vmatpush1.msra.mxu0 %v591
        %818 = vmatprep.subr.mxu0 %v584
        %819 = vmatpush1.msra.mxu0 %v583
        %820 = vmatprep.subr.mxu0 0.0
        %821 = vmatpush2.msra.mxu0 0.0
        %822 = vmatprep.subr.mxu0 0.0
        %823 = vmatpush2.msra.mxu0 0.0
        %824 = vmatprep.subr.mxu0 0.0
        %825 = vmatpush2.msra.mxu0 0.0
        %826 = vmatprep.subr.mxu0 0.0
        %827 = vmatpush2.msra.mxu0 0.0
        %828 = vmatprep.subr.mxu0 0.0
        %829 = vmatpush2.msra.mxu0 0.0
        %830 = vmatprep.subr.mxu0 0.0
        %831 = vmatpush2.msra.mxu0 0.0
        %832 = vmatprep.subr.mxu0 0.0
        %833 = vmatpush2.msra.mxu0 0.0
        %834 = vmatprep.subr.mxu0 0.0
        %835 = vmatpush2.msra.mxu0 0.0
        %836 = vmatprep.subr.mxu0 0.0
        %837 = vmatpush2.msra.mxu0 0.0
        %838 = vmatprep.subr.mxu0 0.0
        %839 = vmatpush2.msra.mxu0 0.0
        %840 = vmatprep.subr.mxu0 0.0
        %841 = vmatpush2.msra.mxu0 0.0
        %842 = vmatprep.subr.mxu0 0.0
        %843 = vmatpush2.msra.mxu0 0.0
        %844 = vmatprep.subr.mxu0 0.0
        %845 = vmatpush2.msra.mxu0 0.0
        %846 = vmatprep.subr.mxu0 0.0
        %847 = vmatpush2.msra.mxu0 0.0
        %848 = vmatprep.subr.mxu0 0.0
        %849 = vmatpush2.msra.mxu0 0.0
        %850 = vmatprep.subr.mxu0 0.0
        %851 = vmatpush2.msra.mxu0 0.0
        %852 = vmatprep.mubr.f32.mxu0 0.0
        %853 = vmatmul.mubr.f32.gmra.mxu0 %v614
        %v854 = vpop.f32.mrf.mxu0
        %v855 = vadd.f32 %v601, %v854
        %v856 = vpop.f32.mrf.mxu0
        %v857 = vadd.f32 %v601, %v856
        %858 = vmatprep.mubr.f32.mxu0 0.0
        %859 = vmatmul.mubr.f32.gmra.mxu0 %v617
        %v860 = vpop.f32.mrf.mxu0
        %v861 = vadd.f32 %v606, %v860
        %v862 = vpop.f32.mrf.mxu0
        %v863 = vadd.f32 %v606, %v862
        %864 = vmatprep.mubr.f32.mxu0 0.0
        %865 = vmatmul.mubr.f32.gmra.mxu0 %v620
        %v866 = vpop.f32.mrf.mxu0
        %v867 = vadd.f32 %v611, %v866
        %v868 = vpop.f32.mrf.mxu0
        %v869 = vadd.f32 %v611, %v868
        %870 = vdwg.mxu0
        %871 = vmatprep.subr.mxu0 0.0
        %872 = vmatpush1.msra.mxu0 0.0
        %873 = vmatprep.subr.mxu0 0.0
        %874 = vmatpush1.msra.mxu0 0.0
        %875 = vmatprep.subr.mxu0 0.0
        %876 = vmatpush1.msra.mxu0 0.0
        %877 = vmatprep.subr.mxu0 0.0
        %878 = vmatpush1.msra.mxu0 0.0
        %879 = vmatprep.subr.mxu0 0.0
        %880 = vmatpush1.msra.mxu0 0.0
        %881 = vmatprep.subr.mxu0 0.0
        %882 = vmatpush1.msra.mxu0 0.0
        %883 = vmatprep.subr.mxu0 0.0
        %884 = vmatpush1.msra.mxu0 0.0
        %885 = vmatprep.subr.mxu0 0.0
        %886 = vmatpush1.msra.mxu0 0.0
        %887 = vmatprep.subr.mxu0 0.0
        %888 = vmatpush1.msra.mxu0 0.0
        %889 = vmatprep.subr.mxu0 0.0
        %890 = vmatpush1.msra.mxu0 0.0
        %891 = vmatprep.subr.mxu0 0.0
        %892 = vmatpush1.msra.mxu0 0.0
        %893 = vmatprep.subr.mxu0 0.0
        %894 = vmatpush1.msra.mxu0 0.0
        %895 = vmatprep.subr.mxu0 0.0
        %896 = vmatpush1.msra.mxu0 0.0
        %897 = vmatprep.subr.mxu0 0.0
        %898 = vmatpush1.msra.mxu0 0.0
        %899 = vmatprep.subr.mxu0 %v594
        %900 = vmatpush1.msra.mxu0 %v593
        %901 = vmatprep.subr.mxu0 %v586
        %902 = vmatpush1.msra.mxu0 %v585
        %903 = vmatprep.subr.mxu0 0.0
        %904 = vmatpush2.msra.mxu0 0.0
        %905 = vmatprep.subr.mxu0 0.0
        %906 = vmatpush2.msra.mxu0 0.0
        %907 = vmatprep.subr.mxu0 0.0
        %908 = vmatpush2.msra.mxu0 0.0
        %909 = vmatprep.subr.mxu0 0.0
        %910 = vmatpush2.msra.mxu0 0.0
        %911 = vmatprep.subr.mxu0 0.0
        %912 = vmatpush2.msra.mxu0 0.0
        %913 = vmatprep.subr.mxu0 0.0
        %914 = vmatpush2.msra.mxu0 0.0
        %915 = vmatprep.subr.mxu0 0.0
        %916 = vmatpush2.msra.mxu0 0.0
        %917 = vmatprep.subr.mxu0 0.0
        %918 = vmatpush2.msra.mxu0 0.0
        %919 = vmatprep.subr.mxu0 0.0
        %920 = vmatpush2.msra.mxu0 0.0
        %921 = vmatprep.subr.mxu0 0.0
        %922 = vmatpush2.msra.mxu0 0.0
        %923 = vmatprep.subr.mxu0 0.0
        %924 = vmatpush2.msra.mxu0 0.0
        %925 = vmatprep.subr.mxu0 0.0
        %926 = vmatpush2.msra.mxu0 0.0
        %927 = vmatprep.subr.mxu0 0.0
        %928 = vmatpush2.msra.mxu0 0.0
        %929 = vmatprep.subr.mxu0 0.0
        %930 = vmatpush2.msra.mxu0 0.0
        %931 = vmatprep.subr.mxu0 0.0
        %932 = vmatpush2.msra.mxu0 0.0
        %933 = vmatprep.subr.mxu0 0.0
        %934 = vmatpush2.msra.mxu0 0.0
        %935 = vmatprep.mubr.f32.mxu0 0.0
        %936 = vmatmul.mubr.f32.gmra.mxu0 %v614
        %v937 = vpop.f32.mrf.mxu0
        %v938 = vadd.f32 %v601, %v937
        %v939 = vpop.f32.mrf.mxu0
        %v940 = vadd.f32 %v601, %v939
        %941 = vmatprep.mubr.f32.mxu0 0.0
        %942 = vmatmul.mubr.f32.gmra.mxu0 %v617
        %v943 = vpop.f32.mrf.mxu0
        %v944 = vadd.f32 %v606, %v943
        %v945 = vpop.f32.mrf.mxu0
        %v946 = vadd.f32 %v606, %v945
        %947 = vmatprep.mubr.f32.mxu0 0.0
        %948 = vmatmul.mubr.f32.gmra.mxu0 %v620
        %v949 = vpop.f32.mrf.mxu0
        %v950 = vadd.f32 %v611, %v949
        %v951 = vpop.f32.mrf.mxu0
        %v952 = vadd.f32 %v611, %v951
        %953 = vdwg.mxu0
        %v954 = vmax.f32 %v689, 0.0
        %v955 = vmax.f32 %v691, 0.0
        %v956 = vmax.f32 %v772, 0.0
        %v957 = vmax.f32 %v774, 0.0
        %v958 = vmax.f32 %v855, 0.0
        %v959 = vmax.f32 %v857, 0.0
        %v960 = vmax.f32 %v938, 0.0
        %v961 = vmax.f32 %v940, 0.0
        %v962 = vmax.f32 %v695, 0.0
        %v963 = vmax.f32 %v697, 0.0
        %v964 = vmax.f32 %v778, 0.0
        %v965 = vmax.f32 %v780, 0.0
        %v966 = vmax.f32 %v861, 0.0
        %v967 = vmax.f32 %v863, 0.0
        %v968 = vmax.f32 %v944, 0.0
        %v969 = vmax.f32 %v946, 0.0
        %v970 = vmax.f32 %v701, 0.0
        %v971 = vmax.f32 %v703, 0.0
        %v972 = vmax.f32 %v784, 0.0
        %v973 = vmax.f32 %v786, 0.0
        %v974 = vmax.f32 %v867, 0.0
        %v975 = vmax.f32 %v869, 0.0
        %v976 = vmax.f32 %v950, 0.0
        %v977 = vmax.f32 %v952, 0.0
        %978 = vxpose.xlu0.b32.start [1/16] %v572, 128
        %979 = vxpose.xlu0.b32.cont [2/16] 0.0, 128
        %980 = vxpose.xlu0.b32.cont [3/16] 0.0, 128
        %981 = vxpose.xlu0.b32.cont [4/16] 0.0, 128
        %982 = vxpose.xlu0.b32.cont [5/16] 0.0, 128
        %983 = vxpose.xlu0.b32.cont [6/16] 0.0, 128
        %984 = vxpose.xlu0.b32.cont [7/16] 0.0, 128
        %985 = vxpose.xlu0.b32.cont [8/16] 0.0, 128
        %986 = vxpose.xlu0.b32.cont [9/16] 0.0, 128
        %987 = vxpose.xlu0.b32.cont [10/16] 0.0, 128
        %988 = vxpose.xlu0.b32.cont [11/16] 0.0, 128
        %989 = vxpose.xlu0.b32.cont [12/16] 0.0, 128
        %990 = vxpose.xlu0.b32.cont [13/16] 0.0, 128
        %991 = vxpose.xlu0.b32.cont [14/16] 0.0, 128
        %992 = vxpose.xlu0.b32.cont [15/16] 0.0, 128
        %993 = vxpose.xlu0.b32.end [16/16] 0.0, 128
        %v994 = vpop.trf.xlu0
        %v995 = vpop.trf.xlu0
        %v996 = vpop.trf.xlu0
        %v997 = vpop.trf.xlu0
        %v998 = vpop.trf.xlu0
        %v999 = vpop.trf.xlu0
        %v1000 = vpop.trf.xlu0
        %v1001 = vpop.trf.xlu0
        %v1002 = vpop.trf.xlu0
        %v1003 = vpop.trf.xlu0
        %v1004 = vpop.trf.xlu0
        %v1005 = vpop.trf.xlu0
        %v1006 = vpop.trf.xlu0
        %v1007 = vpop.trf.xlu0
        %v1008 = vpop.trf.xlu0
        %v1009 = vpop.trf.xlu0
        %1010 = vxpose.xlu0.b32.start [1/16] %v573, 128
        %1011 = vxpose.xlu0.b32.cont [2/16] 0.0, 128
        %1012 = vxpose.xlu0.b32.cont [3/16] 0.0, 128
        %1013 = vxpose.xlu0.b32.cont [4/16] 0.0, 128
        %1014 = vxpose.xlu0.b32.cont [5/16] 0.0, 128
        %1015 = vxpose.xlu0.b32.cont [6/16] 0.0, 128
        %1016 = vxpose.xlu0.b32.cont [7/16] 0.0, 128
        %1017 = vxpose.xlu0.b32.cont [8/16] 0.0, 128
        %1018 = vxpose.xlu0.b32.cont [9/16] 0.0, 128
        %1019 = vxpose.xlu0.b32.cont [10/16] 0.0, 128
        %1020 = vxpose.xlu0.b32.cont [11/16] 0.0, 128
        %1021 = vxpose.xlu0.b32.cont [12/16] 0.0, 128
        %1022 = vxpose.xlu0.b32.cont [13/16] 0.0, 128
        %1023 = vxpose.xlu0.b32.cont [14/16] 0.0, 128
        %1024 = vxpose.xlu0.b32.cont [15/16] 0.0, 128
        %1025 = vxpose.xlu0.b32.end [16/16] 0.0, 128
        %v1026 = vpop.trf.xlu0
        %v1027 = vpop.trf.xlu0
        %v1028 = vpop.trf.xlu0
        %v1029 = vpop.trf.xlu0
        %v1030 = vpop.trf.xlu0
        %v1031 = vpop.trf.xlu0
        %v1032 = vpop.trf.xlu0
        %v1033 = vpop.trf.xlu0
        %v1034 = vpop.trf.xlu0
        %v1035 = vpop.trf.xlu0
        %v1036 = vpop.trf.xlu0
        %v1037 = vpop.trf.xlu0
        %v1038 = vpop.trf.xlu0
        %v1039 = vpop.trf.xlu0
        %v1040 = vpop.trf.xlu0
        %v1041 = vpop.trf.xlu0
        %1042 = vxpose.xlu0.b32.start [1/16] %v574, 128
        %1043 = vxpose.xlu0.b32.cont [2/16] 0.0, 128
        %1044 = vxpose.xlu0.b32.cont [3/16] 0.0, 128
        %1045 = vxpose.xlu0.b32.cont [4/16] 0.0, 128
        %1046 = vxpose.xlu0.b32.cont [5/16] 0.0, 128
        %1047 = vxpose.xlu0.b32.cont [6/16] 0.0, 128
        %1048 = vxpose.xlu0.b32.cont [7/16] 0.0, 128
        %1049 = vxpose.xlu0.b32.cont [8/16] 0.0, 128
        %1050 = vxpose.xlu0.b32.cont [9/16] 0.0, 128
        %1051 = vxpose.xlu0.b32.cont [10/16] 0.0, 128
        %1052 = vxpose.xlu0.b32.cont [11/16] 0.0, 128
        %1053 = vxpose.xlu0.b32.cont [12/16] 0.0, 128
        %1054 = vxpose.xlu0.b32.cont [13/16] 0.0, 128
        %1055 = vxpose.xlu0.b32.cont [14/16] 0.0, 128
        %1056 = vxpose.xlu0.b32.cont [15/16] 0.0, 128
        %1057 = vxpose.xlu0.b32.end [16/16] 0.0, 128
        %v1058 = vpop.trf.xlu0
        %v1059 = vpop.trf.xlu0
        %v1060 = vpop.trf.xlu0
        %v1061 = vpop.trf.xlu0
        %v1062 = vpop.trf.xlu0
        %v1063 = vpop.trf.xlu0
        %v1064 = vpop.trf.xlu0
        %v1065 = vpop.trf.xlu0
        %v1066 = vpop.trf.xlu0
        %v1067 = vpop.trf.xlu0
        %v1068 = vpop.trf.xlu0
        %v1069 = vpop.trf.xlu0
        %v1070 = vpop.trf.xlu0
        %v1071 = vpop.trf.xlu0
        %v1072 = vpop.trf.xlu0
        %v1073 = vpop.trf.xlu0
        %1074 = vxpose.xlu0.b32.start [1/16] %v575, 128
        %1075 = vxpose.xlu0.b32.cont [2/16] 0.0, 128
        %1076 = vxpose.xlu0.b32.cont [3/16] 0.0, 128
        %1077 = vxpose.xlu0.b32.cont [4/16] 0.0, 128
        %1078 = vxpose.xlu0.b32.cont [5/16] 0.0, 128
        %1079 = vxpose.xlu0.b32.cont [6/16] 0.0, 128
        %1080 = vxpose.xlu0.b32.cont [7/16] 0.0, 128
        %1081 = vxpose.xlu0.b32.cont [8/16] 0.0, 128
        %1082 = vxpose.xlu0.b32.cont [9/16] 0.0, 128
        %1083 = vxpose.xlu0.b32.cont [10/16] 0.0, 128
        %1084 = vxpose.xlu0.b32.cont [11/16] 0.0, 128
        %1085 = vxpose.xlu0.b32.cont [12/16] 0.0, 128
        %1086 = vxpose.xlu0.b32.cont [13/16] 0.0, 128
        %1087 = vxpose.xlu0.b32.cont [14/16] 0.0, 128
        %1088 = vxpose.xlu0.b32.cont [15/16] 0.0, 128
        %1089 = vxpose.xlu0.b32.end [16/16] 0.0, 128
        %v1090 = vpop.trf.xlu0
        %v1091 = vpop.trf.xlu0
        %v1092 = vpop.trf.xlu0
        %v1093 = vpop.trf.xlu0
        %v1094 = vpop.trf.xlu0
        %v1095 = vpop.trf.xlu0
        %v1096 = vpop.trf.xlu0
        %v1097 = vpop.trf.xlu0
        %v1098 = vpop.trf.xlu0
        %v1099 = vpop.trf.xlu0
        %v1100 = vpop.trf.xlu0
        %v1101 = vpop.trf.xlu0
        %v1102 = vpop.trf.xlu0
        %v1103 = vpop.trf.xlu0
        %v1104 = vpop.trf.xlu0
        %v1105 = vpop.trf.xlu0
        %vm1106 = vcmask 15360
        %v1108 = vsel %vm1106, %v994, 0
        %v1111 = vsel %vm1106, %v995, 0
        %v1114 = vsel %vm1106, %v996, 0
        %v1117 = vsel %vm1106, %v997, 0
        %v1120 = vsel %vm1106, %v998, 0
        %v1123 = vsel %vm1106, %v999, 0
        %v1126 = vsel %vm1106, %v1000, 0
        %v1129 = vsel %vm1106, %v1001, 0
        %v1132 = vsel %vm1106, %v1002, 0
        %v1135 = vsel %vm1106, %v1003, 0
        %v1138 = vsel %vm1106, %v1004, 0
        %v1141 = vsel %vm1106, %v1005, 0
        %v1144 = vsel %vm1106, %v1006, 0
        %v1147 = vsel %vm1106, %v1007, 0
        %v1150 = vsel %vm1106, %v1008, 0
        %v1153 = vsel %vm1106, %v1009, 0
        %v1156 = vsel %vm1106, %v1026, 0
        %v1159 = vsel %vm1106, %v1027, 0
        %v1162 = vsel %vm1106, %v1028, 0
        %v1165 = vsel %vm1106, %v1029, 0
        %v1168 = vsel %vm1106, %v1030, 0
        %v1171 = vsel %vm1106, %v1031, 0
        %v1174 = vsel %vm1106, %v1032, 0
        %v1177 = vsel %vm1106, %v1033, 0
        %v1180 = vsel %vm1106, %v1034, 0
        %v1183 = vsel %vm1106, %v1035, 0
        %v1186 = vsel %vm1106, %v1036, 0
        %v1189 = vsel %vm1106, %v1037, 0
        %v1192 = vsel %vm1106, %v1038, 0
        %v1195 = vsel %vm1106, %v1039, 0
        %v1198 = vsel %vm1106, %v1040, 0
        %v1201 = vsel %vm1106, %v1041, 0
        %v1204 = vsel %vm1106, %v1058, 0
        %v1207 = vsel %vm1106, %v1059, 0
        %v1210 = vsel %vm1106, %v1060, 0
        %v1213 = vsel %vm1106, %v1061, 0
        %v1216 = vsel %vm1106, %v1062, 0
        %v1219 = vsel %vm1106, %v1063, 0
        %v1222 = vsel %vm1106, %v1064, 0
        %v1225 = vsel %vm1106, %v1065, 0
        %v1228 = vsel %vm1106, %v1066, 0
        %v1231 = vsel %vm1106, %v1067, 0
        %v1234 = vsel %vm1106, %v1068, 0
        %v1237 = vsel %vm1106, %v1069, 0
        %v1240 = vsel %vm1106, %v1070, 0
        %v1243 = vsel %vm1106, %v1071, 0
        %v1246 = vsel %vm1106, %v1072, 0
        %v1249 = vsel %vm1106, %v1073, 0
        %v1252 = vsel %vm1106, %v1090, 0
        %v1255 = vsel %vm1106, %v1091, 0
        %v1258 = vsel %vm1106, %v1092, 0
        %v1261 = vsel %vm1106, %v1093, 0
        %v1264 = vsel %vm1106, %v1094, 0
        %v1267 = vsel %vm1106, %v1095, 0
        %v1270 = vsel %vm1106, %v1096, 0
        %v1273 = vsel %vm1106, %v1097, 0
        %v1276 = vsel %vm1106, %v1098, 0
        %v1279 = vsel %vm1106, %v1099, 0
        %v1282 = vsel %vm1106, %v1100, 0
        %v1285 = vsel %vm1106, %v1101, 0
        %v1288 = vsel %vm1106, %v1102, 0
        %v1291 = vsel %vm1106, %v1103, 0
        %v1294 = vsel %vm1106, %v1104, 0
        %v1297 = vsel %vm1106, %v1105, 0
        %vm1299 = vcmask 1041408
        %v1301 = vsel %vm1299, %v970, 0
        %v1304 = vsel %vm1299, %v971, 0
        %v1307 = vsel %vm1299, %v972, 0
        %v1310 = vsel %vm1299, %v973, 0
        %v1313 = vsel %vm1299, %v974, 0
        %v1316 = vsel %vm1299, %v975, 0
        %v1319 = vsel %vm1299, %v976, 0
        %v1322 = vsel %vm1299, %v977, 0
        %1324 = vmatprep.subr.mxu0 0.0
        %1325 = vmatpush1.msra.mxu0 0.0
        %1326 = vmatprep.subr.mxu0 0.0
        %1327 = vmatpush1.msra.mxu0 0.0
        %1328 = vmatprep.subr.mxu0 0.0
        %1329 = vmatpush1.msra.mxu0 0.0
        %1330 = vmatprep.subr.mxu0 0.0
        %1331 = vmatpush1.msra.mxu0 0.0
        %1332 = vmatprep.subr.mxu0 0.0
        %1333 = vmatpush1.msra.mxu0 0.0
        %1334 = vmatprep.subr.mxu0 0.0
        %1335 = vmatpush1.msra.mxu0 0.0
        %1336 = vmatprep.subr.mxu0 0.0
        %1337 = vmatpush1.msra.mxu0 0.0
        %1338 = vmatprep.subr.mxu0 0.0
        %1339 = vmatpush1.msra.mxu0 0.0
        %1340 = vmatprep.subr.mxu0 0.0
        %1341 = vmatpush1.msra.mxu0 0.0
        %1342 = vmatprep.subr.mxu0 0.0
        %1343 = vmatpush1.msra.mxu0 0.0
        %1344 = vmatprep.subr.mxu0 0.0
        %1345 = vmatpush1.msra.mxu0 0.0
        %1346 = vmatprep.subr.mxu0 0.0
        %1347 = vmatpush1.msra.mxu0 0.0
        %1348 = vmatprep.subr.mxu0 0.0
        %1349 = vmatpush1.msra.mxu0 0.0
        %1350 = vmatprep.subr.mxu0 0.0
        %1351 = vmatpush1.msra.mxu0 0.0
        %1352 = vmatprep.subr.mxu0 0.0
        %1353 = vmatpush1.msra.mxu0 0.0
        %1354 = vmatprep.subr.mxu0 %v1304
        %1355 = vmatpush1.msra.mxu0 %v1301
        %1356 = vmatprep.subr.mxu0 0.0
        %1357 = vmatpush2.msra.mxu0 0.0
        %1358 = vmatprep.subr.mxu0 0.0
        %1359 = vmatpush2.msra.mxu0 0.0
        %1360 = vmatprep.subr.mxu0 0.0
        %1361 = vmatpush2.msra.mxu0 0.0
        %1362 = vmatprep.subr.mxu0 0.0
        %1363 = vmatpush2.msra.mxu0 0.0
        %1364 = vmatprep.subr.mxu0 0.0
        %1365 = vmatpush2.msra.mxu0 0.0
        %1366 = vmatprep.subr.mxu0 0.0
        %1367 = vmatpush2.msra.mxu0 0.0
        %1368 = vmatprep.subr.mxu0 0.0
        %1369 = vmatpush2.msra.mxu0 0.0
        %1370 = vmatprep.subr.mxu0 0.0
        %1371 = vmatpush2.msra.mxu0 0.0
        %1372 = vmatprep.subr.mxu0 0.0
        %1373 = vmatpush2.msra.mxu0 0.0
        %1374 = vmatprep.subr.mxu0 0.0
        %1375 = vmatpush2.msra.mxu0 0.0
        %1376 = vmatprep.subr.mxu0 0.0
        %1377 = vmatpush2.msra.mxu0 0.0
        %1378 = vmatprep.subr.mxu0 0.0
        %1379 = vmatpush2.msra.mxu0 0.0
        %1380 = vmatprep.subr.mxu0 0.0
        %1381 = vmatpush2.msra.mxu0 0.0
        %1382 = vmatprep.subr.mxu0 0.0
        %1383 = vmatpush2.msra.mxu0 0.0
        %1384 = vmatprep.subr.mxu0 0.0
        %1385 = vmatpush2.msra.mxu0 0.0
        %1386 = vmatprep.subr.mxu0 0.0
        %1387 = vmatpush2.msra.mxu0 0.0
        %1388 = vmatprep.mubr.f32.mxu0 0.0
        %1389 = vmatmul.mubr.f32.gmra.mxu0 %v1108
        %v1390 = vpop.f32.mrf.mxu0
        %v1391 = vadd.f32 0.0, %v1390
        %v1392 = vpop.f32.mrf.mxu0
        %v1393 = vadd.f32 0.0, %v1392
        %1394 = vmatprep.mubr.f32.mxu0 0.0
        %1395 = vmatmul.mubr.f32.gmra.mxu0 %v1111
        %v1396 = vpop.f32.mrf.mxu0
        %v1397 = vadd.f32 0.0, %v1396
        %v1398 = vpop.f32.mrf.mxu0
        %v1399 = vadd.f32 0.0, %v1398
        %1400 = vmatprep.mubr.f32.mxu0 0.0
        %1401 = vmatmul.mubr.f32.gmra.mxu0 %v1114
        %v1402 = vpop.f32.mrf.mxu0
        %v1403 = vadd.f32 0.0, %v1402
        %v1404 = vpop.f32.mrf.mxu0
        %v1405 = vadd.f32 0.0, %v1404
        %1406 = vmatprep.mubr.f32.mxu0 0.0
        %1407 = vmatmul.mubr.f32.gmra.mxu0 %v1117
        %v1408 = vpop.f32.mrf.mxu0
        %v1409 = vadd.f32 0.0, %v1408
        %v1410 = vpop.f32.mrf.mxu0
        %v1411 = vadd.f32 0.0, %v1410
        %1412 = vmatprep.mubr.f32.mxu0 0.0
        %1413 = vmatmul.mubr.f32.gmra.mxu0 %v1120
        %v1414 = vpop.f32.mrf.mxu0
        %v1415 = vadd.f32 0.0, %v1414
        %v1416 = vpop.f32.mrf.mxu0
        %v1417 = vadd.f32 0.0, %v1416
        %1418 = vmatprep.mubr.f32.mxu0 0.0
        %1419 = vmatmul.mubr.f32.gmra.mxu0 %v1123
        %v1420 = vpop.f32.mrf.mxu0
        %v1421 = vadd.f32 0.0, %v1420
        %v1422 = vpop.f32.mrf.mxu0
        %v1423 = vadd.f32 0.0, %v1422
        %1424 = vmatprep.mubr.f32.mxu0 0.0
        %1425 = vmatmul.mubr.f32.gmra.mxu0 %v1126
        %v1426 = vpop.f32.mrf.mxu0
        %v1427 = vadd.f32 0.0, %v1426
        %v1428 = vpop.f32.mrf.mxu0
        %v1429 = vadd.f32 0.0, %v1428
        %1430 = vmatprep.mubr.f32.mxu0 0.0
        %1431 = vmatmul.mubr.f32.gmra.mxu0 %v1129
        %v1432 = vpop.f32.mrf.mxu0
        %v1433 = vadd.f32 0.0, %v1432
        %v1434 = vpop.f32.mrf.mxu0
        %v1435 = vadd.f32 0.0, %v1434
        %1436 = vmatprep.mubr.f32.mxu0 0.0
        %1437 = vmatmul.mubr.f32.gmra.mxu0 %v1132
        %v1438 = vpop.f32.mrf.mxu0
        %v1439 = vadd.f32 0.0, %v1438
        %v1440 = vpop.f32.mrf.mxu0
        %v1441 = vadd.f32 0.0, %v1440
        %1442 = vmatprep.mubr.f32.mxu0 0.0
        %1443 = vmatmul.mubr.f32.gmra.mxu0 %v1135
        %v1444 = vpop.f32.mrf.mxu0
        %v1445 = vadd.f32 0.0, %v1444
        %v1446 = vpop.f32.mrf.mxu0
        %v1447 = vadd.f32 0.0, %v1446
        %1448 = vmatprep.mubr.f32.mxu0 0.0
        %1449 = vmatmul.mubr.f32.gmra.mxu0 %v1138
        %v1450 = vpop.f32.mrf.mxu0
        %v1451 = vadd.f32 0.0, %v1450
        %v1452 = vpop.f32.mrf.mxu0
        %v1453 = vadd.f32 0.0, %v1452
        %1454 = vmatprep.mubr.f32.mxu0 0.0
        %1455 = vmatmul.mubr.f32.gmra.mxu0 %v1141
        %v1456 = vpop.f32.mrf.mxu0
        %v1457 = vadd.f32 0.0, %v1456
        %v1458 = vpop.f32.mrf.mxu0
        %v1459 = vadd.f32 0.0, %v1458
        %1460 = vmatprep.mubr.f32.mxu0 0.0
        %1461 = vmatmul.mubr.f32.gmra.mxu0 %v1144
        %v1462 = vpop.f32.mrf.mxu0
        %v1463 = vadd.f32 0.0, %v1462
        %v1464 = vpop.f32.mrf.mxu0
        %v1465 = vadd.f32 0.0, %v1464
        %1466 = vmatprep.mubr.f32.mxu0 0.0
        %1467 = vmatmul.mubr.f32.gmra.mxu0 %v1147
        %v1468 = vpop.f32.mrf.mxu0
        %v1469 = vadd.f32 0.0, %v1468
        %v1470 = vpop.f32.mrf.mxu0
        %v1471 = vadd.f32 0.0, %v1470
        %1472 = vmatprep.mubr.f32.mxu0 0.0
        %1473 = vmatmul.mubr.f32.gmra.mxu0 %v1150
        %v1474 = vpop.f32.mrf.mxu0
        %v1475 = vadd.f32 0.0, %v1474
        %v1476 = vpop.f32.mrf.mxu0
        %v1477 = vadd.f32 0.0, %v1476
        %1478 = vmatprep.mubr.f32.mxu0 0.0
        %1479 = vmatmul.mubr.f32.gmra.mxu0 %v1153
        %v1480 = vpop.f32.mrf.mxu0
        %v1481 = vadd.f32 0.0, %v1480
        %v1482 = vpop.f32.mrf.mxu0
        %v1483 = vadd.f32 0.0, %v1482
        %1484 = vmatprep.mubr.f32.mxu0 0.0
        %1485 = vmatmul.mubr.f32.gmra.mxu0 %v1156
        %v1486 = vpop.f32.mrf.mxu0
        %v1487 = vadd.f32 0.0, %v1486
        %v1488 = vpop.f32.mrf.mxu0
        %v1489 = vadd.f32 0.0, %v1488
        %1490 = vmatprep.mubr.f32.mxu0 0.0
        %1491 = vmatmul.mubr.f32.gmra.mxu0 %v1159
        %v1492 = vpop.f32.mrf.mxu0
        %v1493 = vadd.f32 0.0, %v1492
        %v1494 = vpop.f32.mrf.mxu0
        %v1495 = vadd.f32 0.0, %v1494
        %1496 = vmatprep.mubr.f32.mxu0 0.0
        %1497 = vmatmul.mubr.f32.gmra.mxu0 %v1162
        %v1498 = vpop.f32.mrf.mxu0
        %v1499 = vadd.f32 0.0, %v1498
        %v1500 = vpop.f32.mrf.mxu0
        %v1501 = vadd.f32 0.0, %v1500
        %1502 = vmatprep.mubr.f32.mxu0 0.0
        %1503 = vmatmul.mubr.f32.gmra.mxu0 %v1165
        %v1504 = vpop.f32.mrf.mxu0
        %v1505 = vadd.f32 0.0, %v1504
        %v1506 = vpop.f32.mrf.mxu0
        %v1507 = vadd.f32 0.0, %v1506
        %1508 = vmatprep.mubr.f32.mxu0 0.0
        %1509 = vmatmul.mubr.f32.gmra.mxu0 %v1168
        %v1510 = vpop.f32.mrf.mxu0
        %v1511 = vadd.f32 0.0, %v1510
        %v1512 = vpop.f32.mrf.mxu0
        %v1513 = vadd.f32 0.0, %v1512
        %1514 = vmatprep.mubr.f32.mxu0 0.0
        %1515 = vmatmul.mubr.f32.gmra.mxu0 %v1171
        %v1516 = vpop.f32.mrf.mxu0
        %v1517 = vadd.f32 0.0, %v1516
        %v1518 = vpop.f32.mrf.mxu0
        %v1519 = vadd.f32 0.0, %v1518
        %1520 = vmatprep.mubr.f32.mxu0 0.0
        %1521 = vmatmul.mubr.f32.gmra.mxu0 %v1174
        %v1522 = vpop.f32.mrf.mxu0
        %v1523 = vadd.f32 0.0, %v1522
        %v1524 = vpop.f32.mrf.mxu0
        %v1525 = vadd.f32 0.0, %v1524
        %1526 = vmatprep.mubr.f32.mxu0 0.0
        %1527 = vmatmul.mubr.f32.gmra.mxu0 %v1177
        %v1528 = vpop.f32.mrf.mxu0
        %v1529 = vadd.f32 0.0, %v1528
        %v1530 = vpop.f32.mrf.mxu0
        %v1531 = vadd.f32 0.0, %v1530
        %1532 = vmatprep.mubr.f32.mxu0 0.0
        %1533 = vmatmul.mubr.f32.gmra.mxu0 %v1180
        %v1534 = vpop.f32.mrf.mxu0
        %v1535 = vadd.f32 0.0, %v1534
        %v1536 = vpop.f32.mrf.mxu0
        %v1537 = vadd.f32 0.0, %v1536
        %1538 = vmatprep.mubr.f32.mxu0 0.0
        %1539 = vmatmul.mubr.f32.gmra.mxu0 %v1183
        %v1540 = vpop.f32.mrf.mxu0
        %v1541 = vadd.f32 0.0, %v1540
        %v1542 = vpop.f32.mrf.mxu0
        %v1543 = vadd.f32 0.0, %v1542
        %1544 = vmatprep.mubr.f32.mxu0 0.0
        %1545 = vmatmul.mubr.f32.gmra.mxu0 %v1186
        %v1546 = vpop.f32.mrf.mxu0
        %v1547 = vadd.f32 0.0, %v1546
        %v1548 = vpop.f32.mrf.mxu0
        %v1549 = vadd.f32 0.0, %v1548
        %1550 = vmatprep.mubr.f32.mxu0 0.0
        %1551 = vmatmul.mubr.f32.gmra.mxu0 %v1189
        %v1552 = vpop.f32.mrf.mxu0
        %v1553 = vadd.f32 0.0, %v1552
        %v1554 = vpop.f32.mrf.mxu0
        %v1555 = vadd.f32 0.0, %v1554
        %1556 = vmatprep.mubr.f32.mxu0 0.0
        %1557 = vmatmul.mubr.f32.gmra.mxu0 %v1192
        %v1558 = vpop.f32.mrf.mxu0
        %v1559 = vadd.f32 0.0, %v1558
        %v1560 = vpop.f32.mrf.mxu0
        %v1561 = vadd.f32 0.0, %v1560
        %1562 = vmatprep.mubr.f32.mxu0 0.0
        %1563 = vmatmul.mubr.f32.gmra.mxu0 %v1195
        %v1564 = vpop.f32.mrf.mxu0
        %v1565 = vadd.f32 0.0, %v1564
        %v1566 = vpop.f32.mrf.mxu0
        %v1567 = vadd.f32 0.0, %v1566
        %1568 = vmatprep.mubr.f32.mxu0 0.0
        %1569 = vmatmul.mubr.f32.gmra.mxu0 %v1198
        %v1570 = vpop.f32.mrf.mxu0
        %v1571 = vadd.f32 0.0, %v1570
        %v1572 = vpop.f32.mrf.mxu0
        %v1573 = vadd.f32 0.0, %v1572
        %1574 = vmatprep.mubr.f32.mxu0 0.0
        %1575 = vmatmul.mubr.f32.gmra.mxu0 %v1201
        %v1576 = vpop.f32.mrf.mxu0
        %v1577 = vadd.f32 0.0, %v1576
        %v1578 = vpop.f32.mrf.mxu0
        %v1579 = vadd.f32 0.0, %v1578
        %1580 = vmatprep.mubr.f32.mxu0 0.0
        %1581 = vmatmul.mubr.f32.gmra.mxu0 %v1204
        %v1582 = vpop.f32.mrf.mxu0
        %v1583 = vadd.f32 0.0, %v1582
        %v1584 = vpop.f32.mrf.mxu0
        %v1585 = vadd.f32 0.0, %v1584
        %1586 = vmatprep.mubr.f32.mxu0 0.0
        %1587 = vmatmul.mubr.f32.gmra.mxu0 %v1207
        %v1588 = vpop.f32.mrf.mxu0
        %v1589 = vadd.f32 0.0, %v1588
        %v1590 = vpop.f32.mrf.mxu0
        %v1591 = vadd.f32 0.0, %v1590
        %1592 = vmatprep.mubr.f32.mxu0 0.0
        %1593 = vmatmul.mubr.f32.gmra.mxu0 %v1210
        %v1594 = vpop.f32.mrf.mxu0
        %v1595 = vadd.f32 0.0, %v1594
        %v1596 = vpop.f32.mrf.mxu0
        %v1597 = vadd.f32 0.0, %v1596
        %1598 = vmatprep.mubr.f32.mxu0 0.0
        %1599 = vmatmul.mubr.f32.gmra.mxu0 %v1213
        %v1600 = vpop.f32.mrf.mxu0
        %v1601 = vadd.f32 0.0, %v1600
        %v1602 = vpop.f32.mrf.mxu0
        %v1603 = vadd.f32 0.0, %v1602
        %1604 = vmatprep.mubr.f32.mxu0 0.0
        %1605 = vmatmul.mubr.f32.gmra.mxu0 %v1216
        %v1606 = vpop.f32.mrf.mxu0
        %v1607 = vadd.f32 0.0, %v1606
        %v1608 = vpop.f32.mrf.mxu0
        %v1609 = vadd.f32 0.0, %v1608
        %1610 = vmatprep.mubr.f32.mxu0 0.0
        %1611 = vmatmul.mubr.f32.gmra.mxu0 %v1219
        %v1612 = vpop.f32.mrf.mxu0
        %v1613 = vadd.f32 0.0, %v1612
        %v1614 = vpop.f32.mrf.mxu0
        %v1615 = vadd.f32 0.0, %v1614
        %1616 = vmatprep.mubr.f32.mxu0 0.0
        %1617 = vmatmul.mubr.f32.gmra.mxu0 %v1222
        %v1618 = vpop.f32.mrf.mxu0
        %v1619 = vadd.f32 0.0, %v1618
        %v1620 = vpop.f32.mrf.mxu0
        %v1621 = vadd.f32 0.0, %v1620
        %1622 = vmatprep.mubr.f32.mxu0 0.0
        %1623 = vmatmul.mubr.f32.gmra.mxu0 %v1225
        %v1624 = vpop.f32.mrf.mxu0
        %v1625 = vadd.f32 0.0, %v1624
        %v1626 = vpop.f32.mrf.mxu0
        %v1627 = vadd.f32 0.0, %v1626
        %1628 = vmatprep.mubr.f32.mxu0 0.0
        %1629 = vmatmul.mubr.f32.gmra.mxu0 %v1228
        %v1630 = vpop.f32.mrf.mxu0
        %v1631 = vadd.f32 0.0, %v1630
        %v1632 = vpop.f32.mrf.mxu0
        %v1633 = vadd.f32 0.0, %v1632
        %1634 = vmatprep.mubr.f32.mxu0 0.0
        %1635 = vmatmul.mubr.f32.gmra.mxu0 %v1231
        %v1636 = vpop.f32.mrf.mxu0
        %v1637 = vadd.f32 0.0, %v1636
        %v1638 = vpop.f32.mrf.mxu0
        %v1639 = vadd.f32 0.0, %v1638
        %1640 = vmatprep.mubr.f32.mxu0 0.0
        %1641 = vmatmul.mubr.f32.gmra.mxu0 %v1234
        %v1642 = vpop.f32.mrf.mxu0
        %v1643 = vadd.f32 0.0, %v1642
        %v1644 = vpop.f32.mrf.mxu0
        %v1645 = vadd.f32 0.0, %v1644
        %1646 = vmatprep.mubr.f32.mxu0 0.0
        %1647 = vmatmul.mubr.f32.gmra.mxu0 %v1237
        %v1648 = vpop.f32.mrf.mxu0
        %v1649 = vadd.f32 0.0, %v1648
        %v1650 = vpop.f32.mrf.mxu0
        %v1651 = vadd.f32 0.0, %v1650
        %1652 = vmatprep.mubr.f32.mxu0 0.0
        %1653 = vmatmul.mubr.f32.gmra.mxu0 %v1240
        %v1654 = vpop.f32.mrf.mxu0
        %v1655 = vadd.f32 0.0, %v1654
        %v1656 = vpop.f32.mrf.mxu0
        %v1657 = vadd.f32 0.0, %v1656
        %1658 = vmatprep.mubr.f32.mxu0 0.0
        %1659 = vmatmul.mubr.f32.gmra.mxu0 %v1243
        %v1660 = vpop.f32.mrf.mxu0
        %v1661 = vadd.f32 0.0, %v1660
        %v1662 = vpop.f32.mrf.mxu0
        %v1663 = vadd.f32 0.0, %v1662
        %1664 = vmatprep.mubr.f32.mxu0 0.0
        %1665 = vmatmul.mubr.f32.gmra.mxu0 %v1246
        %v1666 = vpop.f32.mrf.mxu0
        %v1667 = vadd.f32 0.0, %v1666
        %v1668 = vpop.f32.mrf.mxu0
        %v1669 = vadd.f32 0.0, %v1668
        %1670 = vmatprep.mubr.f32.mxu0 0.0
        %1671 = vmatmul.mubr.f32.gmra.mxu0 %v1249
        %v1672 = vpop.f32.mrf.mxu0
        %v1673 = vadd.f32 0.0, %v1672
        %v1674 = vpop.f32.mrf.mxu0
        %v1675 = vadd.f32 0.0, %v1674
        %1676 = vmatprep.mubr.f32.mxu0 0.0
        %1677 = vmatmul.mubr.f32.gmra.mxu0 %v1252
        %v1678 = vpop.f32.mrf.mxu0
        %v1679 = vadd.f32 0.0, %v1678
        %v1680 = vpop.f32.mrf.mxu0
        %v1681 = vadd.f32 0.0, %v1680
        %1682 = vmatprep.mubr.f32.mxu0 0.0
        %1683 = vmatmul.mubr.f32.gmra.mxu0 %v1255
        %v1684 = vpop.f32.mrf.mxu0
        %v1685 = vadd.f32 0.0, %v1684
        %v1686 = vpop.f32.mrf.mxu0
        %v1687 = vadd.f32 0.0, %v1686
        %1688 = vmatprep.mubr.f32.mxu0 0.0
        %1689 = vmatmul.mubr.f32.gmra.mxu0 %v1258
        %v1690 = vpop.f32.mrf.mxu0
        %v1691 = vadd.f32 0.0, %v1690
        %v1692 = vpop.f32.mrf.mxu0
        %v1693 = vadd.f32 0.0, %v1692
        %1694 = vmatprep.mubr.f32.mxu0 0.0
        %1695 = vmatmul.mubr.f32.gmra.mxu0 %v1261
        %v1696 = vpop.f32.mrf.mxu0
        %v1697 = vadd.f32 0.0, %v1696
        %v1698 = vpop.f32.mrf.mxu0
        %v1699 = vadd.f32 0.0, %v1698
        %1700 = vmatprep.mubr.f32.mxu0 0.0
        %1701 = vmatmul.mubr.f32.gmra.mxu0 %v1264
        %v1702 = vpop.f32.mrf.mxu0
        %v1703 = vadd.f32 0.0, %v1702
        %v1704 = vpop.f32.mrf.mxu0
        %v1705 = vadd.f32 0.0, %v1704
        %1706 = vmatprep.mubr.f32.mxu0 0.0
        %1707 = vmatmul.mubr.f32.gmra.mxu0 %v1267
        %v1708 = vpop.f32.mrf.mxu0
        %v1709 = vadd.f32 0.0, %v1708
        %v1710 = vpop.f32.mrf.mxu0
        %v1711 = vadd.f32 0.0, %v1710
        %1712 = vmatprep.mubr.f32.mxu0 0.0
        %1713 = vmatmul.mubr.f32.gmra.mxu0 %v1270
        %v1714 = vpop.f32.mrf.mxu0
        %v1715 = vadd.f32 0.0, %v1714
        %v1716 = vpop.f32.mrf.mxu0
        %v1717 = vadd.f32 0.0, %v1716
        %1718 = vmatprep.mubr.f32.mxu0 0.0
        %1719 = vmatmul.mubr.f32.gmra.mxu0 %v1273
        %v1720 = vpop.f32.mrf.mxu0
        %v1721 = vadd.f32 0.0, %v1720
        %v1722 = vpop.f32.mrf.mxu0
        %v1723 = vadd.f32 0.0, %v1722
        %1724 = vmatprep.mubr.f32.mxu0 0.0
        %1725 = vmatmul.mubr.f32.gmra.mxu0 %v1276
        %v1726 = vpop.f32.mrf.mxu0
        %v1727 = vadd.f32 0.0, %v1726
        %v1728 = vpop.f32.mrf.mxu0
        %v1729 = vadd.f32 0.0, %v1728
        %1730 = vmatprep.mubr.f32.mxu0 0.0
        %1731 = vmatmul.mubr.f32.gmra.mxu0 %v1279
        %v1732 = vpop.f32.mrf.mxu0
        %v1733 = vadd.f32 0.0, %v1732
        %v1734 = vpop.f32.mrf.mxu0
        %v1735 = vadd.f32 0.0, %v1734
        %1736 = vmatprep.mubr.f32.mxu0 0.0
        %1737 = vmatmul.mubr.f32.gmra.mxu0 %v1282
        %v1738 = vpop.f32.mrf.mxu0
        %v1739 = vadd.f32 0.0, %v1738
        %v1740 = vpop.f32.mrf.mxu0
        %v1741 = vadd.f32 0.0, %v1740
        %1742 = vmatprep.mubr.f32.mxu0 0.0
        %1743 = vmatmul.mubr.f32.gmra.mxu0 %v1285
        %v1744 = vpop.f32.mrf.mxu0
        %v1745 = vadd.f32 0.0, %v1744
        %v1746 = vpop.f32.mrf.mxu0
        %v1747 = vadd.f32 0.0, %v1746
        %1748 = vmatprep.mubr.f32.mxu0 0.0
        %1749 = vmatmul.mubr.f32.gmra.mxu0 %v1288
        %v1750 = vpop.f32.mrf.mxu0
        %v1751 = vadd.f32 0.0, %v1750
        %v1752 = vpop.f32.mrf.mxu0
        %v1753 = vadd.f32 0.0, %v1752
        %1754 = vmatprep.mubr.f32.mxu0 0.0
        %1755 = vmatmul.mubr.f32.gmra.mxu0 %v1291
        %v1756 = vpop.f32.mrf.mxu0
        %v1757 = vadd.f32 0.0, %v1756
        %v1758 = vpop.f32.mrf.mxu0
        %v1759 = vadd.f32 0.0, %v1758
        %1760 = vmatprep.mubr.f32.mxu0 0.0
        %1761 = vmatmul.mubr.f32.gmra.mxu0 %v1294
        %v1762 = vpop.f32.mrf.mxu0
        %v1763 = vadd.f32 0.0, %v1762
        %v1764 = vpop.f32.mrf.mxu0
        %v1765 = vadd.f32 0.0, %v1764
        %1766 = vmatprep.mubr.f32.mxu0 0.0
        %1767 = vmatmul.mubr.f32.gmra.mxu0 %v1297
        %v1768 = vpop.f32.mrf.mxu0
        %v1769 = vadd.f32 0.0, %v1768
        %v1770 = vpop.f32.mrf.mxu0
        %v1771 = vadd.f32 0.0, %v1770
        %1772 = vdwg.mxu0
        %1773 = vmatprep.subr.mxu0 0.0
        %1774 = vmatpush1.msra.mxu0 0.0
        %1775 = vmatprep.subr.mxu0 0.0
        %1776 = vmatpush1.msra.mxu0 0.0
        %1777 = vmatprep.subr.mxu0 0.0
        %1778 = vmatpush1.msra.mxu0 0.0
        %1779 = vmatprep.subr.mxu0 0.0
        %1780 = vmatpush1.msra.mxu0 0.0
        %1781 = vmatprep.subr.mxu0 0.0
        %1782 = vmatpush1.msra.mxu0 0.0
        %1783 = vmatprep.subr.mxu0 0.0
        %1784 = vmatpush1.msra.mxu0 0.0
        %1785 = vmatprep.subr.mxu0 0.0
        %1786 = vmatpush1.msra.mxu0 0.0
        %1787 = vmatprep.subr.mxu0 0.0
        %1788 = vmatpush1.msra.mxu0 0.0
        %1789 = vmatprep.subr.mxu0 0.0
        %1790 = vmatpush1.msra.mxu0 0.0
        %1791 = vmatprep.subr.mxu0 0.0
        %1792 = vmatpush1.msra.mxu0 0.0
        %1793 = vmatprep.subr.mxu0 0.0
        %1794 = vmatpush1.msra.mxu0 0.0
        %1795 = vmatprep.subr.mxu0 0.0
        %1796 = vmatpush1.msra.mxu0 0.0
        %1797 = vmatprep.subr.mxu0 0.0
        %1798 = vmatpush1.msra.mxu0 0.0
        %1799 = vmatprep.subr.mxu0 0.0
        %1800 = vmatpush1.msra.mxu0 0.0
        %1801 = vmatprep.subr.mxu0 0.0
        %1802 = vmatpush1.msra.mxu0 0.0
        %1803 = vmatprep.subr.mxu0 %v1310
        %1804 = vmatpush1.msra.mxu0 %v1307
        %1805 = vmatprep.subr.mxu0 0.0
        %1806 = vmatpush2.msra.mxu0 0.0
        %1807 = vmatprep.subr.mxu0 0.0
        %1808 = vmatpush2.msra.mxu0 0.0
        %1809 = vmatprep.subr.mxu0 0.0
        %1810 = vmatpush2.msra.mxu0 0.0
        %1811 = vmatprep.subr.mxu0 0.0
        %1812 = vmatpush2.msra.mxu0 0.0
        %1813 = vmatprep.subr.mxu0 0.0
        %1814 = vmatpush2.msra.mxu0 0.0
        %1815 = vmatprep.subr.mxu0 0.0
        %1816 = vmatpush2.msra.mxu0 0.0
        %1817 = vmatprep.subr.mxu0 0.0
        %1818 = vmatpush2.msra.mxu0 0.0
        %1819 = vmatprep.subr.mxu0 0.0
        %1820 = vmatpush2.msra.mxu0 0.0
        %1821 = vmatprep.subr.mxu0 0.0
        %1822 = vmatpush2.msra.mxu0 0.0
        %1823 = vmatprep.subr.mxu0 0.0
        %1824 = vmatpush2.msra.mxu0 0.0
        %1825 = vmatprep.subr.mxu0 0.0
        %1826 = vmatpush2.msra.mxu0 0.0
        %1827 = vmatprep.subr.mxu0 0.0
        %1828 = vmatpush2.msra.mxu0 0.0
        %1829 = vmatprep.subr.mxu0 0.0
        %1830 = vmatpush2.msra.mxu0 0.0
        %1831 = vmatprep.subr.mxu0 0.0
        %1832 = vmatpush2.msra.mxu0 0.0
        %1833 = vmatprep.subr.mxu0 0.0
        %1834 = vmatpush2.msra.mxu0 0.0
        %1835 = vmatprep.subr.mxu0 0.0
        %1836 = vmatpush2.msra.mxu0 0.0
        %1837 = vmatprep.mubr.f32.mxu0 0.0
        %1838 = vmatmul.mubr.f32.gmra.mxu0 %v1108
        %v1839 = vpop.f32.mrf.mxu0
        %v1840 = vadd.f32 0.0, %v1839
        %v1841 = vpop.f32.mrf.mxu0
        %v1842 = vadd.f32 0.0, %v1841
        %1843 = vmatprep.mubr.f32.mxu0 0.0
        %1844 = vmatmul.mubr.f32.gmra.mxu0 %v1111
        %v1845 = vpop.f32.mrf.mxu0
        %v1846 = vadd.f32 0.0, %v1845
        %v1847 = vpop.f32.mrf.mxu0
        %v1848 = vadd.f32 0.0, %v1847
        %1849 = vmatprep.mubr.f32.mxu0 0.0
        %1850 = vmatmul.mubr.f32.gmra.mxu0 %v1114
        %v1851 = vpop.f32.mrf.mxu0
        %v1852 = vadd.f32 0.0, %v1851
        %v1853 = vpop.f32.mrf.mxu0
        %v1854 = vadd.f32 0.0, %v1853
        %1855 = vmatprep.mubr.f32.mxu0 0.0
        %1856 = vmatmul.mubr.f32.gmra.mxu0 %v1117
        %v1857 = vpop.f32.mrf.mxu0
        %v1858 = vadd.f32 0.0, %v1857
        %v1859 = vpop.f32.mrf.mxu0
        %v1860 = vadd.f32 0.0, %v1859
        %1861 = vmatprep.mubr.f32.mxu0 0.0
        %1862 = vmatmul.mubr.f32.gmra.mxu0 %v1120
        %v1863 = vpop.f32.mrf.mxu0
        %v1864 = vadd.f32 0.0, %v1863
        %v1865 = vpop.f32.mrf.mxu0
        %v1866 = vadd.f32 0.0, %v1865
        %1867 = vmatprep.mubr.f32.mxu0 0.0
        %1868 = vmatmul.mubr.f32.gmra.mxu0 %v1123
        %v1869 = vpop.f32.mrf.mxu0
        %v1870 = vadd.f32 0.0, %v1869
        %v1871 = vpop.f32.mrf.mxu0
        %v1872 = vadd.f32 0.0, %v1871
        %1873 = vmatprep.mubr.f32.mxu0 0.0
        %1874 = vmatmul.mubr.f32.gmra.mxu0 %v1126
        %v1875 = vpop.f32.mrf.mxu0
        %v1876 = vadd.f32 0.0, %v1875
        %v1877 = vpop.f32.mrf.mxu0
        %v1878 = vadd.f32 0.0, %v1877
        %1879 = vmatprep.mubr.f32.mxu0 0.0
        %1880 = vmatmul.mubr.f32.gmra.mxu0 %v1129
        %v1881 = vpop.f32.mrf.mxu0
        %v1882 = vadd.f32 0.0, %v1881
        %v1883 = vpop.f32.mrf.mxu0
        %v1884 = vadd.f32 0.0, %v1883
        %1885 = vmatprep.mubr.f32.mxu0 0.0
        %1886 = vmatmul.mubr.f32.gmra.mxu0 %v1132
        %v1887 = vpop.f32.mrf.mxu0
        %v1888 = vadd.f32 0.0, %v1887
        %v1889 = vpop.f32.mrf.mxu0
        %v1890 = vadd.f32 0.0, %v1889
        %1891 = vmatprep.mubr.f32.mxu0 0.0
        %1892 = vmatmul.mubr.f32.gmra.mxu0 %v1135
        %v1893 = vpop.f32.mrf.mxu0
        %v1894 = vadd.f32 0.0, %v1893
        %v1895 = vpop.f32.mrf.mxu0
        %v1896 = vadd.f32 0.0, %v1895
        %1897 = vmatprep.mubr.f32.mxu0 0.0
        %1898 = vmatmul.mubr.f32.gmra.mxu0 %v1138
        %v1899 = vpop.f32.mrf.mxu0
        %v1900 = vadd.f32 0.0, %v1899
        %v1901 = vpop.f32.mrf.mxu0
        %v1902 = vadd.f32 0.0, %v1901
        %1903 = vmatprep.mubr.f32.mxu0 0.0
        %1904 = vmatmul.mubr.f32.gmra.mxu0 %v1141
        %v1905 = vpop.f32.mrf.mxu0
        %v1906 = vadd.f32 0.0, %v1905
        %v1907 = vpop.f32.mrf.mxu0
        %v1908 = vadd.f32 0.0, %v1907
        %1909 = vmatprep.mubr.f32.mxu0 0.0
        %1910 = vmatmul.mubr.f32.gmra.mxu0 %v1144
        %v1911 = vpop.f32.mrf.mxu0
        %v1912 = vadd.f32 0.0, %v1911
        %v1913 = vpop.f32.mrf.mxu0
        %v1914 = vadd.f32 0.0, %v1913
        %1915 = vmatprep.mubr.f32.mxu0 0.0
        %1916 = vmatmul.mubr.f32.gmra.mxu0 %v1147
        %v1917 = vpop.f32.mrf.mxu0
        %v1918 = vadd.f32 0.0, %v1917
        %v1919 = vpop.f32.mrf.mxu0
        %v1920 = vadd.f32 0.0, %v1919
        %1921 = vmatprep.mubr.f32.mxu0 0.0
        %1922 = vmatmul.mubr.f32.gmra.mxu0 %v1150
        %v1923 = vpop.f32.mrf.mxu0
        %v1924 = vadd.f32 0.0, %v1923
        %v1925 = vpop.f32.mrf.mxu0
        %v1926 = vadd.f32 0.0, %v1925
        %1927 = vmatprep.mubr.f32.mxu0 0.0
        %1928 = vmatmul.mubr.f32.gmra.mxu0 %v1153
        %v1929 = vpop.f32.mrf.mxu0
        %v1930 = vadd.f32 0.0, %v1929
        %v1931 = vpop.f32.mrf.mxu0
        %v1932 = vadd.f32 0.0, %v1931
        %1933 = vmatprep.mubr.f32.mxu0 0.0
        %1934 = vmatmul.mubr.f32.gmra.mxu0 %v1156
        %v1935 = vpop.f32.mrf.mxu0
        %v1936 = vadd.f32 0.0, %v1935
        %v1937 = vpop.f32.mrf.mxu0
        %v1938 = vadd.f32 0.0, %v1937
        %1939 = vmatprep.mubr.f32.mxu0 0.0
        %1940 = vmatmul.mubr.f32.gmra.mxu0 %v1159
        %v1941 = vpop.f32.mrf.mxu0
        %v1942 = vadd.f32 0.0, %v1941
        %v1943 = vpop.f32.mrf.mxu0
        %v1944 = vadd.f32 0.0, %v1943
        %1945 = vmatprep.mubr.f32.mxu0 0.0
        %1946 = vmatmul.mubr.f32.gmra.mxu0 %v1162
        %v1947 = vpop.f32.mrf.mxu0
        %v1948 = vadd.f32 0.0, %v1947
        %v1949 = vpop.f32.mrf.mxu0
        %v1950 = vadd.f32 0.0, %v1949
        %1951 = vmatprep.mubr.f32.mxu0 0.0
        %1952 = vmatmul.mubr.f32.gmra.mxu0 %v1165
        %v1953 = vpop.f32.mrf.mxu0
        %v1954 = vadd.f32 0.0, %v1953
        %v1955 = vpop.f32.mrf.mxu0
        %v1956 = vadd.f32 0.0, %v1955
        %1957 = vmatprep.mubr.f32.mxu0 0.0
        %1958 = vmatmul.mubr.f32.gmra.mxu0 %v1168
        %v1959 = vpop.f32.mrf.mxu0
        %v1960 = vadd.f32 0.0, %v1959
        %v1961 = vpop.f32.mrf.mxu0
        %v1962 = vadd.f32 0.0, %v1961
        %1963 = vmatprep.mubr.f32.mxu0 0.0
        %1964 = vmatmul.mubr.f32.gmra.mxu0 %v1171
        %v1965 = vpop.f32.mrf.mxu0
        %v1966 = vadd.f32 0.0, %v1965
        %v1967 = vpop.f32.mrf.mxu0
        %v1968 = vadd.f32 0.0, %v1967
        %1969 = vmatprep.mubr.f32.mxu0 0.0
        %1970 = vmatmul.mubr.f32.gmra.mxu0 %v1174
        %v1971 = vpop.f32.mrf.mxu0
        %v1972 = vadd.f32 0.0, %v1971
        %v1973 = vpop.f32.mrf.mxu0
        %v1974 = vadd.f32 0.0, %v1973
        %1975 = vmatprep.mubr.f32.mxu0 0.0
        %1976 = vmatmul.mubr.f32.gmra.mxu0 %v1177
        %v1977 = vpop.f32.mrf.mxu0
        %v1978 = vadd.f32 0.0, %v1977
        %v1979 = vpop.f32.mrf.mxu0
        %v1980 = vadd.f32 0.0, %v1979
        %1981 = vmatprep.mubr.f32.mxu0 0.0
        %1982 = vmatmul.mubr.f32.gmra.mxu0 %v1180
        %v1983 = vpop.f32.mrf.mxu0
        %v1984 = vadd.f32 0.0, %v1983
        %v1985 = vpop.f32.mrf.mxu0
        %v1986 = vadd.f32 0.0, %v1985
        %1987 = vmatprep.mubr.f32.mxu0 0.0
        %1988 = vmatmul.mubr.f32.gmra.mxu0 %v1183
        %v1989 = vpop.f32.mrf.mxu0
        %v1990 = vadd.f32 0.0, %v1989
        %v1991 = vpop.f32.mrf.mxu0
        %v1992 = vadd.f32 0.0, %v1991
        %1993 = vmatprep.mubr.f32.mxu0 0.0
        %1994 = vmatmul.mubr.f32.gmra.mxu0 %v1186
        %v1995 = vpop.f32.mrf.mxu0
        %v1996 = vadd.f32 0.0, %v1995
        %v1997 = vpop.f32.mrf.mxu0
        %v1998 = vadd.f32 0.0, %v1997
        %1999 = vmatprep.mubr.f32.mxu0 0.0
        %2000 = vmatmul.mubr.f32.gmra.mxu0 %v1189
        %v2001 = vpop.f32.mrf.mxu0
        %v2002 = vadd.f32 0.0, %v2001
        %v2003 = vpop.f32.mrf.mxu0
        %v2004 = vadd.f32 0.0, %v2003
        %2005 = vmatprep.mubr.f32.mxu0 0.0
        %2006 = vmatmul.mubr.f32.gmra.mxu0 %v1192
        %v2007 = vpop.f32.mrf.mxu0
        %v2008 = vadd.f32 0.0, %v2007
        %v2009 = vpop.f32.mrf.mxu0
        %v2010 = vadd.f32 0.0, %v2009
        %2011 = vmatprep.mubr.f32.mxu0 0.0
        %2012 = vmatmul.mubr.f32.gmra.mxu0 %v1195
        %v2013 = vpop.f32.mrf.mxu0
        %v2014 = vadd.f32 0.0, %v2013
        %v2015 = vpop.f32.mrf.mxu0
        %v2016 = vadd.f32 0.0, %v2015
        %2017 = vmatprep.mubr.f32.mxu0 0.0
        %2018 = vmatmul.mubr.f32.gmra.mxu0 %v1198
        %v2019 = vpop.f32.mrf.mxu0
        %v2020 = vadd.f32 0.0, %v2019
        %v2021 = vpop.f32.mrf.mxu0
        %v2022 = vadd.f32 0.0, %v2021
        %2023 = vmatprep.mubr.f32.mxu0 0.0
        %2024 = vmatmul.mubr.f32.gmra.mxu0 %v1201
        %v2025 = vpop.f32.mrf.mxu0
        %v2026 = vadd.f32 0.0, %v2025
        %v2027 = vpop.f32.mrf.mxu0
        %v2028 = vadd.f32 0.0, %v2027
        %2029 = vmatprep.mubr.f32.mxu0 0.0
        %2030 = vmatmul.mubr.f32.gmra.mxu0 %v1204
        %v2031 = vpop.f32.mrf.mxu0
        %v2032 = vadd.f32 0.0, %v2031
        %v2033 = vpop.f32.mrf.mxu0
        %v2034 = vadd.f32 0.0, %v2033
        %2035 = vmatprep.mubr.f32.mxu0 0.0
        %2036 = vmatmul.mubr.f32.gmra.mxu0 %v1207
        %v2037 = vpop.f32.mrf.mxu0
        %v2038 = vadd.f32 0.0, %v2037
        %v2039 = vpop.f32.mrf.mxu0
        %v2040 = vadd.f32 0.0, %v2039
        %2041 = vmatprep.mubr.f32.mxu0 0.0
        %2042 = vmatmul.mubr.f32.gmra.mxu0 %v1210
        %v2043 = vpop.f32.mrf.mxu0
        %v2044 = vadd.f32 0.0, %v2043
        %v2045 = vpop.f32.mrf.mxu0
        %v2046 = vadd.f32 0.0, %v2045
        %2047 = vmatprep.mubr.f32.mxu0 0.0
        %2048 = vmatmul.mubr.f32.gmra.mxu0 %v1213
        %v2049 = vpop.f32.mrf.mxu0
        %v2050 = vadd.f32 0.0, %v2049
        %v2051 = vpop.f32.mrf.mxu0
        %v2052 = vadd.f32 0.0, %v2051
        %2053 = vmatprep.mubr.f32.mxu0 0.0
        %2054 = vmatmul.mubr.f32.gmra.mxu0 %v1216
        %v2055 = vpop.f32.mrf.mxu0
        %v2056 = vadd.f32 0.0, %v2055
        %v2057 = vpop.f32.mrf.mxu0
        %v2058 = vadd.f32 0.0, %v2057
        %2059 = vmatprep.mubr.f32.mxu0 0.0
        %2060 = vmatmul.mubr.f32.gmra.mxu0 %v1219
        %v2061 = vpop.f32.mrf.mxu0
        %v2062 = vadd.f32 0.0, %v2061
        %v2063 = vpop.f32.mrf.mxu0
        %v2064 = vadd.f32 0.0, %v2063
        %2065 = vmatprep.mubr.f32.mxu0 0.0
        %2066 = vmatmul.mubr.f32.gmra.mxu0 %v1222
        %v2067 = vpop.f32.mrf.mxu0
        %v2068 = vadd.f32 0.0, %v2067
        %v2069 = vpop.f32.mrf.mxu0
        %v2070 = vadd.f32 0.0, %v2069
        %2071 = vmatprep.mubr.f32.mxu0 0.0
        %2072 = vmatmul.mubr.f32.gmra.mxu0 %v1225
        %v2073 = vpop.f32.mrf.mxu0
        %v2074 = vadd.f32 0.0, %v2073
        %v2075 = vpop.f32.mrf.mxu0
        %v2076 = vadd.f32 0.0, %v2075
        %2077 = vmatprep.mubr.f32.mxu0 0.0
        %2078 = vmatmul.mubr.f32.gmra.mxu0 %v1228
        %v2079 = vpop.f32.mrf.mxu0
        %v2080 = vadd.f32 0.0, %v2079
        %v2081 = vpop.f32.mrf.mxu0
        %v2082 = vadd.f32 0.0, %v2081
        %2083 = vmatprep.mubr.f32.mxu0 0.0
        %2084 = vmatmul.mubr.f32.gmra.mxu0 %v1231
        %v2085 = vpop.f32.mrf.mxu0
        %v2086 = vadd.f32 0.0, %v2085
        %v2087 = vpop.f32.mrf.mxu0
        %v2088 = vadd.f32 0.0, %v2087
        %2089 = vmatprep.mubr.f32.mxu0 0.0
        %2090 = vmatmul.mubr.f32.gmra.mxu0 %v1234
        %v2091 = vpop.f32.mrf.mxu0
        %v2092 = vadd.f32 0.0, %v2091
        %v2093 = vpop.f32.mrf.mxu0
        %v2094 = vadd.f32 0.0, %v2093
        %2095 = vmatprep.mubr.f32.mxu0 0.0
        %2096 = vmatmul.mubr.f32.gmra.mxu0 %v1237
        %v2097 = vpop.f32.mrf.mxu0
        %v2098 = vadd.f32 0.0, %v2097
        %v2099 = vpop.f32.mrf.mxu0
        %v2100 = vadd.f32 0.0, %v2099
        %2101 = vmatprep.mubr.f32.mxu0 0.0
        %2102 = vmatmul.mubr.f32.gmra.mxu0 %v1240
        %v2103 = vpop.f32.mrf.mxu0
        %v2104 = vadd.f32 0.0, %v2103
        %v2105 = vpop.f32.mrf.mxu0
        %v2106 = vadd.f32 0.0, %v2105
        %2107 = vmatprep.mubr.f32.mxu0 0.0
        %2108 = vmatmul.mubr.f32.gmra.mxu0 %v1243
        %v2109 = vpop.f32.mrf.mxu0
        %v2110 = vadd.f32 0.0, %v2109
        %v2111 = vpop.f32.mrf.mxu0
        %v2112 = vadd.f32 0.0, %v2111
        %2113 = vmatprep.mubr.f32.mxu0 0.0
        %2114 = vmatmul.mubr.f32.gmra.mxu0 %v1246
        %v2115 = vpop.f32.mrf.mxu0
        %v2116 = vadd.f32 0.0, %v2115
        %v2117 = vpop.f32.mrf.mxu0
        %v2118 = vadd.f32 0.0, %v2117
        %2119 = vmatprep.mubr.f32.mxu0 0.0
        %2120 = vmatmul.mubr.f32.gmra.mxu0 %v1249
        %v2121 = vpop.f32.mrf.mxu0
        %v2122 = vadd.f32 0.0, %v2121
        %v2123 = vpop.f32.mrf.mxu0
        %v2124 = vadd.f32 0.0, %v2123
        %2125 = vmatprep.mubr.f32.mxu0 0.0
        %2126 = vmatmul.mubr.f32.gmra.mxu0 %v1252
        %v2127 = vpop.f32.mrf.mxu0
        %v2128 = vadd.f32 0.0, %v2127
        %v2129 = vpop.f32.mrf.mxu0
        %v2130 = vadd.f32 0.0, %v2129
        %2131 = vmatprep.mubr.f32.mxu0 0.0
        %2132 = vmatmul.mubr.f32.gmra.mxu0 %v1255
        %v2133 = vpop.f32.mrf.mxu0
        %v2134 = vadd.f32 0.0, %v2133
        %v2135 = vpop.f32.mrf.mxu0
        %v2136 = vadd.f32 0.0, %v2135
        %2137 = vmatprep.mubr.f32.mxu0 0.0
        %2138 = vmatmul.mubr.f32.gmra.mxu0 %v1258
        %v2139 = vpop.f32.mrf.mxu0
        %v2140 = vadd.f32 0.0, %v2139
        %v2141 = vpop.f32.mrf.mxu0
        %v2142 = vadd.f32 0.0, %v2141
        %2143 = vmatprep.mubr.f32.mxu0 0.0
        %2144 = vmatmul.mubr.f32.gmra.mxu0 %v1261
        %v2145 = vpop.f32.mrf.mxu0
        %v2146 = vadd.f32 0.0, %v2145
        %v2147 = vpop.f32.mrf.mxu0
        %v2148 = vadd.f32 0.0, %v2147
        %2149 = vmatprep.mubr.f32.mxu0 0.0
        %2150 = vmatmul.mubr.f32.gmra.mxu0 %v1264
        %v2151 = vpop.f32.mrf.mxu0
        %v2152 = vadd.f32 0.0, %v2151
        %v2153 = vpop.f32.mrf.mxu0
        %v2154 = vadd.f32 0.0, %v2153
        %2155 = vmatprep.mubr.f32.mxu0 0.0
        %2156 = vmatmul.mubr.f32.gmra.mxu0 %v1267
        %v2157 = vpop.f32.mrf.mxu0
        %v2158 = vadd.f32 0.0, %v2157
        %v2159 = vpop.f32.mrf.mxu0
        %v2160 = vadd.f32 0.0, %v2159
        %2161 = vmatprep.mubr.f32.mxu0 0.0
        %2162 = vmatmul.mubr.f32.gmra.mxu0 %v1270
        %v2163 = vpop.f32.mrf.mxu0
        %v2164 = vadd.f32 0.0, %v2163
        %v2165 = vpop.f32.mrf.mxu0
        %v2166 = vadd.f32 0.0, %v2165
        %2167 = vmatprep.mubr.f32.mxu0 0.0
        %2168 = vmatmul.mubr.f32.gmra.mxu0 %v1273
        %v2169 = vpop.f32.mrf.mxu0
        %v2170 = vadd.f32 0.0, %v2169
        %v2171 = vpop.f32.mrf.mxu0
        %v2172 = vadd.f32 0.0, %v2171
        %2173 = vmatprep.mubr.f32.mxu0 0.0
        %2174 = vmatmul.mubr.f32.gmra.mxu0 %v1276
        %v2175 = vpop.f32.mrf.mxu0
        %v2176 = vadd.f32 0.0, %v2175
        %v2177 = vpop.f32.mrf.mxu0
        %v2178 = vadd.f32 0.0, %v2177
        %2179 = vmatprep.mubr.f32.mxu0 0.0
        %2180 = vmatmul.mubr.f32.gmra.mxu0 %v1279
        %v2181 = vpop.f32.mrf.mxu0
        %v2182 = vadd.f32 0.0, %v2181
        %v2183 = vpop.f32.mrf.mxu0
        %v2184 = vadd.f32 0.0, %v2183
        %2185 = vmatprep.mubr.f32.mxu0 0.0
        %2186 = vmatmul.mubr.f32.gmra.mxu0 %v1282
        %v2187 = vpop.f32.mrf.mxu0
        %v2188 = vadd.f32 0.0, %v2187
        %v2189 = vpop.f32.mrf.mxu0
        %v2190 = vadd.f32 0.0, %v2189
        %2191 = vmatprep.mubr.f32.mxu0 0.0
        %2192 = vmatmul.mubr.f32.gmra.mxu0 %v1285
        %v2193 = vpop.f32.mrf.mxu0
        %v2194 = vadd.f32 0.0, %v2193
        %v2195 = vpop.f32.mrf.mxu0
        %v2196 = vadd.f32 0.0, %v2195
        %2197 = vmatprep.mubr.f32.mxu0 0.0
        %2198 = vmatmul.mubr.f32.gmra.mxu0 %v1288
        %v2199 = vpop.f32.mrf.mxu0
        %v2200 = vadd.f32 0.0, %v2199
        %v2201 = vpop.f32.mrf.mxu0
        %v2202 = vadd.f32 0.0, %v2201
        %2203 = vmatprep.mubr.f32.mxu0 0.0
        %2204 = vmatmul.mubr.f32.gmra.mxu0 %v1291
        %v2205 = vpop.f32.mrf.mxu0
        %v2206 = vadd.f32 0.0, %v2205
        %v2207 = vpop.f32.mrf.mxu0
        %v2208 = vadd.f32 0.0, %v2207
        %2209 = vmatprep.mubr.f32.mxu0 0.0
        %2210 = vmatmul.mubr.f32.gmra.mxu0 %v1294
        %v2211 = vpop.f32.mrf.mxu0
        %v2212 = vadd.f32 0.0, %v2211
        %v2213 = vpop.f32.mrf.mxu0
        %v2214 = vadd.f32 0.0, %v2213
        %2215 = vmatprep.mubr.f32.mxu0 0.0
        %2216 = vmatmul.mubr.f32.gmra.mxu0 %v1297
        %v2217 = vpop.f32.mrf.mxu0
        %v2218 = vadd.f32 0.0, %v2217
        %v2219 = vpop.f32.mrf.mxu0
        %v2220 = vadd.f32 0.0, %v2219
        %2221 = vdwg.mxu0
        %2222 = vmatprep.subr.mxu0 0.0
        %2223 = vmatpush1.msra.mxu0 0.0
        %2224 = vmatprep.subr.mxu0 0.0
        %2225 = vmatpush1.msra.mxu0 0.0
        %2226 = vmatprep.subr.mxu0 0.0
        %2227 = vmatpush1.msra.mxu0 0.0
        %2228 = vmatprep.subr.mxu0 0.0
        %2229 = vmatpush1.msra.mxu0 0.0
        %2230 = vmatprep.subr.mxu0 0.0
        %2231 = vmatpush1.msra.mxu0 0.0
        %2232 = vmatprep.subr.mxu0 0.0
        %2233 = vmatpush1.msra.mxu0 0.0
        %2234 = vmatprep.subr.mxu0 0.0
        %2235 = vmatpush1.msra.mxu0 0.0
        %2236 = vmatprep.subr.mxu0 0.0
        %2237 = vmatpush1.msra.mxu0 0.0
        %2238 = vmatprep.subr.mxu0 0.0
        %2239 = vmatpush1.msra.mxu0 0.0
        %2240 = vmatprep.subr.mxu0 0.0
        %2241 = vmatpush1.msra.mxu0 0.0
        %2242 = vmatprep.subr.mxu0 0.0
        %2243 = vmatpush1.msra.mxu0 0.0
        %2244 = vmatprep.subr.mxu0 0.0
        %2245 = vmatpush1.msra.mxu0 0.0
        %2246 = vmatprep.subr.mxu0 0.0
        %2247 = vmatpush1.msra.mxu0 0.0
        %2248 = vmatprep.subr.mxu0 0.0
        %2249 = vmatpush1.msra.mxu0 0.0
        %2250 = vmatprep.subr.mxu0 0.0
        %2251 = vmatpush1.msra.mxu0 0.0
        %2252 = vmatprep.subr.mxu0 %v1316
        %2253 = vmatpush1.msra.mxu0 %v1313
        %2254 = vmatprep.subr.mxu0 0.0
        %2255 = vmatpush2.msra.mxu0 0.0
        %2256 = vmatprep.subr.mxu0 0.0
        %2257 = vmatpush2.msra.mxu0 0.0
        %2258 = vmatprep.subr.mxu0 0.0
        %2259 = vmatpush2.msra.mxu0 0.0
        %2260 = vmatprep.subr.mxu0 0.0
        %2261 = vmatpush2.msra.mxu0 0.0
        %2262 = vmatprep.subr.mxu0 0.0
        %2263 = vmatpush2.msra.mxu0 0.0
        %2264 = vmatprep.subr.mxu0 0.0
        %2265 = vmatpush2.msra.mxu0 0.0
        %2266 = vmatprep.subr.mxu0 0.0
        %2267 = vmatpush2.msra.mxu0 0.0
        %2268 = vmatprep.subr.mxu0 0.0
        %2269 = vmatpush2.msra.mxu0 0.0
        %2270 = vmatprep.subr.mxu0 0.0
        %2271 = vmatpush2.msra.mxu0 0.0
        %2272 = vmatprep.subr.mxu0 0.0
        %2273 = vmatpush2.msra.mxu0 0.0
        %2274 = vmatprep.subr.mxu0 0.0
        %2275 = vmatpush2.msra.mxu0 0.0
        %2276 = vmatprep.subr.mxu0 0.0
        %2277 = vmatpush2.msra.mxu0 0.0
        %2278 = vmatprep.subr.mxu0 0.0
        %2279 = vmatpush2.msra.mxu0 0.0
        %2280 = vmatprep.subr.mxu0 0.0
        %2281 = vmatpush2.msra.mxu0 0.0
        %2282 = vmatprep.subr.mxu0 0.0
        %2283 = vmatpush2.msra.mxu0 0.0
        %2284 = vmatprep.subr.mxu0 0.0
        %2285 = vmatpush2.msra.mxu0 0.0
        %2286 = vmatprep.mubr.f32.mxu0 0.0
        %2287 = vmatmul.mubr.f32.gmra.mxu0 %v1108
        %v2288 = vpop.f32.mrf.mxu0
        %v2289 = vadd.f32 0.0, %v2288
        %v2290 = vpop.f32.mrf.mxu0
        %v2291 = vadd.f32 0.0, %v2290
        %2292 = vmatprep.mubr.f32.mxu0 0.0
        %2293 = vmatmul.mubr.f32.gmra.mxu0 %v1111
        %v2294 = vpop.f32.mrf.mxu0
        %v2295 = vadd.f32 0.0, %v2294
        %v2296 = vpop.f32.mrf.mxu0
        %v2297 = vadd.f32 0.0, %v2296
        %2298 = vmatprep.mubr.f32.mxu0 0.0
        %2299 = vmatmul.mubr.f32.gmra.mxu0 %v1114
        %v2300 = vpop.f32.mrf.mxu0
        %v2301 = vadd.f32 0.0, %v2300
        %v2302 = vpop.f32.mrf.mxu0
        %v2303 = vadd.f32 0.0, %v2302
        %2304 = vmatprep.mubr.f32.mxu0 0.0
        %2305 = vmatmul.mubr.f32.gmra.mxu0 %v1117
        %v2306 = vpop.f32.mrf.mxu0
        %v2307 = vadd.f32 0.0, %v2306
        %v2308 = vpop.f32.mrf.mxu0
        %v2309 = vadd.f32 0.0, %v2308
        %2310 = vmatprep.mubr.f32.mxu0 0.0
        %2311 = vmatmul.mubr.f32.gmra.mxu0 %v1120
        %v2312 = vpop.f32.mrf.mxu0
        %v2313 = vadd.f32 0.0, %v2312
        %v2314 = vpop.f32.mrf.mxu0
        %v2315 = vadd.f32 0.0, %v2314
        %2316 = vmatprep.mubr.f32.mxu0 0.0
        %2317 = vmatmul.mubr.f32.gmra.mxu0 %v1123
        %v2318 = vpop.f32.mrf.mxu0
        %v2319 = vadd.f32 0.0, %v2318
        %v2320 = vpop.f32.mrf.mxu0
        %v2321 = vadd.f32 0.0, %v2320
        %2322 = vmatprep.mubr.f32.mxu0 0.0
        %2323 = vmatmul.mubr.f32.gmra.mxu0 %v1126
        %v2324 = vpop.f32.mrf.mxu0
        %v2325 = vadd.f32 0.0, %v2324
        %v2326 = vpop.f32.mrf.mxu0
        %v2327 = vadd.f32 0.0, %v2326
        %2328 = vmatprep.mubr.f32.mxu0 0.0
        %2329 = vmatmul.mubr.f32.gmra.mxu0 %v1129
        %v2330 = vpop.f32.mrf.mxu0
        %v2331 = vadd.f32 0.0, %v2330
        %v2332 = vpop.f32.mrf.mxu0
        %v2333 = vadd.f32 0.0, %v2332
        %2334 = vmatprep.mubr.f32.mxu0 0.0
        %2335 = vmatmul.mubr.f32.gmra.mxu0 %v1132
        %v2336 = vpop.f32.mrf.mxu0
        %v2337 = vadd.f32 0.0, %v2336
        %v2338 = vpop.f32.mrf.mxu0
        %v2339 = vadd.f32 0.0, %v2338
        %2340 = vmatprep.mubr.f32.mxu0 0.0
        %2341 = vmatmul.mubr.f32.gmra.mxu0 %v1135
        %v2342 = vpop.f32.mrf.mxu0
        %v2343 = vadd.f32 0.0, %v2342
        %v2344 = vpop.f32.mrf.mxu0
        %v2345 = vadd.f32 0.0, %v2344
        %2346 = vmatprep.mubr.f32.mxu0 0.0
        %2347 = vmatmul.mubr.f32.gmra.mxu0 %v1138
        %v2348 = vpop.f32.mrf.mxu0
        %v2349 = vadd.f32 0.0, %v2348
        %v2350 = vpop.f32.mrf.mxu0
        %v2351 = vadd.f32 0.0, %v2350
        %2352 = vmatprep.mubr.f32.mxu0 0.0
        %2353 = vmatmul.mubr.f32.gmra.mxu0 %v1141
        %v2354 = vpop.f32.mrf.mxu0
        %v2355 = vadd.f32 0.0, %v2354
        %v2356 = vpop.f32.mrf.mxu0
        %v2357 = vadd.f32 0.0, %v2356
        %2358 = vmatprep.mubr.f32.mxu0 0.0
        %2359 = vmatmul.mubr.f32.gmra.mxu0 %v1144
        %v2360 = vpop.f32.mrf.mxu0
        %v2361 = vadd.f32 0.0, %v2360
        %v2362 = vpop.f32.mrf.mxu0
        %v2363 = vadd.f32 0.0, %v2362
        %2364 = vmatprep.mubr.f32.mxu0 0.0
        %2365 = vmatmul.mubr.f32.gmra.mxu0 %v1147
        %v2366 = vpop.f32.mrf.mxu0
        %v2367 = vadd.f32 0.0, %v2366
        %v2368 = vpop.f32.mrf.mxu0
        %v2369 = vadd.f32 0.0, %v2368
        %2370 = vmatprep.mubr.f32.mxu0 0.0
        %2371 = vmatmul.mubr.f32.gmra.mxu0 %v1150
        %v2372 = vpop.f32.mrf.mxu0
        %v2373 = vadd.f32 0.0, %v2372
        %v2374 = vpop.f32.mrf.mxu0
        %v2375 = vadd.f32 0.0, %v2374
        %2376 = vmatprep.mubr.f32.mxu0 0.0
        %2377 = vmatmul.mubr.f32.gmra.mxu0 %v1153
        %v2378 = vpop.f32.mrf.mxu0
        %v2379 = vadd.f32 0.0, %v2378
        %v2380 = vpop.f32.mrf.mxu0
        %v2381 = vadd.f32 0.0, %v2380
        %2382 = vmatprep.mubr.f32.mxu0 0.0
        %2383 = vmatmul.mubr.f32.gmra.mxu0 %v1156
        %v2384 = vpop.f32.mrf.mxu0
        %v2385 = vadd.f32 0.0, %v2384
        %v2386 = vpop.f32.mrf.mxu0
        %v2387 = vadd.f32 0.0, %v2386
        %2388 = vmatprep.mubr.f32.mxu0 0.0
        %2389 = vmatmul.mubr.f32.gmra.mxu0 %v1159
        %v2390 = vpop.f32.mrf.mxu0
        %v2391 = vadd.f32 0.0, %v2390
        %v2392 = vpop.f32.mrf.mxu0
        %v2393 = vadd.f32 0.0, %v2392
        %2394 = vmatprep.mubr.f32.mxu0 0.0
        %2395 = vmatmul.mubr.f32.gmra.mxu0 %v1162
        %v2396 = vpop.f32.mrf.mxu0
        %v2397 = vadd.f32 0.0, %v2396
        %v2398 = vpop.f32.mrf.mxu0
        %v2399 = vadd.f32 0.0, %v2398
        %2400 = vmatprep.mubr.f32.mxu0 0.0
        %2401 = vmatmul.mubr.f32.gmra.mxu0 %v1165
        %v2402 = vpop.f32.mrf.mxu0
        %v2403 = vadd.f32 0.0, %v2402
        %v2404 = vpop.f32.mrf.mxu0
        %v2405 = vadd.f32 0.0, %v2404
        %2406 = vmatprep.mubr.f32.mxu0 0.0
        %2407 = vmatmul.mubr.f32.gmra.mxu0 %v1168
        %v2408 = vpop.f32.mrf.mxu0
        %v2409 = vadd.f32 0.0, %v2408
        %v2410 = vpop.f32.mrf.mxu0
        %v2411 = vadd.f32 0.0, %v2410
        %2412 = vmatprep.mubr.f32.mxu0 0.0
        %2413 = vmatmul.mubr.f32.gmra.mxu0 %v1171
        %v2414 = vpop.f32.mrf.mxu0
        %v2415 = vadd.f32 0.0, %v2414
        %v2416 = vpop.f32.mrf.mxu0
        %v2417 = vadd.f32 0.0, %v2416
        %2418 = vmatprep.mubr.f32.mxu0 0.0
        %2419 = vmatmul.mubr.f32.gmra.mxu0 %v1174
        %v2420 = vpop.f32.mrf.mxu0
        %v2421 = vadd.f32 0.0, %v2420
        %v2422 = vpop.f32.mrf.mxu0
        %v2423 = vadd.f32 0.0, %v2422
        %2424 = vmatprep.mubr.f32.mxu0 0.0
        %2425 = vmatmul.mubr.f32.gmra.mxu0 %v1177
        %v2426 = vpop.f32.mrf.mxu0
        %v2427 = vadd.f32 0.0, %v2426
        %v2428 = vpop.f32.mrf.mxu0
        %v2429 = vadd.f32 0.0, %v2428
        %2430 = vmatprep.mubr.f32.mxu0 0.0
        %2431 = vmatmul.mubr.f32.gmra.mxu0 %v1180
        %v2432 = vpop.f32.mrf.mxu0
        %v2433 = vadd.f32 0.0, %v2432
        %v2434 = vpop.f32.mrf.mxu0
        %v2435 = vadd.f32 0.0, %v2434
        %2436 = vmatprep.mubr.f32.mxu0 0.0
        %2437 = vmatmul.mubr.f32.gmra.mxu0 %v1183
        %v2438 = vpop.f32.mrf.mxu0
        %v2439 = vadd.f32 0.0, %v2438
        %v2440 = vpop.f32.mrf.mxu0
        %v2441 = vadd.f32 0.0, %v2440
        %2442 = vmatprep.mubr.f32.mxu0 0.0
        %2443 = vmatmul.mubr.f32.gmra.mxu0 %v1186
        %v2444 = vpop.f32.mrf.mxu0
        %v2445 = vadd.f32 0.0, %v2444
        %v2446 = vpop.f32.mrf.mxu0
        %v2447 = vadd.f32 0.0, %v2446
        %2448 = vmatprep.mubr.f32.mxu0 0.0
        %2449 = vmatmul.mubr.f32.gmra.mxu0 %v1189
        %v2450 = vpop.f32.mrf.mxu0
        %v2451 = vadd.f32 0.0, %v2450
        %v2452 = vpop.f32.mrf.mxu0
        %v2453 = vadd.f32 0.0, %v2452
        %2454 = vmatprep.mubr.f32.mxu0 0.0
        %2455 = vmatmul.mubr.f32.gmra.mxu0 %v1192
        %v2456 = vpop.f32.mrf.mxu0
        %v2457 = vadd.f32 0.0, %v2456
        %v2458 = vpop.f32.mrf.mxu0
        %v2459 = vadd.f32 0.0, %v2458
        %2460 = vmatprep.mubr.f32.mxu0 0.0
        %2461 = vmatmul.mubr.f32.gmra.mxu0 %v1195
        %v2462 = vpop.f32.mrf.mxu0
        %v2463 = vadd.f32 0.0, %v2462
        %v2464 = vpop.f32.mrf.mxu0
        %v2465 = vadd.f32 0.0, %v2464
        %2466 = vmatprep.mubr.f32.mxu0 0.0
        %2467 = vmatmul.mubr.f32.gmra.mxu0 %v1198
        %v2468 = vpop.f32.mrf.mxu0
        %v2469 = vadd.f32 0.0, %v2468
        %v2470 = vpop.f32.mrf.mxu0
        %v2471 = vadd.f32 0.0, %v2470
        %2472 = vmatprep.mubr.f32.mxu0 0.0
        %2473 = vmatmul.mubr.f32.gmra.mxu0 %v1201
        %v2474 = vpop.f32.mrf.mxu0
        %v2475 = vadd.f32 0.0, %v2474
        %v2476 = vpop.f32.mrf.mxu0
        %v2477 = vadd.f32 0.0, %v2476
        %2478 = vmatprep.mubr.f32.mxu0 0.0
        %2479 = vmatmul.mubr.f32.gmra.mxu0 %v1204
        %v2480 = vpop.f32.mrf.mxu0
        %v2481 = vadd.f32 0.0, %v2480
        %v2482 = vpop.f32.mrf.mxu0
        %v2483 = vadd.f32 0.0, %v2482
        %2484 = vmatprep.mubr.f32.mxu0 0.0
        %2485 = vmatmul.mubr.f32.gmra.mxu0 %v1207
        %v2486 = vpop.f32.mrf.mxu0
        %v2487 = vadd.f32 0.0, %v2486
        %v2488 = vpop.f32.mrf.mxu0
        %v2489 = vadd.f32 0.0, %v2488
        %2490 = vmatprep.mubr.f32.mxu0 0.0
        %2491 = vmatmul.mubr.f32.gmra.mxu0 %v1210
        %v2492 = vpop.f32.mrf.mxu0
        %v2493 = vadd.f32 0.0, %v2492
        %v2494 = vpop.f32.mrf.mxu0
        %v2495 = vadd.f32 0.0, %v2494
        %2496 = vmatprep.mubr.f32.mxu0 0.0
        %2497 = vmatmul.mubr.f32.gmra.mxu0 %v1213
        %v2498 = vpop.f32.mrf.mxu0
        %v2499 = vadd.f32 0.0, %v2498
        %v2500 = vpop.f32.mrf.mxu0
        %v2501 = vadd.f32 0.0, %v2500
        %2502 = vmatprep.mubr.f32.mxu0 0.0
        %2503 = vmatmul.mubr.f32.gmra.mxu0 %v1216
        %v2504 = vpop.f32.mrf.mxu0
        %v2505 = vadd.f32 0.0, %v2504
        %v2506 = vpop.f32.mrf.mxu0
        %v2507 = vadd.f32 0.0, %v2506
        %2508 = vmatprep.mubr.f32.mxu0 0.0
        %2509 = vmatmul.mubr.f32.gmra.mxu0 %v1219
        %v2510 = vpop.f32.mrf.mxu0
        %v2511 = vadd.f32 0.0, %v2510
        %v2512 = vpop.f32.mrf.mxu0
        %v2513 = vadd.f32 0.0, %v2512
        %2514 = vmatprep.mubr.f32.mxu0 0.0
        %2515 = vmatmul.mubr.f32.gmra.mxu0 %v1222
        %v2516 = vpop.f32.mrf.mxu0
        %v2517 = vadd.f32 0.0, %v2516
        %v2518 = vpop.f32.mrf.mxu0
        %v2519 = vadd.f32 0.0, %v2518
        %2520 = vmatprep.mubr.f32.mxu0 0.0
        %2521 = vmatmul.mubr.f32.gmra.mxu0 %v1225
        %v2522 = vpop.f32.mrf.mxu0
        %v2523 = vadd.f32 0.0, %v2522
        %v2524 = vpop.f32.mrf.mxu0
        %v2525 = vadd.f32 0.0, %v2524
        %2526 = vmatprep.mubr.f32.mxu0 0.0
        %2527 = vmatmul.mubr.f32.gmra.mxu0 %v1228
        %v2528 = vpop.f32.mrf.mxu0
        %v2529 = vadd.f32 0.0, %v2528
        %v2530 = vpop.f32.mrf.mxu0
        %v2531 = vadd.f32 0.0, %v2530
        %2532 = vmatprep.mubr.f32.mxu0 0.0
        %2533 = vmatmul.mubr.f32.gmra.mxu0 %v1231
        %v2534 = vpop.f32.mrf.mxu0
        %v2535 = vadd.f32 0.0, %v2534
        %v2536 = vpop.f32.mrf.mxu0
        %v2537 = vadd.f32 0.0, %v2536
        %2538 = vmatprep.mubr.f32.mxu0 0.0
        %2539 = vmatmul.mubr.f32.gmra.mxu0 %v1234
        %v2540 = vpop.f32.mrf.mxu0
        %v2541 = vadd.f32 0.0, %v2540
        %v2542 = vpop.f32.mrf.mxu0
        %v2543 = vadd.f32 0.0, %v2542
        %2544 = vmatprep.mubr.f32.mxu0 0.0
        %2545 = vmatmul.mubr.f32.gmra.mxu0 %v1237
        %v2546 = vpop.f32.mrf.mxu0
        %v2547 = vadd.f32 0.0, %v2546
        %v2548 = vpop.f32.mrf.mxu0
        %v2549 = vadd.f32 0.0, %v2548
        %2550 = vmatprep.mubr.f32.mxu0 0.0
        %2551 = vmatmul.mubr.f32.gmra.mxu0 %v1240
        %v2552 = vpop.f32.mrf.mxu0
        %v2553 = vadd.f32 0.0, %v2552
        %v2554 = vpop.f32.mrf.mxu0
        %v2555 = vadd.f32 0.0, %v2554
        %2556 = vmatprep.mubr.f32.mxu0 0.0
        %2557 = vmatmul.mubr.f32.gmra.mxu0 %v1243
        %v2558 = vpop.f32.mrf.mxu0
        %v2559 = vadd.f32 0.0, %v2558
        %v2560 = vpop.f32.mrf.mxu0
        %v2561 = vadd.f32 0.0, %v2560
        %2562 = vmatprep.mubr.f32.mxu0 0.0
        %2563 = vmatmul.mubr.f32.gmra.mxu0 %v1246
        %v2564 = vpop.f32.mrf.mxu0
        %v2565 = vadd.f32 0.0, %v2564
        %v2566 = vpop.f32.mrf.mxu0
        %v2567 = vadd.f32 0.0, %v2566
        %2568 = vmatprep.mubr.f32.mxu0 0.0
        %2569 = vmatmul.mubr.f32.gmra.mxu0 %v1249
        %v2570 = vpop.f32.mrf.mxu0
        %v2571 = vadd.f32 0.0, %v2570
        %v2572 = vpop.f32.mrf.mxu0
        %v2573 = vadd.f32 0.0, %v2572
        %2574 = vmatprep.mubr.f32.mxu0 0.0
        %2575 = vmatmul.mubr.f32.gmra.mxu0 %v1252
        %v2576 = vpop.f32.mrf.mxu0
        %v2577 = vadd.f32 0.0, %v2576
        %v2578 = vpop.f32.mrf.mxu0
        %v2579 = vadd.f32 0.0, %v2578
        %2580 = vmatprep.mubr.f32.mxu0 0.0
        %2581 = vmatmul.mubr.f32.gmra.mxu0 %v1255
        %v2582 = vpop.f32.mrf.mxu0
        %v2583 = vadd.f32 0.0, %v2582
        %v2584 = vpop.f32.mrf.mxu0
        %v2585 = vadd.f32 0.0, %v2584
        %2586 = vmatprep.mubr.f32.mxu0 0.0
        %2587 = vmatmul.mubr.f32.gmra.mxu0 %v1258
        %v2588 = vpop.f32.mrf.mxu0
        %v2589 = vadd.f32 0.0, %v2588
        %v2590 = vpop.f32.mrf.mxu0
        %v2591 = vadd.f32 0.0, %v2590
        %2592 = vmatprep.mubr.f32.mxu0 0.0
        %2593 = vmatmul.mubr.f32.gmra.mxu0 %v1261
        %v2594 = vpop.f32.mrf.mxu0
        %v2595 = vadd.f32 0.0, %v2594
        %v2596 = vpop.f32.mrf.mxu0
        %v2597 = vadd.f32 0.0, %v2596
        %2598 = vmatprep.mubr.f32.mxu0 0.0
        %2599 = vmatmul.mubr.f32.gmra.mxu0 %v1264
        %v2600 = vpop.f32.mrf.mxu0
        %v2601 = vadd.f32 0.0, %v2600
        %v2602 = vpop.f32.mrf.mxu0
        %v2603 = vadd.f32 0.0, %v2602
        %2604 = vmatprep.mubr.f32.mxu0 0.0
        %2605 = vmatmul.mubr.f32.gmra.mxu0 %v1267
        %v2606 = vpop.f32.mrf.mxu0
        %v2607 = vadd.f32 0.0, %v2606
        %v2608 = vpop.f32.mrf.mxu0
        %v2609 = vadd.f32 0.0, %v2608
        %2610 = vmatprep.mubr.f32.mxu0 0.0
        %2611 = vmatmul.mubr.f32.gmra.mxu0 %v1270
        %v2612 = vpop.f32.mrf.mxu0
        %v2613 = vadd.f32 0.0, %v2612
        %v2614 = vpop.f32.mrf.mxu0
        %v2615 = vadd.f32 0.0, %v2614
        %2616 = vmatprep.mubr.f32.mxu0 0.0
        %2617 = vmatmul.mubr.f32.gmra.mxu0 %v1273
        %v2618 = vpop.f32.mrf.mxu0
        %v2619 = vadd.f32 0.0, %v2618
        %v2620 = vpop.f32.mrf.mxu0
        %v2621 = vadd.f32 0.0, %v2620
        %2622 = vmatprep.mubr.f32.mxu0 0.0
        %2623 = vmatmul.mubr.f32.gmra.mxu0 %v1276
        %v2624 = vpop.f32.mrf.mxu0
        %v2625 = vadd.f32 0.0, %v2624
        %v2626 = vpop.f32.mrf.mxu0
        %v2627 = vadd.f32 0.0, %v2626
        %2628 = vmatprep.mubr.f32.mxu0 0.0
        %2629 = vmatmul.mubr.f32.gmra.mxu0 %v1279
        %v2630 = vpop.f32.mrf.mxu0
        %v2631 = vadd.f32 0.0, %v2630
        %v2632 = vpop.f32.mrf.mxu0
        %v2633 = vadd.f32 0.0, %v2632
        %2634 = vmatprep.mubr.f32.mxu0 0.0
        %2635 = vmatmul.mubr.f32.gmra.mxu0 %v1282
        %v2636 = vpop.f32.mrf.mxu0
        %v2637 = vadd.f32 0.0, %v2636
        %v2638 = vpop.f32.mrf.mxu0
        %v2639 = vadd.f32 0.0, %v2638
        %2640 = vmatprep.mubr.f32.mxu0 0.0
        %2641 = vmatmul.mubr.f32.gmra.mxu0 %v1285
        %v2642 = vpop.f32.mrf.mxu0
        %v2643 = vadd.f32 0.0, %v2642
        %v2644 = vpop.f32.mrf.mxu0
        %v2645 = vadd.f32 0.0, %v2644
        %2646 = vmatprep.mubr.f32.mxu0 0.0
        %2647 = vmatmul.mubr.f32.gmra.mxu0 %v1288
        %v2648 = vpop.f32.mrf.mxu0
        %v2649 = vadd.f32 0.0, %v2648
        %v2650 = vpop.f32.mrf.mxu0
        %v2651 = vadd.f32 0.0, %v2650
        %2652 = vmatprep.mubr.f32.mxu0 0.0
        %2653 = vmatmul.mubr.f32.gmra.mxu0 %v1291
        %v2654 = vpop.f32.mrf.mxu0
        %v2655 = vadd.f32 0.0, %v2654
        %v2656 = vpop.f32.mrf.mxu0
        %v2657 = vadd.f32 0.0, %v2656
        %2658 = vmatprep.mubr.f32.mxu0 0.0
        %2659 = vmatmul.mubr.f32.gmra.mxu0 %v1294
        %v2660 = vpop.f32.mrf.mxu0
        %v2661 = vadd.f32 0.0, %v2660
        %v2662 = vpop.f32.mrf.mxu0
        %v2663 = vadd.f32 0.0, %v2662
        %2664 = vmatprep.mubr.f32.mxu0 0.0
        %2665 = vmatmul.mubr.f32.gmra.mxu0 %v1297
        %v2666 = vpop.f32.mrf.mxu0
        %v2667 = vadd.f32 0.0, %v2666
        %v2668 = vpop.f32.mrf.mxu0
        %v2669 = vadd.f32 0.0, %v2668
        %2670 = vdwg.mxu0
        %2671 = vmatprep.subr.mxu0 0.0
        %2672 = vmatpush1.msra.mxu0 0.0
        %2673 = vmatprep.subr.mxu0 0.0
        %2674 = vmatpush1.msra.mxu0 0.0
        %2675 = vmatprep.subr.mxu0 0.0
        %2676 = vmatpush1.msra.mxu0 0.0
        %2677 = vmatprep.subr.mxu0 0.0
        %2678 = vmatpush1.msra.mxu0 0.0
        %2679 = vmatprep.subr.mxu0 0.0
        %2680 = vmatpush1.msra.mxu0 0.0
        %2681 = vmatprep.subr.mxu0 0.0
        %2682 = vmatpush1.msra.mxu0 0.0
        %2683 = vmatprep.subr.mxu0 0.0
        %2684 = vmatpush1.msra.mxu0 0.0
        %2685 = vmatprep.subr.mxu0 0.0
        %2686 = vmatpush1.msra.mxu0 0.0
        %2687 = vmatprep.subr.mxu0 0.0
        %2688 = vmatpush1.msra.mxu0 0.0
        %2689 = vmatprep.subr.mxu0 0.0
        %2690 = vmatpush1.msra.mxu0 0.0
        %2691 = vmatprep.subr.mxu0 0.0
        %2692 = vmatpush1.msra.mxu0 0.0
        %2693 = vmatprep.subr.mxu0 0.0
        %2694 = vmatpush1.msra.mxu0 0.0
        %2695 = vmatprep.subr.mxu0 0.0
        %2696 = vmatpush1.msra.mxu0 0.0
        %2697 = vmatprep.subr.mxu0 0.0
        %2698 = vmatpush1.msra.mxu0 0.0
        %2699 = vmatprep.subr.mxu0 0.0
        %2700 = vmatpush1.msra.mxu0 0.0
        %2701 = vmatprep.subr.mxu0 %v1322
        %2702 = vmatpush1.msra.mxu0 %v1319
        %2703 = vmatprep.subr.mxu0 0.0
        %2704 = vmatpush2.msra.mxu0 0.0
        %2705 = vmatprep.subr.mxu0 0.0
        %2706 = vmatpush2.msra.mxu0 0.0
        %2707 = vmatprep.subr.mxu0 0.0
        %2708 = vmatpush2.msra.mxu0 0.0
        %2709 = vmatprep.subr.mxu0 0.0
        %2710 = vmatpush2.msra.mxu0 0.0
        %2711 = vmatprep.subr.mxu0 0.0
        %2712 = vmatpush2.msra.mxu0 0.0
        %2713 = vmatprep.subr.mxu0 0.0
        %2714 = vmatpush2.msra.mxu0 0.0
        %2715 = vmatprep.subr.mxu0 0.0
        %2716 = vmatpush2.msra.mxu0 0.0
        %2717 = vmatprep.subr.mxu0 0.0
        %2718 = vmatpush2.msra.mxu0 0.0
        %2719 = vmatprep.subr.mxu0 0.0
        %2720 = vmatpush2.msra.mxu0 0.0
        %2721 = vmatprep.subr.mxu0 0.0
        %2722 = vmatpush2.msra.mxu0 0.0
        %2723 = vmatprep.subr.mxu0 0.0
        %2724 = vmatpush2.msra.mxu0 0.0
        %2725 = vmatprep.subr.mxu0 0.0
        %2726 = vmatpush2.msra.mxu0 0.0
        %2727 = vmatprep.subr.mxu0 0.0
        %2728 = vmatpush2.msra.mxu0 0.0
        %2729 = vmatprep.subr.mxu0 0.0
        %2730 = vmatpush2.msra.mxu0 0.0
        %2731 = vmatprep.subr.mxu0 0.0
        %2732 = vmatpush2.msra.mxu0 0.0
        %2733 = vmatprep.subr.mxu0 0.0
        %2734 = vmatpush2.msra.mxu0 0.0
        %2735 = vmatprep.mubr.f32.mxu0 0.0
        %2736 = vmatmul.mubr.f32.gmra.mxu0 %v1108
        %v2737 = vpop.f32.mrf.mxu0
        %v2738 = vadd.f32 0.0, %v2737
        %v2739 = vpop.f32.mrf.mxu0
        %v2740 = vadd.f32 0.0, %v2739
        %2741 = vmatprep.mubr.f32.mxu0 0.0
        %2742 = vmatmul.mubr.f32.gmra.mxu0 %v1111
        %v2743 = vpop.f32.mrf.mxu0
        %v2744 = vadd.f32 0.0, %v2743
        %v2745 = vpop.f32.mrf.mxu0
        %v2746 = vadd.f32 0.0, %v2745
        %2747 = vmatprep.mubr.f32.mxu0 0.0
        %2748 = vmatmul.mubr.f32.gmra.mxu0 %v1114
        %v2749 = vpop.f32.mrf.mxu0
        %v2750 = vadd.f32 0.0, %v2749
        %v2751 = vpop.f32.mrf.mxu0
        %v2752 = vadd.f32 0.0, %v2751
        %2753 = vmatprep.mubr.f32.mxu0 0.0
        %2754 = vmatmul.mubr.f32.gmra.mxu0 %v1117
        %v2755 = vpop.f32.mrf.mxu0
        %v2756 = vadd.f32 0.0, %v2755
        %v2757 = vpop.f32.mrf.mxu0
        %v2758 = vadd.f32 0.0, %v2757
        %2759 = vmatprep.mubr.f32.mxu0 0.0
        %2760 = vmatmul.mubr.f32.gmra.mxu0 %v1120
        %v2761 = vpop.f32.mrf.mxu0
        %v2762 = vadd.f32 0.0, %v2761
        %v2763 = vpop.f32.mrf.mxu0
        %v2764 = vadd.f32 0.0, %v2763
        %2765 = vmatprep.mubr.f32.mxu0 0.0
        %2766 = vmatmul.mubr.f32.gmra.mxu0 %v1123
        %v2767 = vpop.f32.mrf.mxu0
        %v2768 = vadd.f32 0.0, %v2767
        %v2769 = vpop.f32.mrf.mxu0
        %v2770 = vadd.f32 0.0, %v2769
        %2771 = vmatprep.mubr.f32.mxu0 0.0
        %2772 = vmatmul.mubr.f32.gmra.mxu0 %v1126
        %v2773 = vpop.f32.mrf.mxu0
        %v2774 = vadd.f32 0.0, %v2773
        %v2775 = vpop.f32.mrf.mxu0
        %v2776 = vadd.f32 0.0, %v2775
        %2777 = vmatprep.mubr.f32.mxu0 0.0
        %2778 = vmatmul.mubr.f32.gmra.mxu0 %v1129
        %v2779 = vpop.f32.mrf.mxu0
        %v2780 = vadd.f32 0.0, %v2779
        %v2781 = vpop.f32.mrf.mxu0
        %v2782 = vadd.f32 0.0, %v2781
        %2783 = vmatprep.mubr.f32.mxu0 0.0
        %2784 = vmatmul.mubr.f32.gmra.mxu0 %v1132
        %v2785 = vpop.f32.mrf.mxu0
        %v2786 = vadd.f32 0.0, %v2785
        %v2787 = vpop.f32.mrf.mxu0
        %v2788 = vadd.f32 0.0, %v2787
        %2789 = vmatprep.mubr.f32.mxu0 0.0
        %2790 = vmatmul.mubr.f32.gmra.mxu0 %v1135
        %v2791 = vpop.f32.mrf.mxu0
        %v2792 = vadd.f32 0.0, %v2791
        %v2793 = vpop.f32.mrf.mxu0
        %v2794 = vadd.f32 0.0, %v2793
        %2795 = vmatprep.mubr.f32.mxu0 0.0
        %2796 = vmatmul.mubr.f32.gmra.mxu0 %v1138
        %v2797 = vpop.f32.mrf.mxu0
        %v2798 = vadd.f32 0.0, %v2797
        %v2799 = vpop.f32.mrf.mxu0
        %v2800 = vadd.f32 0.0, %v2799
        %2801 = vmatprep.mubr.f32.mxu0 0.0
        %2802 = vmatmul.mubr.f32.gmra.mxu0 %v1141
        %v2803 = vpop.f32.mrf.mxu0
        %v2804 = vadd.f32 0.0, %v2803
        %v2805 = vpop.f32.mrf.mxu0
        %v2806 = vadd.f32 0.0, %v2805
        %2807 = vmatprep.mubr.f32.mxu0 0.0
        %2808 = vmatmul.mubr.f32.gmra.mxu0 %v1144
        %v2809 = vpop.f32.mrf.mxu0
        %v2810 = vadd.f32 0.0, %v2809
        %v2811 = vpop.f32.mrf.mxu0
        %v2812 = vadd.f32 0.0, %v2811
        %2813 = vmatprep.mubr.f32.mxu0 0.0
        %2814 = vmatmul.mubr.f32.gmra.mxu0 %v1147
        %v2815 = vpop.f32.mrf.mxu0
        %v2816 = vadd.f32 0.0, %v2815
        %v2817 = vpop.f32.mrf.mxu0
        %v2818 = vadd.f32 0.0, %v2817
        %2819 = vmatprep.mubr.f32.mxu0 0.0
        %2820 = vmatmul.mubr.f32.gmra.mxu0 %v1150
        %v2821 = vpop.f32.mrf.mxu0
        %v2822 = vadd.f32 0.0, %v2821
        %v2823 = vpop.f32.mrf.mxu0
        %v2824 = vadd.f32 0.0, %v2823
        %2825 = vmatprep.mubr.f32.mxu0 0.0
        %2826 = vmatmul.mubr.f32.gmra.mxu0 %v1153
        %v2827 = vpop.f32.mrf.mxu0
        %v2828 = vadd.f32 0.0, %v2827
        %v2829 = vpop.f32.mrf.mxu0
        %v2830 = vadd.f32 0.0, %v2829
        %2831 = vmatprep.mubr.f32.mxu0 0.0
        %2832 = vmatmul.mubr.f32.gmra.mxu0 %v1156
        %v2833 = vpop.f32.mrf.mxu0
        %v2834 = vadd.f32 0.0, %v2833
        %v2835 = vpop.f32.mrf.mxu0
        %v2836 = vadd.f32 0.0, %v2835
        %2837 = vmatprep.mubr.f32.mxu0 0.0
        %2838 = vmatmul.mubr.f32.gmra.mxu0 %v1159
        %v2839 = vpop.f32.mrf.mxu0
        %v2840 = vadd.f32 0.0, %v2839
        %v2841 = vpop.f32.mrf.mxu0
        %v2842 = vadd.f32 0.0, %v2841
        %2843 = vmatprep.mubr.f32.mxu0 0.0
        %2844 = vmatmul.mubr.f32.gmra.mxu0 %v1162
        %v2845 = vpop.f32.mrf.mxu0
        %v2846 = vadd.f32 0.0, %v2845
        %v2847 = vpop.f32.mrf.mxu0
        %v2848 = vadd.f32 0.0, %v2847
        %2849 = vmatprep.mubr.f32.mxu0 0.0
        %2850 = vmatmul.mubr.f32.gmra.mxu0 %v1165
        %v2851 = vpop.f32.mrf.mxu0
        %v2852 = vadd.f32 0.0, %v2851
        %v2853 = vpop.f32.mrf.mxu0
        %v2854 = vadd.f32 0.0, %v2853
        %2855 = vmatprep.mubr.f32.mxu0 0.0
        %2856 = vmatmul.mubr.f32.gmra.mxu0 %v1168
        %v2857 = vpop.f32.mrf.mxu0
        %v2858 = vadd.f32 0.0, %v2857
        %v2859 = vpop.f32.mrf.mxu0
        %v2860 = vadd.f32 0.0, %v2859
        %2861 = vmatprep.mubr.f32.mxu0 0.0
        %2862 = vmatmul.mubr.f32.gmra.mxu0 %v1171
        %v2863 = vpop.f32.mrf.mxu0
        %v2864 = vadd.f32 0.0, %v2863
        %v2865 = vpop.f32.mrf.mxu0
        %v2866 = vadd.f32 0.0, %v2865
        %2867 = vmatprep.mubr.f32.mxu0 0.0
        %2868 = vmatmul.mubr.f32.gmra.mxu0 %v1174
        %v2869 = vpop.f32.mrf.mxu0
        %v2870 = vadd.f32 0.0, %v2869
        %v2871 = vpop.f32.mrf.mxu0
        %v2872 = vadd.f32 0.0, %v2871
        %2873 = vmatprep.mubr.f32.mxu0 0.0
        %2874 = vmatmul.mubr.f32.gmra.mxu0 %v1177
        %v2875 = vpop.f32.mrf.mxu0
        %v2876 = vadd.f32 0.0, %v2875
        %v2877 = vpop.f32.mrf.mxu0
        %v2878 = vadd.f32 0.0, %v2877
        %2879 = vmatprep.mubr.f32.mxu0 0.0
        %2880 = vmatmul.mubr.f32.gmra.mxu0 %v1180
        %v2881 = vpop.f32.mrf.mxu0
        %v2882 = vadd.f32 0.0, %v2881
        %v2883 = vpop.f32.mrf.mxu0
        %v2884 = vadd.f32 0.0, %v2883
        %2885 = vmatprep.mubr.f32.mxu0 0.0
        %2886 = vmatmul.mubr.f32.gmra.mxu0 %v1183
        %v2887 = vpop.f32.mrf.mxu0
        %v2888 = vadd.f32 0.0, %v2887
        %v2889 = vpop.f32.mrf.mxu0
        %v2890 = vadd.f32 0.0, %v2889
        %2891 = vmatprep.mubr.f32.mxu0 0.0
        %2892 = vmatmul.mubr.f32.gmra.mxu0 %v1186
        %v2893 = vpop.f32.mrf.mxu0
        %v2894 = vadd.f32 0.0, %v2893
        %v2895 = vpop.f32.mrf.mxu0
        %v2896 = vadd.f32 0.0, %v2895
        %2897 = vmatprep.mubr.f32.mxu0 0.0
        %2898 = vmatmul.mubr.f32.gmra.mxu0 %v1189
        %v2899 = vpop.f32.mrf.mxu0
        %v2900 = vadd.f32 0.0, %v2899
        %v2901 = vpop.f32.mrf.mxu0
        %v2902 = vadd.f32 0.0, %v2901
        %2903 = vmatprep.mubr.f32.mxu0 0.0
        %2904 = vmatmul.mubr.f32.gmra.mxu0 %v1192
        %v2905 = vpop.f32.mrf.mxu0
        %v2906 = vadd.f32 0.0, %v2905
        %v2907 = vpop.f32.mrf.mxu0
        %v2908 = vadd.f32 0.0, %v2907
        %2909 = vmatprep.mubr.f32.mxu0 0.0
        %2910 = vmatmul.mubr.f32.gmra.mxu0 %v1195
        %v2911 = vpop.f32.mrf.mxu0
        %v2912 = vadd.f32 0.0, %v2911
        %v2913 = vpop.f32.mrf.mxu0
        %v2914 = vadd.f32 0.0, %v2913
        %2915 = vmatprep.mubr.f32.mxu0 0.0
        %2916 = vmatmul.mubr.f32.gmra.mxu0 %v1198
        %v2917 = vpop.f32.mrf.mxu0
        %v2918 = vadd.f32 0.0, %v2917
        %v2919 = vpop.f32.mrf.mxu0
        %v2920 = vadd.f32 0.0, %v2919
        %2921 = vmatprep.mubr.f32.mxu0 0.0
        %2922 = vmatmul.mubr.f32.gmra.mxu0 %v1201
        %v2923 = vpop.f32.mrf.mxu0
        %v2924 = vadd.f32 0.0, %v2923
        %v2925 = vpop.f32.mrf.mxu0
        %v2926 = vadd.f32 0.0, %v2925
        %2927 = vmatprep.mubr.f32.mxu0 0.0
        %2928 = vmatmul.mubr.f32.gmra.mxu0 %v1204
        %v2929 = vpop.f32.mrf.mxu0
        %v2930 = vadd.f32 0.0, %v2929
        %v2931 = vpop.f32.mrf.mxu0
        %v2932 = vadd.f32 0.0, %v2931
        %2933 = vmatprep.mubr.f32.mxu0 0.0
        %2934 = vmatmul.mubr.f32.gmra.mxu0 %v1207
        %v2935 = vpop.f32.mrf.mxu0
        %v2936 = vadd.f32 0.0, %v2935
        %v2937 = vpop.f32.mrf.mxu0
        %v2938 = vadd.f32 0.0, %v2937
        %2939 = vmatprep.mubr.f32.mxu0 0.0
        %2940 = vmatmul.mubr.f32.gmra.mxu0 %v1210
        %v2941 = vpop.f32.mrf.mxu0
        %v2942 = vadd.f32 0.0, %v2941
        %v2943 = vpop.f32.mrf.mxu0
        %v2944 = vadd.f32 0.0, %v2943
        %2945 = vmatprep.mubr.f32.mxu0 0.0
        %2946 = vmatmul.mubr.f32.gmra.mxu0 %v1213
        %v2947 = vpop.f32.mrf.mxu0
        %v2948 = vadd.f32 0.0, %v2947
        %v2949 = vpop.f32.mrf.mxu0
        %v2950 = vadd.f32 0.0, %v2949
        %2951 = vmatprep.mubr.f32.mxu0 0.0
        %2952 = vmatmul.mubr.f32.gmra.mxu0 %v1216
        %v2953 = vpop.f32.mrf.mxu0
        %v2954 = vadd.f32 0.0, %v2953
        %v2955 = vpop.f32.mrf.mxu0
        %v2956 = vadd.f32 0.0, %v2955
        %2957 = vmatprep.mubr.f32.mxu0 0.0
        %2958 = vmatmul.mubr.f32.gmra.mxu0 %v1219
        %v2959 = vpop.f32.mrf.mxu0
        %v2960 = vadd.f32 0.0, %v2959
        %v2961 = vpop.f32.mrf.mxu0
        %v2962 = vadd.f32 0.0, %v2961
        %2963 = vmatprep.mubr.f32.mxu0 0.0
        %2964 = vmatmul.mubr.f32.gmra.mxu0 %v1222
        %v2965 = vpop.f32.mrf.mxu0
        %v2966 = vadd.f32 0.0, %v2965
        %v2967 = vpop.f32.mrf.mxu0
        %v2968 = vadd.f32 0.0, %v2967
        %2969 = vmatprep.mubr.f32.mxu0 0.0
        %2970 = vmatmul.mubr.f32.gmra.mxu0 %v1225
        %v2971 = vpop.f32.mrf.mxu0
        %v2972 = vadd.f32 0.0, %v2971
        %v2973 = vpop.f32.mrf.mxu0
        %v2974 = vadd.f32 0.0, %v2973
        %2975 = vmatprep.mubr.f32.mxu0 0.0
        %2976 = vmatmul.mubr.f32.gmra.mxu0 %v1228
        %v2977 = vpop.f32.mrf.mxu0
        %v2978 = vadd.f32 0.0, %v2977
        %v2979 = vpop.f32.mrf.mxu0
        %v2980 = vadd.f32 0.0, %v2979
        %2981 = vmatprep.mubr.f32.mxu0 0.0
        %2982 = vmatmul.mubr.f32.gmra.mxu0 %v1231
        %v2983 = vpop.f32.mrf.mxu0
        %v2984 = vadd.f32 0.0, %v2983
        %v2985 = vpop.f32.mrf.mxu0
        %v2986 = vadd.f32 0.0, %v2985
        %2987 = vmatprep.mubr.f32.mxu0 0.0
        %2988 = vmatmul.mubr.f32.gmra.mxu0 %v1234
        %v2989 = vpop.f32.mrf.mxu0
        %v2990 = vadd.f32 0.0, %v2989
        %v2991 = vpop.f32.mrf.mxu0
        %v2992 = vadd.f32 0.0, %v2991
        %2993 = vmatprep.mubr.f32.mxu0 0.0
        %2994 = vmatmul.mubr.f32.gmra.mxu0 %v1237
        %v2995 = vpop.f32.mrf.mxu0
        %v2996 = vadd.f32 0.0, %v2995
        %v2997 = vpop.f32.mrf.mxu0
        %v2998 = vadd.f32 0.0, %v2997
        %2999 = vmatprep.mubr.f32.mxu0 0.0
        %3000 = vmatmul.mubr.f32.gmra.mxu0 %v1240
        %v3001 = vpop.f32.mrf.mxu0
        %v3002 = vadd.f32 0.0, %v3001
        %v3003 = vpop.f32.mrf.mxu0
        %v3004 = vadd.f32 0.0, %v3003
        %3005 = vmatprep.mubr.f32.mxu0 0.0
        %3006 = vmatmul.mubr.f32.gmra.mxu0 %v1243
        %v3007 = vpop.f32.mrf.mxu0
        %v3008 = vadd.f32 0.0, %v3007
        %v3009 = vpop.f32.mrf.mxu0
        %v3010 = vadd.f32 0.0, %v3009
        %3011 = vmatprep.mubr.f32.mxu0 0.0
        %3012 = vmatmul.mubr.f32.gmra.mxu0 %v1246
        %v3013 = vpop.f32.mrf.mxu0
        %v3014 = vadd.f32 0.0, %v3013
        %v3015 = vpop.f32.mrf.mxu0
        %v3016 = vadd.f32 0.0, %v3015
        %3017 = vmatprep.mubr.f32.mxu0 0.0
        %3018 = vmatmul.mubr.f32.gmra.mxu0 %v1249
        %v3019 = vpop.f32.mrf.mxu0
        %v3020 = vadd.f32 0.0, %v3019
        %v3021 = vpop.f32.mrf.mxu0
        %v3022 = vadd.f32 0.0, %v3021
        %3023 = vmatprep.mubr.f32.mxu0 0.0
        %3024 = vmatmul.mubr.f32.gmra.mxu0 %v1252
        %v3025 = vpop.f32.mrf.mxu0
        %v3026 = vadd.f32 0.0, %v3025
        %v3027 = vpop.f32.mrf.mxu0
        %v3028 = vadd.f32 0.0, %v3027
        %3029 = vmatprep.mubr.f32.mxu0 0.0
        %3030 = vmatmul.mubr.f32.gmra.mxu0 %v1255
        %v3031 = vpop.f32.mrf.mxu0
        %v3032 = vadd.f32 0.0, %v3031
        %v3033 = vpop.f32.mrf.mxu0
        %v3034 = vadd.f32 0.0, %v3033
        %3035 = vmatprep.mubr.f32.mxu0 0.0
        %3036 = vmatmul.mubr.f32.gmra.mxu0 %v1258
        %v3037 = vpop.f32.mrf.mxu0
        %v3038 = vadd.f32 0.0, %v3037
        %v3039 = vpop.f32.mrf.mxu0
        %v3040 = vadd.f32 0.0, %v3039
        %3041 = vmatprep.mubr.f32.mxu0 0.0
        %3042 = vmatmul.mubr.f32.gmra.mxu0 %v1261
        %v3043 = vpop.f32.mrf.mxu0
        %v3044 = vadd.f32 0.0, %v3043
        %v3045 = vpop.f32.mrf.mxu0
        %v3046 = vadd.f32 0.0, %v3045
        %3047 = vmatprep.mubr.f32.mxu0 0.0
        %3048 = vmatmul.mubr.f32.gmra.mxu0 %v1264
        %v3049 = vpop.f32.mrf.mxu0
        %v3050 = vadd.f32 0.0, %v3049
        %v3051 = vpop.f32.mrf.mxu0
        %v3052 = vadd.f32 0.0, %v3051
        %3053 = vmatprep.mubr.f32.mxu0 0.0
        %3054 = vmatmul.mubr.f32.gmra.mxu0 %v1267
        %v3055 = vpop.f32.mrf.mxu0
        %v3056 = vadd.f32 0.0, %v3055
        %v3057 = vpop.f32.mrf.mxu0
        %v3058 = vadd.f32 0.0, %v3057
        %3059 = vmatprep.mubr.f32.mxu0 0.0
        %3060 = vmatmul.mubr.f32.gmra.mxu0 %v1270
        %v3061 = vpop.f32.mrf.mxu0
        %v3062 = vadd.f32 0.0, %v3061
        %v3063 = vpop.f32.mrf.mxu0
        %v3064 = vadd.f32 0.0, %v3063
        %3065 = vmatprep.mubr.f32.mxu0 0.0
        %3066 = vmatmul.mubr.f32.gmra.mxu0 %v1273
        %v3067 = vpop.f32.mrf.mxu0
        %v3068 = vadd.f32 0.0, %v3067
        %v3069 = vpop.f32.mrf.mxu0
        %v3070 = vadd.f32 0.0, %v3069
        %3071 = vmatprep.mubr.f32.mxu0 0.0
        %3072 = vmatmul.mubr.f32.gmra.mxu0 %v1276
        %v3073 = vpop.f32.mrf.mxu0
        %v3074 = vadd.f32 0.0, %v3073
        %v3075 = vpop.f32.mrf.mxu0
        %v3076 = vadd.f32 0.0, %v3075
        %3077 = vmatprep.mubr.f32.mxu0 0.0
        %3078 = vmatmul.mubr.f32.gmra.mxu0 %v1279
        %v3079 = vpop.f32.mrf.mxu0
        %v3080 = vadd.f32 0.0, %v3079
        %v3081 = vpop.f32.mrf.mxu0
        %v3082 = vadd.f32 0.0, %v3081
        %3083 = vmatprep.mubr.f32.mxu0 0.0
        %3084 = vmatmul.mubr.f32.gmra.mxu0 %v1282
        %v3085 = vpop.f32.mrf.mxu0
        %v3086 = vadd.f32 0.0, %v3085
        %v3087 = vpop.f32.mrf.mxu0
        %v3088 = vadd.f32 0.0, %v3087
        %3089 = vmatprep.mubr.f32.mxu0 0.0
        %3090 = vmatmul.mubr.f32.gmra.mxu0 %v1285
        %v3091 = vpop.f32.mrf.mxu0
        %v3092 = vadd.f32 0.0, %v3091
        %v3093 = vpop.f32.mrf.mxu0
        %v3094 = vadd.f32 0.0, %v3093
        %3095 = vmatprep.mubr.f32.mxu0 0.0
        %3096 = vmatmul.mubr.f32.gmra.mxu0 %v1288
        %v3097 = vpop.f32.mrf.mxu0
        %v3098 = vadd.f32 0.0, %v3097
        %v3099 = vpop.f32.mrf.mxu0
        %v3100 = vadd.f32 0.0, %v3099
        %3101 = vmatprep.mubr.f32.mxu0 0.0
        %3102 = vmatmul.mubr.f32.gmra.mxu0 %v1291
        %v3103 = vpop.f32.mrf.mxu0
        %v3104 = vadd.f32 0.0, %v3103
        %v3105 = vpop.f32.mrf.mxu0
        %v3106 = vadd.f32 0.0, %v3105
        %3107 = vmatprep.mubr.f32.mxu0 0.0
        %3108 = vmatmul.mubr.f32.gmra.mxu0 %v1294
        %v3109 = vpop.f32.mrf.mxu0
        %v3110 = vadd.f32 0.0, %v3109
        %v3111 = vpop.f32.mrf.mxu0
        %v3112 = vadd.f32 0.0, %v3111
        %3113 = vmatprep.mubr.f32.mxu0 0.0
        %3114 = vmatmul.mubr.f32.gmra.mxu0 %v1297
        %v3115 = vpop.f32.mrf.mxu0
        %v3116 = vadd.f32 0.0, %v3115
        %v3117 = vpop.f32.mrf.mxu0
        %v3118 = vadd.f32 0.0, %v3117
        %3119 = vdwg.mxu0
        %v3120 = vmax.f32 %v1391, %v1393
        %v3121 = vmax.f32 %v3120, %v1840
        %v3122 = vmax.f32 %v3121, %v1842
        %v3123 = vmax.f32 %v3122, %v2289
        %v3124 = vmax.f32 %v3123, %v2291
        %v3125 = vmax.f32 %v3124, %v2738
        %v3126 = vmax.f32 %v3125, %v2740
        %3127 = vmax.xlane.f32.xlu0 %v3126
        %v3128 = vpop.xlane.xlu0 %3127
        %v3129 = vmax.f32 %v1397, %v1399
        %v3130 = vmax.f32 %v3129, %v1846
        %v3131 = vmax.f32 %v3130, %v1848
        %v3132 = vmax.f32 %v3131, %v2295
        %v3133 = vmax.f32 %v3132, %v2297
        %v3134 = vmax.f32 %v3133, %v2744
        %v3135 = vmax.f32 %v3134, %v2746
        %3136 = vmax.xlane.f32.xlu0 %v3135
        %v3137 = vpop.xlane.xlu0 %3136
        %v3138 = vmax.f32 %v1403, %v1405
        %v3139 = vmax.f32 %v3138, %v1852
        %v3140 = vmax.f32 %v3139, %v1854
        %v3141 = vmax.f32 %v3140, %v2301
        %v3142 = vmax.f32 %v3141, %v2303
        %v3143 = vmax.f32 %v3142, %v2750
        %v3144 = vmax.f32 %v3143, %v2752
        %3145 = vmax.xlane.f32.xlu0 %v3144
        %v3146 = vpop.xlane.xlu0 %3145
        %v3147 = vmax.f32 %v1409, %v1411
        %v3148 = vmax.f32 %v3147, %v1858
        %v3149 = vmax.f32 %v3148, %v1860
        %v3150 = vmax.f32 %v3149, %v2307
        %v3151 = vmax.f32 %v3150, %v2309
        %v3152 = vmax.f32 %v3151, %v2756
        %v3153 = vmax.f32 %v3152, %v2758
        %3154 = vmax.xlane.f32.xlu0 %v3153
        %v3155 = vpop.xlane.xlu0 %3154
        %v3156 = vmax.f32 %v1415, %v1417
        %v3157 = vmax.f32 %v3156, %v1864
        %v3158 = vmax.f32 %v3157, %v1866
        %v3159 = vmax.f32 %v3158, %v2313
        %v3160 = vmax.f32 %v3159, %v2315
        %v3161 = vmax.f32 %v3160, %v2762
        %v3162 = vmax.f32 %v3161, %v2764
        %3163 = vmax.xlane.f32.xlu0 %v3162
        %v3164 = vpop.xlane.xlu0 %3163
        %v3165 = vmax.f32 %v1421, %v1423
        %v3166 = vmax.f32 %v3165, %v1870
        %v3167 = vmax.f32 %v3166, %v1872
        %v3168 = vmax.f32 %v3167, %v2319
        %v3169 = vmax.f32 %v3168, %v2321
        %v3170 = vmax.f32 %v3169, %v2768
        %v3171 = vmax.f32 %v3170, %v2770
        %3172 = vmax.xlane.f32.xlu0 %v3171
        %v3173 = vpop.xlane.xlu0 %3172
        %v3174 = vmax.f32 %v1427, %v1429
        %v3175 = vmax.f32 %v3174, %v1876
        %v3176 = vmax.f32 %v3175, %v1878
        %v3177 = vmax.f32 %v3176, %v2325
        %v3178 = vmax.f32 %v3177, %v2327
        %v3179 = vmax.f32 %v3178, %v2774
        %v3180 = vmax.f32 %v3179, %v2776
        %3181 = vmax.xlane.f32.xlu0 %v3180
        %v3182 = vpop.xlane.xlu0 %3181
        %v3183 = vmax.f32 %v1433, %v1435
        %v3184 = vmax.f32 %v3183, %v1882
        %v3185 = vmax.f32 %v3184, %v1884
        %v3186 = vmax.f32 %v3185, %v2331
        %v3187 = vmax.f32 %v3186, %v2333
        %v3188 = vmax.f32 %v3187, %v2780
        %v3189 = vmax.f32 %v3188, %v2782
        %3190 = vmax.xlane.f32.xlu0 %v3189
        %v3191 = vpop.xlane.xlu0 %3190
        %v3192 = vmax.f32 %v1439, %v1441
        %v3193 = vmax.f32 %v3192, %v1888
        %v3194 = vmax.f32 %v3193, %v1890
        %v3195 = vmax.f32 %v3194, %v2337
        %v3196 = vmax.f32 %v3195, %v2339
        %v3197 = vmax.f32 %v3196, %v2786
        %v3198 = vmax.f32 %v3197, %v2788
        %3199 = vmax.xlane.f32.xlu0 %v3198
        %v3200 = vpop.xlane.xlu0 %3199
        %v3201 = vmax.f32 %v1445, %v1447
        %v3202 = vmax.f32 %v3201, %v1894
        %v3203 = vmax.f32 %v3202, %v1896
        %v3204 = vmax.f32 %v3203, %v2343
        %v3205 = vmax.f32 %v3204, %v2345
        %v3206 = vmax.f32 %v3205, %v2792
        %v3207 = vmax.f32 %v3206, %v2794
        %3208 = vmax.xlane.f32.xlu0 %v3207
        %v3209 = vpop.xlane.xlu0 %3208
        %v3210 = vmax.f32 %v1451, %v1453
        %v3211 = vmax.f32 %v3210, %v1900
        %v3212 = vmax.f32 %v3211, %v1902
        %v3213 = vmax.f32 %v3212, %v2349
        %v3214 = vmax.f32 %v3213, %v2351
        %v3215 = vmax.f32 %v3214, %v2798
        %v3216 = vmax.f32 %v3215, %v2800
        %3217 = vmax.xlane.f32.xlu0 %v3216
        %v3218 = vpop.xlane.xlu0 %3217
        %v3219 = vmax.f32 %v1457, %v1459
        %v3220 = vmax.f32 %v3219, %v1906
        %v3221 = vmax.f32 %v3220, %v1908
        %v3222 = vmax.f32 %v3221, %v2355
        %v3223 = vmax.f32 %v3222, %v2357
        %v3224 = vmax.f32 %v3223, %v2804
        %v3225 = vmax.f32 %v3224, %v2806
        %3226 = vmax.xlane.f32.xlu0 %v3225
        %v3227 = vpop.xlane.xlu0 %3226
        %v3228 = vmax.f32 %v1463, %v1465
        %v3229 = vmax.f32 %v3228, %v1912
        %v3230 = vmax.f32 %v3229, %v1914
        %v3231 = vmax.f32 %v3230, %v2361
        %v3232 = vmax.f32 %v3231, %v2363
        %v3233 = vmax.f32 %v3232, %v2810
        %v3234 = vmax.f32 %v3233, %v2812
        %3235 = vmax.xlane.f32.xlu0 %v3234
        %v3236 = vpop.xlane.xlu0 %3235
        %v3237 = vmax.f32 %v1469, %v1471
        %v3238 = vmax.f32 %v3237, %v1918
        %v3239 = vmax.f32 %v3238, %v1920
        %v3240 = vmax.f32 %v3239, %v2367
        %v3241 = vmax.f32 %v3240, %v2369
        %v3242 = vmax.f32 %v3241, %v2816
        %v3243 = vmax.f32 %v3242, %v2818
        %3244 = vmax.xlane.f32.xlu0 %v3243
        %v3245 = vpop.xlane.xlu0 %3244
        %v3246 = vmax.f32 %v1475, %v1477
        %v3247 = vmax.f32 %v3246, %v1924
        %v3248 = vmax.f32 %v3247, %v1926
        %v3249 = vmax.f32 %v3248, %v2373
        %v3250 = vmax.f32 %v3249, %v2375
        %v3251 = vmax.f32 %v3250, %v2822
        %v3252 = vmax.f32 %v3251, %v2824
        %3253 = vmax.xlane.f32.xlu0 %v3252
        %v3254 = vpop.xlane.xlu0 %3253
        %v3255 = vmax.f32 %v1481, %v1483
        %v3256 = vmax.f32 %v3255, %v1930
        %v3257 = vmax.f32 %v3256, %v1932
        %v3258 = vmax.f32 %v3257, %v2379
        %v3259 = vmax.f32 %v3258, %v2381
        %v3260 = vmax.f32 %v3259, %v2828
        %v3261 = vmax.f32 %v3260, %v2830
        %3262 = vmax.xlane.f32.xlu0 %v3261
        %v3263 = vpop.xlane.xlu0 %3262
        %v3264 = vmax.f32 %v1487, %v1489
        %v3265 = vmax.f32 %v3264, %v1936
        %v3266 = vmax.f32 %v3265, %v1938
        %v3267 = vmax.f32 %v3266, %v2385
        %v3268 = vmax.f32 %v3267, %v2387
        %v3269 = vmax.f32 %v3268, %v2834
        %v3270 = vmax.f32 %v3269, %v2836
        %3271 = vmax.xlane.f32.xlu0 %v3270
        %v3272 = vpop.xlane.xlu0 %3271
        %v3273 = vmax.f32 %v1493, %v1495
        %v3274 = vmax.f32 %v3273, %v1942
        %v3275 = vmax.f32 %v3274, %v1944
        %v3276 = vmax.f32 %v3275, %v2391
        %v3277 = vmax.f32 %v3276, %v2393
        %v3278 = vmax.f32 %v3277, %v2840
        %v3279 = vmax.f32 %v3278, %v2842
        %3280 = vmax.xlane.f32.xlu0 %v3279
        %v3281 = vpop.xlane.xlu0 %3280
        %v3282 = vmax.f32 %v1499, %v1501
        %v3283 = vmax.f32 %v3282, %v1948
        %v3284 = vmax.f32 %v3283, %v1950
        %v3285 = vmax.f32 %v3284, %v2397
        %v3286 = vmax.f32 %v3285, %v2399
        %v3287 = vmax.f32 %v3286, %v2846
        %v3288 = vmax.f32 %v3287, %v2848
        %3289 = vmax.xlane.f32.xlu0 %v3288
        %v3290 = vpop.xlane.xlu0 %3289
        %v3291 = vmax.f32 %v1505, %v1507
        %v3292 = vmax.f32 %v3291, %v1954
        %v3293 = vmax.f32 %v3292, %v1956
        %v3294 = vmax.f32 %v3293, %v2403
        %v3295 = vmax.f32 %v3294, %v2405
        %v3296 = vmax.f32 %v3295, %v2852
        %v3297 = vmax.f32 %v3296, %v2854
        %3298 = vmax.xlane.f32.xlu0 %v3297
        %v3299 = vpop.xlane.xlu0 %3298
        %v3300 = vmax.f32 %v1511, %v1513
        %v3301 = vmax.f32 %v3300, %v1960
        %v3302 = vmax.f32 %v3301, %v1962
        %v3303 = vmax.f32 %v3302, %v2409
        %v3304 = vmax.f32 %v3303, %v2411
        %v3305 = vmax.f32 %v3304, %v2858
        %v3306 = vmax.f32 %v3305, %v2860
        %3307 = vmax.xlane.f32.xlu0 %v3306
        %v3308 = vpop.xlane.xlu0 %3307
        %v3309 = vmax.f32 %v1517, %v1519
        %v3310 = vmax.f32 %v3309, %v1966
        %v3311 = vmax.f32 %v3310, %v1968
        %v3312 = vmax.f32 %v3311, %v2415
        %v3313 = vmax.f32 %v3312, %v2417
        %v3314 = vmax.f32 %v3313, %v2864
        %v3315 = vmax.f32 %v3314, %v2866
        %3316 = vmax.xlane.f32.xlu0 %v3315
        %v3317 = vpop.xlane.xlu0 %3316
        %v3318 = vmax.f32 %v1523, %v1525
        %v3319 = vmax.f32 %v3318, %v1972
        %v3320 = vmax.f32 %v3319, %v1974
        %v3321 = vmax.f32 %v3320, %v2421
        %v3322 = vmax.f32 %v3321, %v2423
        %v3323 = vmax.f32 %v3322, %v2870
        %v3324 = vmax.f32 %v3323, %v2872
        %3325 = vmax.xlane.f32.xlu0 %v3324
        %v3326 = vpop.xlane.xlu0 %3325
        %v3327 = vmax.f32 %v1529, %v1531
        %v3328 = vmax.f32 %v3327, %v1978
        %v3329 = vmax.f32 %v3328, %v1980
        %v3330 = vmax.f32 %v3329, %v2427
        %v3331 = vmax.f32 %v3330, %v2429
        %v3332 = vmax.f32 %v3331, %v2876
        %v3333 = vmax.f32 %v3332, %v2878
        %3334 = vmax.xlane.f32.xlu0 %v3333
        %v3335 = vpop.xlane.xlu0 %3334
        %v3336 = vmax.f32 %v1535, %v1537
        %v3337 = vmax.f32 %v3336, %v1984
        %v3338 = vmax.f32 %v3337, %v1986
        %v3339 = vmax.f32 %v3338, %v2433
        %v3340 = vmax.f32 %v3339, %v2435
        %v3341 = vmax.f32 %v3340, %v2882
        %v3342 = vmax.f32 %v3341, %v2884
        %3343 = vmax.xlane.f32.xlu0 %v3342
        %v3344 = vpop.xlane.xlu0 %3343
        %v3345 = vmax.f32 %v1541, %v1543
        %v3346 = vmax.f32 %v3345, %v1990
        %v3347 = vmax.f32 %v3346, %v1992
        %v3348 = vmax.f32 %v3347, %v2439
        %v3349 = vmax.f32 %v3348, %v2441
        %v3350 = vmax.f32 %v3349, %v2888
        %v3351 = vmax.f32 %v3350, %v2890
        %3352 = vmax.xlane.f32.xlu0 %v3351
        %v3353 = vpop.xlane.xlu0 %3352
        %v3354 = vmax.f32 %v1547, %v1549
        %v3355 = vmax.f32 %v3354, %v1996
        %v3356 = vmax.f32 %v3355, %v1998
        %v3357 = vmax.f32 %v3356, %v2445
        %v3358 = vmax.f32 %v3357, %v2447
        %v3359 = vmax.f32 %v3358, %v2894
        %v3360 = vmax.f32 %v3359, %v2896
        %3361 = vmax.xlane.f32.xlu0 %v3360
        %v3362 = vpop.xlane.xlu0 %3361
        %v3363 = vmax.f32 %v1553, %v1555
        %v3364 = vmax.f32 %v3363, %v2002
        %v3365 = vmax.f32 %v3364, %v2004
        %v3366 = vmax.f32 %v3365, %v2451
        %v3367 = vmax.f32 %v3366, %v2453
        %v3368 = vmax.f32 %v3367, %v2900
        %v3369 = vmax.f32 %v3368, %v2902
        %3370 = vmax.xlane.f32.xlu0 %v3369
        %v3371 = vpop.xlane.xlu0 %3370
        %v3372 = vmax.f32 %v1559, %v1561
        %v3373 = vmax.f32 %v3372, %v2008
        %v3374 = vmax.f32 %v3373, %v2010
        %v3375 = vmax.f32 %v3374, %v2457
        %v3376 = vmax.f32 %v3375, %v2459
        %v3377 = vmax.f32 %v3376, %v2906
        %v3378 = vmax.f32 %v3377, %v2908
        %3379 = vmax.xlane.f32.xlu0 %v3378
        %v3380 = vpop.xlane.xlu0 %3379
        %v3381 = vmax.f32 %v1565, %v1567
        %v3382 = vmax.f32 %v3381, %v2014
        %v3383 = vmax.f32 %v3382, %v2016
        %v3384 = vmax.f32 %v3383, %v2463
        %v3385 = vmax.f32 %v3384, %v2465
        %v3386 = vmax.f32 %v3385, %v2912
        %v3387 = vmax.f32 %v3386, %v2914
        %3388 = vmax.xlane.f32.xlu0 %v3387
        %v3389 = vpop.xlane.xlu0 %3388
        %v3390 = vmax.f32 %v1571, %v1573
        %v3391 = vmax.f32 %v3390, %v2020
        %v3392 = vmax.f32 %v3391, %v2022
        %v3393 = vmax.f32 %v3392, %v2469
        %v3394 = vmax.f32 %v3393, %v2471
        %v3395 = vmax.f32 %v3394, %v2918
        %v3396 = vmax.f32 %v3395, %v2920
        %3397 = vmax.xlane.f32.xlu0 %v3396
        %v3398 = vpop.xlane.xlu0 %3397
        %v3399 = vmax.f32 %v1577, %v1579
        %v3400 = vmax.f32 %v3399, %v2026
        %v3401 = vmax.f32 %v3400, %v2028
        %v3402 = vmax.f32 %v3401, %v2475
        %v3403 = vmax.f32 %v3402, %v2477
        %v3404 = vmax.f32 %v3403, %v2924
        %v3405 = vmax.f32 %v3404, %v2926
        %3406 = vmax.xlane.f32.xlu0 %v3405
        %v3407 = vpop.xlane.xlu0 %3406
        %v3408 = vmax.f32 %v1583, %v1585
        %v3409 = vmax.f32 %v3408, %v2032
        %v3410 = vmax.f32 %v3409, %v2034
        %v3411 = vmax.f32 %v3410, %v2481
        %v3412 = vmax.f32 %v3411, %v2483
        %v3413 = vmax.f32 %v3412, %v2930
        %v3414 = vmax.f32 %v3413, %v2932
        %3415 = vmax.xlane.f32.xlu0 %v3414
        %v3416 = vpop.xlane.xlu0 %3415
        %v3417 = vmax.f32 %v1589, %v1591
        %v3418 = vmax.f32 %v3417, %v2038
        %v3419 = vmax.f32 %v3418, %v2040
        %v3420 = vmax.f32 %v3419, %v2487
        %v3421 = vmax.f32 %v3420, %v2489
        %v3422 = vmax.f32 %v3421, %v2936
        %v3423 = vmax.f32 %v3422, %v2938
        %3424 = vmax.xlane.f32.xlu0 %v3423
        %v3425 = vpop.xlane.xlu0 %3424
        %v3426 = vmax.f32 %v1595, %v1597
        %v3427 = vmax.f32 %v3426, %v2044
        %v3428 = vmax.f32 %v3427, %v2046
        %v3429 = vmax.f32 %v3428, %v2493
        %v3430 = vmax.f32 %v3429, %v2495
        %v3431 = vmax.f32 %v3430, %v2942
        %v3432 = vmax.f32 %v3431, %v2944
        %3433 = vmax.xlane.f32.xlu0 %v3432
        %v3434 = vpop.xlane.xlu0 %3433
        %v3435 = vmax.f32 %v1601, %v1603
        %v3436 = vmax.f32 %v3435, %v2050
        %v3437 = vmax.f32 %v3436, %v2052
        %v3438 = vmax.f32 %v3437, %v2499
        %v3439 = vmax.f32 %v3438, %v2501
        %v3440 = vmax.f32 %v3439, %v2948
        %v3441 = vmax.f32 %v3440, %v2950
        %3442 = vmax.xlane.f32.xlu0 %v3441
        %v3443 = vpop.xlane.xlu0 %3442
        %v3444 = vmax.f32 %v1607, %v1609
        %v3445 = vmax.f32 %v3444, %v2056
        %v3446 = vmax.f32 %v3445, %v2058
        %v3447 = vmax.f32 %v3446, %v2505
        %v3448 = vmax.f32 %v3447, %v2507
        %v3449 = vmax.f32 %v3448, %v2954
        %v3450 = vmax.f32 %v3449, %v2956
        %3451 = vmax.xlane.f32.xlu0 %v3450
        %v3452 = vpop.xlane.xlu0 %3451
        %v3453 = vmax.f32 %v1613, %v1615
        %v3454 = vmax.f32 %v3453, %v2062
        %v3455 = vmax.f32 %v3454, %v2064
        %v3456 = vmax.f32 %v3455, %v2511
        %v3457 = vmax.f32 %v3456, %v2513
        %v3458 = vmax.f32 %v3457, %v2960
        %v3459 = vmax.f32 %v3458, %v2962
        %3460 = vmax.xlane.f32.xlu0 %v3459
        %v3461 = vpop.xlane.xlu0 %3460
        %v3462 = vmax.f32 %v1619, %v1621
        %v3463 = vmax.f32 %v3462, %v2068
        %v3464 = vmax.f32 %v3463, %v2070
        %v3465 = vmax.f32 %v3464, %v2517
        %v3466 = vmax.f32 %v3465, %v2519
        %v3467 = vmax.f32 %v3466, %v2966
        %v3468 = vmax.f32 %v3467, %v2968
        %3469 = vmax.xlane.f32.xlu0 %v3468
        %v3470 = vpop.xlane.xlu0 %3469
        %v3471 = vmax.f32 %v1625, %v1627
        %v3472 = vmax.f32 %v3471, %v2074
        %v3473 = vmax.f32 %v3472, %v2076
        %v3474 = vmax.f32 %v3473, %v2523
        %v3475 = vmax.f32 %v3474, %v2525
        %v3476 = vmax.f32 %v3475, %v2972
        %v3477 = vmax.f32 %v3476, %v2974
        %3478 = vmax.xlane.f32.xlu0 %v3477
        %v3479 = vpop.xlane.xlu0 %3478
        %v3480 = vmax.f32 %v1631, %v1633
        %v3481 = vmax.f32 %v3480, %v2080
        %v3482 = vmax.f32 %v3481, %v2082
        %v3483 = vmax.f32 %v3482, %v2529
        %v3484 = vmax.f32 %v3483, %v2531
        %v3485 = vmax.f32 %v3484, %v2978
        %v3486 = vmax.f32 %v3485, %v2980
        %3487 = vmax.xlane.f32.xlu0 %v3486
        %v3488 = vpop.xlane.xlu0 %3487
        %v3489 = vmax.f32 %v1637, %v1639
        %v3490 = vmax.f32 %v3489, %v2086
        %v3491 = vmax.f32 %v3490, %v2088
        %v3492 = vmax.f32 %v3491, %v2535
        %v3493 = vmax.f32 %v3492, %v2537
        %v3494 = vmax.f32 %v3493, %v2984
        %v3495 = vmax.f32 %v3494, %v2986
        %3496 = vmax.xlane.f32.xlu0 %v3495
        %v3497 = vpop.xlane.xlu0 %3496
        %v3498 = vmax.f32 %v1643, %v1645
        %v3499 = vmax.f32 %v3498, %v2092
        %v3500 = vmax.f32 %v3499, %v2094
        %v3501 = vmax.f32 %v3500, %v2541
        %v3502 = vmax.f32 %v3501, %v2543
        %v3503 = vmax.f32 %v3502, %v2990
        %v3504 = vmax.f32 %v3503, %v2992
        %3505 = vmax.xlane.f32.xlu0 %v3504
        %v3506 = vpop.xlane.xlu0 %3505
        %v3507 = vmax.f32 %v1649, %v1651
        %v3508 = vmax.f32 %v3507, %v2098
        %v3509 = vmax.f32 %v3508, %v2100
        %v3510 = vmax.f32 %v3509, %v2547
        %v3511 = vmax.f32 %v3510, %v2549
        %v3512 = vmax.f32 %v3511, %v2996
        %v3513 = vmax.f32 %v3512, %v2998
        %3514 = vmax.xlane.f32.xlu0 %v3513
        %v3515 = vpop.xlane.xlu0 %3514
        %v3516 = vmax.f32 %v1655, %v1657
        %v3517 = vmax.f32 %v3516, %v2104
        %v3518 = vmax.f32 %v3517, %v2106
        %v3519 = vmax.f32 %v3518, %v2553
        %v3520 = vmax.f32 %v3519, %v2555
        %v3521 = vmax.f32 %v3520, %v3002
        %v3522 = vmax.f32 %v3521, %v3004
        %3523 = vmax.xlane.f32.xlu0 %v3522
        %v3524 = vpop.xlane.xlu0 %3523
        %v3525 = vmax.f32 %v1661, %v1663
        %v3526 = vmax.f32 %v3525, %v2110
        %v3527 = vmax.f32 %v3526, %v2112
        %v3528 = vmax.f32 %v3527, %v2559
        %v3529 = vmax.f32 %v3528, %v2561
        %v3530 = vmax.f32 %v3529, %v3008
        %v3531 = vmax.f32 %v3530, %v3010
        %3532 = vmax.xlane.f32.xlu0 %v3531
        %v3533 = vpop.xlane.xlu0 %3532
        %v3534 = vmax.f32 %v1667, %v1669
        %v3535 = vmax.f32 %v3534, %v2116
        %v3536 = vmax.f32 %v3535, %v2118
        %v3537 = vmax.f32 %v3536, %v2565
        %v3538 = vmax.f32 %v3537, %v2567
        %v3539 = vmax.f32 %v3538, %v3014
        %v3540 = vmax.f32 %v3539, %v3016
        %3541 = vmax.xlane.f32.xlu0 %v3540
        %v3542 = vpop.xlane.xlu0 %3541
        %v3543 = vmax.f32 %v1673, %v1675
        %v3544 = vmax.f32 %v3543, %v2122
        %v3545 = vmax.f32 %v3544, %v2124
        %v3546 = vmax.f32 %v3545, %v2571
        %v3547 = vmax.f32 %v3546, %v2573
        %v3548 = vmax.f32 %v3547, %v3020
        %v3549 = vmax.f32 %v3548, %v3022
        %3550 = vmax.xlane.f32.xlu0 %v3549
        %v3551 = vpop.xlane.xlu0 %3550
        %v3552 = vmax.f32 %v1679, %v1681
        %v3553 = vmax.f32 %v3552, %v2128
        %v3554 = vmax.f32 %v3553, %v2130
        %v3555 = vmax.f32 %v3554, %v2577
        %v3556 = vmax.f32 %v3555, %v2579
        %v3557 = vmax.f32 %v3556, %v3026
        %v3558 = vmax.f32 %v3557, %v3028
        %3559 = vmax.xlane.f32.xlu0 %v3558
        %v3560 = vpop.xlane.xlu0 %3559
        %v3561 = vmax.f32 %v1685, %v1687
        %v3562 = vmax.f32 %v3561, %v2134
        %v3563 = vmax.f32 %v3562, %v2136
        %v3564 = vmax.f32 %v3563, %v2583
        %v3565 = vmax.f32 %v3564, %v2585
        %v3566 = vmax.f32 %v3565, %v3032
        %v3567 = vmax.f32 %v3566, %v3034
        %3568 = vmax.xlane.f32.xlu0 %v3567
        %v3569 = vpop.xlane.xlu0 %3568
        %v3570 = vmax.f32 %v1691, %v1693
        %v3571 = vmax.f32 %v3570, %v2140
        %v3572 = vmax.f32 %v3571, %v2142
        %v3573 = vmax.f32 %v3572, %v2589
        %v3574 = vmax.f32 %v3573, %v2591
        %v3575 = vmax.f32 %v3574, %v3038
        %v3576 = vmax.f32 %v3575, %v3040
        %3577 = vmax.xlane.f32.xlu0 %v3576
        %v3578 = vpop.xlane.xlu0 %3577
        %v3579 = vmax.f32 %v1697, %v1699
        %v3580 = vmax.f32 %v3579, %v2146
        %v3581 = vmax.f32 %v3580, %v2148
        %v3582 = vmax.f32 %v3581, %v2595
        %v3583 = vmax.f32 %v3582, %v2597
        %v3584 = vmax.f32 %v3583, %v3044
        %v3585 = vmax.f32 %v3584, %v3046
        %3586 = vmax.xlane.f32.xlu0 %v3585
        %v3587 = vpop.xlane.xlu0 %3586
        %v3588 = vmax.f32 %v1703, %v1705
        %v3589 = vmax.f32 %v3588, %v2152
        %v3590 = vmax.f32 %v3589, %v2154
        %v3591 = vmax.f32 %v3590, %v2601
        %v3592 = vmax.f32 %v3591, %v2603
        %v3593 = vmax.f32 %v3592, %v3050
        %v3594 = vmax.f32 %v3593, %v3052
        %3595 = vmax.xlane.f32.xlu0 %v3594
        %v3596 = vpop.xlane.xlu0 %3595
        %v3597 = vmax.f32 %v1709, %v1711
        %v3598 = vmax.f32 %v3597, %v2158
        %v3599 = vmax.f32 %v3598, %v2160
        %v3600 = vmax.f32 %v3599, %v2607
        %v3601 = vmax.f32 %v3600, %v2609
        %v3602 = vmax.f32 %v3601, %v3056
        %v3603 = vmax.f32 %v3602, %v3058
        %3604 = vmax.xlane.f32.xlu0 %v3603
        %v3605 = vpop.xlane.xlu0 %3604
        %v3606 = vmax.f32 %v1715, %v1717
        %v3607 = vmax.f32 %v3606, %v2164
        %v3608 = vmax.f32 %v3607, %v2166
        %v3609 = vmax.f32 %v3608, %v2613
        %v3610 = vmax.f32 %v3609, %v2615
        %v3611 = vmax.f32 %v3610, %v3062
        %v3612 = vmax.f32 %v3611, %v3064
        %3613 = vmax.xlane.f32.xlu0 %v3612
        %v3614 = vpop.xlane.xlu0 %3613
        %v3615 = vmax.f32 %v1721, %v1723
        %v3616 = vmax.f32 %v3615, %v2170
        %v3617 = vmax.f32 %v3616, %v2172
        %v3618 = vmax.f32 %v3617, %v2619
        %v3619 = vmax.f32 %v3618, %v2621
        %v3620 = vmax.f32 %v3619, %v3068
        %v3621 = vmax.f32 %v3620, %v3070
        %3622 = vmax.xlane.f32.xlu0 %v3621
        %v3623 = vpop.xlane.xlu0 %3622
        %v3624 = vmax.f32 %v1727, %v1729
        %v3625 = vmax.f32 %v3624, %v2176
        %v3626 = vmax.f32 %v3625, %v2178
        %v3627 = vmax.f32 %v3626, %v2625
        %v3628 = vmax.f32 %v3627, %v2627
        %v3629 = vmax.f32 %v3628, %v3074
        %v3630 = vmax.f32 %v3629, %v3076
        %3631 = vmax.xlane.f32.xlu0 %v3630
        %v3632 = vpop.xlane.xlu0 %3631
        %v3633 = vmax.f32 %v1733, %v1735
        %v3634 = vmax.f32 %v3633, %v2182
        %v3635 = vmax.f32 %v3634, %v2184
        %v3636 = vmax.f32 %v3635, %v2631
        %v3637 = vmax.f32 %v3636, %v2633
        %v3638 = vmax.f32 %v3637, %v3080
        %v3639 = vmax.f32 %v3638, %v3082
        %3640 = vmax.xlane.f32.xlu0 %v3639
        %v3641 = vpop.xlane.xlu0 %3640
        %v3642 = vmax.f32 %v1739, %v1741
        %v3643 = vmax.f32 %v3642, %v2188
        %v3644 = vmax.f32 %v3643, %v2190
        %v3645 = vmax.f32 %v3644, %v2637
        %v3646 = vmax.f32 %v3645, %v2639
        %v3647 = vmax.f32 %v3646, %v3086
        %v3648 = vmax.f32 %v3647, %v3088
        %3649 = vmax.xlane.f32.xlu0 %v3648
        %v3650 = vpop.xlane.xlu0 %3649
        %v3651 = vmax.f32 %v1745, %v1747
        %v3652 = vmax.f32 %v3651, %v2194
        %v3653 = vmax.f32 %v3652, %v2196
        %v3654 = vmax.f32 %v3653, %v2643
        %v3655 = vmax.f32 %v3654, %v2645
        %v3656 = vmax.f32 %v3655, %v3092
        %v3657 = vmax.f32 %v3656, %v3094
        %3658 = vmax.xlane.f32.xlu0 %v3657
        %v3659 = vpop.xlane.xlu0 %3658
        %v3660 = vmax.f32 %v1751, %v1753
        %v3661 = vmax.f32 %v3660, %v2200
        %v3662 = vmax.f32 %v3661, %v2202
        %v3663 = vmax.f32 %v3662, %v2649
        %v3664 = vmax.f32 %v3663, %v2651
        %v3665 = vmax.f32 %v3664, %v3098
        %v3666 = vmax.f32 %v3665, %v3100
        %3667 = vmax.xlane.f32.xlu0 %v3666
        %v3668 = vpop.xlane.xlu0 %3667
        %v3669 = vmax.f32 %v1757, %v1759
        %v3670 = vmax.f32 %v3669, %v2206
        %v3671 = vmax.f32 %v3670, %v2208
        %v3672 = vmax.f32 %v3671, %v2655
        %v3673 = vmax.f32 %v3672, %v2657
        %v3674 = vmax.f32 %v3673, %v3104
        %v3675 = vmax.f32 %v3674, %v3106
        %3676 = vmax.xlane.f32.xlu0 %v3675
        %v3677 = vpop.xlane.xlu0 %3676
        %v3678 = vmax.f32 %v1763, %v1765
        %v3679 = vmax.f32 %v3678, %v2212
        %v3680 = vmax.f32 %v3679, %v2214
        %v3681 = vmax.f32 %v3680, %v2661
        %v3682 = vmax.f32 %v3681, %v2663
        %v3683 = vmax.f32 %v3682, %v3110
        %v3684 = vmax.f32 %v3683, %v3112
        %3685 = vmax.xlane.f32.xlu0 %v3684
        %v3686 = vpop.xlane.xlu0 %3685
        %v3687 = vmax.f32 %v1769, %v1771
        %v3688 = vmax.f32 %v3687, %v2218
        %v3689 = vmax.f32 %v3688, %v2220
        %v3690 = vmax.f32 %v3689, %v2667
        %v3691 = vmax.f32 %v3690, %v2669
        %v3692 = vmax.f32 %v3691, %v3116
        %v3693 = vmax.f32 %v3692, %v3118
        %3694 = vmax.xlane.f32.xlu0 %v3693
        %v3695 = vpop.xlane.xlu0 %3694
        %v3696 = vsub.f32 %v1391, %v3128
        %v3697 = vsub.f32 %v1393, %v3128
        %v3698 = vsub.f32 %v1840, %v3128
        %v3699 = vsub.f32 %v1842, %v3128
        %v3700 = vsub.f32 %v2289, %v3128
        %v3701 = vsub.f32 %v2291, %v3128
        %v3702 = vsub.f32 %v2738, %v3128
        %v3703 = vsub.f32 %v2740, %v3128
        %v3704 = vsub.f32 %v1397, %v3137
        %v3705 = vsub.f32 %v1399, %v3137
        %v3706 = vsub.f32 %v1846, %v3137
        %v3707 = vsub.f32 %v1848, %v3137
        %v3708 = vsub.f32 %v2295, %v3137
        %v3709 = vsub.f32 %v2297, %v3137
        %v3710 = vsub.f32 %v2744, %v3137
        %v3711 = vsub.f32 %v2746, %v3137
        %v3712 = vsub.f32 %v1403, %v3146
        %v3713 = vsub.f32 %v1405, %v3146
        %v3714 = vsub.f32 %v1852, %v3146
        %v3715 = vsub.f32 %v1854, %v3146
        %v3716 = vsub.f32 %v2301, %v3146
        %v3717 = vsub.f32 %v2303, %v3146
        %v3718 = vsub.f32 %v2750, %v3146
        %v3719 = vsub.f32 %v2752, %v3146
        %v3720 = vsub.f32 %v1409, %v3155
        %v3721 = vsub.f32 %v1411, %v3155
        %v3722 = vsub.f32 %v1858, %v3155
        %v3723 = vsub.f32 %v1860, %v3155
        %v3724 = vsub.f32 %v2307, %v3155
        %v3725 = vsub.f32 %v2309, %v3155
        %v3726 = vsub.f32 %v2756, %v3155
        %v3727 = vsub.f32 %v2758, %v3155
        %v3728 = vsub.f32 %v1415, %v3164
        %v3729 = vsub.f32 %v1417, %v3164
        %v3730 = vsub.f32 %v1864, %v3164
        %v3731 = vsub.f32 %v1866, %v3164
        %v3732 = vsub.f32 %v2313, %v3164
        %v3733 = vsub.f32 %v2315, %v3164
        %v3734 = vsub.f32 %v2762, %v3164
        %v3735 = vsub.f32 %v2764, %v3164
        %v3736 = vsub.f32 %v1421, %v3173
        %v3737 = vsub.f32 %v1423, %v3173
        %v3738 = vsub.f32 %v1870, %v3173
        %v3739 = vsub.f32 %v1872, %v3173
        %v3740 = vsub.f32 %v2319, %v3173
        %v3741 = vsub.f32 %v2321, %v3173
        %v3742 = vsub.f32 %v2768, %v3173
        %v3743 = vsub.f32 %v2770, %v3173
        %v3744 = vsub.f32 %v1427, %v3182
        %v3745 = vsub.f32 %v1429, %v3182
        %v3746 = vsub.f32 %v1876, %v3182
        %v3747 = vsub.f32 %v1878, %v3182
        %v3748 = vsub.f32 %v2325, %v3182
        %v3749 = vsub.f32 %v2327, %v3182
        %v3750 = vsub.f32 %v2774, %v3182
        %v3751 = vsub.f32 %v2776, %v3182
        %v3752 = vsub.f32 %v1433, %v3191
        %v3753 = vsub.f32 %v1435, %v3191
        %v3754 = vsub.f32 %v1882, %v3191
        %v3755 = vsub.f32 %v1884, %v3191
        %v3756 = vsub.f32 %v2331, %v3191
        %v3757 = vsub.f32 %v2333, %v3191
        %v3758 = vsub.f32 %v2780, %v3191
        %v3759 = vsub.f32 %v2782, %v3191
        %v3760 = vsub.f32 %v1439, %v3200
        %v3761 = vsub.f32 %v1441, %v3200
        %v3762 = vsub.f32 %v1888, %v3200
        %v3763 = vsub.f32 %v1890, %v3200
        %v3764 = vsub.f32 %v2337, %v3200
        %v3765 = vsub.f32 %v2339, %v3200
        %v3766 = vsub.f32 %v2786, %v3200
        %v3767 = vsub.f32 %v2788, %v3200
        %v3768 = vsub.f32 %v1445, %v3209
        %v3769 = vsub.f32 %v1447, %v3209
        %v3770 = vsub.f32 %v1894, %v3209
        %v3771 = vsub.f32 %v1896, %v3209
        %v3772 = vsub.f32 %v2343, %v3209
        %v3773 = vsub.f32 %v2345, %v3209
        %v3774 = vsub.f32 %v2792, %v3209
        %v3775 = vsub.f32 %v2794, %v3209
        %v3776 = vsub.f32 %v1451, %v3218
        %v3777 = vsub.f32 %v1453, %v3218
        %v3778 = vsub.f32 %v1900, %v3218
        %v3779 = vsub.f32 %v1902, %v3218
        %v3780 = vsub.f32 %v2349, %v3218
        %v3781 = vsub.f32 %v2351, %v3218
        %v3782 = vsub.f32 %v2798, %v3218
        %v3783 = vsub.f32 %v2800, %v3218
        %v3784 = vsub.f32 %v1457, %v3227
        %v3785 = vsub.f32 %v1459, %v3227
        %v3786 = vsub.f32 %v1906, %v3227
        %v3787 = vsub.f32 %v1908, %v3227
        %v3788 = vsub.f32 %v2355, %v3227
        %v3789 = vsub.f32 %v2357, %v3227
        %v3790 = vsub.f32 %v2804, %v3227
        %v3791 = vsub.f32 %v2806, %v3227
        %v3792 = vsub.f32 %v1463, %v3236
        %v3793 = vsub.f32 %v1465, %v3236
        %v3794 = vsub.f32 %v1912, %v3236
        %v3795 = vsub.f32 %v1914, %v3236
        %v3796 = vsub.f32 %v2361, %v3236
        %v3797 = vsub.f32 %v2363, %v3236
        %v3798 = vsub.f32 %v2810, %v3236
        %v3799 = vsub.f32 %v2812, %v3236
        %v3800 = vsub.f32 %v1469, %v3245
        %v3801 = vsub.f32 %v1471, %v3245
        %v3802 = vsub.f32 %v1918, %v3245
        %v3803 = vsub.f32 %v1920, %v3245
        %v3804 = vsub.f32 %v2367, %v3245
        %v3805 = vsub.f32 %v2369, %v3245
        %v3806 = vsub.f32 %v2816, %v3245
        %v3807 = vsub.f32 %v2818, %v3245
        %v3808 = vsub.f32 %v1475, %v3254
        %v3809 = vsub.f32 %v1477, %v3254
        %v3810 = vsub.f32 %v1924, %v3254
        %v3811 = vsub.f32 %v1926, %v3254
        %v3812 = vsub.f32 %v2373, %v3254
        %v3813 = vsub.f32 %v2375, %v3254
        %v3814 = vsub.f32 %v2822, %v3254
        %v3815 = vsub.f32 %v2824, %v3254
        %v3816 = vsub.f32 %v1481, %v3263
        %v3817 = vsub.f32 %v1483, %v3263
        %v3818 = vsub.f32 %v1930, %v3263
        %v3819 = vsub.f32 %v1932, %v3263
        %v3820 = vsub.f32 %v2379, %v3263
        %v3821 = vsub.f32 %v2381, %v3263
        %v3822 = vsub.f32 %v2828, %v3263
        %v3823 = vsub.f32 %v2830, %v3263
        %v3824 = vsub.f32 %v1487, %v3272
        %v3825 = vsub.f32 %v1489, %v3272
        %v3826 = vsub.f32 %v1936, %v3272
        %v3827 = vsub.f32 %v1938, %v3272
        %v3828 = vsub.f32 %v2385, %v3272
        %v3829 = vsub.f32 %v2387, %v3272
        %v3830 = vsub.f32 %v2834, %v3272
        %v3831 = vsub.f32 %v2836, %v3272
        %v3832 = vsub.f32 %v1493, %v3281
        %v3833 = vsub.f32 %v1495, %v3281
        %v3834 = vsub.f32 %v1942, %v3281
        %v3835 = vsub.f32 %v1944, %v3281
        %v3836 = vsub.f32 %v2391, %v3281
        %v3837 = vsub.f32 %v2393, %v3281
        %v3838 = vsub.f32 %v2840, %v3281
        %v3839 = vsub.f32 %v2842, %v3281
        %v3840 = vsub.f32 %v1499, %v3290
        %v3841 = vsub.f32 %v1501, %v3290
        %v3842 = vsub.f32 %v1948, %v3290
        %v3843 = vsub.f32 %v1950, %v3290
        %v3844 = vsub.f32 %v2397, %v3290
        %v3845 = vsub.f32 %v2399, %v3290
        %v3846 = vsub.f32 %v2846, %v3290
        %v3847 = vsub.f32 %v2848, %v3290
        %v3848 = vsub.f32 %v1505, %v3299
        %v3849 = vsub.f32 %v1507, %v3299
        %v3850 = vsub.f32 %v1954, %v3299
        %v3851 = vsub.f32 %v1956, %v3299
        %v3852 = vsub.f32 %v2403, %v3299
        %v3853 = vsub.f32 %v2405, %v3299
        %v3854 = vsub.f32 %v2852, %v3299
        %v3855 = vsub.f32 %v2854, %v3299
        %v3856 = vsub.f32 %v1511, %v3308
        %v3857 = vsub.f32 %v1513, %v3308
        %v3858 = vsub.f32 %v1960, %v3308
        %v3859 = vsub.f32 %v1962, %v3308
        %v3860 = vsub.f32 %v2409, %v3308
        %v3861 = vsub.f32 %v2411, %v3308
        %v3862 = vsub.f32 %v2858, %v3308
        %v3863 = vsub.f32 %v2860, %v3308
        %v3864 = vsub.f32 %v1517, %v3317
        %v3865 = vsub.f32 %v1519, %v3317
        %v3866 = vsub.f32 %v1966, %v3317
        %v3867 = vsub.f32 %v1968, %v3317
        %v3868 = vsub.f32 %v2415, %v3317
        %v3869 = vsub.f32 %v2417, %v3317
        %v3870 = vsub.f32 %v2864, %v3317
        %v3871 = vsub.f32 %v2866, %v3317
        %v3872 = vsub.f32 %v1523, %v3326
        %v3873 = vsub.f32 %v1525, %v3326
        %v3874 = vsub.f32 %v1972, %v3326
        %v3875 = vsub.f32 %v1974, %v3326
        %v3876 = vsub.f32 %v2421, %v3326
        %v3877 = vsub.f32 %v2423, %v3326
        %v3878 = vsub.f32 %v2870, %v3326
        %v3879 = vsub.f32 %v2872, %v3326
        %v3880 = vsub.f32 %v1529, %v3335
        %v3881 = vsub.f32 %v1531, %v3335
        %v3882 = vsub.f32 %v1978, %v3335
        %v3883 = vsub.f32 %v1980, %v3335
        %v3884 = vsub.f32 %v2427, %v3335
        %v3885 = vsub.f32 %v2429, %v3335
        %v3886 = vsub.f32 %v2876, %v3335
        %v3887 = vsub.f32 %v2878, %v3335
        %v3888 = vsub.f32 %v1535, %v3344
        %v3889 = vsub.f32 %v1537, %v3344
        %v3890 = vsub.f32 %v1984, %v3344
        %v3891 = vsub.f32 %v1986, %v3344
        %v3892 = vsub.f32 %v2433, %v3344
        %v3893 = vsub.f32 %v2435, %v3344
        %v3894 = vsub.f32 %v2882, %v3344
        %v3895 = vsub.f32 %v2884, %v3344
        %v3896 = vsub.f32 %v1541, %v3353
        %v3897 = vsub.f32 %v1543, %v3353
        %v3898 = vsub.f32 %v1990, %v3353
        %v3899 = vsub.f32 %v1992, %v3353
        %v3900 = vsub.f32 %v2439, %v3353
        %v3901 = vsub.f32 %v2441, %v3353
        %v3902 = vsub.f32 %v2888, %v3353
        %v3903 = vsub.f32 %v2890, %v3353
        %v3904 = vsub.f32 %v1547, %v3362
        %v3905 = vsub.f32 %v1549, %v3362
        %v3906 = vsub.f32 %v1996, %v3362
        %v3907 = vsub.f32 %v1998, %v3362
        %v3908 = vsub.f32 %v2445, %v3362
        %v3909 = vsub.f32 %v2447, %v3362
        %v3910 = vsub.f32 %v2894, %v3362
        %v3911 = vsub.f32 %v2896, %v3362
        %v3912 = vsub.f32 %v1553, %v3371
        %v3913 = vsub.f32 %v1555, %v3371
        %v3914 = vsub.f32 %v2002, %v3371
        %v3915 = vsub.f32 %v2004, %v3371
        %v3916 = vsub.f32 %v2451, %v3371
        %v3917 = vsub.f32 %v2453, %v3371
        %v3918 = vsub.f32 %v2900, %v3371
        %v3919 = vsub.f32 %v2902, %v3371
        %v3920 = vsub.f32 %v1559, %v3380
        %v3921 = vsub.f32 %v1561, %v3380
        %v3922 = vsub.f32 %v2008, %v3380
        %v3923 = vsub.f32 %v2010, %v3380
        %v3924 = vsub.f32 %v2457, %v3380
        %v3925 = vsub.f32 %v2459, %v3380
        %v3926 = vsub.f32 %v2906, %v3380
        %v3927 = vsub.f32 %v2908, %v3380
        %v3928 = vsub.f32 %v1565, %v3389
        %v3929 = vsub.f32 %v1567, %v3389
        %v3930 = vsub.f32 %v2014, %v3389
        %v3931 = vsub.f32 %v2016, %v3389
        %v3932 = vsub.f32 %v2463, %v3389
        %v3933 = vsub.f32 %v2465, %v3389
        %v3934 = vsub.f32 %v2912, %v3389
        %v3935 = vsub.f32 %v2914, %v3389
        %v3936 = vsub.f32 %v1571, %v3398
        %v3937 = vsub.f32 %v1573, %v3398
        %v3938 = vsub.f32 %v2020, %v3398
        %v3939 = vsub.f32 %v2022, %v3398
        %v3940 = vsub.f32 %v2469, %v3398
        %v3941 = vsub.f32 %v2471, %v3398
        %v3942 = vsub.f32 %v2918, %v3398
        %v3943 = vsub.f32 %v2920, %v3398
        %v3944 = vsub.f32 %v1577, %v3407
        %v3945 = vsub.f32 %v1579, %v3407
        %v3946 = vsub.f32 %v2026, %v3407
        %v3947 = vsub.f32 %v2028, %v3407
        %v3948 = vsub.f32 %v2475, %v3407
        %v3949 = vsub.f32 %v2477, %v3407
        %v3950 = vsub.f32 %v2924, %v3407
        %v3951 = vsub.f32 %v2926, %v3407
        %v3952 = vsub.f32 %v1583, %v3416
        %v3953 = vsub.f32 %v1585, %v3416
        %v3954 = vsub.f32 %v2032, %v3416
        %v3955 = vsub.f32 %v2034, %v3416
        %v3956 = vsub.f32 %v2481, %v3416
        %v3957 = vsub.f32 %v2483, %v3416
        %v3958 = vsub.f32 %v2930, %v3416
        %v3959 = vsub.f32 %v2932, %v3416
        %v3960 = vsub.f32 %v1589, %v3425
        %v3961 = vsub.f32 %v1591, %v3425
        %v3962 = vsub.f32 %v2038, %v3425
        %v3963 = vsub.f32 %v2040, %v3425
        %v3964 = vsub.f32 %v2487, %v3425
        %v3965 = vsub.f32 %v2489, %v3425
        %v3966 = vsub.f32 %v2936, %v3425
        %v3967 = vsub.f32 %v2938, %v3425
        %v3968 = vsub.f32 %v1595, %v3434
        %v3969 = vsub.f32 %v1597, %v3434
        %v3970 = vsub.f32 %v2044, %v3434
        %v3971 = vsub.f32 %v2046, %v3434
        %v3972 = vsub.f32 %v2493, %v3434
        %v3973 = vsub.f32 %v2495, %v3434
        %v3974 = vsub.f32 %v2942, %v3434
        %v3975 = vsub.f32 %v2944, %v3434
        %v3976 = vsub.f32 %v1601, %v3443
        %v3977 = vsub.f32 %v1603, %v3443
        %v3978 = vsub.f32 %v2050, %v3443
        %v3979 = vsub.f32 %v2052, %v3443
        %v3980 = vsub.f32 %v2499, %v3443
        %v3981 = vsub.f32 %v2501, %v3443
        %v3982 = vsub.f32 %v2948, %v3443
        %v3983 = vsub.f32 %v2950, %v3443
        %v3984 = vsub.f32 %v1607, %v3452
        %v3985 = vsub.f32 %v1609, %v3452
        %v3986 = vsub.f32 %v2056, %v3452
        %v3987 = vsub.f32 %v2058, %v3452
        %v3988 = vsub.f32 %v2505, %v3452
        %v3989 = vsub.f32 %v2507, %v3452
        %v3990 = vsub.f32 %v2954, %v3452
        %v3991 = vsub.f32 %v2956, %v3452
        %v3992 = vsub.f32 %v1613, %v3461
        %v3993 = vsub.f32 %v1615, %v3461
        %v3994 = vsub.f32 %v2062, %v3461
        %v3995 = vsub.f32 %v2064, %v3461
        %v3996 = vsub.f32 %v2511, %v3461
        %v3997 = vsub.f32 %v2513, %v3461
        %v3998 = vsub.f32 %v2960, %v3461
        %v3999 = vsub.f32 %v2962, %v3461
        %v4000 = vsub.f32 %v1619, %v3470
        %v4001 = vsub.f32 %v1621, %v3470
        %v4002 = vsub.f32 %v2068, %v3470
        %v4003 = vsub.f32 %v2070, %v3470
        %v4004 = vsub.f32 %v2517, %v3470
        %v4005 = vsub.f32 %v2519, %v3470
        %v4006 = vsub.f32 %v2966, %v3470
        %v4007 = vsub.f32 %v2968, %v3470
        %v4008 = vsub.f32 %v1625, %v3479
        %v4009 = vsub.f32 %v1627, %v3479
        %v4010 = vsub.f32 %v2074, %v3479
        %v4011 = vsub.f32 %v2076, %v3479
        %v4012 = vsub.f32 %v2523, %v3479
        %v4013 = vsub.f32 %v2525, %v3479
        %v4014 = vsub.f32 %v2972, %v3479
        %v4015 = vsub.f32 %v2974, %v3479
        %v4016 = vsub.f32 %v1631, %v3488
        %v4017 = vsub.f32 %v1633, %v3488
        %v4018 = vsub.f32 %v2080, %v3488
        %v4019 = vsub.f32 %v2082, %v3488
        %v4020 = vsub.f32 %v2529, %v3488
        %v4021 = vsub.f32 %v2531, %v3488
        %v4022 = vsub.f32 %v2978, %v3488
        %v4023 = vsub.f32 %v2980, %v3488
        %v4024 = vsub.f32 %v1637, %v3497
        %v4025 = vsub.f32 %v1639, %v3497
        %v4026 = vsub.f32 %v2086, %v3497
        %v4027 = vsub.f32 %v2088, %v3497
        %v4028 = vsub.f32 %v2535, %v3497
        %v4029 = vsub.f32 %v2537, %v3497
        %v4030 = vsub.f32 %v2984, %v3497
        %v4031 = vsub.f32 %v2986, %v3497
        %v4032 = vsub.f32 %v1643, %v3506
        %v4033 = vsub.f32 %v1645, %v3506
        %v4034 = vsub.f32 %v2092, %v3506
        %v4035 = vsub.f32 %v2094, %v3506
        %v4036 = vsub.f32 %v2541, %v3506
        %v4037 = vsub.f32 %v2543, %v3506
        %v4038 = vsub.f32 %v2990, %v3506
        %v4039 = vsub.f32 %v2992, %v3506
        %v4040 = vsub.f32 %v1649, %v3515
        %v4041 = vsub.f32 %v1651, %v3515
        %v4042 = vsub.f32 %v2098, %v3515
        %v4043 = vsub.f32 %v2100, %v3515
        %v4044 = vsub.f32 %v2547, %v3515
        %v4045 = vsub.f32 %v2549, %v3515
        %v4046 = vsub.f32 %v2996, %v3515
        %v4047 = vsub.f32 %v2998, %v3515
        %v4048 = vsub.f32 %v1655, %v3524
        %v4049 = vsub.f32 %v1657, %v3524
        %v4050 = vsub.f32 %v2104, %v3524
        %v4051 = vsub.f32 %v2106, %v3524
        %v4052 = vsub.f32 %v2553, %v3524
        %v4053 = vsub.f32 %v2555, %v3524
        %v4054 = vsub.f32 %v3002, %v3524
        %v4055 = vsub.f32 %v3004, %v3524
        %v4056 = vsub.f32 %v1661, %v3533
        %v4057 = vsub.f32 %v1663, %v3533
        %v4058 = vsub.f32 %v2110, %v3533
        %v4059 = vsub.f32 %v2112, %v3533
        %v4060 = vsub.f32 %v2559, %v3533
        %v4061 = vsub.f32 %v2561, %v3533
        %v4062 = vsub.f32 %v3008, %v3533
        %v4063 = vsub.f32 %v3010, %v3533
        %v4064 = vsub.f32 %v1667, %v3542
        %v4065 = vsub.f32 %v1669, %v3542
        %v4066 = vsub.f32 %v2116, %v3542
        %v4067 = vsub.f32 %v2118, %v3542
        %v4068 = vsub.f32 %v2565, %v3542
        %v4069 = vsub.f32 %v2567, %v3542
        %v4070 = vsub.f32 %v3014, %v3542
        %v4071 = vsub.f32 %v3016, %v3542
        %v4072 = vsub.f32 %v1673, %v3551
        %v4073 = vsub.f32 %v1675, %v3551
        %v4074 = vsub.f32 %v2122, %v3551
        %v4075 = vsub.f32 %v2124, %v3551
        %v4076 = vsub.f32 %v2571, %v3551
        %v4077 = vsub.f32 %v2573, %v3551
        %v4078 = vsub.f32 %v3020, %v3551
        %v4079 = vsub.f32 %v3022, %v3551
        %v4080 = vsub.f32 %v1679, %v3560
        %v4081 = vsub.f32 %v1681, %v3560
        %v4082 = vsub.f32 %v2128, %v3560
        %v4083 = vsub.f32 %v2130, %v3560
        %v4084 = vsub.f32 %v2577, %v3560
        %v4085 = vsub.f32 %v2579, %v3560
        %v4086 = vsub.f32 %v3026, %v3560
        %v4087 = vsub.f32 %v3028, %v3560
        %v4088 = vsub.f32 %v1685, %v3569
        %v4089 = vsub.f32 %v1687, %v3569
        %v4090 = vsub.f32 %v2134, %v3569
        %v4091 = vsub.f32 %v2136, %v3569
        %v4092 = vsub.f32 %v2583, %v3569
        %v4093 = vsub.f32 %v2585, %v3569
        %v4094 = vsub.f32 %v3032, %v3569
        %v4095 = vsub.f32 %v3034, %v3569
        %v4096 = vsub.f32 %v1691, %v3578
        %v4097 = vsub.f32 %v1693, %v3578
        %v4098 = vsub.f32 %v2140, %v3578
        %v4099 = vsub.f32 %v2142, %v3578
        %v4100 = vsub.f32 %v2589, %v3578
        %v4101 = vsub.f32 %v2591, %v3578
        %v4102 = vsub.f32 %v3038, %v3578
        %v4103 = vsub.f32 %v3040, %v3578
        %v4104 = vsub.f32 %v1697, %v3587
        %v4105 = vsub.f32 %v1699, %v3587
        %v4106 = vsub.f32 %v2146, %v3587
        %v4107 = vsub.f32 %v2148, %v3587
        %v4108 = vsub.f32 %v2595, %v3587
        %v4109 = vsub.f32 %v2597, %v3587
        %v4110 = vsub.f32 %v3044, %v3587
        %v4111 = vsub.f32 %v3046, %v3587
        %v4112 = vsub.f32 %v1703, %v3596
        %v4113 = vsub.f32 %v1705, %v3596
        %v4114 = vsub.f32 %v2152, %v3596
        %v4115 = vsub.f32 %v2154, %v3596
        %v4116 = vsub.f32 %v2601, %v3596
        %v4117 = vsub.f32 %v2603, %v3596
        %v4118 = vsub.f32 %v3050, %v3596
        %v4119 = vsub.f32 %v3052, %v3596
        %v4120 = vsub.f32 %v1709, %v3605
        %v4121 = vsub.f32 %v1711, %v3605
        %v4122 = vsub.f32 %v2158, %v3605
        %v4123 = vsub.f32 %v2160, %v3605
        %v4124 = vsub.f32 %v2607, %v3605
        %v4125 = vsub.f32 %v2609, %v3605
        %v4126 = vsub.f32 %v3056, %v3605
        %v4127 = vsub.f32 %v3058, %v3605
        %v4128 = vsub.f32 %v1715, %v3614
        %v4129 = vsub.f32 %v1717, %v3614
        %v4130 = vsub.f32 %v2164, %v3614
        %v4131 = vsub.f32 %v2166, %v3614
        %v4132 = vsub.f32 %v2613, %v3614
        %v4133 = vsub.f32 %v2615, %v3614
        %v4134 = vsub.f32 %v3062, %v3614
        %v4135 = vsub.f32 %v3064, %v3614
        %v4136 = vsub.f32 %v1721, %v3623
        %v4137 = vsub.f32 %v1723, %v3623
        %v4138 = vsub.f32 %v2170, %v3623
        %v4139 = vsub.f32 %v2172, %v3623
        %v4140 = vsub.f32 %v2619, %v3623
        %v4141 = vsub.f32 %v2621, %v3623
        %v4142 = vsub.f32 %v3068, %v3623
        %v4143 = vsub.f32 %v3070, %v3623
        %v4144 = vsub.f32 %v1727, %v3632
        %v4145 = vsub.f32 %v1729, %v3632
        %v4146 = vsub.f32 %v2176, %v3632
        %v4147 = vsub.f32 %v2178, %v3632
        %v4148 = vsub.f32 %v2625, %v3632
        %v4149 = vsub.f32 %v2627, %v3632
        %v4150 = vsub.f32 %v3074, %v3632
        %v4151 = vsub.f32 %v3076, %v3632
        %v4152 = vsub.f32 %v1733, %v3641
        %v4153 = vsub.f32 %v1735, %v3641
        %v4154 = vsub.f32 %v2182, %v3641
        %v4155 = vsub.f32 %v2184, %v3641
        %v4156 = vsub.f32 %v2631, %v3641
        %v4157 = vsub.f32 %v2633, %v3641
        %v4158 = vsub.f32 %v3080, %v3641
        %v4159 = vsub.f32 %v3082, %v3641
        %v4160 = vsub.f32 %v1739, %v3650
        %v4161 = vsub.f32 %v1741, %v3650
        %v4162 = vsub.f32 %v2188, %v3650
        %v4163 = vsub.f32 %v2190, %v3650
        %v4164 = vsub.f32 %v2637, %v3650
        %v4165 = vsub.f32 %v2639, %v3650
        %v4166 = vsub.f32 %v3086, %v3650
        %v4167 = vsub.f32 %v3088, %v3650
        %v4168 = vsub.f32 %v1745, %v3659
        %v4169 = vsub.f32 %v1747, %v3659
        %v4170 = vsub.f32 %v2194, %v3659
        %v4171 = vsub.f32 %v2196, %v3659
        %v4172 = vsub.f32 %v2643, %v3659
        %v4173 = vsub.f32 %v2645, %v3659
        %v4174 = vsub.f32 %v3092, %v3659
        %v4175 = vsub.f32 %v3094, %v3659
        %v4176 = vsub.f32 %v1751, %v3668
        %v4177 = vsub.f32 %v1753, %v3668
        %v4178 = vsub.f32 %v2200, %v3668
        %v4179 = vsub.f32 %v2202, %v3668
        %v4180 = vsub.f32 %v2649, %v3668
        %v4181 = vsub.f32 %v2651, %v3668
        %v4182 = vsub.f32 %v3098, %v3668
        %v4183 = vsub.f32 %v3100, %v3668
        %v4184 = vsub.f32 %v1757, %v3677
        %v4185 = vsub.f32 %v1759, %v3677
        %v4186 = vsub.f32 %v2206, %v3677
        %v4187 = vsub.f32 %v2208, %v3677
        %v4188 = vsub.f32 %v2655, %v3677
        %v4189 = vsub.f32 %v2657, %v3677
        %v4190 = vsub.f32 %v3104, %v3677
        %v4191 = vsub.f32 %v3106, %v3677
        %v4192 = vsub.f32 %v1763, %v3686
        %v4193 = vsub.f32 %v1765, %v3686
        %v4194 = vsub.f32 %v2212, %v3686
        %v4195 = vsub.f32 %v2214, %v3686
        %v4196 = vsub.f32 %v2661, %v3686
        %v4197 = vsub.f32 %v2663, %v3686
        %v4198 = vsub.f32 %v3110, %v3686
        %v4199 = vsub.f32 %v3112, %v3686
        %v4200 = vsub.f32 %v1769, %v3695
        %v4201 = vsub.f32 %v1771, %v3695
        %v4202 = vsub.f32 %v2218, %v3695
        %v4203 = vsub.f32 %v2220, %v3695
        %v4204 = vsub.f32 %v2667, %v3695
        %v4205 = vsub.f32 %v2669, %v3695
        %v4206 = vsub.f32 %v3116, %v3695
        %v4207 = vsub.f32 %v3118, %v3695
        %v4208 = vmul.f32 %v3696, 1.442695
        %v4209 = vpow.pop %v4208
        %v4210 = vmul.f32 %v3697, 1.442695
        %v4211 = vpow.pop %v4210
        %v4212 = vmul.f32 %v3698, 1.442695
        %v4213 = vpow.pop %v4212
        %v4214 = vmul.f32 %v3699, 1.442695
        %v4215 = vpow.pop %v4214
        %v4216 = vmul.f32 %v3700, 1.442695
        %v4217 = vpow.pop %v4216
        %v4218 = vmul.f32 %v3701, 1.442695
        %v4219 = vpow.pop %v4218
        %v4220 = vmul.f32 %v3702, 1.442695
        %v4221 = vpow.pop %v4220
        %v4222 = vmul.f32 %v3703, 1.442695
        %v4223 = vpow.pop %v4222
        %v4224 = vmul.f32 %v3704, 1.442695
        %v4225 = vpow.pop %v4224
        %v4226 = vmul.f32 %v3705, 1.442695
        %v4227 = vpow.pop %v4226
        %v4228 = vmul.f32 %v3706, 1.442695
        %v4229 = vpow.pop %v4228
        %v4230 = vmul.f32 %v3707, 1.442695
        %v4231 = vpow.pop %v4230
        %v4232 = vmul.f32 %v3708, 1.442695
        %v4233 = vpow.pop %v4232
        %v4234 = vmul.f32 %v3709, 1.442695
        %v4235 = vpow.pop %v4234
        %v4236 = vmul.f32 %v3710, 1.442695
        %v4237 = vpow.pop %v4236
        %v4238 = vmul.f32 %v3711, 1.442695
        %v4239 = vpow.pop %v4238
        %v4240 = vmul.f32 %v3712, 1.442695
        %v4241 = vpow.pop %v4240
        %v4242 = vmul.f32 %v3713, 1.442695
        %v4243 = vpow.pop %v4242
        %v4244 = vmul.f32 %v3714, 1.442695
        %v4245 = vpow.pop %v4244
        %v4246 = vmul.f32 %v3715, 1.442695
        %v4247 = vpow.pop %v4246
        %v4248 = vmul.f32 %v3716, 1.442695
        %v4249 = vpow.pop %v4248
        %v4250 = vmul.f32 %v3717, 1.442695
        %v4251 = vpow.pop %v4250
        %v4252 = vmul.f32 %v3718, 1.442695
        %v4253 = vpow.pop %v4252
        %v4254 = vmul.f32 %v3719, 1.442695
        %v4255 = vpow.pop %v4254
        %v4256 = vmul.f32 %v3720, 1.442695
        %v4257 = vpow.pop %v4256
        %v4258 = vmul.f32 %v3721, 1.442695
        %v4259 = vpow.pop %v4258
        %v4260 = vmul.f32 %v3722, 1.442695
        %v4261 = vpow.pop %v4260
        %v4262 = vmul.f32 %v3723, 1.442695
        %v4263 = vpow.pop %v4262
        %v4264 = vmul.f32 %v3724, 1.442695
        %v4265 = vpow.pop %v4264
        %v4266 = vmul.f32 %v3725, 1.442695
        %v4267 = vpow.pop %v4266
        %v4268 = vmul.f32 %v3726, 1.442695
        %v4269 = vpow.pop %v4268
        %v4270 = vmul.f32 %v3727, 1.442695
        %v4271 = vpow.pop %v4270
        %v4272 = vmul.f32 %v3728, 1.442695
        %v4273 = vpow.pop %v4272
        %v4274 = vmul.f32 %v3729, 1.442695
        %v4275 = vpow.pop %v4274
        %v4276 = vmul.f32 %v3730, 1.442695
        %v4277 = vpow.pop %v4276
        %v4278 = vmul.f32 %v3731, 1.442695
        %v4279 = vpow.pop %v4278
        %v4280 = vmul.f32 %v3732, 1.442695
        %v4281 = vpow.pop %v4280
        %v4282 = vmul.f32 %v3733, 1.442695
        %v4283 = vpow.pop %v4282
        %v4284 = vmul.f32 %v3734, 1.442695
        %v4285 = vpow.pop %v4284
        %v4286 = vmul.f32 %v3735, 1.442695
        %v4287 = vpow.pop %v4286
        %v4288 = vmul.f32 %v3736, 1.442695
        %v4289 = vpow.pop %v4288
        %v4290 = vmul.f32 %v3737, 1.442695
        %v4291 = vpow.pop %v4290
        %v4292 = vmul.f32 %v3738, 1.442695
        %v4293 = vpow.pop %v4292
        %v4294 = vmul.f32 %v3739, 1.442695
        %v4295 = vpow.pop %v4294
        %v4296 = vmul.f32 %v3740, 1.442695
        %v4297 = vpow.pop %v4296
        %v4298 = vmul.f32 %v3741, 1.442695
        %v4299 = vpow.pop %v4298
        %v4300 = vmul.f32 %v3742, 1.442695
        %v4301 = vpow.pop %v4300
        %v4302 = vmul.f32 %v3743, 1.442695
        %v4303 = vpow.pop %v4302
        %v4304 = vmul.f32 %v3744, 1.442695
        %v4305 = vpow.pop %v4304
        %v4306 = vmul.f32 %v3745, 1.442695
        %v4307 = vpow.pop %v4306
        %v4308 = vmul.f32 %v3746, 1.442695
        %v4309 = vpow.pop %v4308
        %v4310 = vmul.f32 %v3747, 1.442695
        %v4311 = vpow.pop %v4310
        %v4312 = vmul.f32 %v3748, 1.442695
        %v4313 = vpow.pop %v4312
        %v4314 = vmul.f32 %v3749, 1.442695
        %v4315 = vpow.pop %v4314
        %v4316 = vmul.f32 %v3750, 1.442695
        %v4317 = vpow.pop %v4316
        %v4318 = vmul.f32 %v3751, 1.442695
        %v4319 = vpow.pop %v4318
        %v4320 = vmul.f32 %v3752, 1.442695
        %v4321 = vpow.pop %v4320
        %v4322 = vmul.f32 %v3753, 1.442695
        %v4323 = vpow.pop %v4322
        %v4324 = vmul.f32 %v3754, 1.442695
        %v4325 = vpow.pop %v4324
        %v4326 = vmul.f32 %v3755, 1.442695
        %v4327 = vpow.pop %v4326
        %v4328 = vmul.f32 %v3756, 1.442695
        %v4329 = vpow.pop %v4328
        %v4330 = vmul.f32 %v3757, 1.442695
        %v4331 = vpow.pop %v4330
        %v4332 = vmul.f32 %v3758, 1.442695
        %v4333 = vpow.pop %v4332
        %v4334 = vmul.f32 %v3759, 1.442695
        %v4335 = vpow.pop %v4334
        %v4336 = vmul.f32 %v3760, 1.442695
        %v4337 = vpow.pop %v4336
        %v4338 = vmul.f32 %v3761, 1.442695
        %v4339 = vpow.pop %v4338
        %v4340 = vmul.f32 %v3762, 1.442695
        %v4341 = vpow.pop %v4340
        %v4342 = vmul.f32 %v3763, 1.442695
        %v4343 = vpow.pop %v4342
        %v4344 = vmul.f32 %v3764, 1.442695
        %v4345 = vpow.pop %v4344
        %v4346 = vmul.f32 %v3765, 1.442695
        %v4347 = vpow.pop %v4346
        %v4348 = vmul.f32 %v3766, 1.442695
        %v4349 = vpow.pop %v4348
        %v4350 = vmul.f32 %v3767, 1.442695
        %v4351 = vpow.pop %v4350
        %v4352 = vmul.f32 %v3768, 1.442695
        %v4353 = vpow.pop %v4352
        %v4354 = vmul.f32 %v3769, 1.442695
        %v4355 = vpow.pop %v4354
        %v4356 = vmul.f32 %v3770, 1.442695
        %v4357 = vpow.pop %v4356
        %v4358 = vmul.f32 %v3771, 1.442695
        %v4359 = vpow.pop %v4358
        %v4360 = vmul.f32 %v3772, 1.442695
        %v4361 = vpow.pop %v4360
        %v4362 = vmul.f32 %v3773, 1.442695
        %v4363 = vpow.pop %v4362
        %v4364 = vmul.f32 %v3774, 1.442695
        %v4365 = vpow.pop %v4364
        %v4366 = vmul.f32 %v3775, 1.442695
        %v4367 = vpow.pop %v4366
        %v4368 = vmul.f32 %v3776, 1.442695
        %v4369 = vpow.pop %v4368
        %v4370 = vmul.f32 %v3777, 1.442695
        %v4371 = vpow.pop %v4370
        %v4372 = vmul.f32 %v3778, 1.442695
        %v4373 = vpow.pop %v4372
        %v4374 = vmul.f32 %v3779, 1.442695
        %v4375 = vpow.pop %v4374
        %v4376 = vmul.f32 %v3780, 1.442695
        %v4377 = vpow.pop %v4376
        %v4378 = vmul.f32 %v3781, 1.442695
        %v4379 = vpow.pop %v4378
        %v4380 = vmul.f32 %v3782, 1.442695
        %v4381 = vpow.pop %v4380
        %v4382 = vmul.f32 %v3783, 1.442695
        %v4383 = vpow.pop %v4382
        %v4384 = vmul.f32 %v3784, 1.442695
        %v4385 = vpow.pop %v4384
        %v4386 = vmul.f32 %v3785, 1.442695
        %v4387 = vpow.pop %v4386
        %v4388 = vmul.f32 %v3786, 1.442695
        %v4389 = vpow.pop %v4388
        %v4390 = vmul.f32 %v3787, 1.442695
        %v4391 = vpow.pop %v4390
        %v4392 = vmul.f32 %v3788, 1.442695
        %v4393 = vpow.pop %v4392
        %v4394 = vmul.f32 %v3789, 1.442695
        %v4395 = vpow.pop %v4394
        %v4396 = vmul.f32 %v3790, 1.442695
        %v4397 = vpow.pop %v4396
        %v4398 = vmul.f32 %v3791, 1.442695
        %v4399 = vpow.pop %v4398
        %v4400 = vmul.f32 %v3792, 1.442695
        %v4401 = vpow.pop %v4400
        %v4402 = vmul.f32 %v3793, 1.442695
        %v4403 = vpow.pop %v4402
        %v4404 = vmul.f32 %v3794, 1.442695
        %v4405 = vpow.pop %v4404
        %v4406 = vmul.f32 %v3795, 1.442695
        %v4407 = vpow.pop %v4406
        %v4408 = vmul.f32 %v3796, 1.442695
        %v4409 = vpow.pop %v4408
        %v4410 = vmul.f32 %v3797, 1.442695
        %v4411 = vpow.pop %v4410
        %v4412 = vmul.f32 %v3798, 1.442695
        %v4413 = vpow.pop %v4412
        %v4414 = vmul.f32 %v3799, 1.442695
        %v4415 = vpow.pop %v4414
        %v4416 = vmul.f32 %v3800, 1.442695
        %v4417 = vpow.pop %v4416
        %v4418 = vmul.f32 %v3801, 1.442695
        %v4419 = vpow.pop %v4418
        %v4420 = vmul.f32 %v3802, 1.442695
        %v4421 = vpow.pop %v4420
        %v4422 = vmul.f32 %v3803, 1.442695
        %v4423 = vpow.pop %v4422
        %v4424 = vmul.f32 %v3804, 1.442695
        %v4425 = vpow.pop %v4424
        %v4426 = vmul.f32 %v3805, 1.442695
        %v4427 = vpow.pop %v4426
        %v4428 = vmul.f32 %v3806, 1.442695
        %v4429 = vpow.pop %v4428
        %v4430 = vmul.f32 %v3807, 1.442695
        %v4431 = vpow.pop %v4430
        %v4432 = vmul.f32 %v3808, 1.442695
        %v4433 = vpow.pop %v4432
        %v4434 = vmul.f32 %v3809, 1.442695
        %v4435 = vpow.pop %v4434
        %v4436 = vmul.f32 %v3810, 1.442695
        %v4437 = vpow.pop %v4436
        %v4438 = vmul.f32 %v3811, 1.442695
        %v4439 = vpow.pop %v4438
        %v4440 = vmul.f32 %v3812, 1.442695
        %v4441 = vpow.pop %v4440
        %v4442 = vmul.f32 %v3813, 1.442695
        %v4443 = vpow.pop %v4442
        %v4444 = vmul.f32 %v3814, 1.442695
        %v4445 = vpow.pop %v4444
        %v4446 = vmul.f32 %v3815, 1.442695
        %v4447 = vpow.pop %v4446
        %v4448 = vmul.f32 %v3816, 1.442695
        %v4449 = vpow.pop %v4448
        %v4450 = vmul.f32 %v3817, 1.442695
        %v4451 = vpow.pop %v4450
        %v4452 = vmul.f32 %v3818, 1.442695
        %v4453 = vpow.pop %v4452
        %v4454 = vmul.f32 %v3819, 1.442695
        %v4455 = vpow.pop %v4454
        %v4456 = vmul.f32 %v3820, 1.442695
        %v4457 = vpow.pop %v4456
        %v4458 = vmul.f32 %v3821, 1.442695
        %v4459 = vpow.pop %v4458
        %v4460 = vmul.f32 %v3822, 1.442695
        %v4461 = vpow.pop %v4460
        %v4462 = vmul.f32 %v3823, 1.442695
        %v4463 = vpow.pop %v4462
        %v4464 = vmul.f32 %v3824, 1.442695
        %v4465 = vpow.pop %v4464
        %v4466 = vmul.f32 %v3825, 1.442695
        %v4467 = vpow.pop %v4466
        %v4468 = vmul.f32 %v3826, 1.442695
        %v4469 = vpow.pop %v4468
        %v4470 = vmul.f32 %v3827, 1.442695
        %v4471 = vpow.pop %v4470
        %v4472 = vmul.f32 %v3828, 1.442695
        %v4473 = vpow.pop %v4472
        %v4474 = vmul.f32 %v3829, 1.442695
        %v4475 = vpow.pop %v4474
        %v4476 = vmul.f32 %v3830, 1.442695
        %v4477 = vpow.pop %v4476
        %v4478 = vmul.f32 %v3831, 1.442695
        %v4479 = vpow.pop %v4478
        %v4480 = vmul.f32 %v3832, 1.442695
        %v4481 = vpow.pop %v4480
        %v4482 = vmul.f32 %v3833, 1.442695
        %v4483 = vpow.pop %v4482
        %v4484 = vmul.f32 %v3834, 1.442695
        %v4485 = vpow.pop %v4484
        %v4486 = vmul.f32 %v3835, 1.442695
        %v4487 = vpow.pop %v4486
        %v4488 = vmul.f32 %v3836, 1.442695
        %v4489 = vpow.pop %v4488
        %v4490 = vmul.f32 %v3837, 1.442695
        %v4491 = vpow.pop %v4490
        %v4492 = vmul.f32 %v3838, 1.442695
        %v4493 = vpow.pop %v4492
        %v4494 = vmul.f32 %v3839, 1.442695
        %v4495 = vpow.pop %v4494
        %v4496 = vmul.f32 %v3840, 1.442695
        %v4497 = vpow.pop %v4496
        %v4498 = vmul.f32 %v3841, 1.442695
        %v4499 = vpow.pop %v4498
        %v4500 = vmul.f32 %v3842, 1.442695
        %v4501 = vpow.pop %v4500
        %v4502 = vmul.f32 %v3843, 1.442695
        %v4503 = vpow.pop %v4502
        %v4504 = vmul.f32 %v3844, 1.442695
        %v4505 = vpow.pop %v4504
        %v4506 = vmul.f32 %v3845, 1.442695
        %v4507 = vpow.pop %v4506
        %v4508 = vmul.f32 %v3846, 1.442695
        %v4509 = vpow.pop %v4508
        %v4510 = vmul.f32 %v3847, 1.442695
        %v4511 = vpow.pop %v4510
        %v4512 = vmul.f32 %v3848, 1.442695
        %v4513 = vpow.pop %v4512
        %v4514 = vmul.f32 %v3849, 1.442695
        %v4515 = vpow.pop %v4514
        %v4516 = vmul.f32 %v3850, 1.442695
        %v4517 = vpow.pop %v4516
        %v4518 = vmul.f32 %v3851, 1.442695
        %v4519 = vpow.pop %v4518
        %v4520 = vmul.f32 %v3852, 1.442695
        %v4521 = vpow.pop %v4520
        %v4522 = vmul.f32 %v3853, 1.442695
        %v4523 = vpow.pop %v4522
        %v4524 = vmul.f32 %v3854, 1.442695
        %v4525 = vpow.pop %v4524
        %v4526 = vmul.f32 %v3855, 1.442695
        %v4527 = vpow.pop %v4526
        %v4528 = vmul.f32 %v3856, 1.442695
        %v4529 = vpow.pop %v4528
        %v4530 = vmul.f32 %v3857, 1.442695
        %v4531 = vpow.pop %v4530
        %v4532 = vmul.f32 %v3858, 1.442695
        %v4533 = vpow.pop %v4532
        %v4534 = vmul.f32 %v3859, 1.442695
        %v4535 = vpow.pop %v4534
        %v4536 = vmul.f32 %v3860, 1.442695
        %v4537 = vpow.pop %v4536
        %v4538 = vmul.f32 %v3861, 1.442695
        %v4539 = vpow.pop %v4538
        %v4540 = vmul.f32 %v3862, 1.442695
        %v4541 = vpow.pop %v4540
        %v4542 = vmul.f32 %v3863, 1.442695
        %v4543 = vpow.pop %v4542
        %v4544 = vmul.f32 %v3864, 1.442695
        %v4545 = vpow.pop %v4544
        %v4546 = vmul.f32 %v3865, 1.442695
        %v4547 = vpow.pop %v4546
        %v4548 = vmul.f32 %v3866, 1.442695
        %v4549 = vpow.pop %v4548
        %v4550 = vmul.f32 %v3867, 1.442695
        %v4551 = vpow.pop %v4550
        %v4552 = vmul.f32 %v3868, 1.442695
        %v4553 = vpow.pop %v4552
        %v4554 = vmul.f32 %v3869, 1.442695
        %v4555 = vpow.pop %v4554
        %v4556 = vmul.f32 %v3870, 1.442695
        %v4557 = vpow.pop %v4556
        %v4558 = vmul.f32 %v3871, 1.442695
        %v4559 = vpow.pop %v4558
        %v4560 = vmul.f32 %v3872, 1.442695
        %v4561 = vpow.pop %v4560
        %v4562 = vmul.f32 %v3873, 1.442695
        %v4563 = vpow.pop %v4562
        %v4564 = vmul.f32 %v3874, 1.442695
        %v4565 = vpow.pop %v4564
        %v4566 = vmul.f32 %v3875, 1.442695
        %v4567 = vpow.pop %v4566
        %v4568 = vmul.f32 %v3876, 1.442695
        %v4569 = vpow.pop %v4568
        %v4570 = vmul.f32 %v3877, 1.442695
        %v4571 = vpow.pop %v4570
        %v4572 = vmul.f32 %v3878, 1.442695
        %v4573 = vpow.pop %v4572
        %v4574 = vmul.f32 %v3879, 1.442695
        %v4575 = vpow.pop %v4574
        %v4576 = vmul.f32 %v3880, 1.442695
        %v4577 = vpow.pop %v4576
        %v4578 = vmul.f32 %v3881, 1.442695
        %v4579 = vpow.pop %v4578
        %v4580 = vmul.f32 %v3882, 1.442695
        %v4581 = vpow.pop %v4580
        %v4582 = vmul.f32 %v3883, 1.442695
        %v4583 = vpow.pop %v4582
        %v4584 = vmul.f32 %v3884, 1.442695
        %v4585 = vpow.pop %v4584
        %v4586 = vmul.f32 %v3885, 1.442695
        %v4587 = vpow.pop %v4586
        %v4588 = vmul.f32 %v3886, 1.442695
        %v4589 = vpow.pop %v4588
        %v4590 = vmul.f32 %v3887, 1.442695
        %v4591 = vpow.pop %v4590
        %v4592 = vmul.f32 %v3888, 1.442695
        %v4593 = vpow.pop %v4592
        %v4594 = vmul.f32 %v3889, 1.442695
        %v4595 = vpow.pop %v4594
        %v4596 = vmul.f32 %v3890, 1.442695
        %v4597 = vpow.pop %v4596
        %v4598 = vmul.f32 %v3891, 1.442695
        %v4599 = vpow.pop %v4598
        %v4600 = vmul.f32 %v3892, 1.442695
        %v4601 = vpow.pop %v4600
        %v4602 = vmul.f32 %v3893, 1.442695
        %v4603 = vpow.pop %v4602
        %v4604 = vmul.f32 %v3894, 1.442695
        %v4605 = vpow.pop %v4604
        %v4606 = vmul.f32 %v3895, 1.442695
        %v4607 = vpow.pop %v4606
        %v4608 = vmul.f32 %v3896, 1.442695
        %v4609 = vpow.pop %v4608
        %v4610 = vmul.f32 %v3897, 1.442695
        %v4611 = vpow.pop %v4610
        %v4612 = vmul.f32 %v3898, 1.442695
        %v4613 = vpow.pop %v4612
        %v4614 = vmul.f32 %v3899, 1.442695
        %v4615 = vpow.pop %v4614
        %v4616 = vmul.f32 %v3900, 1.442695
        %v4617 = vpow.pop %v4616
        %v4618 = vmul.f32 %v3901, 1.442695
        %v4619 = vpow.pop %v4618
        %v4620 = vmul.f32 %v3902, 1.442695
        %v4621 = vpow.pop %v4620
        %v4622 = vmul.f32 %v3903, 1.442695
        %v4623 = vpow.pop %v4622
        %v4624 = vmul.f32 %v3904, 1.442695
        %v4625 = vpow.pop %v4624
        %v4626 = vmul.f32 %v3905, 1.442695
        %v4627 = vpow.pop %v4626
        %v4628 = vmul.f32 %v3906, 1.442695
        %v4629 = vpow.pop %v4628
        %v4630 = vmul.f32 %v3907, 1.442695
        %v4631 = vpow.pop %v4630
        %v4632 = vmul.f32 %v3908, 1.442695
        %v4633 = vpow.pop %v4632
        %v4634 = vmul.f32 %v3909, 1.442695
        %v4635 = vpow.pop %v4634
        %v4636 = vmul.f32 %v3910, 1.442695
        %v4637 = vpow.pop %v4636
        %v4638 = vmul.f32 %v3911, 1.442695
        %v4639 = vpow.pop %v4638
        %v4640 = vmul.f32 %v3912, 1.442695
        %v4641 = vpow.pop %v4640
        %v4642 = vmul.f32 %v3913, 1.442695
        %v4643 = vpow.pop %v4642
        %v4644 = vmul.f32 %v3914, 1.442695
        %v4645 = vpow.pop %v4644
        %v4646 = vmul.f32 %v3915, 1.442695
        %v4647 = vpow.pop %v4646
        %v4648 = vmul.f32 %v3916, 1.442695
        %v4649 = vpow.pop %v4648
        %v4650 = vmul.f32 %v3917, 1.442695
        %v4651 = vpow.pop %v4650
        %v4652 = vmul.f32 %v3918, 1.442695
        %v4653 = vpow.pop %v4652
        %v4654 = vmul.f32 %v3919, 1.442695
        %v4655 = vpow.pop %v4654
        %v4656 = vmul.f32 %v3920, 1.442695
        %v4657 = vpow.pop %v4656
        %v4658 = vmul.f32 %v3921, 1.442695
        %v4659 = vpow.pop %v4658
        %v4660 = vmul.f32 %v3922, 1.442695
        %v4661 = vpow.pop %v4660
        %v4662 = vmul.f32 %v3923, 1.442695
        %v4663 = vpow.pop %v4662
        %v4664 = vmul.f32 %v3924, 1.442695
        %v4665 = vpow.pop %v4664
        %v4666 = vmul.f32 %v3925, 1.442695
        %v4667 = vpow.pop %v4666
        %v4668 = vmul.f32 %v3926, 1.442695
        %v4669 = vpow.pop %v4668
        %v4670 = vmul.f32 %v3927, 1.442695
        %v4671 = vpow.pop %v4670
        %v4672 = vmul.f32 %v3928, 1.442695
        %v4673 = vpow.pop %v4672
        %v4674 = vmul.f32 %v3929, 1.442695
        %v4675 = vpow.pop %v4674
        %v4676 = vmul.f32 %v3930, 1.442695
        %v4677 = vpow.pop %v4676
        %v4678 = vmul.f32 %v3931, 1.442695
        %v4679 = vpow.pop %v4678
        %v4680 = vmul.f32 %v3932, 1.442695
        %v4681 = vpow.pop %v4680
        %v4682 = vmul.f32 %v3933, 1.442695
        %v4683 = vpow.pop %v4682
        %v4684 = vmul.f32 %v3934, 1.442695
        %v4685 = vpow.pop %v4684
        %v4686 = vmul.f32 %v3935, 1.442695
        %v4687 = vpow.pop %v4686
        %v4688 = vmul.f32 %v3936, 1.442695
        %v4689 = vpow.pop %v4688
        %v4690 = vmul.f32 %v3937, 1.442695
        %v4691 = vpow.pop %v4690
        %v4692 = vmul.f32 %v3938, 1.442695
        %v4693 = vpow.pop %v4692
        %v4694 = vmul.f32 %v3939, 1.442695
        %v4695 = vpow.pop %v4694
        %v4696 = vmul.f32 %v3940, 1.442695
        %v4697 = vpow.pop %v4696
        %v4698 = vmul.f32 %v3941, 1.442695
        %v4699 = vpow.pop %v4698
        %v4700 = vmul.f32 %v3942, 1.442695
        %v4701 = vpow.pop %v4700
        %v4702 = vmul.f32 %v3943, 1.442695
        %v4703 = vpow.pop %v4702
        %v4704 = vmul.f32 %v3944, 1.442695
        %v4705 = vpow.pop %v4704
        %v4706 = vmul.f32 %v3945, 1.442695
        %v4707 = vpow.pop %v4706
        %v4708 = vmul.f32 %v3946, 1.442695
        %v4709 = vpow.pop %v4708
        %v4710 = vmul.f32 %v3947, 1.442695
        %v4711 = vpow.pop %v4710
        %v4712 = vmul.f32 %v3948, 1.442695
        %v4713 = vpow.pop %v4712
        %v4714 = vmul.f32 %v3949, 1.442695
        %v4715 = vpow.pop %v4714
        %v4716 = vmul.f32 %v3950, 1.442695
        %v4717 = vpow.pop %v4716
        %v4718 = vmul.f32 %v3951, 1.442695
        %v4719 = vpow.pop %v4718
        %v4720 = vmul.f32 %v3952, 1.442695
        %v4721 = vpow.pop %v4720
        %v4722 = vmul.f32 %v3953, 1.442695
        %v4723 = vpow.pop %v4722
        %v4724 = vmul.f32 %v3954, 1.442695
        %v4725 = vpow.pop %v4724
        %v4726 = vmul.f32 %v3955, 1.442695
        %v4727 = vpow.pop %v4726
        %v4728 = vmul.f32 %v3956, 1.442695
        %v4729 = vpow.pop %v4728
        %v4730 = vmul.f32 %v3957, 1.442695
        %v4731 = vpow.pop %v4730
        %v4732 = vmul.f32 %v3958, 1.442695
        %v4733 = vpow.pop %v4732
        %v4734 = vmul.f32 %v3959, 1.442695
        %v4735 = vpow.pop %v4734
        %v4736 = vmul.f32 %v3960, 1.442695
        %v4737 = vpow.pop %v4736
        %v4738 = vmul.f32 %v3961, 1.442695
        %v4739 = vpow.pop %v4738
        %v4740 = vmul.f32 %v3962, 1.442695
        %v4741 = vpow.pop %v4740
        %v4742 = vmul.f32 %v3963, 1.442695
        %v4743 = vpow.pop %v4742
        %v4744 = vmul.f32 %v3964, 1.442695
        %v4745 = vpow.pop %v4744
        %v4746 = vmul.f32 %v3965, 1.442695
        %v4747 = vpow.pop %v4746
        %v4748 = vmul.f32 %v3966, 1.442695
        %v4749 = vpow.pop %v4748
        %v4750 = vmul.f32 %v3967, 1.442695
        %v4751 = vpow.pop %v4750
        %v4752 = vmul.f32 %v3968, 1.442695
        %v4753 = vpow.pop %v4752
        %v4754 = vmul.f32 %v3969, 1.442695
        %v4755 = vpow.pop %v4754
        %v4756 = vmul.f32 %v3970, 1.442695
        %v4757 = vpow.pop %v4756
        %v4758 = vmul.f32 %v3971, 1.442695
        %v4759 = vpow.pop %v4758
        %v4760 = vmul.f32 %v3972, 1.442695
        %v4761 = vpow.pop %v4760
        %v4762 = vmul.f32 %v3973, 1.442695
        %v4763 = vpow.pop %v4762
        %v4764 = vmul.f32 %v3974, 1.442695
        %v4765 = vpow.pop %v4764
        %v4766 = vmul.f32 %v3975, 1.442695
        %v4767 = vpow.pop %v4766
        %v4768 = vmul.f32 %v3976, 1.442695
        %v4769 = vpow.pop %v4768
        %v4770 = vmul.f32 %v3977, 1.442695
        %v4771 = vpow.pop %v4770
        %v4772 = vmul.f32 %v3978, 1.442695
        %v4773 = vpow.pop %v4772
        %v4774 = vmul.f32 %v3979, 1.442695
        %v4775 = vpow.pop %v4774
        %v4776 = vmul.f32 %v3980, 1.442695
        %v4777 = vpow.pop %v4776
        %v4778 = vmul.f32 %v3981, 1.442695
        %v4779 = vpow.pop %v4778
        %v4780 = vmul.f32 %v3982, 1.442695
        %v4781 = vpow.pop %v4780
        %v4782 = vmul.f32 %v3983, 1.442695
        %v4783 = vpow.pop %v4782
        %v4784 = vmul.f32 %v3984, 1.442695
        %v4785 = vpow.pop %v4784
        %v4786 = vmul.f32 %v3985, 1.442695
        %v4787 = vpow.pop %v4786
        %v4788 = vmul.f32 %v3986, 1.442695
        %v4789 = vpow.pop %v4788
        %v4790 = vmul.f32 %v3987, 1.442695
        %v4791 = vpow.pop %v4790
        %v4792 = vmul.f32 %v3988, 1.442695
        %v4793 = vpow.pop %v4792
        %v4794 = vmul.f32 %v3989, 1.442695
        %v4795 = vpow.pop %v4794
        %v4796 = vmul.f32 %v3990, 1.442695
        %v4797 = vpow.pop %v4796
        %v4798 = vmul.f32 %v3991, 1.442695
        %v4799 = vpow.pop %v4798
        %v4800 = vmul.f32 %v3992, 1.442695
        %v4801 = vpow.pop %v4800
        %v4802 = vmul.f32 %v3993, 1.442695
        %v4803 = vpow.pop %v4802
        %v4804 = vmul.f32 %v3994, 1.442695
        %v4805 = vpow.pop %v4804
        %v4806 = vmul.f32 %v3995, 1.442695
        %v4807 = vpow.pop %v4806
        %v4808 = vmul.f32 %v3996, 1.442695
        %v4809 = vpow.pop %v4808
        %v4810 = vmul.f32 %v3997, 1.442695
        %v4811 = vpow.pop %v4810
        %v4812 = vmul.f32 %v3998, 1.442695
        %v4813 = vpow.pop %v4812
        %v4814 = vmul.f32 %v3999, 1.442695
        %v4815 = vpow.pop %v4814
        %v4816 = vmul.f32 %v4000, 1.442695
        %v4817 = vpow.pop %v4816
        %v4818 = vmul.f32 %v4001, 1.442695
        %v4819 = vpow.pop %v4818
        %v4820 = vmul.f32 %v4002, 1.442695
        %v4821 = vpow.pop %v4820
        %v4822 = vmul.f32 %v4003, 1.442695
        %v4823 = vpow.pop %v4822
        %v4824 = vmul.f32 %v4004, 1.442695
        %v4825 = vpow.pop %v4824
        %v4826 = vmul.f32 %v4005, 1.442695
        %v4827 = vpow.pop %v4826
        %v4828 = vmul.f32 %v4006, 1.442695
        %v4829 = vpow.pop %v4828
        %v4830 = vmul.f32 %v4007, 1.442695
        %v4831 = vpow.pop %v4830
        %v4832 = vmul.f32 %v4008, 1.442695
        %v4833 = vpow.pop %v4832
        %v4834 = vmul.f32 %v4009, 1.442695
        %v4835 = vpow.pop %v4834
        %v4836 = vmul.f32 %v4010, 1.442695
        %v4837 = vpow.pop %v4836
        %v4838 = vmul.f32 %v4011, 1.442695
        %v4839 = vpow.pop %v4838
        %v4840 = vmul.f32 %v4012, 1.442695
        %v4841 = vpow.pop %v4840
        %v4842 = vmul.f32 %v4013, 1.442695
        %v4843 = vpow.pop %v4842
        %v4844 = vmul.f32 %v4014, 1.442695
        %v4845 = vpow.pop %v4844
        %v4846 = vmul.f32 %v4015, 1.442695
        %v4847 = vpow.pop %v4846
        %v4848 = vmul.f32 %v4016, 1.442695
        %v4849 = vpow.pop %v4848
        %v4850 = vmul.f32 %v4017, 1.442695
        %v4851 = vpow.pop %v4850
        %v4852 = vmul.f32 %v4018, 1.442695
        %v4853 = vpow.pop %v4852
        %v4854 = vmul.f32 %v4019, 1.442695
        %v4855 = vpow.pop %v4854
        %v4856 = vmul.f32 %v4020, 1.442695
        %v4857 = vpow.pop %v4856
        %v4858 = vmul.f32 %v4021, 1.442695
        %v4859 = vpow.pop %v4858
        %v4860 = vmul.f32 %v4022, 1.442695
        %v4861 = vpow.pop %v4860
        %v4862 = vmul.f32 %v4023, 1.442695
        %v4863 = vpow.pop %v4862
        %v4864 = vmul.f32 %v4024, 1.442695
        %v4865 = vpow.pop %v4864
        %v4866 = vmul.f32 %v4025, 1.442695
        %v4867 = vpow.pop %v4866
        %v4868 = vmul.f32 %v4026, 1.442695
        %v4869 = vpow.pop %v4868
        %v4870 = vmul.f32 %v4027, 1.442695
        %v4871 = vpow.pop %v4870
        %v4872 = vmul.f32 %v4028, 1.442695
        %v4873 = vpow.pop %v4872
        %v4874 = vmul.f32 %v4029, 1.442695
        %v4875 = vpow.pop %v4874
        %v4876 = vmul.f32 %v4030, 1.442695
        %v4877 = vpow.pop %v4876
        %v4878 = vmul.f32 %v4031, 1.442695
        %v4879 = vpow.pop %v4878
        %v4880 = vmul.f32 %v4032, 1.442695
        %v4881 = vpow.pop %v4880
        %v4882 = vmul.f32 %v4033, 1.442695
        %v4883 = vpow.pop %v4882
        %v4884 = vmul.f32 %v4034, 1.442695
        %v4885 = vpow.pop %v4884
        %v4886 = vmul.f32 %v4035, 1.442695
        %v4887 = vpow.pop %v4886
        %v4888 = vmul.f32 %v4036, 1.442695
        %v4889 = vpow.pop %v4888
        %v4890 = vmul.f32 %v4037, 1.442695
        %v4891 = vpow.pop %v4890
        %v4892 = vmul.f32 %v4038, 1.442695
        %v4893 = vpow.pop %v4892
        %v4894 = vmul.f32 %v4039, 1.442695
        %v4895 = vpow.pop %v4894
        %v4896 = vmul.f32 %v4040, 1.442695
        %v4897 = vpow.pop %v4896
        %v4898 = vmul.f32 %v4041, 1.442695
        %v4899 = vpow.pop %v4898
        %v4900 = vmul.f32 %v4042, 1.442695
        %v4901 = vpow.pop %v4900
        %v4902 = vmul.f32 %v4043, 1.442695
        %v4903 = vpow.pop %v4902
        %v4904 = vmul.f32 %v4044, 1.442695
        %v4905 = vpow.pop %v4904
        %v4906 = vmul.f32 %v4045, 1.442695
        %v4907 = vpow.pop %v4906
        %v4908 = vmul.f32 %v4046, 1.442695
        %v4909 = vpow.pop %v4908
        %v4910 = vmul.f32 %v4047, 1.442695
        %v4911 = vpow.pop %v4910
        %v4912 = vmul.f32 %v4048, 1.442695
        %v4913 = vpow.pop %v4912
        %v4914 = vmul.f32 %v4049, 1.442695
        %v4915 = vpow.pop %v4914
        %v4916 = vmul.f32 %v4050, 1.442695
        %v4917 = vpow.pop %v4916
        %v4918 = vmul.f32 %v4051, 1.442695
        %v4919 = vpow.pop %v4918
        %v4920 = vmul.f32 %v4052, 1.442695
        %v4921 = vpow.pop %v4920
        %v4922 = vmul.f32 %v4053, 1.442695
        %v4923 = vpow.pop %v4922
        %v4924 = vmul.f32 %v4054, 1.442695
        %v4925 = vpow.pop %v4924
        %v4926 = vmul.f32 %v4055, 1.442695
        %v4927 = vpow.pop %v4926
        %v4928 = vmul.f32 %v4056, 1.442695
        %v4929 = vpow.pop %v4928
        %v4930 = vmul.f32 %v4057, 1.442695
        %v4931 = vpow.pop %v4930
        %v4932 = vmul.f32 %v4058, 1.442695
        %v4933 = vpow.pop %v4932
        %v4934 = vmul.f32 %v4059, 1.442695
        %v4935 = vpow.pop %v4934
        %v4936 = vmul.f32 %v4060, 1.442695
        %v4937 = vpow.pop %v4936
        %v4938 = vmul.f32 %v4061, 1.442695
        %v4939 = vpow.pop %v4938
        %v4940 = vmul.f32 %v4062, 1.442695
        %v4941 = vpow.pop %v4940
        %v4942 = vmul.f32 %v4063, 1.442695
        %v4943 = vpow.pop %v4942
        %v4944 = vmul.f32 %v4064, 1.442695
        %v4945 = vpow.pop %v4944
        %v4946 = vmul.f32 %v4065, 1.442695
        %v4947 = vpow.pop %v4946
        %v4948 = vmul.f32 %v4066, 1.442695
        %v4949 = vpow.pop %v4948
        %v4950 = vmul.f32 %v4067, 1.442695
        %v4951 = vpow.pop %v4950
        %v4952 = vmul.f32 %v4068, 1.442695
        %v4953 = vpow.pop %v4952
        %v4954 = vmul.f32 %v4069, 1.442695
        %v4955 = vpow.pop %v4954
        %v4956 = vmul.f32 %v4070, 1.442695
        %v4957 = vpow.pop %v4956
        %v4958 = vmul.f32 %v4071, 1.442695
        %v4959 = vpow.pop %v4958
        %v4960 = vmul.f32 %v4072, 1.442695
        %v4961 = vpow.pop %v4960
        %v4962 = vmul.f32 %v4073, 1.442695
        %v4963 = vpow.pop %v4962
        %v4964 = vmul.f32 %v4074, 1.442695
        %v4965 = vpow.pop %v4964
        %v4966 = vmul.f32 %v4075, 1.442695
        %v4967 = vpow.pop %v4966
        %v4968 = vmul.f32 %v4076, 1.442695
        %v4969 = vpow.pop %v4968
        %v4970 = vmul.f32 %v4077, 1.442695
        %v4971 = vpow.pop %v4970
        %v4972 = vmul.f32 %v4078, 1.442695
        %v4973 = vpow.pop %v4972
        %v4974 = vmul.f32 %v4079, 1.442695
        %v4975 = vpow.pop %v4974
        %v4976 = vmul.f32 %v4080, 1.442695
        %v4977 = vpow.pop %v4976
        %v4978 = vmul.f32 %v4081, 1.442695
        %v4979 = vpow.pop %v4978
        %v4980 = vmul.f32 %v4082, 1.442695
        %v4981 = vpow.pop %v4980
        %v4982 = vmul.f32 %v4083, 1.442695
        %v4983 = vpow.pop %v4982
        %v4984 = vmul.f32 %v4084, 1.442695
        %v4985 = vpow.pop %v4984
        %v4986 = vmul.f32 %v4085, 1.442695
        %v4987 = vpow.pop %v4986
        %v4988 = vmul.f32 %v4086, 1.442695
        %v4989 = vpow.pop %v4988
        %v4990 = vmul.f32 %v4087, 1.442695
        %v4991 = vpow.pop %v4990
        %v4992 = vmul.f32 %v4088, 1.442695
        %v4993 = vpow.pop %v4992
        %v4994 = vmul.f32 %v4089, 1.442695
        %v4995 = vpow.pop %v4994
        %v4996 = vmul.f32 %v4090, 1.442695
        %v4997 = vpow.pop %v4996
        %v4998 = vmul.f32 %v4091, 1.442695
        %v4999 = vpow.pop %v4998
        %v5000 = vmul.f32 %v4092, 1.442695
        %v5001 = vpow.pop %v5000
        %v5002 = vmul.f32 %v4093, 1.442695
        %v5003 = vpow.pop %v5002
        %v5004 = vmul.f32 %v4094, 1.442695
        %v5005 = vpow.pop %v5004
        %v5006 = vmul.f32 %v4095, 1.442695
        %v5007 = vpow.pop %v5006
        %v5008 = vmul.f32 %v4096, 1.442695
        %v5009 = vpow.pop %v5008
        %v5010 = vmul.f32 %v4097, 1.442695
        %v5011 = vpow.pop %v5010
        %v5012 = vmul.f32 %v4098, 1.442695
        %v5013 = vpow.pop %v5012
        %v5014 = vmul.f32 %v4099, 1.442695
        %v5015 = vpow.pop %v5014
        %v5016 = vmul.f32 %v4100, 1.442695
        %v5017 = vpow.pop %v5016
        %v5018 = vmul.f32 %v4101, 1.442695
        %v5019 = vpow.pop %v5018
        %v5020 = vmul.f32 %v4102, 1.442695
        %v5021 = vpow.pop %v5020
        %v5022 = vmul.f32 %v4103, 1.442695
        %v5023 = vpow.pop %v5022
        %v5024 = vmul.f32 %v4104, 1.442695
        %v5025 = vpow.pop %v5024
        %v5026 = vmul.f32 %v4105, 1.442695
        %v5027 = vpow.pop %v5026
        %v5028 = vmul.f32 %v4106, 1.442695
        %v5029 = vpow.pop %v5028
        %v5030 = vmul.f32 %v4107, 1.442695
        %v5031 = vpow.pop %v5030
        %v5032 = vmul.f32 %v4108, 1.442695
        %v5033 = vpow.pop %v5032
        %v5034 = vmul.f32 %v4109, 1.442695
        %v5035 = vpow.pop %v5034
        %v5036 = vmul.f32 %v4110, 1.442695
        %v5037 = vpow.pop %v5036
        %v5038 = vmul.f32 %v4111, 1.442695
        %v5039 = vpow.pop %v5038
        %v5040 = vmul.f32 %v4112, 1.442695
        %v5041 = vpow.pop %v5040
        %v5042 = vmul.f32 %v4113, 1.442695
        %v5043 = vpow.pop %v5042
        %v5044 = vmul.f32 %v4114, 1.442695
        %v5045 = vpow.pop %v5044
        %v5046 = vmul.f32 %v4115, 1.442695
        %v5047 = vpow.pop %v5046
        %v5048 = vmul.f32 %v4116, 1.442695
        %v5049 = vpow.pop %v5048
        %v5050 = vmul.f32 %v4117, 1.442695
        %v5051 = vpow.pop %v5050
        %v5052 = vmul.f32 %v4118, 1.442695
        %v5053 = vpow.pop %v5052
        %v5054 = vmul.f32 %v4119, 1.442695
        %v5055 = vpow.pop %v5054
        %v5056 = vmul.f32 %v4120, 1.442695
        %v5057 = vpow.pop %v5056
        %v5058 = vmul.f32 %v4121, 1.442695
        %v5059 = vpow.pop %v5058
        %v5060 = vmul.f32 %v4122, 1.442695
        %v5061 = vpow.pop %v5060
        %v5062 = vmul.f32 %v4123, 1.442695
        %v5063 = vpow.pop %v5062
        %v5064 = vmul.f32 %v4124, 1.442695
        %v5065 = vpow.pop %v5064
        %v5066 = vmul.f32 %v4125, 1.442695
        %v5067 = vpow.pop %v5066
        %v5068 = vmul.f32 %v4126, 1.442695
        %v5069 = vpow.pop %v5068
        %v5070 = vmul.f32 %v4127, 1.442695
        %v5071 = vpow.pop %v5070
        %v5072 = vmul.f32 %v4128, 1.442695
        %v5073 = vpow.pop %v5072
        %v5074 = vmul.f32 %v4129, 1.442695
        %v5075 = vpow.pop %v5074
        %v5076 = vmul.f32 %v4130, 1.442695
        %v5077 = vpow.pop %v5076
        %v5078 = vmul.f32 %v4131, 1.442695
        %v5079 = vpow.pop %v5078
        %v5080 = vmul.f32 %v4132, 1.442695
        %v5081 = vpow.pop %v5080
        %v5082 = vmul.f32 %v4133, 1.442695
        %v5083 = vpow.pop %v5082
        %v5084 = vmul.f32 %v4134, 1.442695
        %v5085 = vpow.pop %v5084
        %v5086 = vmul.f32 %v4135, 1.442695
        %v5087 = vpow.pop %v5086
        %v5088 = vmul.f32 %v4136, 1.442695
        %v5089 = vpow.pop %v5088
        %v5090 = vmul.f32 %v4137, 1.442695
        %v5091 = vpow.pop %v5090
        %v5092 = vmul.f32 %v4138, 1.442695
        %v5093 = vpow.pop %v5092
        %v5094 = vmul.f32 %v4139, 1.442695
        %v5095 = vpow.pop %v5094
        %v5096 = vmul.f32 %v4140, 1.442695
        %v5097 = vpow.pop %v5096
        %v5098 = vmul.f32 %v4141, 1.442695
        %v5099 = vpow.pop %v5098
        %v5100 = vmul.f32 %v4142, 1.442695
        %v5101 = vpow.pop %v5100
        %v5102 = vmul.f32 %v4143, 1.442695
        %v5103 = vpow.pop %v5102
        %v5104 = vmul.f32 %v4144, 1.442695
        %v5105 = vpow.pop %v5104
        %v5106 = vmul.f32 %v4145, 1.442695
        %v5107 = vpow.pop %v5106
        %v5108 = vmul.f32 %v4146, 1.442695
        %v5109 = vpow.pop %v5108
        %v5110 = vmul.f32 %v4147, 1.442695
        %v5111 = vpow.pop %v5110
        %v5112 = vmul.f32 %v4148, 1.442695
        %v5113 = vpow.pop %v5112
        %v5114 = vmul.f32 %v4149, 1.442695
        %v5115 = vpow.pop %v5114
        %v5116 = vmul.f32 %v4150, 1.442695
        %v5117 = vpow.pop %v5116
        %v5118 = vmul.f32 %v4151, 1.442695
        %v5119 = vpow.pop %v5118
        %v5120 = vmul.f32 %v4152, 1.442695
        %v5121 = vpow.pop %v5120
        %v5122 = vmul.f32 %v4153, 1.442695
        %v5123 = vpow.pop %v5122
        %v5124 = vmul.f32 %v4154, 1.442695
        %v5125 = vpow.pop %v5124
        %v5126 = vmul.f32 %v4155, 1.442695
        %v5127 = vpow.pop %v5126
        %v5128 = vmul.f32 %v4156, 1.442695
        %v5129 = vpow.pop %v5128
        %v5130 = vmul.f32 %v4157, 1.442695
        %v5131 = vpow.pop %v5130
        %v5132 = vmul.f32 %v4158, 1.442695
        %v5133 = vpow.pop %v5132
        %v5134 = vmul.f32 %v4159, 1.442695
        %v5135 = vpow.pop %v5134
        %v5136 = vmul.f32 %v4160, 1.442695
        %v5137 = vpow.pop %v5136
        %v5138 = vmul.f32 %v4161, 1.442695
        %v5139 = vpow.pop %v5138
        %v5140 = vmul.f32 %v4162, 1.442695
        %v5141 = vpow.pop %v5140
        %v5142 = vmul.f32 %v4163, 1.442695
        %v5143 = vpow.pop %v5142
        %v5144 = vmul.f32 %v4164, 1.442695
        %v5145 = vpow.pop %v5144
        %v5146 = vmul.f32 %v4165, 1.442695
        %v5147 = vpow.pop %v5146
        %v5148 = vmul.f32 %v4166, 1.442695
        %v5149 = vpow.pop %v5148
        %v5150 = vmul.f32 %v4167, 1.442695
        %v5151 = vpow.pop %v5150
        %v5152 = vmul.f32 %v4168, 1.442695
        %v5153 = vpow.pop %v5152
        %v5154 = vmul.f32 %v4169, 1.442695
        %v5155 = vpow.pop %v5154
        %v5156 = vmul.f32 %v4170, 1.442695
        %v5157 = vpow.pop %v5156
        %v5158 = vmul.f32 %v4171, 1.442695
        %v5159 = vpow.pop %v5158
        %v5160 = vmul.f32 %v4172, 1.442695
        %v5161 = vpow.pop %v5160
        %v5162 = vmul.f32 %v4173, 1.442695
        %v5163 = vpow.pop %v5162
        %v5164 = vmul.f32 %v4174, 1.442695
        %v5165 = vpow.pop %v5164
        %v5166 = vmul.f32 %v4175, 1.442695
        %v5167 = vpow.pop %v5166
        %v5168 = vmul.f32 %v4176, 1.442695
        %v5169 = vpow.pop %v5168
        %v5170 = vmul.f32 %v4177, 1.442695
        %v5171 = vpow.pop %v5170
        %v5172 = vmul.f32 %v4178, 1.442695
        %v5173 = vpow.pop %v5172
        %v5174 = vmul.f32 %v4179, 1.442695
        %v5175 = vpow.pop %v5174
        %v5176 = vmul.f32 %v4180, 1.442695
        %v5177 = vpow.pop %v5176
        %v5178 = vmul.f32 %v4181, 1.442695
        %v5179 = vpow.pop %v5178
        %v5180 = vmul.f32 %v4182, 1.442695
        %v5181 = vpow.pop %v5180
        %v5182 = vmul.f32 %v4183, 1.442695
        %v5183 = vpow.pop %v5182
        %v5184 = vmul.f32 %v4184, 1.442695
        %v5185 = vpow.pop %v5184
        %v5186 = vmul.f32 %v4185, 1.442695
        %v5187 = vpow.pop %v5186
        %v5188 = vmul.f32 %v4186, 1.442695
        %v5189 = vpow.pop %v5188
        %v5190 = vmul.f32 %v4187, 1.442695
        %v5191 = vpow.pop %v5190
        %v5192 = vmul.f32 %v4188, 1.442695
        %v5193 = vpow.pop %v5192
        %v5194 = vmul.f32 %v4189, 1.442695
        %v5195 = vpow.pop %v5194
        %v5196 = vmul.f32 %v4190, 1.442695
        %v5197 = vpow.pop %v5196
        %v5198 = vmul.f32 %v4191, 1.442695
        %v5199 = vpow.pop %v5198
        %v5200 = vmul.f32 %v4192, 1.442695
        %v5201 = vpow.pop %v5200
        %v5202 = vmul.f32 %v4193, 1.442695
        %v5203 = vpow.pop %v5202
        %v5204 = vmul.f32 %v4194, 1.442695
        %v5205 = vpow.pop %v5204
        %v5206 = vmul.f32 %v4195, 1.442695
        %v5207 = vpow.pop %v5206
        %v5208 = vmul.f32 %v4196, 1.442695
        %v5209 = vpow.pop %v5208
        %v5210 = vmul.f32 %v4197, 1.442695
        %v5211 = vpow.pop %v5210
        %v5212 = vmul.f32 %v4198, 1.442695
        %v5213 = vpow.pop %v5212
        %v5214 = vmul.f32 %v4199, 1.442695
        %v5215 = vpow.pop %v5214
        %v5216 = vmul.f32 %v4200, 1.442695
        %v5217 = vpow.pop %v5216
        %v5218 = vmul.f32 %v4201, 1.442695
        %v5219 = vpow.pop %v5218
        %v5220 = vmul.f32 %v4202, 1.442695
        %v5221 = vpow.pop %v5220
        %v5222 = vmul.f32 %v4203, 1.442695
        %v5223 = vpow.pop %v5222
        %v5224 = vmul.f32 %v4204, 1.442695
        %v5225 = vpow.pop %v5224
        %v5226 = vmul.f32 %v4205, 1.442695
        %v5227 = vpow.pop %v5226
        %v5228 = vmul.f32 %v4206, 1.442695
        %v5229 = vpow.pop %v5228
        %v5230 = vmul.f32 %v4207, 1.442695
        %v5231 = vpow.pop %v5230
        %v5232 = vadd.f32 %v4209, %v4211
        %v5233 = vadd.f32 %v5232, %v4213
        %v5234 = vadd.f32 %v5233, %v4215
        %v5235 = vadd.f32 %v5234, %v4217
        %v5236 = vadd.f32 %v5235, %v4219
        %v5237 = vadd.f32 %v5236, %v4221
        %v5238 = vadd.f32 %v5237, %v4223
        %5239 = vadd.xlane.f32.xlu0 %v5238
        %v5240 = vpop.xlane.xlu0 %5239
        %v5241 = vadd.f32 %v4225, %v4227
        %v5242 = vadd.f32 %v5241, %v4229
        %v5243 = vadd.f32 %v5242, %v4231
        %v5244 = vadd.f32 %v5243, %v4233
        %v5245 = vadd.f32 %v5244, %v4235
        %v5246 = vadd.f32 %v5245, %v4237
        %v5247 = vadd.f32 %v5246, %v4239
        %5248 = vadd.xlane.f32.xlu0 %v5247
        %v5249 = vpop.xlane.xlu0 %5248
        %v5250 = vadd.f32 %v4241, %v4243
        %v5251 = vadd.f32 %v5250, %v4245
        %v5252 = vadd.f32 %v5251, %v4247
        %v5253 = vadd.f32 %v5252, %v4249
        %v5254 = vadd.f32 %v5253, %v4251
        %v5255 = vadd.f32 %v5254, %v4253
        %v5256 = vadd.f32 %v5255, %v4255
        %5257 = vadd.xlane.f32.xlu0 %v5256
        %v5258 = vpop.xlane.xlu0 %5257
        %v5259 = vadd.f32 %v4257, %v4259
        %v5260 = vadd.f32 %v5259, %v4261
        %v5261 = vadd.f32 %v5260, %v4263
        %v5262 = vadd.f32 %v5261, %v4265
        %v5263 = vadd.f32 %v5262, %v4267
        %v5264 = vadd.f32 %v5263, %v4269
        %v5265 = vadd.f32 %v5264, %v4271
        %5266 = vadd.xlane.f32.xlu0 %v5265
        %v5267 = vpop.xlane.xlu0 %5266
        %v5268 = vadd.f32 %v4273, %v4275
        %v5269 = vadd.f32 %v5268, %v4277
        %v5270 = vadd.f32 %v5269, %v4279
        %v5271 = vadd.f32 %v5270, %v4281
        %v5272 = vadd.f32 %v5271, %v4283
        %v5273 = vadd.f32 %v5272, %v4285
        %v5274 = vadd.f32 %v5273, %v4287
        %5275 = vadd.xlane.f32.xlu0 %v5274
        %v5276 = vpop.xlane.xlu0 %5275
        %v5277 = vadd.f32 %v4289, %v4291
        %v5278 = vadd.f32 %v5277, %v4293
        %v5279 = vadd.f32 %v5278, %v4295
        %v5280 = vadd.f32 %v5279, %v4297
        %v5281 = vadd.f32 %v5280, %v4299
        %v5282 = vadd.f32 %v5281, %v4301
        %v5283 = vadd.f32 %v5282, %v4303
        %5284 = vadd.xlane.f32.xlu0 %v5283
        %v5285 = vpop.xlane.xlu0 %5284
        %v5286 = vadd.f32 %v4305, %v4307
        %v5287 = vadd.f32 %v5286, %v4309
        %v5288 = vadd.f32 %v5287, %v4311
        %v5289 = vadd.f32 %v5288, %v4313
        %v5290 = vadd.f32 %v5289, %v4315
        %v5291 = vadd.f32 %v5290, %v4317
        %v5292 = vadd.f32 %v5291, %v4319
        %5293 = vadd.xlane.f32.xlu0 %v5292
        %v5294 = vpop.xlane.xlu0 %5293
        %v5295 = vadd.f32 %v4321, %v4323
        %v5296 = vadd.f32 %v5295, %v4325
        %v5297 = vadd.f32 %v5296, %v4327
        %v5298 = vadd.f32 %v5297, %v4329
        %v5299 = vadd.f32 %v5298, %v4331
        %v5300 = vadd.f32 %v5299, %v4333
        %v5301 = vadd.f32 %v5300, %v4335
        %5302 = vadd.xlane.f32.xlu0 %v5301
        %v5303 = vpop.xlane.xlu0 %5302
        %v5304 = vadd.f32 %v4337, %v4339
        %v5305 = vadd.f32 %v5304, %v4341
        %v5306 = vadd.f32 %v5305, %v4343
        %v5307 = vadd.f32 %v5306, %v4345
        %v5308 = vadd.f32 %v5307, %v4347
        %v5309 = vadd.f32 %v5308, %v4349
        %v5310 = vadd.f32 %v5309, %v4351
        %5311 = vadd.xlane.f32.xlu0 %v5310
        %v5312 = vpop.xlane.xlu0 %5311
        %v5313 = vadd.f32 %v4353, %v4355
        %v5314 = vadd.f32 %v5313, %v4357
        %v5315 = vadd.f32 %v5314, %v4359
        %v5316 = vadd.f32 %v5315, %v4361
        %v5317 = vadd.f32 %v5316, %v4363
        %v5318 = vadd.f32 %v5317, %v4365
        %v5319 = vadd.f32 %v5318, %v4367
        %5320 = vadd.xlane.f32.xlu0 %v5319
        %v5321 = vpop.xlane.xlu0 %5320
        %v5322 = vadd.f32 %v4369, %v4371
        %v5323 = vadd.f32 %v5322, %v4373
        %v5324 = vadd.f32 %v5323, %v4375
        %v5325 = vadd.f32 %v5324, %v4377
        %v5326 = vadd.f32 %v5325, %v4379
        %v5327 = vadd.f32 %v5326, %v4381
        %v5328 = vadd.f32 %v5327, %v4383
        %5329 = vadd.xlane.f32.xlu0 %v5328
        %v5330 = vpop.xlane.xlu0 %5329
        %v5331 = vadd.f32 %v4385, %v4387
        %v5332 = vadd.f32 %v5331, %v4389
        %v5333 = vadd.f32 %v5332, %v4391
        %v5334 = vadd.f32 %v5333, %v4393
        %v5335 = vadd.f32 %v5334, %v4395
        %v5336 = vadd.f32 %v5335, %v4397
        %v5337 = vadd.f32 %v5336, %v4399
        %5338 = vadd.xlane.f32.xlu0 %v5337
        %v5339 = vpop.xlane.xlu0 %5338
        %v5340 = vadd.f32 %v4401, %v4403
        %v5341 = vadd.f32 %v5340, %v4405
        %v5342 = vadd.f32 %v5341, %v4407
        %v5343 = vadd.f32 %v5342, %v4409
        %v5344 = vadd.f32 %v5343, %v4411
        %v5345 = vadd.f32 %v5344, %v4413
        %v5346 = vadd.f32 %v5345, %v4415
        %5347 = vadd.xlane.f32.xlu0 %v5346
        %v5348 = vpop.xlane.xlu0 %5347
        %v5349 = vadd.f32 %v4417, %v4419
        %v5350 = vadd.f32 %v5349, %v4421
        %v5351 = vadd.f32 %v5350, %v4423
        %v5352 = vadd.f32 %v5351, %v4425
        %v5353 = vadd.f32 %v5352, %v4427
        %v5354 = vadd.f32 %v5353, %v4429
        %v5355 = vadd.f32 %v5354, %v4431
        %5356 = vadd.xlane.f32.xlu0 %v5355
        %v5357 = vpop.xlane.xlu0 %5356
        %v5358 = vadd.f32 %v4433, %v4435
        %v5359 = vadd.f32 %v5358, %v4437
        %v5360 = vadd.f32 %v5359, %v4439
        %v5361 = vadd.f32 %v5360, %v4441
        %v5362 = vadd.f32 %v5361, %v4443
        %v5363 = vadd.f32 %v5362, %v4445
        %v5364 = vadd.f32 %v5363, %v4447
        %5365 = vadd.xlane.f32.xlu0 %v5364
        %v5366 = vpop.xlane.xlu0 %5365
        %v5367 = vadd.f32 %v4449, %v4451
        %v5368 = vadd.f32 %v5367, %v4453
        %v5369 = vadd.f32 %v5368, %v4455
        %v5370 = vadd.f32 %v5369, %v4457
        %v5371 = vadd.f32 %v5370, %v4459
        %v5372 = vadd.f32 %v5371, %v4461
        %v5373 = vadd.f32 %v5372, %v4463
        %5374 = vadd.xlane.f32.xlu0 %v5373
        %v5375 = vpop.xlane.xlu0 %5374
        %v5376 = vadd.f32 %v4465, %v4467
        %v5377 = vadd.f32 %v5376, %v4469
        %v5378 = vadd.f32 %v5377, %v4471
        %v5379 = vadd.f32 %v5378, %v4473
        %v5380 = vadd.f32 %v5379, %v4475
        %v5381 = vadd.f32 %v5380, %v4477
        %v5382 = vadd.f32 %v5381, %v4479
        %5383 = vadd.xlane.f32.xlu0 %v5382
        %v5384 = vpop.xlane.xlu0 %5383
        %v5385 = vadd.f32 %v4481, %v4483
        %v5386 = vadd.f32 %v5385, %v4485
        %v5387 = vadd.f32 %v5386, %v4487
        %v5388 = vadd.f32 %v5387, %v4489
        %v5389 = vadd.f32 %v5388, %v4491
        %v5390 = vadd.f32 %v5389, %v4493
        %v5391 = vadd.f32 %v5390, %v4495
        %5392 = vadd.xlane.f32.xlu0 %v5391
        %v5393 = vpop.xlane.xlu0 %5392
        %v5394 = vadd.f32 %v4497, %v4499
        %v5395 = vadd.f32 %v5394, %v4501
        %v5396 = vadd.f32 %v5395, %v4503
        %v5397 = vadd.f32 %v5396, %v4505
        %v5398 = vadd.f32 %v5397, %v4507
        %v5399 = vadd.f32 %v5398, %v4509
        %v5400 = vadd.f32 %v5399, %v4511
        %5401 = vadd.xlane.f32.xlu0 %v5400
        %v5402 = vpop.xlane.xlu0 %5401
        %v5403 = vadd.f32 %v4513, %v4515
        %v5404 = vadd.f32 %v5403, %v4517
        %v5405 = vadd.f32 %v5404, %v4519
        %v5406 = vadd.f32 %v5405, %v4521
        %v5407 = vadd.f32 %v5406, %v4523
        %v5408 = vadd.f32 %v5407, %v4525
        %v5409 = vadd.f32 %v5408, %v4527
        %5410 = vadd.xlane.f32.xlu0 %v5409
        %v5411 = vpop.xlane.xlu0 %5410
        %v5412 = vadd.f32 %v4529, %v4531
        %v5413 = vadd.f32 %v5412, %v4533
        %v5414 = vadd.f32 %v5413, %v4535
        %v5415 = vadd.f32 %v5414, %v4537
        %v5416 = vadd.f32 %v5415, %v4539
        %v5417 = vadd.f32 %v5416, %v4541
        %v5418 = vadd.f32 %v5417, %v4543
        %5419 = vadd.xlane.f32.xlu0 %v5418
        %v5420 = vpop.xlane.xlu0 %5419
        %v5421 = vadd.f32 %v4545, %v4547
        %v5422 = vadd.f32 %v5421, %v4549
        %v5423 = vadd.f32 %v5422, %v4551
        %v5424 = vadd.f32 %v5423, %v4553
        %v5425 = vadd.f32 %v5424, %v4555
        %v5426 = vadd.f32 %v5425, %v4557
        %v5427 = vadd.f32 %v5426, %v4559
        %5428 = vadd.xlane.f32.xlu0 %v5427
        %v5429 = vpop.xlane.xlu0 %5428
        %v5430 = vadd.f32 %v4561, %v4563
        %v5431 = vadd.f32 %v5430, %v4565
        %v5432 = vadd.f32 %v5431, %v4567
        %v5433 = vadd.f32 %v5432, %v4569
        %v5434 = vadd.f32 %v5433, %v4571
        %v5435 = vadd.f32 %v5434, %v4573
        %v5436 = vadd.f32 %v5435, %v4575
        %5437 = vadd.xlane.f32.xlu0 %v5436
        %v5438 = vpop.xlane.xlu0 %5437
        %v5439 = vadd.f32 %v4577, %v4579
        %v5440 = vadd.f32 %v5439, %v4581
        %v5441 = vadd.f32 %v5440, %v4583
        %v5442 = vadd.f32 %v5441, %v4585
        %v5443 = vadd.f32 %v5442, %v4587
        %v5444 = vadd.f32 %v5443, %v4589
        %v5445 = vadd.f32 %v5444, %v4591
        %5446 = vadd.xlane.f32.xlu0 %v5445
        %v5447 = vpop.xlane.xlu0 %5446
        %v5448 = vadd.f32 %v4593, %v4595
        %v5449 = vadd.f32 %v5448, %v4597
        %v5450 = vadd.f32 %v5449, %v4599
        %v5451 = vadd.f32 %v5450, %v4601
        %v5452 = vadd.f32 %v5451, %v4603
        %v5453 = vadd.f32 %v5452, %v4605
        %v5454 = vadd.f32 %v5453, %v4607
        %5455 = vadd.xlane.f32.xlu0 %v5454
        %v5456 = vpop.xlane.xlu0 %5455
        %v5457 = vadd.f32 %v4609, %v4611
        %v5458 = vadd.f32 %v5457, %v4613
        %v5459 = vadd.f32 %v5458, %v4615
        %v5460 = vadd.f32 %v5459, %v4617
        %v5461 = vadd.f32 %v5460, %v4619
        %v5462 = vadd.f32 %v5461, %v4621
        %v5463 = vadd.f32 %v5462, %v4623
        %5464 = vadd.xlane.f32.xlu0 %v5463
        %v5465 = vpop.xlane.xlu0 %5464
        %v5466 = vadd.f32 %v4625, %v4627
        %v5467 = vadd.f32 %v5466, %v4629
        %v5468 = vadd.f32 %v5467, %v4631
        %v5469 = vadd.f32 %v5468, %v4633
        %v5470 = vadd.f32 %v5469, %v4635
        %v5471 = vadd.f32 %v5470, %v4637
        %v5472 = vadd.f32 %v5471, %v4639
        %5473 = vadd.xlane.f32.xlu0 %v5472
        %v5474 = vpop.xlane.xlu0 %5473
        %v5475 = vadd.f32 %v4641, %v4643
        %v5476 = vadd.f32 %v5475, %v4645
        %v5477 = vadd.f32 %v5476, %v4647
        %v5478 = vadd.f32 %v5477, %v4649
        %v5479 = vadd.f32 %v5478, %v4651
        %v5480 = vadd.f32 %v5479, %v4653
        %v5481 = vadd.f32 %v5480, %v4655
        %5482 = vadd.xlane.f32.xlu0 %v5481
        %v5483 = vpop.xlane.xlu0 %5482
        %v5484 = vadd.f32 %v4657, %v4659
        %v5485 = vadd.f32 %v5484, %v4661
        %v5486 = vadd.f32 %v5485, %v4663
        %v5487 = vadd.f32 %v5486, %v4665
        %v5488 = vadd.f32 %v5487, %v4667
        %v5489 = vadd.f32 %v5488, %v4669
        %v5490 = vadd.f32 %v5489, %v4671
        %5491 = vadd.xlane.f32.xlu0 %v5490
        %v5492 = vpop.xlane.xlu0 %5491
        %v5493 = vadd.f32 %v4673, %v4675
        %v5494 = vadd.f32 %v5493, %v4677
        %v5495 = vadd.f32 %v5494, %v4679
        %v5496 = vadd.f32 %v5495, %v4681
        %v5497 = vadd.f32 %v5496, %v4683
        %v5498 = vadd.f32 %v5497, %v4685
        %v5499 = vadd.f32 %v5498, %v4687
        %5500 = vadd.xlane.f32.xlu0 %v5499
        %v5501 = vpop.xlane.xlu0 %5500
        %v5502 = vadd.f32 %v4689, %v4691
        %v5503 = vadd.f32 %v5502, %v4693
        %v5504 = vadd.f32 %v5503, %v4695
        %v5505 = vadd.f32 %v5504, %v4697
        %v5506 = vadd.f32 %v5505, %v4699
        %v5507 = vadd.f32 %v5506, %v4701
        %v5508 = vadd.f32 %v5507, %v4703
        %5509 = vadd.xlane.f32.xlu0 %v5508
        %v5510 = vpop.xlane.xlu0 %5509
        %v5511 = vadd.f32 %v4705, %v4707
        %v5512 = vadd.f32 %v5511, %v4709
        %v5513 = vadd.f32 %v5512, %v4711
        %v5514 = vadd.f32 %v5513, %v4713
        %v5515 = vadd.f32 %v5514, %v4715
        %v5516 = vadd.f32 %v5515, %v4717
        %v5517 = vadd.f32 %v5516, %v4719
        %5518 = vadd.xlane.f32.xlu0 %v5517
        %v5519 = vpop.xlane.xlu0 %5518
        %v5520 = vadd.f32 %v4721, %v4723
        %v5521 = vadd.f32 %v5520, %v4725
        %v5522 = vadd.f32 %v5521, %v4727
        %v5523 = vadd.f32 %v5522, %v4729
        %v5524 = vadd.f32 %v5523, %v4731
        %v5525 = vadd.f32 %v5524, %v4733
        %v5526 = vadd.f32 %v5525, %v4735
        %5527 = vadd.xlane.f32.xlu0 %v5526
        %v5528 = vpop.xlane.xlu0 %5527
        %v5529 = vadd.f32 %v4737, %v4739
        %v5530 = vadd.f32 %v5529, %v4741
        %v5531 = vadd.f32 %v5530, %v4743
        %v5532 = vadd.f32 %v5531, %v4745
        %v5533 = vadd.f32 %v5532, %v4747
        %v5534 = vadd.f32 %v5533, %v4749
        %v5535 = vadd.f32 %v5534, %v4751
        %5536 = vadd.xlane.f32.xlu0 %v5535
        %v5537 = vpop.xlane.xlu0 %5536
        %v5538 = vadd.f32 %v4753, %v4755
        %v5539 = vadd.f32 %v5538, %v4757
        %v5540 = vadd.f32 %v5539, %v4759
        %v5541 = vadd.f32 %v5540, %v4761
        %v5542 = vadd.f32 %v5541, %v4763
        %v5543 = vadd.f32 %v5542, %v4765
        %v5544 = vadd.f32 %v5543, %v4767
        %5545 = vadd.xlane.f32.xlu0 %v5544
        %v5546 = vpop.xlane.xlu0 %5545
        %v5547 = vadd.f32 %v4769, %v4771
        %v5548 = vadd.f32 %v5547, %v4773
        %v5549 = vadd.f32 %v5548, %v4775
        %v5550 = vadd.f32 %v5549, %v4777
        %v5551 = vadd.f32 %v5550, %v4779
        %v5552 = vadd.f32 %v5551, %v4781
        %v5553 = vadd.f32 %v5552, %v4783
        %5554 = vadd.xlane.f32.xlu0 %v5553
        %v5555 = vpop.xlane.xlu0 %5554
        %v5556 = vadd.f32 %v4785, %v4787
        %v5557 = vadd.f32 %v5556, %v4789
        %v5558 = vadd.f32 %v5557, %v4791
        %v5559 = vadd.f32 %v5558, %v4793
        %v5560 = vadd.f32 %v5559, %v4795
        %v5561 = vadd.f32 %v5560, %v4797
        %v5562 = vadd.f32 %v5561, %v4799
        %5563 = vadd.xlane.f32.xlu0 %v5562
        %v5564 = vpop.xlane.xlu0 %5563
        %v5565 = vadd.f32 %v4801, %v4803
        %v5566 = vadd.f32 %v5565, %v4805
        %v5567 = vadd.f32 %v5566, %v4807
        %v5568 = vadd.f32 %v5567, %v4809
        %v5569 = vadd.f32 %v5568, %v4811
        %v5570 = vadd.f32 %v5569, %v4813
        %v5571 = vadd.f32 %v5570, %v4815
        %5572 = vadd.xlane.f32.xlu0 %v5571
        %v5573 = vpop.xlane.xlu0 %5572
        %v5574 = vadd.f32 %v4817, %v4819
        %v5575 = vadd.f32 %v5574, %v4821
        %v5576 = vadd.f32 %v5575, %v4823
        %v5577 = vadd.f32 %v5576, %v4825
        %v5578 = vadd.f32 %v5577, %v4827
        %v5579 = vadd.f32 %v5578, %v4829
        %v5580 = vadd.f32 %v5579, %v4831
        %5581 = vadd.xlane.f32.xlu0 %v5580
        %v5582 = vpop.xlane.xlu0 %5581
        %v5583 = vadd.f32 %v4833, %v4835
        %v5584 = vadd.f32 %v5583, %v4837
        %v5585 = vadd.f32 %v5584, %v4839
        %v5586 = vadd.f32 %v5585, %v4841
        %v5587 = vadd.f32 %v5586, %v4843
        %v5588 = vadd.f32 %v5587, %v4845
        %v5589 = vadd.f32 %v5588, %v4847
        %5590 = vadd.xlane.f32.xlu0 %v5589
        %v5591 = vpop.xlane.xlu0 %5590
        %v5592 = vadd.f32 %v4849, %v4851
        %v5593 = vadd.f32 %v5592, %v4853
        %v5594 = vadd.f32 %v5593, %v4855
        %v5595 = vadd.f32 %v5594, %v4857
        %v5596 = vadd.f32 %v5595, %v4859
        %v5597 = vadd.f32 %v5596, %v4861
        %v5598 = vadd.f32 %v5597, %v4863
        %5599 = vadd.xlane.f32.xlu0 %v5598
        %v5600 = vpop.xlane.xlu0 %5599
        %v5601 = vadd.f32 %v4865, %v4867
        %v5602 = vadd.f32 %v5601, %v4869
        %v5603 = vadd.f32 %v5602, %v4871
        %v5604 = vadd.f32 %v5603, %v4873
        %v5605 = vadd.f32 %v5604, %v4875
        %v5606 = vadd.f32 %v5605, %v4877
        %v5607 = vadd.f32 %v5606, %v4879
        %5608 = vadd.xlane.f32.xlu0 %v5607
        %v5609 = vpop.xlane.xlu0 %5608
        %v5610 = vadd.f32 %v4881, %v4883
        %v5611 = vadd.f32 %v5610, %v4885
        %v5612 = vadd.f32 %v5611, %v4887
        %v5613 = vadd.f32 %v5612, %v4889
        %v5614 = vadd.f32 %v5613, %v4891
        %v5615 = vadd.f32 %v5614, %v4893
        %v5616 = vadd.f32 %v5615, %v4895
        %5617 = vadd.xlane.f32.xlu0 %v5616
        %v5618 = vpop.xlane.xlu0 %5617
        %v5619 = vadd.f32 %v4897, %v4899
        %v5620 = vadd.f32 %v5619, %v4901
        %v5621 = vadd.f32 %v5620, %v4903
        %v5622 = vadd.f32 %v5621, %v4905
        %v5623 = vadd.f32 %v5622, %v4907
        %v5624 = vadd.f32 %v5623, %v4909
        %v5625 = vadd.f32 %v5624, %v4911
        %5626 = vadd.xlane.f32.xlu0 %v5625
        %v5627 = vpop.xlane.xlu0 %5626
        %v5628 = vadd.f32 %v4913, %v4915
        %v5629 = vadd.f32 %v5628, %v4917
        %v5630 = vadd.f32 %v5629, %v4919
        %v5631 = vadd.f32 %v5630, %v4921
        %v5632 = vadd.f32 %v5631, %v4923
        %v5633 = vadd.f32 %v5632, %v4925
        %v5634 = vadd.f32 %v5633, %v4927
        %5635 = vadd.xlane.f32.xlu0 %v5634
        %v5636 = vpop.xlane.xlu0 %5635
        %v5637 = vadd.f32 %v4929, %v4931
        %v5638 = vadd.f32 %v5637, %v4933
        %v5639 = vadd.f32 %v5638, %v4935
        %v5640 = vadd.f32 %v5639, %v4937
        %v5641 = vadd.f32 %v5640, %v4939
        %v5642 = vadd.f32 %v5641, %v4941
        %v5643 = vadd.f32 %v5642, %v4943
        %5644 = vadd.xlane.f32.xlu0 %v5643
        %v5645 = vpop.xlane.xlu0 %5644
        %v5646 = vadd.f32 %v4945, %v4947
        %v5647 = vadd.f32 %v5646, %v4949
        %v5648 = vadd.f32 %v5647, %v4951
        %v5649 = vadd.f32 %v5648, %v4953
        %v5650 = vadd.f32 %v5649, %v4955
        %v5651 = vadd.f32 %v5650, %v4957
        %v5652 = vadd.f32 %v5651, %v4959
        %5653 = vadd.xlane.f32.xlu0 %v5652
        %v5654 = vpop.xlane.xlu0 %5653
        %v5655 = vadd.f32 %v4961, %v4963
        %v5656 = vadd.f32 %v5655, %v4965
        %v5657 = vadd.f32 %v5656, %v4967
        %v5658 = vadd.f32 %v5657, %v4969
        %v5659 = vadd.f32 %v5658, %v4971
        %v5660 = vadd.f32 %v5659, %v4973
        %v5661 = vadd.f32 %v5660, %v4975
        %5662 = vadd.xlane.f32.xlu0 %v5661
        %v5663 = vpop.xlane.xlu0 %5662
        %v5664 = vadd.f32 %v4977, %v4979
        %v5665 = vadd.f32 %v5664, %v4981
        %v5666 = vadd.f32 %v5665, %v4983
        %v5667 = vadd.f32 %v5666, %v4985
        %v5668 = vadd.f32 %v5667, %v4987
        %v5669 = vadd.f32 %v5668, %v4989
        %v5670 = vadd.f32 %v5669, %v4991
        %5671 = vadd.xlane.f32.xlu0 %v5670
        %v5672 = vpop.xlane.xlu0 %5671
        %v5673 = vadd.f32 %v4993, %v4995
        %v5674 = vadd.f32 %v5673, %v4997
        %v5675 = vadd.f32 %v5674, %v4999
        %v5676 = vadd.f32 %v5675, %v5001
        %v5677 = vadd.f32 %v5676, %v5003
        %v5678 = vadd.f32 %v5677, %v5005
        %v5679 = vadd.f32 %v5678, %v5007
        %5680 = vadd.xlane.f32.xlu0 %v5679
        %v5681 = vpop.xlane.xlu0 %5680
        %v5682 = vadd.f32 %v5009, %v5011
        %v5683 = vadd.f32 %v5682, %v5013
        %v5684 = vadd.f32 %v5683, %v5015
        %v5685 = vadd.f32 %v5684, %v5017
        %v5686 = vadd.f32 %v5685, %v5019
        %v5687 = vadd.f32 %v5686, %v5021
        %v5688 = vadd.f32 %v5687, %v5023
        %5689 = vadd.xlane.f32.xlu0 %v5688
        %v5690 = vpop.xlane.xlu0 %5689
        %v5691 = vadd.f32 %v5025, %v5027
        %v5692 = vadd.f32 %v5691, %v5029
        %v5693 = vadd.f32 %v5692, %v5031
        %v5694 = vadd.f32 %v5693, %v5033
        %v5695 = vadd.f32 %v5694, %v5035
        %v5696 = vadd.f32 %v5695, %v5037
        %v5697 = vadd.f32 %v5696, %v5039
        %5698 = vadd.xlane.f32.xlu0 %v5697
        %v5699 = vpop.xlane.xlu0 %5698
        %v5700 = vadd.f32 %v5041, %v5043
        %v5701 = vadd.f32 %v5700, %v5045
        %v5702 = vadd.f32 %v5701, %v5047
        %v5703 = vadd.f32 %v5702, %v5049
        %v5704 = vadd.f32 %v5703, %v5051
        %v5705 = vadd.f32 %v5704, %v5053
        %v5706 = vadd.f32 %v5705, %v5055
        %5707 = vadd.xlane.f32.xlu0 %v5706
        %v5708 = vpop.xlane.xlu0 %5707
        %v5709 = vadd.f32 %v5057, %v5059
        %v5710 = vadd.f32 %v5709, %v5061
        %v5711 = vadd.f32 %v5710, %v5063
        %v5712 = vadd.f32 %v5711, %v5065
        %v5713 = vadd.f32 %v5712, %v5067
        %v5714 = vadd.f32 %v5713, %v5069
        %v5715 = vadd.f32 %v5714, %v5071
        %5716 = vadd.xlane.f32.xlu0 %v5715
        %v5717 = vpop.xlane.xlu0 %5716
        %v5718 = vadd.f32 %v5073, %v5075
        %v5719 = vadd.f32 %v5718, %v5077
        %v5720 = vadd.f32 %v5719, %v5079
        %v5721 = vadd.f32 %v5720, %v5081
        %v5722 = vadd.f32 %v5721, %v5083
        %v5723 = vadd.f32 %v5722, %v5085
        %v5724 = vadd.f32 %v5723, %v5087
        %5725 = vadd.xlane.f32.xlu0 %v5724
        %v5726 = vpop.xlane.xlu0 %5725
        %v5727 = vadd.f32 %v5089, %v5091
        %v5728 = vadd.f32 %v5727, %v5093
        %v5729 = vadd.f32 %v5728, %v5095
        %v5730 = vadd.f32 %v5729, %v5097
        %v5731 = vadd.f32 %v5730, %v5099
        %v5732 = vadd.f32 %v5731, %v5101
        %v5733 = vadd.f32 %v5732, %v5103
        %5734 = vadd.xlane.f32.xlu0 %v5733
        %v5735 = vpop.xlane.xlu0 %5734
        %v5736 = vadd.f32 %v5105, %v5107
        %v5737 = vadd.f32 %v5736, %v5109
        %v5738 = vadd.f32 %v5737, %v5111
        %v5739 = vadd.f32 %v5738, %v5113
        %v5740 = vadd.f32 %v5739, %v5115
        %v5741 = vadd.f32 %v5740, %v5117
        %v5742 = vadd.f32 %v5741, %v5119
        %5743 = vadd.xlane.f32.xlu0 %v5742
        %v5744 = vpop.xlane.xlu0 %5743
        %v5745 = vadd.f32 %v5121, %v5123
        %v5746 = vadd.f32 %v5745, %v5125
        %v5747 = vadd.f32 %v5746, %v5127
        %v5748 = vadd.f32 %v5747, %v5129
        %v5749 = vadd.f32 %v5748, %v5131
        %v5750 = vadd.f32 %v5749, %v5133
        %v5751 = vadd.f32 %v5750, %v5135
        %5752 = vadd.xlane.f32.xlu0 %v5751
        %v5753 = vpop.xlane.xlu0 %5752
        %v5754 = vadd.f32 %v5137, %v5139
        %v5755 = vadd.f32 %v5754, %v5141
        %v5756 = vadd.f32 %v5755, %v5143
        %v5757 = vadd.f32 %v5756, %v5145
        %v5758 = vadd.f32 %v5757, %v5147
        %v5759 = vadd.f32 %v5758, %v5149
        %v5760 = vadd.f32 %v5759, %v5151
        %5761 = vadd.xlane.f32.xlu0 %v5760
        %v5762 = vpop.xlane.xlu0 %5761
        %v5763 = vadd.f32 %v5153, %v5155
        %v5764 = vadd.f32 %v5763, %v5157
        %v5765 = vadd.f32 %v5764, %v5159
        %v5766 = vadd.f32 %v5765, %v5161
        %v5767 = vadd.f32 %v5766, %v5163
        %v5768 = vadd.f32 %v5767, %v5165
        %v5769 = vadd.f32 %v5768, %v5167
        %5770 = vadd.xlane.f32.xlu0 %v5769
        %v5771 = vpop.xlane.xlu0 %5770
        %v5772 = vadd.f32 %v5169, %v5171
        %v5773 = vadd.f32 %v5772, %v5173
        %v5774 = vadd.f32 %v5773, %v5175
        %v5775 = vadd.f32 %v5774, %v5177
        %v5776 = vadd.f32 %v5775, %v5179
        %v5777 = vadd.f32 %v5776, %v5181
        %v5778 = vadd.f32 %v5777, %v5183
        %5779 = vadd.xlane.f32.xlu0 %v5778
        %v5780 = vpop.xlane.xlu0 %5779
        %v5781 = vadd.f32 %v5185, %v5187
        %v5782 = vadd.f32 %v5781, %v5189
        %v5783 = vadd.f32 %v5782, %v5191
        %v5784 = vadd.f32 %v5783, %v5193
        %v5785 = vadd.f32 %v5784, %v5195
        %v5786 = vadd.f32 %v5785, %v5197
        %v5787 = vadd.f32 %v5786, %v5199
        %5788 = vadd.xlane.f32.xlu0 %v5787
        %v5789 = vpop.xlane.xlu0 %5788
        %v5790 = vadd.f32 %v5201, %v5203
        %v5791 = vadd.f32 %v5790, %v5205
        %v5792 = vadd.f32 %v5791, %v5207
        %v5793 = vadd.f32 %v5792, %v5209
        %v5794 = vadd.f32 %v5793, %v5211
        %v5795 = vadd.f32 %v5794, %v5213
        %v5796 = vadd.f32 %v5795, %v5215
        %5797 = vadd.xlane.f32.xlu0 %v5796
        %v5798 = vpop.xlane.xlu0 %5797
        %v5799 = vadd.f32 %v5217, %v5219
        %v5800 = vadd.f32 %v5799, %v5221
        %v5801 = vadd.f32 %v5800, %v5223
        %v5802 = vadd.f32 %v5801, %v5225
        %v5803 = vadd.f32 %v5802, %v5227
        %v5804 = vadd.f32 %v5803, %v5229
        %v5805 = vadd.f32 %v5804, %v5231
        %5806 = vadd.xlane.f32.xlu0 %v5805
        %v5807 = vpop.xlane.xlu0 %5806
        %v5808 = vrcp.pop %v5240
        %v5809 = vrcp.pop %v5249
        %v5810 = vrcp.pop %v5258
        %v5811 = vrcp.pop %v5267
        %v5812 = vrcp.pop %v5276
        %v5813 = vrcp.pop %v5285
        %v5814 = vrcp.pop %v5294
        %v5815 = vrcp.pop %v5303
        %v5816 = vrcp.pop %v5312
        %v5817 = vrcp.pop %v5321
        %v5818 = vrcp.pop %v5330
        %v5819 = vrcp.pop %v5339
        %v5820 = vrcp.pop %v5348
        %v5821 = vrcp.pop %v5357
        %v5822 = vrcp.pop %v5366
        %v5823 = vrcp.pop %v5375
        %v5824 = vrcp.pop %v5384
        %v5825 = vrcp.pop %v5393
        %v5826 = vrcp.pop %v5402
        %v5827 = vrcp.pop %v5411
        %v5828 = vrcp.pop %v5420
        %v5829 = vrcp.pop %v5429
        %v5830 = vrcp.pop %v5438
        %v5831 = vrcp.pop %v5447
        %v5832 = vrcp.pop %v5456
        %v5833 = vrcp.pop %v5465
        %v5834 = vrcp.pop %v5474
        %v5835 = vrcp.pop %v5483
        %v5836 = vrcp.pop %v5492
        %v5837 = vrcp.pop %v5501
        %v5838 = vrcp.pop %v5510
        %v5839 = vrcp.pop %v5519
        %v5840 = vrcp.pop %v5528
        %v5841 = vrcp.pop %v5537
        %v5842 = vrcp.pop %v5546
        %v5843 = vrcp.pop %v5555
        %v5844 = vrcp.pop %v5564
        %v5845 = vrcp.pop %v5573
        %v5846 = vrcp.pop %v5582
        %v5847 = vrcp.pop %v5591
        %v5848 = vrcp.pop %v5600
        %v5849 = vrcp.pop %v5609
        %v5850 = vrcp.pop %v5618
        %v5851 = vrcp.pop %v5627
        %v5852 = vrcp.pop %v5636
        %v5853 = vrcp.pop %v5645
        %v5854 = vrcp.pop %v5654
        %v5855 = vrcp.pop %v5663
        %v5856 = vrcp.pop %v5672
        %v5857 = vrcp.pop %v5681
        %v5858 = vrcp.pop %v5690
        %v5859 = vrcp.pop %v5699
        %v5860 = vrcp.pop %v5708
        %v5861 = vrcp.pop %v5717
        %v5862 = vrcp.pop %v5726
        %v5863 = vrcp.pop %v5735
        %v5864 = vrcp.pop %v5744
        %v5865 = vrcp.pop %v5753
        %v5866 = vrcp.pop %v5762
        %v5867 = vrcp.pop %v5771
        %v5868 = vrcp.pop %v5780
        %v5869 = vrcp.pop %v5789
        %v5870 = vrcp.pop %v5798
        %v5871 = vrcp.pop %v5807
        %v5872 = vmul.f32 %v4209, %v5808
        %v5873 = vmul.f32 %v4211, %v5808
        %v5874 = vmul.f32 %v4213, %v5808
        %v5875 = vmul.f32 %v4215, %v5808
        %v5876 = vmul.f32 %v4217, %v5808
        %v5877 = vmul.f32 %v4219, %v5808
        %v5878 = vmul.f32 %v4221, %v5808
        %v5879 = vmul.f32 %v4223, %v5808
        %v5880 = vmul.f32 %v4225, %v5809
        %v5881 = vmul.f32 %v4227, %v5809
        %v5882 = vmul.f32 %v4229, %v5809
        %v5883 = vmul.f32 %v4231, %v5809
        %v5884 = vmul.f32 %v4233, %v5809
        %v5885 = vmul.f32 %v4235, %v5809
        %v5886 = vmul.f32 %v4237, %v5809
        %v5887 = vmul.f32 %v4239, %v5809
        %v5888 = vmul.f32 %v4241, %v5810
        %v5889 = vmul.f32 %v4243, %v5810
        %v5890 = vmul.f32 %v4245, %v5810
        %v5891 = vmul.f32 %v4247, %v5810
        %v5892 = vmul.f32 %v4249, %v5810
        %v5893 = vmul.f32 %v4251, %v5810
        %v5894 = vmul.f32 %v4253, %v5810
        %v5895 = vmul.f32 %v4255, %v5810
        %v5896 = vmul.f32 %v4257, %v5811
        %v5897 = vmul.f32 %v4259, %v5811
        %v5898 = vmul.f32 %v4261, %v5811
        %v5899 = vmul.f32 %v4263, %v5811
        %v5900 = vmul.f32 %v4265, %v5811
        %v5901 = vmul.f32 %v4267, %v5811
        %v5902 = vmul.f32 %v4269, %v5811
        %v5903 = vmul.f32 %v4271, %v5811
        %v5904 = vmul.f32 %v4273, %v5812
        %v5905 = vmul.f32 %v4275, %v5812
        %v5906 = vmul.f32 %v4277, %v5812
        %v5907 = vmul.f32 %v4279, %v5812
        %v5908 = vmul.f32 %v4281, %v5812
        %v5909 = vmul.f32 %v4283, %v5812
        %v5910 = vmul.f32 %v4285, %v5812
        %v5911 = vmul.f32 %v4287, %v5812
        %v5912 = vmul.f32 %v4289, %v5813
        %v5913 = vmul.f32 %v4291, %v5813
        %v5914 = vmul.f32 %v4293, %v5813
        %v5915 = vmul.f32 %v4295, %v5813
        %v5916 = vmul.f32 %v4297, %v5813
        %v5917 = vmul.f32 %v4299, %v5813
        %v5918 = vmul.f32 %v4301, %v5813
        %v5919 = vmul.f32 %v4303, %v5813
        %v5920 = vmul.f32 %v4305, %v5814
        %v5921 = vmul.f32 %v4307, %v5814
        %v5922 = vmul.f32 %v4309, %v5814
        %v5923 = vmul.f32 %v4311, %v5814
        %v5924 = vmul.f32 %v4313, %v5814
        %v5925 = vmul.f32 %v4315, %v5814
        %v5926 = vmul.f32 %v4317, %v5814
        %v5927 = vmul.f32 %v4319, %v5814
        %v5928 = vmul.f32 %v4321, %v5815
        %v5929 = vmul.f32 %v4323, %v5815
        %v5930 = vmul.f32 %v4325, %v5815
        %v5931 = vmul.f32 %v4327, %v5815
        %v5932 = vmul.f32 %v4329, %v5815
        %v5933 = vmul.f32 %v4331, %v5815
        %v5934 = vmul.f32 %v4333, %v5815
        %v5935 = vmul.f32 %v4335, %v5815
        %v5936 = vmul.f32 %v4337, %v5816
        %v5937 = vmul.f32 %v4339, %v5816
        %v5938 = vmul.f32 %v4341, %v5816
        %v5939 = vmul.f32 %v4343, %v5816
        %v5940 = vmul.f32 %v4345, %v5816
        %v5941 = vmul.f32 %v4347, %v5816
        %v5942 = vmul.f32 %v4349, %v5816
        %v5943 = vmul.f32 %v4351, %v5816
        %v5944 = vmul.f32 %v4353, %v5817
        %v5945 = vmul.f32 %v4355, %v5817
        %v5946 = vmul.f32 %v4357, %v5817
        %v5947 = vmul.f32 %v4359, %v5817
        %v5948 = vmul.f32 %v4361, %v5817
        %v5949 = vmul.f32 %v4363, %v5817
        %v5950 = vmul.f32 %v4365, %v5817
        %v5951 = vmul.f32 %v4367, %v5817
        %v5952 = vmul.f32 %v4369, %v5818
        %v5953 = vmul.f32 %v4371, %v5818
        %v5954 = vmul.f32 %v4373, %v5818
        %v5955 = vmul.f32 %v4375, %v5818
        %v5956 = vmul.f32 %v4377, %v5818
        %v5957 = vmul.f32 %v4379, %v5818
        %v5958 = vmul.f32 %v4381, %v5818
        %v5959 = vmul.f32 %v4383, %v5818
        %v5960 = vmul.f32 %v4385, %v5819
        %v5961 = vmul.f32 %v4387, %v5819
        %v5962 = vmul.f32 %v4389, %v5819
        %v5963 = vmul.f32 %v4391, %v5819
        %v5964 = vmul.f32 %v4393, %v5819
        %v5965 = vmul.f32 %v4395, %v5819
        %v5966 = vmul.f32 %v4397, %v5819
        %v5967 = vmul.f32 %v4399, %v5819
        %v5968 = vmul.f32 %v4401, %v5820
        %v5969 = vmul.f32 %v4403, %v5820
        %v5970 = vmul.f32 %v4405, %v5820
        %v5971 = vmul.f32 %v4407, %v5820
        %v5972 = vmul.f32 %v4409, %v5820
        %v5973 = vmul.f32 %v4411, %v5820
        %v5974 = vmul.f32 %v4413, %v5820
        %v5975 = vmul.f32 %v4415, %v5820
        %v5976 = vmul.f32 %v4417, %v5821
        %v5977 = vmul.f32 %v4419, %v5821
        %v5978 = vmul.f32 %v4421, %v5821
        %v5979 = vmul.f32 %v4423, %v5821
        %v5980 = vmul.f32 %v4425, %v5821
        %v5981 = vmul.f32 %v4427, %v5821
        %v5982 = vmul.f32 %v4429, %v5821
        %v5983 = vmul.f32 %v4431, %v5821
        %v5984 = vmul.f32 %v4433, %v5822
        %v5985 = vmul.f32 %v4435, %v5822
        %v5986 = vmul.f32 %v4437, %v5822
        %v5987 = vmul.f32 %v4439, %v5822
        %v5988 = vmul.f32 %v4441, %v5822
        %v5989 = vmul.f32 %v4443, %v5822
        %v5990 = vmul.f32 %v4445, %v5822
        %v5991 = vmul.f32 %v4447, %v5822
        %v5992 = vmul.f32 %v4449, %v5823
        %v5993 = vmul.f32 %v4451, %v5823
        %v5994 = vmul.f32 %v4453, %v5823
        %v5995 = vmul.f32 %v4455, %v5823
        %v5996 = vmul.f32 %v4457, %v5823
        %v5997 = vmul.f32 %v4459, %v5823
        %v5998 = vmul.f32 %v4461, %v5823
        %v5999 = vmul.f32 %v4463, %v5823
        %v6000 = vmul.f32 %v4465, %v5824
        %v6001 = vmul.f32 %v4467, %v5824
        %v6002 = vmul.f32 %v4469, %v5824
        %v6003 = vmul.f32 %v4471, %v5824
        %v6004 = vmul.f32 %v4473, %v5824
        %v6005 = vmul.f32 %v4475, %v5824
        %v6006 = vmul.f32 %v4477, %v5824
        %v6007 = vmul.f32 %v4479, %v5824
        %v6008 = vmul.f32 %v4481, %v5825
        %v6009 = vmul.f32 %v4483, %v5825
        %v6010 = vmul.f32 %v4485, %v5825
        %v6011 = vmul.f32 %v4487, %v5825
        %v6012 = vmul.f32 %v4489, %v5825
        %v6013 = vmul.f32 %v4491, %v5825
        %v6014 = vmul.f32 %v4493, %v5825
        %v6015 = vmul.f32 %v4495, %v5825
        %v6016 = vmul.f32 %v4497, %v5826
        %v6017 = vmul.f32 %v4499, %v5826
        %v6018 = vmul.f32 %v4501, %v5826
        %v6019 = vmul.f32 %v4503, %v5826
        %v6020 = vmul.f32 %v4505, %v5826
        %v6021 = vmul.f32 %v4507, %v5826
        %v6022 = vmul.f32 %v4509, %v5826
        %v6023 = vmul.f32 %v4511, %v5826
        %v6024 = vmul.f32 %v4513, %v5827
        %v6025 = vmul.f32 %v4515, %v5827
        %v6026 = vmul.f32 %v4517, %v5827
        %v6027 = vmul.f32 %v4519, %v5827
        %v6028 = vmul.f32 %v4521, %v5827
        %v6029 = vmul.f32 %v4523, %v5827
        %v6030 = vmul.f32 %v4525, %v5827
        %v6031 = vmul.f32 %v4527, %v5827
        %v6032 = vmul.f32 %v4529, %v5828
        %v6033 = vmul.f32 %v4531, %v5828
        %v6034 = vmul.f32 %v4533, %v5828
        %v6035 = vmul.f32 %v4535, %v5828
        %v6036 = vmul.f32 %v4537, %v5828
        %v6037 = vmul.f32 %v4539, %v5828
        %v6038 = vmul.f32 %v4541, %v5828
        %v6039 = vmul.f32 %v4543, %v5828
        %v6040 = vmul.f32 %v4545, %v5829
        %v6041 = vmul.f32 %v4547, %v5829
        %v6042 = vmul.f32 %v4549, %v5829
        %v6043 = vmul.f32 %v4551, %v5829
        %v6044 = vmul.f32 %v4553, %v5829
        %v6045 = vmul.f32 %v4555, %v5829
        %v6046 = vmul.f32 %v4557, %v5829
        %v6047 = vmul.f32 %v4559, %v5829
        %v6048 = vmul.f32 %v4561, %v5830
        %v6049 = vmul.f32 %v4563, %v5830
        %v6050 = vmul.f32 %v4565, %v5830
        %v6051 = vmul.f32 %v4567, %v5830
        %v6052 = vmul.f32 %v4569, %v5830
        %v6053 = vmul.f32 %v4571, %v5830
        %v6054 = vmul.f32 %v4573, %v5830
        %v6055 = vmul.f32 %v4575, %v5830
        %v6056 = vmul.f32 %v4577, %v5831
        %v6057 = vmul.f32 %v4579, %v5831
        %v6058 = vmul.f32 %v4581, %v5831
        %v6059 = vmul.f32 %v4583, %v5831
        %v6060 = vmul.f32 %v4585, %v5831
        %v6061 = vmul.f32 %v4587, %v5831
        %v6062 = vmul.f32 %v4589, %v5831
        %v6063 = vmul.f32 %v4591, %v5831
        %v6064 = vmul.f32 %v4593, %v5832
        %v6065 = vmul.f32 %v4595, %v5832
        %v6066 = vmul.f32 %v4597, %v5832
        %v6067 = vmul.f32 %v4599, %v5832
        %v6068 = vmul.f32 %v4601, %v5832
        %v6069 = vmul.f32 %v4603, %v5832
        %v6070 = vmul.f32 %v4605, %v5832
        %v6071 = vmul.f32 %v4607, %v5832
        %v6072 = vmul.f32 %v4609, %v5833
        %v6073 = vmul.f32 %v4611, %v5833
        %v6074 = vmul.f32 %v4613, %v5833
        %v6075 = vmul.f32 %v4615, %v5833
        %v6076 = vmul.f32 %v4617, %v5833
        %v6077 = vmul.f32 %v4619, %v5833
        %v6078 = vmul.f32 %v4621, %v5833
        %v6079 = vmul.f32 %v4623, %v5833
        %v6080 = vmul.f32 %v4625, %v5834
        %v6081 = vmul.f32 %v4627, %v5834
        %v6082 = vmul.f32 %v4629, %v5834
        %v6083 = vmul.f32 %v4631, %v5834
        %v6084 = vmul.f32 %v4633, %v5834
        %v6085 = vmul.f32 %v4635, %v5834
        %v6086 = vmul.f32 %v4637, %v5834
        %v6087 = vmul.f32 %v4639, %v5834
        %v6088 = vmul.f32 %v4641, %v5835
        %v6089 = vmul.f32 %v4643, %v5835
        %v6090 = vmul.f32 %v4645, %v5835
        %v6091 = vmul.f32 %v4647, %v5835
        %v6092 = vmul.f32 %v4649, %v5835
        %v6093 = vmul.f32 %v4651, %v5835
        %v6094 = vmul.f32 %v4653, %v5835
        %v6095 = vmul.f32 %v4655, %v5835
        %v6096 = vmul.f32 %v4657, %v5836
        %v6097 = vmul.f32 %v4659, %v5836
        %v6098 = vmul.f32 %v4661, %v5836
        %v6099 = vmul.f32 %v4663, %v5836
        %v6100 = vmul.f32 %v4665, %v5836
        %v6101 = vmul.f32 %v4667, %v5836
        %v6102 = vmul.f32 %v4669, %v5836
        %v6103 = vmul.f32 %v4671, %v5836
        %v6104 = vmul.f32 %v4673, %v5837
        %v6105 = vmul.f32 %v4675, %v5837
        %v6106 = vmul.f32 %v4677, %v5837
        %v6107 = vmul.f32 %v4679, %v5837
        %v6108 = vmul.f32 %v4681, %v5837
        %v6109 = vmul.f32 %v4683, %v5837
        %v6110 = vmul.f32 %v4685, %v5837
        %v6111 = vmul.f32 %v4687, %v5837
        %v6112 = vmul.f32 %v4689, %v5838
        %v6113 = vmul.f32 %v4691, %v5838
        %v6114 = vmul.f32 %v4693, %v5838
        %v6115 = vmul.f32 %v4695, %v5838
        %v6116 = vmul.f32 %v4697, %v5838
        %v6117 = vmul.f32 %v4699, %v5838
        %v6118 = vmul.f32 %v4701, %v5838
        %v6119 = vmul.f32 %v4703, %v5838
        %v6120 = vmul.f32 %v4705, %v5839
        %v6121 = vmul.f32 %v4707, %v5839
        %v6122 = vmul.f32 %v4709, %v5839
        %v6123 = vmul.f32 %v4711, %v5839
        %v6124 = vmul.f32 %v4713, %v5839
        %v6125 = vmul.f32 %v4715, %v5839
        %v6126 = vmul.f32 %v4717, %v5839
        %v6127 = vmul.f32 %v4719, %v5839
        %v6128 = vmul.f32 %v4721, %v5840
        %v6129 = vmul.f32 %v4723, %v5840
        %v6130 = vmul.f32 %v4725, %v5840
        %v6131 = vmul.f32 %v4727, %v5840
        %v6132 = vmul.f32 %v4729, %v5840
        %v6133 = vmul.f32 %v4731, %v5840
        %v6134 = vmul.f32 %v4733, %v5840
        %v6135 = vmul.f32 %v4735, %v5840
        %v6136 = vmul.f32 %v4737, %v5841
        %v6137 = vmul.f32 %v4739, %v5841
        %v6138 = vmul.f32 %v4741, %v5841
        %v6139 = vmul.f32 %v4743, %v5841
        %v6140 = vmul.f32 %v4745, %v5841
        %v6141 = vmul.f32 %v4747, %v5841
        %v6142 = vmul.f32 %v4749, %v5841
        %v6143 = vmul.f32 %v4751, %v5841
        %v6144 = vmul.f32 %v4753, %v5842
        %v6145 = vmul.f32 %v4755, %v5842
        %v6146 = vmul.f32 %v4757, %v5842
        %v6147 = vmul.f32 %v4759, %v5842
        %v6148 = vmul.f32 %v4761, %v5842
        %v6149 = vmul.f32 %v4763, %v5842
        %v6150 = vmul.f32 %v4765, %v5842
        %v6151 = vmul.f32 %v4767, %v5842
        %v6152 = vmul.f32 %v4769, %v5843
        %v6153 = vmul.f32 %v4771, %v5843
        %v6154 = vmul.f32 %v4773, %v5843
        %v6155 = vmul.f32 %v4775, %v5843
        %v6156 = vmul.f32 %v4777, %v5843
        %v6157 = vmul.f32 %v4779, %v5843
        %v6158 = vmul.f32 %v4781, %v5843
        %v6159 = vmul.f32 %v4783, %v5843
        %v6160 = vmul.f32 %v4785, %v5844
        %v6161 = vmul.f32 %v4787, %v5844
        %v6162 = vmul.f32 %v4789, %v5844
        %v6163 = vmul.f32 %v4791, %v5844
        %v6164 = vmul.f32 %v4793, %v5844
        %v6165 = vmul.f32 %v4795, %v5844
        %v6166 = vmul.f32 %v4797, %v5844
        %v6167 = vmul.f32 %v4799, %v5844
        %v6168 = vmul.f32 %v4801, %v5845
        %v6169 = vmul.f32 %v4803, %v5845
        %v6170 = vmul.f32 %v4805, %v5845
        %v6171 = vmul.f32 %v4807, %v5845
        %v6172 = vmul.f32 %v4809, %v5845
        %v6173 = vmul.f32 %v4811, %v5845
        %v6174 = vmul.f32 %v4813, %v5845
        %v6175 = vmul.f32 %v4815, %v5845
        %v6176 = vmul.f32 %v4817, %v5846
        %v6177 = vmul.f32 %v4819, %v5846
        %v6178 = vmul.f32 %v4821, %v5846
        %v6179 = vmul.f32 %v4823, %v5846
        %v6180 = vmul.f32 %v4825, %v5846
        %v6181 = vmul.f32 %v4827, %v5846
        %v6182 = vmul.f32 %v4829, %v5846
        %v6183 = vmul.f32 %v4831, %v5846
        %v6184 = vmul.f32 %v4833, %v5847
        %v6185 = vmul.f32 %v4835, %v5847
        %v6186 = vmul.f32 %v4837, %v5847
        %v6187 = vmul.f32 %v4839, %v5847
        %v6188 = vmul.f32 %v4841, %v5847
        %v6189 = vmul.f32 %v4843, %v5847
        %v6190 = vmul.f32 %v4845, %v5847
        %v6191 = vmul.f32 %v4847, %v5847
        %v6192 = vmul.f32 %v4849, %v5848
        %v6193 = vmul.f32 %v4851, %v5848
        %v6194 = vmul.f32 %v4853, %v5848
        %v6195 = vmul.f32 %v4855, %v5848
        %v6196 = vmul.f32 %v4857, %v5848
        %v6197 = vmul.f32 %v4859, %v5848
        %v6198 = vmul.f32 %v4861, %v5848
        %v6199 = vmul.f32 %v4863, %v5848
        %v6200 = vmul.f32 %v4865, %v5849
        %v6201 = vmul.f32 %v4867, %v5849
        %v6202 = vmul.f32 %v4869, %v5849
        %v6203 = vmul.f32 %v4871, %v5849
        %v6204 = vmul.f32 %v4873, %v5849
        %v6205 = vmul.f32 %v4875, %v5849
        %v6206 = vmul.f32 %v4877, %v5849
        %v6207 = vmul.f32 %v4879, %v5849
        %v6208 = vmul.f32 %v4881, %v5850
        %v6209 = vmul.f32 %v4883, %v5850
        %v6210 = vmul.f32 %v4885, %v5850
        %v6211 = vmul.f32 %v4887, %v5850
        %v6212 = vmul.f32 %v4889, %v5850
        %v6213 = vmul.f32 %v4891, %v5850
        %v6214 = vmul.f32 %v4893, %v5850
        %v6215 = vmul.f32 %v4895, %v5850
        %v6216 = vmul.f32 %v4897, %v5851
        %v6217 = vmul.f32 %v4899, %v5851
        %v6218 = vmul.f32 %v4901, %v5851
        %v6219 = vmul.f32 %v4903, %v5851
        %v6220 = vmul.f32 %v4905, %v5851
        %v6221 = vmul.f32 %v4907, %v5851
        %v6222 = vmul.f32 %v4909, %v5851
        %v6223 = vmul.f32 %v4911, %v5851
        %v6224 = vmul.f32 %v4913, %v5852
        %v6225 = vmul.f32 %v4915, %v5852
        %v6226 = vmul.f32 %v4917, %v5852
        %v6227 = vmul.f32 %v4919, %v5852
        %v6228 = vmul.f32 %v4921, %v5852
        %v6229 = vmul.f32 %v4923, %v5852
        %v6230 = vmul.f32 %v4925, %v5852
        %v6231 = vmul.f32 %v4927, %v5852
        %v6232 = vmul.f32 %v4929, %v5853
        %v6233 = vmul.f32 %v4931, %v5853
        %v6234 = vmul.f32 %v4933, %v5853
        %v6235 = vmul.f32 %v4935, %v5853
        %v6236 = vmul.f32 %v4937, %v5853
        %v6237 = vmul.f32 %v4939, %v5853
        %v6238 = vmul.f32 %v4941, %v5853
        %v6239 = vmul.f32 %v4943, %v5853
        %v6240 = vmul.f32 %v4945, %v5854
        %v6241 = vmul.f32 %v4947, %v5854
        %v6242 = vmul.f32 %v4949, %v5854
        %v6243 = vmul.f32 %v4951, %v5854
        %v6244 = vmul.f32 %v4953, %v5854
        %v6245 = vmul.f32 %v4955, %v5854
        %v6246 = vmul.f32 %v4957, %v5854
        %v6247 = vmul.f32 %v4959, %v5854
        %v6248 = vmul.f32 %v4961, %v5855
        %v6249 = vmul.f32 %v4963, %v5855
        %v6250 = vmul.f32 %v4965, %v5855
        %v6251 = vmul.f32 %v4967, %v5855
        %v6252 = vmul.f32 %v4969, %v5855
        %v6253 = vmul.f32 %v4971, %v5855
        %v6254 = vmul.f32 %v4973, %v5855
        %v6255 = vmul.f32 %v4975, %v5855
        %v6256 = vmul.f32 %v4977, %v5856
        %v6257 = vmul.f32 %v4979, %v5856
        %v6258 = vmul.f32 %v4981, %v5856
        %v6259 = vmul.f32 %v4983, %v5856
        %v6260 = vmul.f32 %v4985, %v5856
        %v6261 = vmul.f32 %v4987, %v5856
        %v6262 = vmul.f32 %v4989, %v5856
        %v6263 = vmul.f32 %v4991, %v5856
        %v6264 = vmul.f32 %v4993, %v5857
        %v6265 = vmul.f32 %v4995, %v5857
        %v6266 = vmul.f32 %v4997, %v5857
        %v6267 = vmul.f32 %v4999, %v5857
        %v6268 = vmul.f32 %v5001, %v5857
        %v6269 = vmul.f32 %v5003, %v5857
        %v6270 = vmul.f32 %v5005, %v5857
        %v6271 = vmul.f32 %v5007, %v5857
        %v6272 = vmul.f32 %v5009, %v5858
        %v6273 = vmul.f32 %v5011, %v5858
        %v6274 = vmul.f32 %v5013, %v5858
        %v6275 = vmul.f32 %v5015, %v5858
        %v6276 = vmul.f32 %v5017, %v5858
        %v6277 = vmul.f32 %v5019, %v5858
        %v6278 = vmul.f32 %v5021, %v5858
        %v6279 = vmul.f32 %v5023, %v5858
        %v6280 = vmul.f32 %v5025, %v5859
        %v6281 = vmul.f32 %v5027, %v5859
        %v6282 = vmul.f32 %v5029, %v5859
        %v6283 = vmul.f32 %v5031, %v5859
        %v6284 = vmul.f32 %v5033, %v5859
        %v6285 = vmul.f32 %v5035, %v5859
        %v6286 = vmul.f32 %v5037, %v5859
        %v6287 = vmul.f32 %v5039, %v5859
        %v6288 = vmul.f32 %v5041, %v5860
        %v6289 = vmul.f32 %v5043, %v5860
        %v6290 = vmul.f32 %v5045, %v5860
        %v6291 = vmul.f32 %v5047, %v5860
        %v6292 = vmul.f32 %v5049, %v5860
        %v6293 = vmul.f32 %v5051, %v5860
        %v6294 = vmul.f32 %v5053, %v5860
        %v6295 = vmul.f32 %v5055, %v5860
        %v6296 = vmul.f32 %v5057, %v5861
        %v6297 = vmul.f32 %v5059, %v5861
        %v6298 = vmul.f32 %v5061, %v5861
        %v6299 = vmul.f32 %v5063, %v5861
        %v6300 = vmul.f32 %v5065, %v5861
        %v6301 = vmul.f32 %v5067, %v5861
        %v6302 = vmul.f32 %v5069, %v5861
        %v6303 = vmul.f32 %v5071, %v5861
        %v6304 = vmul.f32 %v5073, %v5862
        %v6305 = vmul.f32 %v5075, %v5862
        %v6306 = vmul.f32 %v5077, %v5862
        %v6307 = vmul.f32 %v5079, %v5862
        %v6308 = vmul.f32 %v5081, %v5862
        %v6309 = vmul.f32 %v5083, %v5862
        %v6310 = vmul.f32 %v5085, %v5862
        %v6311 = vmul.f32 %v5087, %v5862
        %v6312 = vmul.f32 %v5089, %v5863
        %v6313 = vmul.f32 %v5091, %v5863
        %v6314 = vmul.f32 %v5093, %v5863
        %v6315 = vmul.f32 %v5095, %v5863
        %v6316 = vmul.f32 %v5097, %v5863
        %v6317 = vmul.f32 %v5099, %v5863
        %v6318 = vmul.f32 %v5101, %v5863
        %v6319 = vmul.f32 %v5103, %v5863
        %v6320 = vmul.f32 %v5105, %v5864
        %v6321 = vmul.f32 %v5107, %v5864
        %v6322 = vmul.f32 %v5109, %v5864
        %v6323 = vmul.f32 %v5111, %v5864
        %v6324 = vmul.f32 %v5113, %v5864
        %v6325 = vmul.f32 %v5115, %v5864
        %v6326 = vmul.f32 %v5117, %v5864
        %v6327 = vmul.f32 %v5119, %v5864
        %v6328 = vmul.f32 %v5121, %v5865
        %v6329 = vmul.f32 %v5123, %v5865
        %v6330 = vmul.f32 %v5125, %v5865
        %v6331 = vmul.f32 %v5127, %v5865
        %v6332 = vmul.f32 %v5129, %v5865
        %v6333 = vmul.f32 %v5131, %v5865
        %v6334 = vmul.f32 %v5133, %v5865
        %v6335 = vmul.f32 %v5135, %v5865
        %v6336 = vmul.f32 %v5137, %v5866
        %v6337 = vmul.f32 %v5139, %v5866
        %v6338 = vmul.f32 %v5141, %v5866
        %v6339 = vmul.f32 %v5143, %v5866
        %v6340 = vmul.f32 %v5145, %v5866
        %v6341 = vmul.f32 %v5147, %v5866
        %v6342 = vmul.f32 %v5149, %v5866
        %v6343 = vmul.f32 %v5151, %v5866
        %v6344 = vmul.f32 %v5153, %v5867
        %v6345 = vmul.f32 %v5155, %v5867
        %v6346 = vmul.f32 %v5157, %v5867
        %v6347 = vmul.f32 %v5159, %v5867
        %v6348 = vmul.f32 %v5161, %v5867
        %v6349 = vmul.f32 %v5163, %v5867
        %v6350 = vmul.f32 %v5165, %v5867
        %v6351 = vmul.f32 %v5167, %v5867
        %v6352 = vmul.f32 %v5169, %v5868
        %v6353 = vmul.f32 %v5171, %v5868
        %v6354 = vmul.f32 %v5173, %v5868
        %v6355 = vmul.f32 %v5175, %v5868
        %v6356 = vmul.f32 %v5177, %v5868
        %v6357 = vmul.f32 %v5179, %v5868
        %v6358 = vmul.f32 %v5181, %v5868
        %v6359 = vmul.f32 %v5183, %v5868
        %v6360 = vmul.f32 %v5185, %v5869
        %v6361 = vmul.f32 %v5187, %v5869
        %v6362 = vmul.f32 %v5189, %v5869
        %v6363 = vmul.f32 %v5191, %v5869
        %v6364 = vmul.f32 %v5193, %v5869
        %v6365 = vmul.f32 %v5195, %v5869
        %v6366 = vmul.f32 %v5197, %v5869
        %v6367 = vmul.f32 %v5199, %v5869
        %v6368 = vmul.f32 %v5201, %v5870
        %v6369 = vmul.f32 %v5203, %v5870
        %v6370 = vmul.f32 %v5205, %v5870
        %v6371 = vmul.f32 %v5207, %v5870
        %v6372 = vmul.f32 %v5209, %v5870
        %v6373 = vmul.f32 %v5211, %v5870
        %v6374 = vmul.f32 %v5213, %v5870
        %v6375 = vmul.f32 %v5215, %v5870
        %v6376 = vmul.f32 %v5217, %v5871
        %v6377 = vmul.f32 %v5219, %v5871
        %v6378 = vmul.f32 %v5221, %v5871
        %v6379 = vmul.f32 %v5223, %v5871
        %v6380 = vmul.f32 %v5225, %v5871
        %v6381 = vmul.f32 %v5227, %v5871
        %v6382 = vmul.f32 %v5229, %v5871
        %v6383 = vmul.f32 %v5231, %v5871
        %v6384 = vpack.c.bf16 %v5880, %v5872
        %v6385 = vpack.c.bf16 %v5881, %v5873
        %v6386 = vpack.c.bf16 %v5882, %v5874
        %v6387 = vpack.c.bf16 %v5883, %v5875
        %v6388 = vpack.c.bf16 %v5884, %v5876
        %v6389 = vpack.c.bf16 %v5885, %v5877
        %v6390 = vpack.c.bf16 %v5886, %v5878
        %v6391 = vpack.c.bf16 %v5887, %v5879
        %v6392 = vpack.c.bf16 %v5896, %v5888
        %v6393 = vpack.c.bf16 %v5897, %v5889
        %v6394 = vpack.c.bf16 %v5898, %v5890
        %v6395 = vpack.c.bf16 %v5899, %v5891
        %v6396 = vpack.c.bf16 %v5900, %v5892
        %v6397 = vpack.c.bf16 %v5901, %v5893
        %v6398 = vpack.c.bf16 %v5902, %v5894
        %v6399 = vpack.c.bf16 %v5903, %v5895
        %v6400 = vpack.c.bf16 %v5912, %v5904
        %v6401 = vpack.c.bf16 %v5913, %v5905
        %v6402 = vpack.c.bf16 %v5914, %v5906
        %v6403 = vpack.c.bf16 %v5915, %v5907
        %v6404 = vpack.c.bf16 %v5916, %v5908
        %v6405 = vpack.c.bf16 %v5917, %v5909
        %v6406 = vpack.c.bf16 %v5918, %v5910
        %v6407 = vpack.c.bf16 %v5919, %v5911
        %v6408 = vpack.c.bf16 %v5928, %v5920
        %v6409 = vpack.c.bf16 %v5929, %v5921
        %v6410 = vpack.c.bf16 %v5930, %v5922
        %v6411 = vpack.c.bf16 %v5931, %v5923
        %v6412 = vpack.c.bf16 %v5932, %v5924
        %v6413 = vpack.c.bf16 %v5933, %v5925
        %v6414 = vpack.c.bf16 %v5934, %v5926
        %v6415 = vpack.c.bf16 %v5935, %v5927
        %v6416 = vpack.c.bf16 %v5944, %v5936
        %v6417 = vpack.c.bf16 %v5945, %v5937
        %v6418 = vpack.c.bf16 %v5946, %v5938
        %v6419 = vpack.c.bf16 %v5947, %v5939
        %v6420 = vpack.c.bf16 %v5948, %v5940
        %v6421 = vpack.c.bf16 %v5949, %v5941
        %v6422 = vpack.c.bf16 %v5950, %v5942
        %v6423 = vpack.c.bf16 %v5951, %v5943
        %v6424 = vpack.c.bf16 %v5960, %v5952
        %v6425 = vpack.c.bf16 %v5961, %v5953
        %v6426 = vpack.c.bf16 %v5962, %v5954
        %v6427 = vpack.c.bf16 %v5963, %v5955
        %v6428 = vpack.c.bf16 %v5964, %v5956
        %v6429 = vpack.c.bf16 %v5965, %v5957
        %v6430 = vpack.c.bf16 %v5966, %v5958
        %v6431 = vpack.c.bf16 %v5967, %v5959
        %v6432 = vpack.c.bf16 %v5976, %v5968
        %v6433 = vpack.c.bf16 %v5977, %v5969
        %v6434 = vpack.c.bf16 %v5978, %v5970
        %v6435 = vpack.c.bf16 %v5979, %v5971
        %v6436 = vpack.c.bf16 %v5980, %v5972
        %v6437 = vpack.c.bf16 %v5981, %v5973
        %v6438 = vpack.c.bf16 %v5982, %v5974
        %v6439 = vpack.c.bf16 %v5983, %v5975
        %v6440 = vpack.c.bf16 %v5992, %v5984
        %v6441 = vpack.c.bf16 %v5993, %v5985
        %v6442 = vpack.c.bf16 %v5994, %v5986
        %v6443 = vpack.c.bf16 %v5995, %v5987
        %v6444 = vpack.c.bf16 %v5996, %v5988
        %v6445 = vpack.c.bf16 %v5997, %v5989
        %v6446 = vpack.c.bf16 %v5998, %v5990
        %v6447 = vpack.c.bf16 %v5999, %v5991
        %v6448 = vpack.c.bf16 %v6008, %v6000
        %v6449 = vpack.c.bf16 %v6009, %v6001
        %v6450 = vpack.c.bf16 %v6010, %v6002
        %v6451 = vpack.c.bf16 %v6011, %v6003
        %v6452 = vpack.c.bf16 %v6012, %v6004
        %v6453 = vpack.c.bf16 %v6013, %v6005
        %v6454 = vpack.c.bf16 %v6014, %v6006
        %v6455 = vpack.c.bf16 %v6015, %v6007
        %v6456 = vpack.c.bf16 %v6024, %v6016
        %v6457 = vpack.c.bf16 %v6025, %v6017
        %v6458 = vpack.c.bf16 %v6026, %v6018
        %v6459 = vpack.c.bf16 %v6027, %v6019
        %v6460 = vpack.c.bf16 %v6028, %v6020
        %v6461 = vpack.c.bf16 %v6029, %v6021
        %v6462 = vpack.c.bf16 %v6030, %v6022
        %v6463 = vpack.c.bf16 %v6031, %v6023
        %v6464 = vpack.c.bf16 %v6040, %v6032
        %v6465 = vpack.c.bf16 %v6041, %v6033
        %v6466 = vpack.c.bf16 %v6042, %v6034
        %v6467 = vpack.c.bf16 %v6043, %v6035
        %v6468 = vpack.c.bf16 %v6044, %v6036
        %v6469 = vpack.c.bf16 %v6045, %v6037
        %v6470 = vpack.c.bf16 %v6046, %v6038
        %v6471 = vpack.c.bf16 %v6047, %v6039
        %v6472 = vpack.c.bf16 %v6056, %v6048
        %v6473 = vpack.c.bf16 %v6057, %v6049
        %v6474 = vpack.c.bf16 %v6058, %v6050
        %v6475 = vpack.c.bf16 %v6059, %v6051
        %v6476 = vpack.c.bf16 %v6060, %v6052
        %v6477 = vpack.c.bf16 %v6061, %v6053
        %v6478 = vpack.c.bf16 %v6062, %v6054
        %v6479 = vpack.c.bf16 %v6063, %v6055
        %v6480 = vpack.c.bf16 %v6072, %v6064
        %v6481 = vpack.c.bf16 %v6073, %v6065
        %v6482 = vpack.c.bf16 %v6074, %v6066
        %v6483 = vpack.c.bf16 %v6075, %v6067
        %v6484 = vpack.c.bf16 %v6076, %v6068
        %v6485 = vpack.c.bf16 %v6077, %v6069
        %v6486 = vpack.c.bf16 %v6078, %v6070
        %v6487 = vpack.c.bf16 %v6079, %v6071
        %v6488 = vpack.c.bf16 %v6088, %v6080
        %v6489 = vpack.c.bf16 %v6089, %v6081
        %v6490 = vpack.c.bf16 %v6090, %v6082
        %v6491 = vpack.c.bf16 %v6091, %v6083
        %v6492 = vpack.c.bf16 %v6092, %v6084
        %v6493 = vpack.c.bf16 %v6093, %v6085
        %v6494 = vpack.c.bf16 %v6094, %v6086
        %v6495 = vpack.c.bf16 %v6095, %v6087
        %v6496 = vpack.c.bf16 %v6104, %v6096
        %v6497 = vpack.c.bf16 %v6105, %v6097
        %v6498 = vpack.c.bf16 %v6106, %v6098
        %v6499 = vpack.c.bf16 %v6107, %v6099
        %v6500 = vpack.c.bf16 %v6108, %v6100
        %v6501 = vpack.c.bf16 %v6109, %v6101
        %v6502 = vpack.c.bf16 %v6110, %v6102
        %v6503 = vpack.c.bf16 %v6111, %v6103
        %v6504 = vpack.c.bf16 %v6120, %v6112
        %v6505 = vpack.c.bf16 %v6121, %v6113
        %v6506 = vpack.c.bf16 %v6122, %v6114
        %v6507 = vpack.c.bf16 %v6123, %v6115
        %v6508 = vpack.c.bf16 %v6124, %v6116
        %v6509 = vpack.c.bf16 %v6125, %v6117
        %v6510 = vpack.c.bf16 %v6126, %v6118
        %v6511 = vpack.c.bf16 %v6127, %v6119
        %v6512 = vpack.c.bf16 %v6136, %v6128
        %v6513 = vpack.c.bf16 %v6137, %v6129
        %v6514 = vpack.c.bf16 %v6138, %v6130
        %v6515 = vpack.c.bf16 %v6139, %v6131
        %v6516 = vpack.c.bf16 %v6140, %v6132
        %v6517 = vpack.c.bf16 %v6141, %v6133
        %v6518 = vpack.c.bf16 %v6142, %v6134
        %v6519 = vpack.c.bf16 %v6143, %v6135
        %v6520 = vpack.c.bf16 %v6152, %v6144
        %v6521 = vpack.c.bf16 %v6153, %v6145
        %v6522 = vpack.c.bf16 %v6154, %v6146
        %v6523 = vpack.c.bf16 %v6155, %v6147
        %v6524 = vpack.c.bf16 %v6156, %v6148
        %v6525 = vpack.c.bf16 %v6157, %v6149
        %v6526 = vpack.c.bf16 %v6158, %v6150
        %v6527 = vpack.c.bf16 %v6159, %v6151
        %v6528 = vpack.c.bf16 %v6168, %v6160
        %v6529 = vpack.c.bf16 %v6169, %v6161
        %v6530 = vpack.c.bf16 %v6170, %v6162
        %v6531 = vpack.c.bf16 %v6171, %v6163
        %v6532 = vpack.c.bf16 %v6172, %v6164
        %v6533 = vpack.c.bf16 %v6173, %v6165
        %v6534 = vpack.c.bf16 %v6174, %v6166
        %v6535 = vpack.c.bf16 %v6175, %v6167
        %v6536 = vpack.c.bf16 %v6184, %v6176
        %v6537 = vpack.c.bf16 %v6185, %v6177
        %v6538 = vpack.c.bf16 %v6186, %v6178
        %v6539 = vpack.c.bf16 %v6187, %v6179
        %v6540 = vpack.c.bf16 %v6188, %v6180
        %v6541 = vpack.c.bf16 %v6189, %v6181
        %v6542 = vpack.c.bf16 %v6190, %v6182
        %v6543 = vpack.c.bf16 %v6191, %v6183
        %v6544 = vpack.c.bf16 %v6200, %v6192
        %v6545 = vpack.c.bf16 %v6201, %v6193
        %v6546 = vpack.c.bf16 %v6202, %v6194
        %v6547 = vpack.c.bf16 %v6203, %v6195
        %v6548 = vpack.c.bf16 %v6204, %v6196
        %v6549 = vpack.c.bf16 %v6205, %v6197
        %v6550 = vpack.c.bf16 %v6206, %v6198
        %v6551 = vpack.c.bf16 %v6207, %v6199
        %v6552 = vpack.c.bf16 %v6216, %v6208
        %v6553 = vpack.c.bf16 %v6217, %v6209
        %v6554 = vpack.c.bf16 %v6218, %v6210
        %v6555 = vpack.c.bf16 %v6219, %v6211
        %v6556 = vpack.c.bf16 %v6220, %v6212
        %v6557 = vpack.c.bf16 %v6221, %v6213
        %v6558 = vpack.c.bf16 %v6222, %v6214
        %v6559 = vpack.c.bf16 %v6223, %v6215
        %v6560 = vpack.c.bf16 %v6232, %v6224
        %v6561 = vpack.c.bf16 %v6233, %v6225
        %v6562 = vpack.c.bf16 %v6234, %v6226
        %v6563 = vpack.c.bf16 %v6235, %v6227
        %v6564 = vpack.c.bf16 %v6236, %v6228
        %v6565 = vpack.c.bf16 %v6237, %v6229
        %v6566 = vpack.c.bf16 %v6238, %v6230
        %v6567 = vpack.c.bf16 %v6239, %v6231
        %v6568 = vpack.c.bf16 %v6248, %v6240
        %v6569 = vpack.c.bf16 %v6249, %v6241
        %v6570 = vpack.c.bf16 %v6250, %v6242
        %v6571 = vpack.c.bf16 %v6251, %v6243
        %v6572 = vpack.c.bf16 %v6252, %v6244
        %v6573 = vpack.c.bf16 %v6253, %v6245
        %v6574 = vpack.c.bf16 %v6254, %v6246
        %v6575 = vpack.c.bf16 %v6255, %v6247
        %v6576 = vpack.c.bf16 %v6264, %v6256
        %v6577 = vpack.c.bf16 %v6265, %v6257
        %v6578 = vpack.c.bf16 %v6266, %v6258
        %v6579 = vpack.c.bf16 %v6267, %v6259
        %v6580 = vpack.c.bf16 %v6268, %v6260
        %v6581 = vpack.c.bf16 %v6269, %v6261
        %v6582 = vpack.c.bf16 %v6270, %v6262
        %v6583 = vpack.c.bf16 %v6271, %v6263
        %v6584 = vpack.c.bf16 %v6280, %v6272
        %v6585 = vpack.c.bf16 %v6281, %v6273
        %v6586 = vpack.c.bf16 %v6282, %v6274
        %v6587 = vpack.c.bf16 %v6283, %v6275
        %v6588 = vpack.c.bf16 %v6284, %v6276
        %v6589 = vpack.c.bf16 %v6285, %v6277
        %v6590 = vpack.c.bf16 %v6286, %v6278
        %v6591 = vpack.c.bf16 %v6287, %v6279
        %v6592 = vpack.c.bf16 %v6296, %v6288
        %v6593 = vpack.c.bf16 %v6297, %v6289
        %v6594 = vpack.c.bf16 %v6298, %v6290
        %v6595 = vpack.c.bf16 %v6299, %v6291
        %v6596 = vpack.c.bf16 %v6300, %v6292
        %v6597 = vpack.c.bf16 %v6301, %v6293
        %v6598 = vpack.c.bf16 %v6302, %v6294
        %v6599 = vpack.c.bf16 %v6303, %v6295
        %v6600 = vpack.c.bf16 %v6312, %v6304
        %v6601 = vpack.c.bf16 %v6313, %v6305
        %v6602 = vpack.c.bf16 %v6314, %v6306
        %v6603 = vpack.c.bf16 %v6315, %v6307
        %v6604 = vpack.c.bf16 %v6316, %v6308
        %v6605 = vpack.c.bf16 %v6317, %v6309
        %v6606 = vpack.c.bf16 %v6318, %v6310
        %v6607 = vpack.c.bf16 %v6319, %v6311
        %v6608 = vpack.c.bf16 %v6328, %v6320
        %v6609 = vpack.c.bf16 %v6329, %v6321
        %v6610 = vpack.c.bf16 %v6330, %v6322
        %v6611 = vpack.c.bf16 %v6331, %v6323
        %v6612 = vpack.c.bf16 %v6332, %v6324
        %v6613 = vpack.c.bf16 %v6333, %v6325
        %v6614 = vpack.c.bf16 %v6334, %v6326
        %v6615 = vpack.c.bf16 %v6335, %v6327
        %v6616 = vpack.c.bf16 %v6344, %v6336
        %v6617 = vpack.c.bf16 %v6345, %v6337
        %v6618 = vpack.c.bf16 %v6346, %v6338
        %v6619 = vpack.c.bf16 %v6347, %v6339
        %v6620 = vpack.c.bf16 %v6348, %v6340
        %v6621 = vpack.c.bf16 %v6349, %v6341
        %v6622 = vpack.c.bf16 %v6350, %v6342
        %v6623 = vpack.c.bf16 %v6351, %v6343
        %v6624 = vpack.c.bf16 %v6360, %v6352
        %v6625 = vpack.c.bf16 %v6361, %v6353
        %v6626 = vpack.c.bf16 %v6362, %v6354
        %v6627 = vpack.c.bf16 %v6363, %v6355
        %v6628 = vpack.c.bf16 %v6364, %v6356
        %v6629 = vpack.c.bf16 %v6365, %v6357
        %v6630 = vpack.c.bf16 %v6366, %v6358
        %v6631 = vpack.c.bf16 %v6367, %v6359
        %v6632 = vpack.c.bf16 %v6376, %v6368
        %v6633 = vpack.c.bf16 %v6377, %v6369
        %v6634 = vpack.c.bf16 %v6378, %v6370
        %v6635 = vpack.c.bf16 %v6379, %v6371
        %v6636 = vpack.c.bf16 %v6380, %v6372
        %v6637 = vpack.c.bf16 %v6381, %v6373
        %v6638 = vpack.c.bf16 %v6382, %v6374
        %v6639 = vpack.c.bf16 %v6383, %v6375
        %v6896 = vunpack.c.l.b16 %v6384
        %v6897 = vunpack.c.l.b16 %v6385
        %v6898 = vunpack.c.l.b16 %v6386
        %v6899 = vunpack.c.l.b16 %v6387
        %v6900 = vunpack.c.l.b16 %v6388
        %v6901 = vunpack.c.l.b16 %v6389
        %v6902 = vunpack.c.l.b16 %v6390
        %v6903 = vunpack.c.l.b16 %v6391
        %v6904 = vunpack.c.h.b16 %v6384
        %v6905 = vunpack.c.h.b16 %v6385
        %v6906 = vunpack.c.h.b16 %v6386
        %v6907 = vunpack.c.h.b16 %v6387
        %v6908 = vunpack.c.h.b16 %v6388
        %v6909 = vunpack.c.h.b16 %v6389
        %v6910 = vunpack.c.h.b16 %v6390
        %v6911 = vunpack.c.h.b16 %v6391
        %v6912 = vunpack.c.l.b16 %v6392
        %v6913 = vunpack.c.l.b16 %v6393
        %v6914 = vunpack.c.l.b16 %v6394
        %v6915 = vunpack.c.l.b16 %v6395
        %v6916 = vunpack.c.l.b16 %v6396
        %v6917 = vunpack.c.l.b16 %v6397
        %v6918 = vunpack.c.l.b16 %v6398
        %v6919 = vunpack.c.l.b16 %v6399
        %v6920 = vunpack.c.h.b16 %v6392
        %v6921 = vunpack.c.h.b16 %v6393
        %v6922 = vunpack.c.h.b16 %v6394
        %v6923 = vunpack.c.h.b16 %v6395
        %v6924 = vunpack.c.h.b16 %v6396
        %v6925 = vunpack.c.h.b16 %v6397
        %v6926 = vunpack.c.h.b16 %v6398
        %v6927 = vunpack.c.h.b16 %v6399
        %v6928 = vunpack.c.l.b16 %v6400
        %v6929 = vunpack.c.l.b16 %v6401
        %v6930 = vunpack.c.l.b16 %v6402
        %v6931 = vunpack.c.l.b16 %v6403
        %v6932 = vunpack.c.l.b16 %v6404
        %v6933 = vunpack.c.l.b16 %v6405
        %v6934 = vunpack.c.l.b16 %v6406
        %v6935 = vunpack.c.l.b16 %v6407
        %v6936 = vunpack.c.h.b16 %v6400
        %v6937 = vunpack.c.h.b16 %v6401
        %v6938 = vunpack.c.h.b16 %v6402
        %v6939 = vunpack.c.h.b16 %v6403
        %v6940 = vunpack.c.h.b16 %v6404
        %v6941 = vunpack.c.h.b16 %v6405
        %v6942 = vunpack.c.h.b16 %v6406
        %v6943 = vunpack.c.h.b16 %v6407
        %v6944 = vunpack.c.l.b16 %v6408
        %v6945 = vunpack.c.l.b16 %v6409
        %v6946 = vunpack.c.l.b16 %v6410
        %v6947 = vunpack.c.l.b16 %v6411
        %v6948 = vunpack.c.l.b16 %v6412
        %v6949 = vunpack.c.l.b16 %v6413
        %v6950 = vunpack.c.l.b16 %v6414
        %v6951 = vunpack.c.l.b16 %v6415
        %v6952 = vunpack.c.h.b16 %v6408
        %v6953 = vunpack.c.h.b16 %v6409
        %v6954 = vunpack.c.h.b16 %v6410
        %v6955 = vunpack.c.h.b16 %v6411
        %v6956 = vunpack.c.h.b16 %v6412
        %v6957 = vunpack.c.h.b16 %v6413
        %v6958 = vunpack.c.h.b16 %v6414
        %v6959 = vunpack.c.h.b16 %v6415
        %v6960 = vunpack.c.l.b16 %v6416
        %v6961 = vunpack.c.l.b16 %v6417
        %v6962 = vunpack.c.l.b16 %v6418
        %v6963 = vunpack.c.l.b16 %v6419
        %v6964 = vunpack.c.l.b16 %v6420
        %v6965 = vunpack.c.l.b16 %v6421
        %v6966 = vunpack.c.l.b16 %v6422
        %v6967 = vunpack.c.l.b16 %v6423
        %v6968 = vunpack.c.h.b16 %v6416
        %v6969 = vunpack.c.h.b16 %v6417
        %v6970 = vunpack.c.h.b16 %v6418
        %v6971 = vunpack.c.h.b16 %v6419
        %v6972 = vunpack.c.h.b16 %v6420
        %v6973 = vunpack.c.h.b16 %v6421
        %v6974 = vunpack.c.h.b16 %v6422
        %v6975 = vunpack.c.h.b16 %v6423
        %v6976 = vunpack.c.l.b16 %v6424
        %v6977 = vunpack.c.l.b16 %v6425
        %v6978 = vunpack.c.l.b16 %v6426
        %v6979 = vunpack.c.l.b16 %v6427
        %v6980 = vunpack.c.l.b16 %v6428
        %v6981 = vunpack.c.l.b16 %v6429
        %v6982 = vunpack.c.l.b16 %v6430
        %v6983 = vunpack.c.l.b16 %v6431
        %v6984 = vunpack.c.h.b16 %v6424
        %v6985 = vunpack.c.h.b16 %v6425
        %v6986 = vunpack.c.h.b16 %v6426
        %v6987 = vunpack.c.h.b16 %v6427
        %v6988 = vunpack.c.h.b16 %v6428
        %v6989 = vunpack.c.h.b16 %v6429
        %v6990 = vunpack.c.h.b16 %v6430
        %v6991 = vunpack.c.h.b16 %v6431
        %v6992 = vunpack.c.l.b16 %v6432
        %v6993 = vunpack.c.l.b16 %v6433
        %v6994 = vunpack.c.l.b16 %v6434
        %v6995 = vunpack.c.l.b16 %v6435
        %v6996 = vunpack.c.l.b16 %v6436
        %v6997 = vunpack.c.l.b16 %v6437
        %v6998 = vunpack.c.l.b16 %v6438
        %v6999 = vunpack.c.l.b16 %v6439
        %v7000 = vunpack.c.h.b16 %v6432
        %v7001 = vunpack.c.h.b16 %v6433
        %v7002 = vunpack.c.h.b16 %v6434
        %v7003 = vunpack.c.h.b16 %v6435
        %v7004 = vunpack.c.h.b16 %v6436
        %v7005 = vunpack.c.h.b16 %v6437
        %v7006 = vunpack.c.h.b16 %v6438
        %v7007 = vunpack.c.h.b16 %v6439
        %v7008 = vunpack.c.l.b16 %v6440
        %v7009 = vunpack.c.l.b16 %v6441
        %v7010 = vunpack.c.l.b16 %v6442
        %v7011 = vunpack.c.l.b16 %v6443
        %v7012 = vunpack.c.l.b16 %v6444
        %v7013 = vunpack.c.l.b16 %v6445
        %v7014 = vunpack.c.l.b16 %v6446
        %v7015 = vunpack.c.l.b16 %v6447
        %v7016 = vunpack.c.h.b16 %v6440
        %v7017 = vunpack.c.h.b16 %v6441
        %v7018 = vunpack.c.h.b16 %v6442
        %v7019 = vunpack.c.h.b16 %v6443
        %v7020 = vunpack.c.h.b16 %v6444
        %v7021 = vunpack.c.h.b16 %v6445
        %v7022 = vunpack.c.h.b16 %v6446
        %v7023 = vunpack.c.h.b16 %v6447
        %v7024 = vunpack.c.l.b16 %v6448
        %v7025 = vunpack.c.l.b16 %v6449
        %v7026 = vunpack.c.l.b16 %v6450
        %v7027 = vunpack.c.l.b16 %v6451
        %v7028 = vunpack.c.l.b16 %v6452
        %v7029 = vunpack.c.l.b16 %v6453
        %v7030 = vunpack.c.l.b16 %v6454
        %v7031 = vunpack.c.l.b16 %v6455
        %v7032 = vunpack.c.h.b16 %v6448
        %v7033 = vunpack.c.h.b16 %v6449
        %v7034 = vunpack.c.h.b16 %v6450
        %v7035 = vunpack.c.h.b16 %v6451
        %v7036 = vunpack.c.h.b16 %v6452
        %v7037 = vunpack.c.h.b16 %v6453
        %v7038 = vunpack.c.h.b16 %v6454
        %v7039 = vunpack.c.h.b16 %v6455
        %v7040 = vunpack.c.l.b16 %v6456
        %v7041 = vunpack.c.l.b16 %v6457
        %v7042 = vunpack.c.l.b16 %v6458
        %v7043 = vunpack.c.l.b16 %v6459
        %v7044 = vunpack.c.l.b16 %v6460
        %v7045 = vunpack.c.l.b16 %v6461
        %v7046 = vunpack.c.l.b16 %v6462
        %v7047 = vunpack.c.l.b16 %v6463
        %v7048 = vunpack.c.h.b16 %v6456
        %v7049 = vunpack.c.h.b16 %v6457
        %v7050 = vunpack.c.h.b16 %v6458
        %v7051 = vunpack.c.h.b16 %v6459
        %v7052 = vunpack.c.h.b16 %v6460
        %v7053 = vunpack.c.h.b16 %v6461
        %v7054 = vunpack.c.h.b16 %v6462
        %v7055 = vunpack.c.h.b16 %v6463
        %v7056 = vunpack.c.l.b16 %v6464
        %v7057 = vunpack.c.l.b16 %v6465
        %v7058 = vunpack.c.l.b16 %v6466
        %v7059 = vunpack.c.l.b16 %v6467
        %v7060 = vunpack.c.l.b16 %v6468
        %v7061 = vunpack.c.l.b16 %v6469
        %v7062 = vunpack.c.l.b16 %v6470
        %v7063 = vunpack.c.l.b16 %v6471
        %v7064 = vunpack.c.h.b16 %v6464
        %v7065 = vunpack.c.h.b16 %v6465
        %v7066 = vunpack.c.h.b16 %v6466
        %v7067 = vunpack.c.h.b16 %v6467
        %v7068 = vunpack.c.h.b16 %v6468
        %v7069 = vunpack.c.h.b16 %v6469
        %v7070 = vunpack.c.h.b16 %v6470
        %v7071 = vunpack.c.h.b16 %v6471
        %v7072 = vunpack.c.l.b16 %v6472
        %v7073 = vunpack.c.l.b16 %v6473
        %v7074 = vunpack.c.l.b16 %v6474
        %v7075 = vunpack.c.l.b16 %v6475
        %v7076 = vunpack.c.l.b16 %v6476
        %v7077 = vunpack.c.l.b16 %v6477
        %v7078 = vunpack.c.l.b16 %v6478
        %v7079 = vunpack.c.l.b16 %v6479
        %v7080 = vunpack.c.h.b16 %v6472
        %v7081 = vunpack.c.h.b16 %v6473
        %v7082 = vunpack.c.h.b16 %v6474
        %v7083 = vunpack.c.h.b16 %v6475
        %v7084 = vunpack.c.h.b16 %v6476
        %v7085 = vunpack.c.h.b16 %v6477
        %v7086 = vunpack.c.h.b16 %v6478
        %v7087 = vunpack.c.h.b16 %v6479
        %v7088 = vunpack.c.l.b16 %v6480
        %v7089 = vunpack.c.l.b16 %v6481
        %v7090 = vunpack.c.l.b16 %v6482
        %v7091 = vunpack.c.l.b16 %v6483
        %v7092 = vunpack.c.l.b16 %v6484
        %v7093 = vunpack.c.l.b16 %v6485
        %v7094 = vunpack.c.l.b16 %v6486
        %v7095 = vunpack.c.l.b16 %v6487
        %v7096 = vunpack.c.h.b16 %v6480
        %v7097 = vunpack.c.h.b16 %v6481
        %v7098 = vunpack.c.h.b16 %v6482
        %v7099 = vunpack.c.h.b16 %v6483
        %v7100 = vunpack.c.h.b16 %v6484
        %v7101 = vunpack.c.h.b16 %v6485
        %v7102 = vunpack.c.h.b16 %v6486
        %v7103 = vunpack.c.h.b16 %v6487
        %v7104 = vunpack.c.l.b16 %v6488
        %v7105 = vunpack.c.l.b16 %v6489
        %v7106 = vunpack.c.l.b16 %v6490
        %v7107 = vunpack.c.l.b16 %v6491
        %v7108 = vunpack.c.l.b16 %v6492
        %v7109 = vunpack.c.l.b16 %v6493
        %v7110 = vunpack.c.l.b16 %v6494
        %v7111 = vunpack.c.l.b16 %v6495
        %v7112 = vunpack.c.h.b16 %v6488
        %v7113 = vunpack.c.h.b16 %v6489
        %v7114 = vunpack.c.h.b16 %v6490
        %v7115 = vunpack.c.h.b16 %v6491
        %v7116 = vunpack.c.h.b16 %v6492
        %v7117 = vunpack.c.h.b16 %v6493
        %v7118 = vunpack.c.h.b16 %v6494
        %v7119 = vunpack.c.h.b16 %v6495
        %v7120 = vunpack.c.l.b16 %v6496
        %v7121 = vunpack.c.l.b16 %v6497
        %v7122 = vunpack.c.l.b16 %v6498
        %v7123 = vunpack.c.l.b16 %v6499
        %v7124 = vunpack.c.l.b16 %v6500
        %v7125 = vunpack.c.l.b16 %v6501
        %v7126 = vunpack.c.l.b16 %v6502
        %v7127 = vunpack.c.l.b16 %v6503
        %v7128 = vunpack.c.h.b16 %v6496
        %v7129 = vunpack.c.h.b16 %v6497
        %v7130 = vunpack.c.h.b16 %v6498
        %v7131 = vunpack.c.h.b16 %v6499
        %v7132 = vunpack.c.h.b16 %v6500
        %v7133 = vunpack.c.h.b16 %v6501
        %v7134 = vunpack.c.h.b16 %v6502
        %v7135 = vunpack.c.h.b16 %v6503
        %v7136 = vunpack.c.l.b16 %v6504
        %v7137 = vunpack.c.l.b16 %v6505
        %v7138 = vunpack.c.l.b16 %v6506
        %v7139 = vunpack.c.l.b16 %v6507
        %v7140 = vunpack.c.l.b16 %v6508
        %v7141 = vunpack.c.l.b16 %v6509
        %v7142 = vunpack.c.l.b16 %v6510
        %v7143 = vunpack.c.l.b16 %v6511
        %v7144 = vunpack.c.h.b16 %v6504
        %v7145 = vunpack.c.h.b16 %v6505
        %v7146 = vunpack.c.h.b16 %v6506
        %v7147 = vunpack.c.h.b16 %v6507
        %v7148 = vunpack.c.h.b16 %v6508
        %v7149 = vunpack.c.h.b16 %v6509
        %v7150 = vunpack.c.h.b16 %v6510
        %v7151 = vunpack.c.h.b16 %v6511
        %v7152 = vunpack.c.l.b16 %v6512
        %v7153 = vunpack.c.l.b16 %v6513
        %v7154 = vunpack.c.l.b16 %v6514
        %v7155 = vunpack.c.l.b16 %v6515
        %v7156 = vunpack.c.l.b16 %v6516
        %v7157 = vunpack.c.l.b16 %v6517
        %v7158 = vunpack.c.l.b16 %v6518
        %v7159 = vunpack.c.l.b16 %v6519
        %v7160 = vunpack.c.h.b16 %v6512
        %v7161 = vunpack.c.h.b16 %v6513
        %v7162 = vunpack.c.h.b16 %v6514
        %v7163 = vunpack.c.h.b16 %v6515
        %v7164 = vunpack.c.h.b16 %v6516
        %v7165 = vunpack.c.h.b16 %v6517
        %v7166 = vunpack.c.h.b16 %v6518
        %v7167 = vunpack.c.h.b16 %v6519
        %v7168 = vunpack.c.l.b16 %v6520
        %v7169 = vunpack.c.l.b16 %v6521
        %v7170 = vunpack.c.l.b16 %v6522
        %v7171 = vunpack.c.l.b16 %v6523
        %v7172 = vunpack.c.l.b16 %v6524
        %v7173 = vunpack.c.l.b16 %v6525
        %v7174 = vunpack.c.l.b16 %v6526
        %v7175 = vunpack.c.l.b16 %v6527
        %v7176 = vunpack.c.h.b16 %v6520
        %v7177 = vunpack.c.h.b16 %v6521
        %v7178 = vunpack.c.h.b16 %v6522
        %v7179 = vunpack.c.h.b16 %v6523
        %v7180 = vunpack.c.h.b16 %v6524
        %v7181 = vunpack.c.h.b16 %v6525
        %v7182 = vunpack.c.h.b16 %v6526
        %v7183 = vunpack.c.h.b16 %v6527
        %v7184 = vunpack.c.l.b16 %v6528
        %v7185 = vunpack.c.l.b16 %v6529
        %v7186 = vunpack.c.l.b16 %v6530
        %v7187 = vunpack.c.l.b16 %v6531
        %v7188 = vunpack.c.l.b16 %v6532
        %v7189 = vunpack.c.l.b16 %v6533
        %v7190 = vunpack.c.l.b16 %v6534
        %v7191 = vunpack.c.l.b16 %v6535
        %v7192 = vunpack.c.h.b16 %v6528
        %v7193 = vunpack.c.h.b16 %v6529
        %v7194 = vunpack.c.h.b16 %v6530
        %v7195 = vunpack.c.h.b16 %v6531
        %v7196 = vunpack.c.h.b16 %v6532
        %v7197 = vunpack.c.h.b16 %v6533
        %v7198 = vunpack.c.h.b16 %v6534
        %v7199 = vunpack.c.h.b16 %v6535
        %v7200 = vunpack.c.l.b16 %v6536
        %v7201 = vunpack.c.l.b16 %v6537
        %v7202 = vunpack.c.l.b16 %v6538
        %v7203 = vunpack.c.l.b16 %v6539
        %v7204 = vunpack.c.l.b16 %v6540
        %v7205 = vunpack.c.l.b16 %v6541
        %v7206 = vunpack.c.l.b16 %v6542
        %v7207 = vunpack.c.l.b16 %v6543
        %v7208 = vunpack.c.h.b16 %v6536
        %v7209 = vunpack.c.h.b16 %v6537
        %v7210 = vunpack.c.h.b16 %v6538
        %v7211 = vunpack.c.h.b16 %v6539
        %v7212 = vunpack.c.h.b16 %v6540
        %v7213 = vunpack.c.h.b16 %v6541
        %v7214 = vunpack.c.h.b16 %v6542
        %v7215 = vunpack.c.h.b16 %v6543
        %v7216 = vunpack.c.l.b16 %v6544
        %v7217 = vunpack.c.l.b16 %v6545
        %v7218 = vunpack.c.l.b16 %v6546
        %v7219 = vunpack.c.l.b16 %v6547
        %v7220 = vunpack.c.l.b16 %v6548
        %v7221 = vunpack.c.l.b16 %v6549
        %v7222 = vunpack.c.l.b16 %v6550
        %v7223 = vunpack.c.l.b16 %v6551
        %v7224 = vunpack.c.h.b16 %v6544
        %v7225 = vunpack.c.h.b16 %v6545
        %v7226 = vunpack.c.h.b16 %v6546
        %v7227 = vunpack.c.h.b16 %v6547
        %v7228 = vunpack.c.h.b16 %v6548
        %v7229 = vunpack.c.h.b16 %v6549
        %v7230 = vunpack.c.h.b16 %v6550
        %v7231 = vunpack.c.h.b16 %v6551
        %v7232 = vunpack.c.l.b16 %v6552
        %v7233 = vunpack.c.l.b16 %v6553
        %v7234 = vunpack.c.l.b16 %v6554
        %v7235 = vunpack.c.l.b16 %v6555
        %v7236 = vunpack.c.l.b16 %v6556
        %v7237 = vunpack.c.l.b16 %v6557
        %v7238 = vunpack.c.l.b16 %v6558
        %v7239 = vunpack.c.l.b16 %v6559
        %v7240 = vunpack.c.h.b16 %v6552
        %v7241 = vunpack.c.h.b16 %v6553
        %v7242 = vunpack.c.h.b16 %v6554
        %v7243 = vunpack.c.h.b16 %v6555
        %v7244 = vunpack.c.h.b16 %v6556
        %v7245 = vunpack.c.h.b16 %v6557
        %v7246 = vunpack.c.h.b16 %v6558
        %v7247 = vunpack.c.h.b16 %v6559
        %v7248 = vunpack.c.l.b16 %v6560
        %v7249 = vunpack.c.l.b16 %v6561
        %v7250 = vunpack.c.l.b16 %v6562
        %v7251 = vunpack.c.l.b16 %v6563
        %v7252 = vunpack.c.l.b16 %v6564
        %v7253 = vunpack.c.l.b16 %v6565
        %v7254 = vunpack.c.l.b16 %v6566
        %v7255 = vunpack.c.l.b16 %v6567
        %v7256 = vunpack.c.h.b16 %v6560
        %v7257 = vunpack.c.h.b16 %v6561
        %v7258 = vunpack.c.h.b16 %v6562
        %v7259 = vunpack.c.h.b16 %v6563
        %v7260 = vunpack.c.h.b16 %v6564
        %v7261 = vunpack.c.h.b16 %v6565
        %v7262 = vunpack.c.h.b16 %v6566
        %v7263 = vunpack.c.h.b16 %v6567
        %v7264 = vunpack.c.l.b16 %v6568
        %v7265 = vunpack.c.l.b16 %v6569
        %v7266 = vunpack.c.l.b16 %v6570
        %v7267 = vunpack.c.l.b16 %v6571
        %v7268 = vunpack.c.l.b16 %v6572
        %v7269 = vunpack.c.l.b16 %v6573
        %v7270 = vunpack.c.l.b16 %v6574
        %v7271 = vunpack.c.l.b16 %v6575
        %v7272 = vunpack.c.h.b16 %v6568
        %v7273 = vunpack.c.h.b16 %v6569
        %v7274 = vunpack.c.h.b16 %v6570
        %v7275 = vunpack.c.h.b16 %v6571
        %v7276 = vunpack.c.h.b16 %v6572
        %v7277 = vunpack.c.h.b16 %v6573
        %v7278 = vunpack.c.h.b16 %v6574
        %v7279 = vunpack.c.h.b16 %v6575
        %v7280 = vunpack.c.l.b16 %v6576
        %v7281 = vunpack.c.l.b16 %v6577
        %v7282 = vunpack.c.l.b16 %v6578
        %v7283 = vunpack.c.l.b16 %v6579
        %v7284 = vunpack.c.l.b16 %v6580
        %v7285 = vunpack.c.l.b16 %v6581
        %v7286 = vunpack.c.l.b16 %v6582
        %v7287 = vunpack.c.l.b16 %v6583
        %v7288 = vunpack.c.h.b16 %v6576
        %v7289 = vunpack.c.h.b16 %v6577
        %v7290 = vunpack.c.h.b16 %v6578
        %v7291 = vunpack.c.h.b16 %v6579
        %v7292 = vunpack.c.h.b16 %v6580
        %v7293 = vunpack.c.h.b16 %v6581
        %v7294 = vunpack.c.h.b16 %v6582
        %v7295 = vunpack.c.h.b16 %v6583
        %v7296 = vunpack.c.l.b16 %v6584
        %v7297 = vunpack.c.l.b16 %v6585
        %v7298 = vunpack.c.l.b16 %v6586
        %v7299 = vunpack.c.l.b16 %v6587
        %v7300 = vunpack.c.l.b16 %v6588
        %v7301 = vunpack.c.l.b16 %v6589
        %v7302 = vunpack.c.l.b16 %v6590
        %v7303 = vunpack.c.l.b16 %v6591
        %v7304 = vunpack.c.h.b16 %v6584
        %v7305 = vunpack.c.h.b16 %v6585
        %v7306 = vunpack.c.h.b16 %v6586
        %v7307 = vunpack.c.h.b16 %v6587
        %v7308 = vunpack.c.h.b16 %v6588
        %v7309 = vunpack.c.h.b16 %v6589
        %v7310 = vunpack.c.h.b16 %v6590
        %v7311 = vunpack.c.h.b16 %v6591
        %v7312 = vunpack.c.l.b16 %v6592
        %v7313 = vunpack.c.l.b16 %v6593
        %v7314 = vunpack.c.l.b16 %v6594
        %v7315 = vunpack.c.l.b16 %v6595
        %v7316 = vunpack.c.l.b16 %v6596
        %v7317 = vunpack.c.l.b16 %v6597
        %v7318 = vunpack.c.l.b16 %v6598
        %v7319 = vunpack.c.l.b16 %v6599
        %v7320 = vunpack.c.h.b16 %v6592
        %v7321 = vunpack.c.h.b16 %v6593
        %v7322 = vunpack.c.h.b16 %v6594
        %v7323 = vunpack.c.h.b16 %v6595
        %v7324 = vunpack.c.h.b16 %v6596
        %v7325 = vunpack.c.h.b16 %v6597
        %v7326 = vunpack.c.h.b16 %v6598
        %v7327 = vunpack.c.h.b16 %v6599
        %v7328 = vunpack.c.l.b16 %v6600
        %v7329 = vunpack.c.l.b16 %v6601
        %v7330 = vunpack.c.l.b16 %v6602
        %v7331 = vunpack.c.l.b16 %v6603
        %v7332 = vunpack.c.l.b16 %v6604
        %v7333 = vunpack.c.l.b16 %v6605
        %v7334 = vunpack.c.l.b16 %v6606
        %v7335 = vunpack.c.l.b16 %v6607
        %v7336 = vunpack.c.h.b16 %v6600
        %v7337 = vunpack.c.h.b16 %v6601
        %v7338 = vunpack.c.h.b16 %v6602
        %v7339 = vunpack.c.h.b16 %v6603
        %v7340 = vunpack.c.h.b16 %v6604
        %v7341 = vunpack.c.h.b16 %v6605
        %v7342 = vunpack.c.h.b16 %v6606
        %v7343 = vunpack.c.h.b16 %v6607
        %v7344 = vunpack.c.l.b16 %v6608
        %v7345 = vunpack.c.l.b16 %v6609
        %v7346 = vunpack.c.l.b16 %v6610
        %v7347 = vunpack.c.l.b16 %v6611
        %v7348 = vunpack.c.l.b16 %v6612
        %v7349 = vunpack.c.l.b16 %v6613
        %v7350 = vunpack.c.l.b16 %v6614
        %v7351 = vunpack.c.l.b16 %v6615
        %v7352 = vunpack.c.h.b16 %v6608
        %v7353 = vunpack.c.h.b16 %v6609
        %v7354 = vunpack.c.h.b16 %v6610
        %v7355 = vunpack.c.h.b16 %v6611
        %v7356 = vunpack.c.h.b16 %v6612
        %v7357 = vunpack.c.h.b16 %v6613
        %v7358 = vunpack.c.h.b16 %v6614
        %v7359 = vunpack.c.h.b16 %v6615
        %v7360 = vunpack.c.l.b16 %v6616
        %v7361 = vunpack.c.l.b16 %v6617
        %v7362 = vunpack.c.l.b16 %v6618
        %v7363 = vunpack.c.l.b16 %v6619
        %v7364 = vunpack.c.l.b16 %v6620
        %v7365 = vunpack.c.l.b16 %v6621
        %v7366 = vunpack.c.l.b16 %v6622
        %v7367 = vunpack.c.l.b16 %v6623
        %v7368 = vunpack.c.h.b16 %v6616
        %v7369 = vunpack.c.h.b16 %v6617
        %v7370 = vunpack.c.h.b16 %v6618
        %v7371 = vunpack.c.h.b16 %v6619
        %v7372 = vunpack.c.h.b16 %v6620
        %v7373 = vunpack.c.h.b16 %v6621
        %v7374 = vunpack.c.h.b16 %v6622
        %v7375 = vunpack.c.h.b16 %v6623
        %v7376 = vunpack.c.l.b16 %v6624
        %v7377 = vunpack.c.l.b16 %v6625
        %v7378 = vunpack.c.l.b16 %v6626
        %v7379 = vunpack.c.l.b16 %v6627
        %v7380 = vunpack.c.l.b16 %v6628
        %v7381 = vunpack.c.l.b16 %v6629
        %v7382 = vunpack.c.l.b16 %v6630
        %v7383 = vunpack.c.l.b16 %v6631
        %v7384 = vunpack.c.h.b16 %v6624
        %v7385 = vunpack.c.h.b16 %v6625
        %v7386 = vunpack.c.h.b16 %v6626
        %v7387 = vunpack.c.h.b16 %v6627
        %v7388 = vunpack.c.h.b16 %v6628
        %v7389 = vunpack.c.h.b16 %v6629
        %v7390 = vunpack.c.h.b16 %v6630
        %v7391 = vunpack.c.h.b16 %v6631
        %v7392 = vunpack.c.l.b16 %v6632
        %v7393 = vunpack.c.l.b16 %v6633
        %v7394 = vunpack.c.l.b16 %v6634
        %v7395 = vunpack.c.l.b16 %v6635
        %v7396 = vunpack.c.l.b16 %v6636
        %v7397 = vunpack.c.l.b16 %v6637
        %v7398 = vunpack.c.l.b16 %v6638
        %v7399 = vunpack.c.l.b16 %v6639
        %v7400 = vunpack.c.h.b16 %v6632
        %v7401 = vunpack.c.h.b16 %v6633
        %v7402 = vunpack.c.h.b16 %v6634
        %v7403 = vunpack.c.h.b16 %v6635
        %v7404 = vunpack.c.h.b16 %v6636
        %v7405 = vunpack.c.h.b16 %v6637
        %v7406 = vunpack.c.h.b16 %v6638
        %v7407 = vunpack.c.h.b16 %v6639
        %v7408 = vpack.c.b16 %v6897, %v6896
        %v7409 = vpack.c.b16 %v6899, %v6898
        %v7410 = vpack.c.b16 %v6901, %v6900
        %v7411 = vpack.c.b16 %v6903, %v6902
        %v7412 = vpack.c.b16 %v6905, %v6904
        %v7413 = vpack.c.b16 %v6907, %v6906
        %v7414 = vpack.c.b16 %v6909, %v6908
        %v7415 = vpack.c.b16 %v6911, %v6910
        %v7416 = vpack.c.b16 %v6913, %v6912
        %v7417 = vpack.c.b16 %v6915, %v6914
        %v7418 = vpack.c.b16 %v6917, %v6916
        %v7419 = vpack.c.b16 %v6919, %v6918
        %v7420 = vpack.c.b16 %v6921, %v6920
        %v7421 = vpack.c.b16 %v6923, %v6922
        %v7422 = vpack.c.b16 %v6925, %v6924
        %v7423 = vpack.c.b16 %v6927, %v6926
        %v7424 = vpack.c.b16 %v6929, %v6928
        %v7425 = vpack.c.b16 %v6931, %v6930
        %v7426 = vpack.c.b16 %v6933, %v6932
        %v7427 = vpack.c.b16 %v6935, %v6934
        %v7428 = vpack.c.b16 %v6937, %v6936
        %v7429 = vpack.c.b16 %v6939, %v6938
        %v7430 = vpack.c.b16 %v6941, %v6940
        %v7431 = vpack.c.b16 %v6943, %v6942
        %v7432 = vpack.c.b16 %v6945, %v6944
        %v7433 = vpack.c.b16 %v6947, %v6946
        %v7434 = vpack.c.b16 %v6949, %v6948
        %v7435 = vpack.c.b16 %v6951, %v6950
        %v7436 = vpack.c.b16 %v6953, %v6952
        %v7437 = vpack.c.b16 %v6955, %v6954
        %v7438 = vpack.c.b16 %v6957, %v6956
        %v7439 = vpack.c.b16 %v6959, %v6958
        %v7440 = vpack.c.b16 %v6961, %v6960
        %v7441 = vpack.c.b16 %v6963, %v6962
        %v7442 = vpack.c.b16 %v6965, %v6964
        %v7443 = vpack.c.b16 %v6967, %v6966
        %v7444 = vpack.c.b16 %v6969, %v6968
        %v7445 = vpack.c.b16 %v6971, %v6970
        %v7446 = vpack.c.b16 %v6973, %v6972
        %v7447 = vpack.c.b16 %v6975, %v6974
        %v7448 = vpack.c.b16 %v6977, %v6976
        %v7449 = vpack.c.b16 %v6979, %v6978
        %v7450 = vpack.c.b16 %v6981, %v6980
        %v7451 = vpack.c.b16 %v6983, %v6982
        %v7452 = vpack.c.b16 %v6985, %v6984
        %v7453 = vpack.c.b16 %v6987, %v6986
        %v7454 = vpack.c.b16 %v6989, %v6988
        %v7455 = vpack.c.b16 %v6991, %v6990
        %v7456 = vpack.c.b16 %v6993, %v6992
        %v7457 = vpack.c.b16 %v6995, %v6994
        %v7458 = vpack.c.b16 %v6997, %v6996
        %v7459 = vpack.c.b16 %v6999, %v6998
        %v7460 = vpack.c.b16 %v7001, %v7000
        %v7461 = vpack.c.b16 %v7003, %v7002
        %v7462 = vpack.c.b16 %v7005, %v7004
        %v7463 = vpack.c.b16 %v7007, %v7006
        %v7464 = vpack.c.b16 %v7009, %v7008
        %v7465 = vpack.c.b16 %v7011, %v7010
        %v7466 = vpack.c.b16 %v7013, %v7012
        %v7467 = vpack.c.b16 %v7015, %v7014
        %v7468 = vpack.c.b16 %v7017, %v7016
        %v7469 = vpack.c.b16 %v7019, %v7018
        %v7470 = vpack.c.b16 %v7021, %v7020
        %v7471 = vpack.c.b16 %v7023, %v7022
        %v7472 = vpack.c.b16 %v7025, %v7024
        %v7473 = vpack.c.b16 %v7027, %v7026
        %v7474 = vpack.c.b16 %v7029, %v7028
        %v7475 = vpack.c.b16 %v7031, %v7030
        %v7476 = vpack.c.b16 %v7033, %v7032
        %v7477 = vpack.c.b16 %v7035, %v7034
        %v7478 = vpack.c.b16 %v7037, %v7036
        %v7479 = vpack.c.b16 %v7039, %v7038
        %v7480 = vpack.c.b16 %v7041, %v7040
        %v7481 = vpack.c.b16 %v7043, %v7042
        %v7482 = vpack.c.b16 %v7045, %v7044
        %v7483 = vpack.c.b16 %v7047, %v7046
        %v7484 = vpack.c.b16 %v7049, %v7048
        %v7485 = vpack.c.b16 %v7051, %v7050
        %v7486 = vpack.c.b16 %v7053, %v7052
        %v7487 = vpack.c.b16 %v7055, %v7054
        %v7488 = vpack.c.b16 %v7057, %v7056
        %v7489 = vpack.c.b16 %v7059, %v7058
        %v7490 = vpack.c.b16 %v7061, %v7060
        %v7491 = vpack.c.b16 %v7063, %v7062
        %v7492 = vpack.c.b16 %v7065, %v7064
        %v7493 = vpack.c.b16 %v7067, %v7066
        %v7494 = vpack.c.b16 %v7069, %v7068
        %v7495 = vpack.c.b16 %v7071, %v7070
        %v7496 = vpack.c.b16 %v7073, %v7072
        %v7497 = vpack.c.b16 %v7075, %v7074
        %v7498 = vpack.c.b16 %v7077, %v7076
        %v7499 = vpack.c.b16 %v7079, %v7078
        %v7500 = vpack.c.b16 %v7081, %v7080
        %v7501 = vpack.c.b16 %v7083, %v7082
        %v7502 = vpack.c.b16 %v7085, %v7084
        %v7503 = vpack.c.b16 %v7087, %v7086
        %v7504 = vpack.c.b16 %v7089, %v7088
        %v7505 = vpack.c.b16 %v7091, %v7090
        %v7506 = vpack.c.b16 %v7093, %v7092
        %v7507 = vpack.c.b16 %v7095, %v7094
        %v7508 = vpack.c.b16 %v7097, %v7096
        %v7509 = vpack.c.b16 %v7099, %v7098
        %v7510 = vpack.c.b16 %v7101, %v7100
        %v7511 = vpack.c.b16 %v7103, %v7102
        %v7512 = vpack.c.b16 %v7105, %v7104
        %v7513 = vpack.c.b16 %v7107, %v7106
        %v7514 = vpack.c.b16 %v7109, %v7108
        %v7515 = vpack.c.b16 %v7111, %v7110
        %v7516 = vpack.c.b16 %v7113, %v7112
        %v7517 = vpack.c.b16 %v7115, %v7114
        %v7518 = vpack.c.b16 %v7117, %v7116
        %v7519 = vpack.c.b16 %v7119, %v7118
        %v7520 = vpack.c.b16 %v7121, %v7120
        %v7521 = vpack.c.b16 %v7123, %v7122
        %v7522 = vpack.c.b16 %v7125, %v7124
        %v7523 = vpack.c.b16 %v7127, %v7126
        %v7524 = vpack.c.b16 %v7129, %v7128
        %v7525 = vpack.c.b16 %v7131, %v7130
        %v7526 = vpack.c.b16 %v7133, %v7132
        %v7527 = vpack.c.b16 %v7135, %v7134
        %v7528 = vpack.c.b16 %v7137, %v7136
        %v7529 = vpack.c.b16 %v7139, %v7138
        %v7530 = vpack.c.b16 %v7141, %v7140
        %v7531 = vpack.c.b16 %v7143, %v7142
        %v7532 = vpack.c.b16 %v7145, %v7144
        %v7533 = vpack.c.b16 %v7147, %v7146
        %v7534 = vpack.c.b16 %v7149, %v7148
        %v7535 = vpack.c.b16 %v7151, %v7150
        %v7536 = vpack.c.b16 %v7153, %v7152
        %v7537 = vpack.c.b16 %v7155, %v7154
        %v7538 = vpack.c.b16 %v7157, %v7156
        %v7539 = vpack.c.b16 %v7159, %v7158
        %v7540 = vpack.c.b16 %v7161, %v7160
        %v7541 = vpack.c.b16 %v7163, %v7162
        %v7542 = vpack.c.b16 %v7165, %v7164
        %v7543 = vpack.c.b16 %v7167, %v7166
        %v7544 = vpack.c.b16 %v7169, %v7168
        %v7545 = vpack.c.b16 %v7171, %v7170
        %v7546 = vpack.c.b16 %v7173, %v7172
        %v7547 = vpack.c.b16 %v7175, %v7174
        %v7548 = vpack.c.b16 %v7177, %v7176
        %v7549 = vpack.c.b16 %v7179, %v7178
        %v7550 = vpack.c.b16 %v7181, %v7180
        %v7551 = vpack.c.b16 %v7183, %v7182
        %v7552 = vpack.c.b16 %v7185, %v7184
        %v7553 = vpack.c.b16 %v7187, %v7186
        %v7554 = vpack.c.b16 %v7189, %v7188
        %v7555 = vpack.c.b16 %v7191, %v7190
        %v7556 = vpack.c.b16 %v7193, %v7192
        %v7557 = vpack.c.b16 %v7195, %v7194
        %v7558 = vpack.c.b16 %v7197, %v7196
        %v7559 = vpack.c.b16 %v7199, %v7198
        %v7560 = vpack.c.b16 %v7201, %v7200
        %v7561 = vpack.c.b16 %v7203, %v7202
        %v7562 = vpack.c.b16 %v7205, %v7204
        %v7563 = vpack.c.b16 %v7207, %v7206
        %v7564 = vpack.c.b16 %v7209, %v7208
        %v7565 = vpack.c.b16 %v7211, %v7210
        %v7566 = vpack.c.b16 %v7213, %v7212
        %v7567 = vpack.c.b16 %v7215, %v7214
        %v7568 = vpack.c.b16 %v7217, %v7216
        %v7569 = vpack.c.b16 %v7219, %v7218
        %v7570 = vpack.c.b16 %v7221, %v7220
        %v7571 = vpack.c.b16 %v7223, %v7222
        %v7572 = vpack.c.b16 %v7225, %v7224
        %v7573 = vpack.c.b16 %v7227, %v7226
        %v7574 = vpack.c.b16 %v7229, %v7228
        %v7575 = vpack.c.b16 %v7231, %v7230
        %v7576 = vpack.c.b16 %v7233, %v7232
        %v7577 = vpack.c.b16 %v7235, %v7234
        %v7578 = vpack.c.b16 %v7237, %v7236
        %v7579 = vpack.c.b16 %v7239, %v7238
        %v7580 = vpack.c.b16 %v7241, %v7240
        %v7581 = vpack.c.b16 %v7243, %v7242
        %v7582 = vpack.c.b16 %v7245, %v7244
        %v7583 = vpack.c.b16 %v7247, %v7246
        %v7584 = vpack.c.b16 %v7249, %v7248
        %v7585 = vpack.c.b16 %v7251, %v7250
        %v7586 = vpack.c.b16 %v7253, %v7252
        %v7587 = vpack.c.b16 %v7255, %v7254
        %v7588 = vpack.c.b16 %v7257, %v7256
        %v7589 = vpack.c.b16 %v7259, %v7258
        %v7590 = vpack.c.b16 %v7261, %v7260
        %v7591 = vpack.c.b16 %v7263, %v7262
        %v7592 = vpack.c.b16 %v7265, %v7264
        %v7593 = vpack.c.b16 %v7267, %v7266
        %v7594 = vpack.c.b16 %v7269, %v7268
        %v7595 = vpack.c.b16 %v7271, %v7270
        %v7596 = vpack.c.b16 %v7273, %v7272
        %v7597 = vpack.c.b16 %v7275, %v7274
        %v7598 = vpack.c.b16 %v7277, %v7276
        %v7599 = vpack.c.b16 %v7279, %v7278
        %v7600 = vpack.c.b16 %v7281, %v7280
        %v7601 = vpack.c.b16 %v7283, %v7282
        %v7602 = vpack.c.b16 %v7285, %v7284
        %v7603 = vpack.c.b16 %v7287, %v7286
        %v7604 = vpack.c.b16 %v7289, %v7288
        %v7605 = vpack.c.b16 %v7291, %v7290
        %v7606 = vpack.c.b16 %v7293, %v7292
        %v7607 = vpack.c.b16 %v7295, %v7294
        %v7608 = vpack.c.b16 %v7297, %v7296
        %v7609 = vpack.c.b16 %v7299, %v7298
        %v7610 = vpack.c.b16 %v7301, %v7300
        %v7611 = vpack.c.b16 %v7303, %v7302
        %v7612 = vpack.c.b16 %v7305, %v7304
        %v7613 = vpack.c.b16 %v7307, %v7306
        %v7614 = vpack.c.b16 %v7309, %v7308
        %v7615 = vpack.c.b16 %v7311, %v7310
        %v7616 = vpack.c.b16 %v7313, %v7312
        %v7617 = vpack.c.b16 %v7315, %v7314
        %v7618 = vpack.c.b16 %v7317, %v7316
        %v7619 = vpack.c.b16 %v7319, %v7318
        %v7620 = vpack.c.b16 %v7321, %v7320
        %v7621 = vpack.c.b16 %v7323, %v7322
        %v7622 = vpack.c.b16 %v7325, %v7324
        %v7623 = vpack.c.b16 %v7327, %v7326
        %v7624 = vpack.c.b16 %v7329, %v7328
        %v7625 = vpack.c.b16 %v7331, %v7330
        %v7626 = vpack.c.b16 %v7333, %v7332
        %v7627 = vpack.c.b16 %v7335, %v7334
        %v7628 = vpack.c.b16 %v7337, %v7336
        %v7629 = vpack.c.b16 %v7339, %v7338
        %v7630 = vpack.c.b16 %v7341, %v7340
        %v7631 = vpack.c.b16 %v7343, %v7342
        %v7632 = vpack.c.b16 %v7345, %v7344
        %v7633 = vpack.c.b16 %v7347, %v7346
        %v7634 = vpack.c.b16 %v7349, %v7348
        %v7635 = vpack.c.b16 %v7351, %v7350
        %v7636 = vpack.c.b16 %v7353, %v7352
        %v7637 = vpack.c.b16 %v7355, %v7354
        %v7638 = vpack.c.b16 %v7357, %v7356
        %v7639 = vpack.c.b16 %v7359, %v7358
        %v7640 = vpack.c.b16 %v7361, %v7360
        %v7641 = vpack.c.b16 %v7363, %v7362
        %v7642 = vpack.c.b16 %v7365, %v7364
        %v7643 = vpack.c.b16 %v7367, %v7366
        %v7644 = vpack.c.b16 %v7369, %v7368
        %v7645 = vpack.c.b16 %v7371, %v7370
        %v7646 = vpack.c.b16 %v7373, %v7372
        %v7647 = vpack.c.b16 %v7375, %v7374
        %v7648 = vpack.c.b16 %v7377, %v7376
        %v7649 = vpack.c.b16 %v7379, %v7378
        %v7650 = vpack.c.b16 %v7381, %v7380
        %v7651 = vpack.c.b16 %v7383, %v7382
        %v7652 = vpack.c.b16 %v7385, %v7384
        %v7653 = vpack.c.b16 %v7387, %v7386
        %v7654 = vpack.c.b16 %v7389, %v7388
        %v7655 = vpack.c.b16 %v7391, %v7390
        %v7656 = vpack.c.b16 %v7393, %v7392
        %v7657 = vpack.c.b16 %v7395, %v7394
        %v7658 = vpack.c.b16 %v7397, %v7396
        %v7659 = vpack.c.b16 %v7399, %v7398
        %v7660 = vpack.c.b16 %v7401, %v7400
        %v7661 = vpack.c.b16 %v7403, %v7402
        %v7662 = vpack.c.b16 %v7405, %v7404
        %v7663 = vpack.c.b16 %v7407, %v7406
        %7920 = vst [vmem:[%s407] sm:$0xff] %v7408
        %7921 = vst [vmem:[%s407 + $0x8] sm:$0xff] %v7409
        %7922 = vst [vmem:[%s407 + $0x10] sm:$0xff] %v7410
        %7923 = vst [vmem:[%s407 + $0x18] sm:$0xff] %v7411
        %7924 = vst [vmem:[%s407 + $0x20] sm:$0xff] %v7412
        %7925 = vst [vmem:[%s407 + $0x28] sm:$0xff] %v7413
        %7926 = vst [vmem:[%s407 + $0x30] sm:$0xff] %v7414
        %7927 = vst [vmem:[%s407 + $0x38] sm:$0xff] %v7415
        %7928 = vst [vmem:[%s407 + $0x40] sm:$0xff] %v7416
        %7929 = vst [vmem:[%s407 + $0x48] sm:$0xff] %v7417
        %7930 = vst [vmem:[%s407 + $0x50] sm:$0xff] %v7418
        %7931 = vst [vmem:[%s407 + $0x58] sm:$0xff] %v7419
        %7932 = vst [vmem:[%s407 + $0x60] sm:$0xff] %v7420
        %7933 = vst [vmem:[%s407 + $0x68] sm:$0xff] %v7421
        %7934 = vst [vmem:[%s407 + $0x70] sm:$0xff] %v7422
        %7935 = vst [vmem:[%s407 + $0x78] sm:$0xff] %v7423
        %7936 = vst [vmem:[%s407 + $0x80] sm:$0xff] %v7424
        %7937 = vst [vmem:[%s407 + $0x88] sm:$0xff] %v7425
        %7938 = vst [vmem:[%s407 + $0x90] sm:$0xff] %v7426
        %7939 = vst [vmem:[%s407 + $0x98] sm:$0xff] %v7427
        %7940 = vst [vmem:[%s407 + $0xa0] sm:$0xff] %v7428
        %7941 = vst [vmem:[%s407 + $0xa8] sm:$0xff] %v7429
        %7942 = vst [vmem:[%s407 + $0xb0] sm:$0xff] %v7430
        %7943 = vst [vmem:[%s407 + $0xb8] sm:$0xff] %v7431
        %7944 = vst [vmem:[%s407 + $0xc0] sm:$0xff] %v7432
        %7945 = vst [vmem:[%s407 + $0xc8] sm:$0xff] %v7433
        %7946 = vst [vmem:[%s407 + $0xd0] sm:$0xff] %v7434
        %7947 = vst [vmem:[%s407 + $0xd8] sm:$0xff] %v7435
        %7948 = vst [vmem:[%s407 + $0xe0] sm:$0xff] %v7436
        %7949 = vst [vmem:[%s407 + $0xe8] sm:$0xff] %v7437
        %7950 = vst [vmem:[%s407 + $0xf0] sm:$0xff] %v7438
        %7951 = vst [vmem:[%s407 + $0xf8] sm:$0xff] %v7439
        %7952 = vst [vmem:[%s407 + $0x100] sm:$0xff] %v7440
        %7953 = vst [vmem:[%s407 + $0x108] sm:$0xff] %v7441
        %7954 = vst [vmem:[%s407 + $0x110] sm:$0xff] %v7442
        %7955 = vst [vmem:[%s407 + $0x118] sm:$0xff] %v7443
        %7956 = vst [vmem:[%s407 + $0x120] sm:$0xff] %v7444
        %7957 = vst [vmem:[%s407 + $0x128] sm:$0xff] %v7445
        %7958 = vst [vmem:[%s407 + $0x130] sm:$0xff] %v7446
        %7959 = vst [vmem:[%s407 + $0x138] sm:$0xff] %v7447
        %7960 = vst [vmem:[%s407 + $0x140] sm:$0xff] %v7448
        %7961 = vst [vmem:[%s407 + $0x148] sm:$0xff] %v7449
        %7962 = vst [vmem:[%s407 + $0x150] sm:$0xff] %v7450
        %7963 = vst [vmem:[%s407 + $0x158] sm:$0xff] %v7451
        %7964 = vst [vmem:[%s407 + $0x160] sm:$0xff] %v7452
        %7965 = vst [vmem:[%s407 + $0x168] sm:$0xff] %v7453
        %7966 = vst [vmem:[%s407 + $0x170] sm:$0xff] %v7454
        %7967 = vst [vmem:[%s407 + $0x178] sm:$0xff] %v7455
        %7968 = vst [vmem:[%s407 + $0x180] sm:$0xff] %v7456
        %7969 = vst [vmem:[%s407 + $0x188] sm:$0xff] %v7457
        %7970 = vst [vmem:[%s407 + $0x190] sm:$0xff] %v7458
        %7971 = vst [vmem:[%s407 + $0x198] sm:$0xff] %v7459
        %7972 = vst [vmem:[%s407 + $0x1a0] sm:$0xff] %v7460
        %7973 = vst [vmem:[%s407 + $0x1a8] sm:$0xff] %v7461
        %7974 = vst [vmem:[%s407 + $0x1b0] sm:$0xff] %v7462
        %7975 = vst [vmem:[%s407 + $0x1b8] sm:$0xff] %v7463
        %7976 = vst [vmem:[%s407 + $0x1c0] sm:$0xff] %v7464
        %7977 = vst [vmem:[%s407 + $0x1c8] sm:$0xff] %v7465
        %7978 = vst [vmem:[%s407 + $0x1d0] sm:$0xff] %v7466
        %7979 = vst [vmem:[%s407 + $0x1d8] sm:$0xff] %v7467
        %7980 = vst [vmem:[%s407 + $0x1e0] sm:$0xff] %v7468
        %7981 = vst [vmem:[%s407 + $0x1e8] sm:$0xff] %v7469
        %7982 = vst [vmem:[%s407 + $0x1f0] sm:$0xff] %v7470
        %7983 = vst [vmem:[%s407 + $0x1f8] sm:$0xff] %v7471
        %7984 = vst [vmem:[%s407 + $0x200] sm:$0xff] %v7472
        %7985 = vst [vmem:[%s407 + $0x208] sm:$0xff] %v7473
        %7986 = vst [vmem:[%s407 + $0x210] sm:$0xff] %v7474
        %7987 = vst [vmem:[%s407 + $0x218] sm:$0xff] %v7475
        %7988 = vst [vmem:[%s407 + $0x220] sm:$0xff] %v7476
        %7989 = vst [vmem:[%s407 + $0x228] sm:$0xff] %v7477
        %7990 = vst [vmem:[%s407 + $0x230] sm:$0xff] %v7478
        %7991 = vst [vmem:[%s407 + $0x238] sm:$0xff] %v7479
        %7992 = vst [vmem:[%s407 + $0x240] sm:$0xff] %v7480
        %7993 = vst [vmem:[%s407 + $0x248] sm:$0xff] %v7481
        %7994 = vst [vmem:[%s407 + $0x250] sm:$0xff] %v7482
        %7995 = vst [vmem:[%s407 + $0x258] sm:$0xff] %v7483
        %7996 = vst [vmem:[%s407 + $0x260] sm:$0xff] %v7484
        %7997 = vst [vmem:[%s407 + $0x268] sm:$0xff] %v7485
        %7998 = vst [vmem:[%s407 + $0x270] sm:$0xff] %v7486
        %7999 = vst [vmem:[%s407 + $0x278] sm:$0xff] %v7487
        %8000 = vst [vmem:[%s407 + $0x280] sm:$0xff] %v7488
        %8001 = vst [vmem:[%s407 + $0x288] sm:$0xff] %v7489
        %8002 = vst [vmem:[%s407 + $0x290] sm:$0xff] %v7490
        %8003 = vst [vmem:[%s407 + $0x298] sm:$0xff] %v7491
        %8004 = vst [vmem:[%s407 + $0x2a0] sm:$0xff] %v7492
        %8005 = vst [vmem:[%s407 + $0x2a8] sm:$0xff] %v7493
        %8006 = vst [vmem:[%s407 + $0x2b0] sm:$0xff] %v7494
        %8007 = vst [vmem:[%s407 + $0x2b8] sm:$0xff] %v7495
        %8008 = vst [vmem:[%s407 + $0x2c0] sm:$0xff] %v7496
        %8009 = vst [vmem:[%s407 + $0x2c8] sm:$0xff] %v7497
        %8010 = vst [vmem:[%s407 + $0x2d0] sm:$0xff] %v7498
        %8011 = vst [vmem:[%s407 + $0x2d8] sm:$0xff] %v7499
        %8012 = vst [vmem:[%s407 + $0x2e0] sm:$0xff] %v7500
        %8013 = vst [vmem:[%s407 + $0x2e8] sm:$0xff] %v7501
        %8014 = vst [vmem:[%s407 + $0x2f0] sm:$0xff] %v7502
        %8015 = vst [vmem:[%s407 + $0x2f8] sm:$0xff] %v7503
        %8016 = vst [vmem:[%s407 + $0x300] sm:$0xff] %v7504
        %8017 = vst [vmem:[%s407 + $0x308] sm:$0xff] %v7505
        %8018 = vst [vmem:[%s407 + $0x310] sm:$0xff] %v7506
        %8019 = vst [vmem:[%s407 + $0x318] sm:$0xff] %v7507
        %8020 = vst [vmem:[%s407 + $0x320] sm:$0xff] %v7508
        %8021 = vst [vmem:[%s407 + $0x328] sm:$0xff] %v7509
        %8022 = vst [vmem:[%s407 + $0x330] sm:$0xff] %v7510
        %8023 = vst [vmem:[%s407 + $0x338] sm:$0xff] %v7511
        %8024 = vst [vmem:[%s407 + $0x340] sm:$0xff] %v7512
        %8025 = vst [vmem:[%s407 + $0x348] sm:$0xff] %v7513
        %8026 = vst [vmem:[%s407 + $0x350] sm:$0xff] %v7514
        %8027 = vst [vmem:[%s407 + $0x358] sm:$0xff] %v7515
        %8028 = vst [vmem:[%s407 + $0x360] sm:$0xff] %v7516
        %8029 = vst [vmem:[%s407 + $0x368] sm:$0xff] %v7517
        %8030 = vst [vmem:[%s407 + $0x370] sm:$0xff] %v7518
        %8031 = vst [vmem:[%s407 + $0x378] sm:$0xff] %v7519
        %8032 = vst [vmem:[%s407 + $0x380] sm:$0xff] %v7520
        %8033 = vst [vmem:[%s407 + $0x388] sm:$0xff] %v7521
        %8034 = vst [vmem:[%s407 + $0x390] sm:$0xff] %v7522
        %8035 = vst [vmem:[%s407 + $0x398] sm:$0xff] %v7523
        %8036 = vst [vmem:[%s407 + $0x3a0] sm:$0xff] %v7524
        %8037 = vst [vmem:[%s407 + $0x3a8] sm:$0xff] %v7525
        %8038 = vst [vmem:[%s407 + $0x3b0] sm:$0xff] %v7526
        %8039 = vst [vmem:[%s407 + $0x3b8] sm:$0xff] %v7527
        %8040 = vst [vmem:[%s407 + $0x3c0] sm:$0xff] %v7528
        %8041 = vst [vmem:[%s407 + $0x3c8] sm:$0xff] %v7529
        %8042 = vst [vmem:[%s407 + $0x3d0] sm:$0xff] %v7530
        %8043 = vst [vmem:[%s407 + $0x3d8] sm:$0xff] %v7531
        %8044 = vst [vmem:[%s407 + $0x3e0] sm:$0xff] %v7532
        %8045 = vst [vmem:[%s407 + $0x3e8] sm:$0xff] %v7533
        %8046 = vst [vmem:[%s407 + $0x3f0] sm:$0xff] %v7534
        %8047 = vst [vmem:[%s407 + $0x3f8] sm:$0xff] %v7535
        %8048 = vst [vmem:[%s407 + $0x400] sm:$0xff] %v7536
        %8049 = vst [vmem:[%s407 + $0x408] sm:$0xff] %v7537
        %8050 = vst [vmem:[%s407 + $0x410] sm:$0xff] %v7538
        %8051 = vst [vmem:[%s407 + $0x418] sm:$0xff] %v7539
        %8052 = vst [vmem:[%s407 + $0x420] sm:$0xff] %v7540
        %8053 = vst [vmem:[%s407 + $0x428] sm:$0xff] %v7541
        %8054 = vst [vmem:[%s407 + $0x430] sm:$0xff] %v7542
        %8055 = vst [vmem:[%s407 + $0x438] sm:$0xff] %v7543
        %8056 = vst [vmem:[%s407 + $0x440] sm:$0xff] %v7544
        %8057 = vst [vmem:[%s407 + $0x448] sm:$0xff] %v7545
        %8058 = vst [vmem:[%s407 + $0x450] sm:$0xff] %v7546
        %8059 = vst [vmem:[%s407 + $0x458] sm:$0xff] %v7547
        %8060 = vst [vmem:[%s407 + $0x460] sm:$0xff] %v7548
        %8061 = vst [vmem:[%s407 + $0x468] sm:$0xff] %v7549
        %8062 = vst [vmem:[%s407 + $0x470] sm:$0xff] %v7550
        %8063 = vst [vmem:[%s407 + $0x478] sm:$0xff] %v7551
        %8064 = vst [vmem:[%s407 + $0x480] sm:$0xff] %v7552
        %8065 = vst [vmem:[%s407 + $0x488] sm:$0xff] %v7553
        %8066 = vst [vmem:[%s407 + $0x490] sm:$0xff] %v7554
        %8067 = vst [vmem:[%s407 + $0x498] sm:$0xff] %v7555
        %8068 = vst [vmem:[%s407 + $0x4a0] sm:$0xff] %v7556
        %8069 = vst [vmem:[%s407 + $0x4a8] sm:$0xff] %v7557
        %8070 = vst [vmem:[%s407 + $0x4b0] sm:$0xff] %v7558
        %8071 = vst [vmem:[%s407 + $0x4b8] sm:$0xff] %v7559
        %8072 = vst [vmem:[%s407 + $0x4c0] sm:$0xff] %v7560
        %8073 = vst [vmem:[%s407 + $0x4c8] sm:$0xff] %v7561
        %8074 = vst [vmem:[%s407 + $0x4d0] sm:$0xff] %v7562
        %8075 = vst [vmem:[%s407 + $0x4d8] sm:$0xff] %v7563
        %8076 = vst [vmem:[%s407 + $0x4e0] sm:$0xff] %v7564
        %8077 = vst [vmem:[%s407 + $0x4e8] sm:$0xff] %v7565
        %8078 = vst [vmem:[%s407 + $0x4f0] sm:$0xff] %v7566
        %8079 = vst [vmem:[%s407 + $0x4f8] sm:$0xff] %v7567
        %8080 = vst [vmem:[%s407 + $0x500] sm:$0xff] %v7568
        %8081 = vst [vmem:[%s407 + $0x508] sm:$0xff] %v7569
        %8082 = vst [vmem:[%s407 + $0x510] sm:$0xff] %v7570
        %8083 = vst [vmem:[%s407 + $0x518] sm:$0xff] %v7571
        %8084 = vst [vmem:[%s407 + $0x520] sm:$0xff] %v7572
        %8085 = vst [vmem:[%s407 + $0x528] sm:$0xff] %v7573
        %8086 = vst [vmem:[%s407 + $0x530] sm:$0xff] %v7574
        %8087 = vst [vmem:[%s407 + $0x538] sm:$0xff] %v7575
        %8088 = vst [vmem:[%s407 + $0x540] sm:$0xff] %v7576
        %8089 = vst [vmem:[%s407 + $0x548] sm:$0xff] %v7577
        %8090 = vst [vmem:[%s407 + $0x550] sm:$0xff] %v7578
        %8091 = vst [vmem:[%s407 + $0x558] sm:$0xff] %v7579
        %8092 = vst [vmem:[%s407 + $0x560] sm:$0xff] %v7580
        %8093 = vst [vmem:[%s407 + $0x568] sm:$0xff] %v7581
        %8094 = vst [vmem:[%s407 + $0x570] sm:$0xff] %v7582
        %8095 = vst [vmem:[%s407 + $0x578] sm:$0xff] %v7583
        %8096 = vst [vmem:[%s407 + $0x580] sm:$0xff] %v7584
        %8097 = vst [vmem:[%s407 + $0x588] sm:$0xff] %v7585
        %8098 = vst [vmem:[%s407 + $0x590] sm:$0xff] %v7586
        %8099 = vst [vmem:[%s407 + $0x598] sm:$0xff] %v7587
        %8100 = vst [vmem:[%s407 + $0x5a0] sm:$0xff] %v7588
        %8101 = vst [vmem:[%s407 + $0x5a8] sm:$0xff] %v7589
        %8102 = vst [vmem:[%s407 + $0x5b0] sm:$0xff] %v7590
        %8103 = vst [vmem:[%s407 + $0x5b8] sm:$0xff] %v7591
        %8104 = vst [vmem:[%s407 + $0x5c0] sm:$0xff] %v7592
        %8105 = vst [vmem:[%s407 + $0x5c8] sm:$0xff] %v7593
        %8106 = vst [vmem:[%s407 + $0x5d0] sm:$0xff] %v7594
        %8107 = vst [vmem:[%s407 + $0x5d8] sm:$0xff] %v7595
        %8108 = vst [vmem:[%s407 + $0x5e0] sm:$0xff] %v7596
        %8109 = vst [vmem:[%s407 + $0x5e8] sm:$0xff] %v7597
        %8110 = vst [vmem:[%s407 + $0x5f0] sm:$0xff] %v7598
        %8111 = vst [vmem:[%s407 + $0x5f8] sm:$0xff] %v7599
        %8112 = vst [vmem:[%s407 + $0x600] sm:$0xff] %v7600
        %8113 = vst [vmem:[%s407 + $0x608] sm:$0xff] %v7601
        %8114 = vst [vmem:[%s407 + $0x610] sm:$0xff] %v7602
        %8115 = vst [vmem:[%s407 + $0x618] sm:$0xff] %v7603
        %8116 = vst [vmem:[%s407 + $0x620] sm:$0xff] %v7604
        %8117 = vst [vmem:[%s407 + $0x628] sm:$0xff] %v7605
        %8118 = vst [vmem:[%s407 + $0x630] sm:$0xff] %v7606
        %8119 = vst [vmem:[%s407 + $0x638] sm:$0xff] %v7607
        %8120 = vst [vmem:[%s407 + $0x640] sm:$0xff] %v7608
        %8121 = vst [vmem:[%s407 + $0x648] sm:$0xff] %v7609
        %8122 = vst [vmem:[%s407 + $0x650] sm:$0xff] %v7610
        %8123 = vst [vmem:[%s407 + $0x658] sm:$0xff] %v7611
        %8124 = vst [vmem:[%s407 + $0x660] sm:$0xff] %v7612
        %8125 = vst [vmem:[%s407 + $0x668] sm:$0xff] %v7613
        %8126 = vst [vmem:[%s407 + $0x670] sm:$0xff] %v7614
        %8127 = vst [vmem:[%s407 + $0x678] sm:$0xff] %v7615
        %8128 = vst [vmem:[%s407 + $0x680] sm:$0xff] %v7616
        %8129 = vst [vmem:[%s407 + $0x688] sm:$0xff] %v7617
        %8130 = vst [vmem:[%s407 + $0x690] sm:$0xff] %v7618
        %8131 = vst [vmem:[%s407 + $0x698] sm:$0xff] %v7619
        %8132 = vst [vmem:[%s407 + $0x6a0] sm:$0xff] %v7620
        %8133 = vst [vmem:[%s407 + $0x6a8] sm:$0xff] %v7621
        %8134 = vst [vmem:[%s407 + $0x6b0] sm:$0xff] %v7622
        %8135 = vst [vmem:[%s407 + $0x6b8] sm:$0xff] %v7623
        %8136 = vst [vmem:[%s407 + $0x6c0] sm:$0xff] %v7624
        %8137 = vst [vmem:[%s407 + $0x6c8] sm:$0xff] %v7625
        %8138 = vst [vmem:[%s407 + $0x6d0] sm:$0xff] %v7626
        %8139 = vst [vmem:[%s407 + $0x6d8] sm:$0xff] %v7627
        %8140 = vst [vmem:[%s407 + $0x6e0] sm:$0xff] %v7628
        %8141 = vst [vmem:[%s407 + $0x6e8] sm:$0xff] %v7629
        %8142 = vst [vmem:[%s407 + $0x6f0] sm:$0xff] %v7630
        %8143 = vst [vmem:[%s407 + $0x6f8] sm:$0xff] %v7631
        %8144 = vst [vmem:[%s407 + $0x700] sm:$0xff] %v7632
        %8145 = vst [vmem:[%s407 + $0x708] sm:$0xff] %v7633
        %8146 = vst [vmem:[%s407 + $0x710] sm:$0xff] %v7634
        %8147 = vst [vmem:[%s407 + $0x718] sm:$0xff] %v7635
        %8148 = vst [vmem:[%s407 + $0x720] sm:$0xff] %v7636
        %8149 = vst [vmem:[%s407 + $0x728] sm:$0xff] %v7637
        %8150 = vst [vmem:[%s407 + $0x730] sm:$0xff] %v7638
        %8151 = vst [vmem:[%s407 + $0x738] sm:$0xff] %v7639
        %8152 = vst [vmem:[%s407 + $0x740] sm:$0xff] %v7640
        %8153 = vst [vmem:[%s407 + $0x748] sm:$0xff] %v7641
        %8154 = vst [vmem:[%s407 + $0x750] sm:$0xff] %v7642
        %8155 = vst [vmem:[%s407 + $0x758] sm:$0xff] %v7643
        %8156 = vst [vmem:[%s407 + $0x760] sm:$0xff] %v7644
        %8157 = vst [vmem:[%s407 + $0x768] sm:$0xff] %v7645
        %8158 = vst [vmem:[%s407 + $0x770] sm:$0xff] %v7646
        %8159 = vst [vmem:[%s407 + $0x778] sm:$0xff] %v7647
        %8160 = vst [vmem:[%s407 + $0x780] sm:$0xff] %v7648
        %8161 = vst [vmem:[%s407 + $0x788] sm:$0xff] %v7649
        %8162 = vst [vmem:[%s407 + $0x790] sm:$0xff] %v7650
        %8163 = vst [vmem:[%s407 + $0x798] sm:$0xff] %v7651
        %8164 = vst [vmem:[%s407 + $0x7a0] sm:$0xff] %v7652
        %8165 = vst [vmem:[%s407 + $0x7a8] sm:$0xff] %v7653
        %8166 = vst [vmem:[%s407 + $0x7b0] sm:$0xff] %v7654
        %8167 = vst [vmem:[%s407 + $0x7b8] sm:$0xff] %v7655
        %8168 = vst [vmem:[%s407 + $0x7c0] sm:$0xff] %v7656
        %8169 = vst [vmem:[%s407 + $0x7c8] sm:$0xff] %v7657
        %8170 = vst [vmem:[%s407 + $0x7d0] sm:$0xff] %v7658
        %8171 = vst [vmem:[%s407 + $0x7d8] sm:$0xff] %v7659
        %8172 = vst [vmem:[%s407 + $0x7e0] sm:$0xff] %v7660
        %8173 = vst [vmem:[%s407 + $0x7e8] sm:$0xff] %v7661
        %8174 = vst [vmem:[%s407 + $0x7f0] sm:$0xff] %v7662
        %8175 = vst [vmem:[%s407 + $0x7f8] sm:$0xff] %v7663
        %8176 = vmatprep.subr.mxu0 %v5993
        %8177 = vmatpush1.xpose.msra.mxu0 %v5992
        %8178 = vmatprep.subr.mxu0 %v5985
        %8179 = vmatpush1.xpose.msra.mxu0 %v5984
        %8180 = vmatprep.subr.mxu0 %v5977
        %8181 = vmatpush1.xpose.msra.mxu0 %v5976
        %8182 = vmatprep.subr.mxu0 %v5969
        %8183 = vmatpush1.xpose.msra.mxu0 %v5968
        %8184 = vmatprep.subr.mxu0 %v5961
        %8185 = vmatpush1.xpose.msra.mxu0 %v5960
        %8186 = vmatprep.subr.mxu0 %v5953
        %8187 = vmatpush1.xpose.msra.mxu0 %v5952
        %8188 = vmatprep.subr.mxu0 %v5945
        %8189 = vmatpush1.xpose.msra.mxu0 %v5944
        %8190 = vmatprep.subr.mxu0 %v5937
        %8191 = vmatpush1.xpose.msra.mxu0 %v5936
        %8192 = vmatprep.subr.mxu0 %v5929
        %8193 = vmatpush1.xpose.msra.mxu0 %v5928
        %8194 = vmatprep.subr.mxu0 %v5921
        %8195 = vmatpush1.xpose.msra.mxu0 %v5920
        %8196 = vmatprep.subr.mxu0 %v5913
        %8197 = vmatpush1.xpose.msra.mxu0 %v5912
        %8198 = vmatprep.subr.mxu0 %v5905
        %8199 = vmatpush1.xpose.msra.mxu0 %v5904
        %8200 = vmatprep.subr.mxu0 %v5897
        %8201 = vmatpush1.xpose.msra.mxu0 %v5896
        %8202 = vmatprep.subr.mxu0 %v5889
        %8203 = vmatpush1.xpose.msra.mxu0 %v5888
        %8204 = vmatprep.subr.mxu0 %v5881
        %8205 = vmatpush1.xpose.msra.mxu0 %v5880
        %8206 = vmatprep.subr.mxu0 %v5873
        %8207 = vmatpush1.xpose.msra.mxu0 %v5872
        %8208 = vmatprep.subr.mxu0 %v6121
        %8209 = vmatpush2.xpose.msra.mxu0 %v6120
        %8210 = vmatprep.subr.mxu0 %v6113
        %8211 = vmatpush2.xpose.msra.mxu0 %v6112
        %8212 = vmatprep.subr.mxu0 %v6105
        %8213 = vmatpush2.xpose.msra.mxu0 %v6104
        %8214 = vmatprep.subr.mxu0 %v6097
        %8215 = vmatpush2.xpose.msra.mxu0 %v6096
        %8216 = vmatprep.subr.mxu0 %v6089
        %8217 = vmatpush2.xpose.msra.mxu0 %v6088
        %8218 = vmatprep.subr.mxu0 %v6081
        %8219 = vmatpush2.xpose.msra.mxu0 %v6080
        %8220 = vmatprep.subr.mxu0 %v6073
        %8221 = vmatpush2.xpose.msra.mxu0 %v6072
        %8222 = vmatprep.subr.mxu0 %v6065
        %8223 = vmatpush2.xpose.msra.mxu0 %v6064
        %8224 = vmatprep.subr.mxu0 %v6057
        %8225 = vmatpush2.xpose.msra.mxu0 %v6056
        %8226 = vmatprep.subr.mxu0 %v6049
        %8227 = vmatpush2.xpose.msra.mxu0 %v6048
        %8228 = vmatprep.subr.mxu0 %v6041
        %8229 = vmatpush2.xpose.msra.mxu0 %v6040
        %8230 = vmatprep.subr.mxu0 %v6033
        %8231 = vmatpush2.xpose.msra.mxu0 %v6032
        %8232 = vmatprep.subr.mxu0 %v6025
        %8233 = vmatpush2.xpose.msra.mxu0 %v6024
        %8234 = vmatprep.subr.mxu0 %v6017
        %8235 = vmatpush2.xpose.msra.mxu0 %v6016
        %8236 = vmatprep.subr.mxu0 %v6009
        %8237 = vmatpush2.xpose.msra.mxu0 %v6008
        %8238 = vmatprep.subr.mxu0 %v6001
        %8239 = vmatpush2.xpose.msra.mxu0 %v6000
        %8240 = vmatprep.mubr.f32.mxu0 %v955
        %8241 = vmatmul.mubr.f32.gmra.mxu0 %v954
        %v8242 = vpop.f32.mrf.mxu0
        %v8243 = vadd.f32 0.0, %v8242
        %v8244 = vpop.f32.mrf.mxu0
        %v8245 = vadd.f32 0.0, %v8244
        %8246 = vmatprep.mubr.f32.mxu0 %v963
        %8247 = vmatmul.mubr.f32.gmra.mxu0 %v962
        %v8248 = vpop.f32.mrf.mxu0
        %v8249 = vadd.f32 0.0, %v8248
        %v8250 = vpop.f32.mrf.mxu0
        %v8251 = vadd.f32 0.0, %v8250
        %8252 = vdwg.mxu0
        %8253 = vmatprep.subr.mxu0 %v5995
        %8254 = vmatpush1.xpose.msra.mxu0 %v5994
        %8255 = vmatprep.subr.mxu0 %v5987
        %8256 = vmatpush1.xpose.msra.mxu0 %v5986
        %8257 = vmatprep.subr.mxu0 %v5979
        %8258 = vmatpush1.xpose.msra.mxu0 %v5978
        %8259 = vmatprep.subr.mxu0 %v5971
        %8260 = vmatpush1.xpose.msra.mxu0 %v5970
        %8261 = vmatprep.subr.mxu0 %v5963
        %8262 = vmatpush1.xpose.msra.mxu0 %v5962
        %8263 = vmatprep.subr.mxu0 %v5955
        %8264 = vmatpush1.xpose.msra.mxu0 %v5954
        %8265 = vmatprep.subr.mxu0 %v5947
        %8266 = vmatpush1.xpose.msra.mxu0 %v5946
        %8267 = vmatprep.subr.mxu0 %v5939
        %8268 = vmatpush1.xpose.msra.mxu0 %v5938
        %8269 = vmatprep.subr.mxu0 %v5931
        %8270 = vmatpush1.xpose.msra.mxu0 %v5930
        %8271 = vmatprep.subr.mxu0 %v5923
        %8272 = vmatpush1.xpose.msra.mxu0 %v5922
        %8273 = vmatprep.subr.mxu0 %v5915
        %8274 = vmatpush1.xpose.msra.mxu0 %v5914
        %8275 = vmatprep.subr.mxu0 %v5907
        %8276 = vmatpush1.xpose.msra.mxu0 %v5906
        %8277 = vmatprep.subr.mxu0 %v5899
        %8278 = vmatpush1.xpose.msra.mxu0 %v5898
        %8279 = vmatprep.subr.mxu0 %v5891
        %8280 = vmatpush1.xpose.msra.mxu0 %v5890
        %8281 = vmatprep.subr.mxu0 %v5883
        %8282 = vmatpush1.xpose.msra.mxu0 %v5882
        %8283 = vmatprep.subr.mxu0 %v5875
        %8284 = vmatpush1.xpose.msra.mxu0 %v5874
        %8285 = vmatprep.subr.mxu0 %v6123
        %8286 = vmatpush2.xpose.msra.mxu0 %v6122
        %8287 = vmatprep.subr.mxu0 %v6115
        %8288 = vmatpush2.xpose.msra.mxu0 %v6114
        %8289 = vmatprep.subr.mxu0 %v6107
        %8290 = vmatpush2.xpose.msra.mxu0 %v6106
        %8291 = vmatprep.subr.mxu0 %v6099
        %8292 = vmatpush2.xpose.msra.mxu0 %v6098
        %8293 = vmatprep.subr.mxu0 %v6091
        %8294 = vmatpush2.xpose.msra.mxu0 %v6090
        %8295 = vmatprep.subr.mxu0 %v6083
        %8296 = vmatpush2.xpose.msra.mxu0 %v6082
        %8297 = vmatprep.subr.mxu0 %v6075
        %8298 = vmatpush2.xpose.msra.mxu0 %v6074
        %8299 = vmatprep.subr.mxu0 %v6067
        %8300 = vmatpush2.xpose.msra.mxu0 %v6066
        %8301 = vmatprep.subr.mxu0 %v6059
        %8302 = vmatpush2.xpose.msra.mxu0 %v6058
        %8303 = vmatprep.subr.mxu0 %v6051
        %8304 = vmatpush2.xpose.msra.mxu0 %v6050
        %8305 = vmatprep.subr.mxu0 %v6043
        %8306 = vmatpush2.xpose.msra.mxu0 %v6042
        %8307 = vmatprep.subr.mxu0 %v6035
        %8308 = vmatpush2.xpose.msra.mxu0 %v6034
        %8309 = vmatprep.subr.mxu0 %v6027
        %8310 = vmatpush2.xpose.msra.mxu0 %v6026
        %8311 = vmatprep.subr.mxu0 %v6019
        %8312 = vmatpush2.xpose.msra.mxu0 %v6018
        %8313 = vmatprep.subr.mxu0 %v6011
        %8314 = vmatpush2.xpose.msra.mxu0 %v6010
        %8315 = vmatprep.subr.mxu0 %v6003
        %8316 = vmatpush2.xpose.msra.mxu0 %v6002
        %8317 = vmatprep.mubr.f32.mxu0 %v957
        %8318 = vmatmul.mubr.f32.gmra.mxu0 %v956
        %v8319 = vpop.f32.mrf.mxu0
        %v8320 = vadd.f32 %v8243, %v8319
        %v8321 = vpop.f32.mrf.mxu0
        %v8322 = vadd.f32 %v8245, %v8321
        %8323 = vmatprep.mubr.f32.mxu0 %v965
        %8324 = vmatmul.mubr.f32.gmra.mxu0 %v964
        %v8325 = vpop.f32.mrf.mxu0
        %v8326 = vadd.f32 %v8249, %v8325
        %v8327 = vpop.f32.mrf.mxu0
        %v8328 = vadd.f32 %v8251, %v8327
        %8329 = vdwg.mxu0
        %8330 = vmatprep.subr.mxu0 %v5997
        %8331 = vmatpush1.xpose.msra.mxu0 %v5996
        %8332 = vmatprep.subr.mxu0 %v5989
        %8333 = vmatpush1.xpose.msra.mxu0 %v5988
        %8334 = vmatprep.subr.mxu0 %v5981
        %8335 = vmatpush1.xpose.msra.mxu0 %v5980
        %8336 = vmatprep.subr.mxu0 %v5973
        %8337 = vmatpush1.xpose.msra.mxu0 %v5972
        %8338 = vmatprep.subr.mxu0 %v5965
        %8339 = vmatpush1.xpose.msra.mxu0 %v5964
        %8340 = vmatprep.subr.mxu0 %v5957
        %8341 = vmatpush1.xpose.msra.mxu0 %v5956
        %8342 = vmatprep.subr.mxu0 %v5949
        %8343 = vmatpush1.xpose.msra.mxu0 %v5948
        %8344 = vmatprep.subr.mxu0 %v5941
        %8345 = vmatpush1.xpose.msra.mxu0 %v5940
        %8346 = vmatprep.subr.mxu0 %v5933
        %8347 = vmatpush1.xpose.msra.mxu0 %v5932
        %8348 = vmatprep.subr.mxu0 %v5925
        %8349 = vmatpush1.xpose.msra.mxu0 %v5924
        %8350 = vmatprep.subr.mxu0 %v5917
        %8351 = vmatpush1.xpose.msra.mxu0 %v5916
        %8352 = vmatprep.subr.mxu0 %v5909
        %8353 = vmatpush1.xpose.msra.mxu0 %v5908
        %8354 = vmatprep.subr.mxu0 %v5901
        %8355 = vmatpush1.xpose.msra.mxu0 %v5900
        %8356 = vmatprep.subr.mxu0 %v5893
        %8357 = vmatpush1.xpose.msra.mxu0 %v5892
        %8358 = vmatprep.subr.mxu0 %v5885
        %8359 = vmatpush1.xpose.msra.mxu0 %v5884
        %8360 = vmatprep.subr.mxu0 %v5877
        %8361 = vmatpush1.xpose.msra.mxu0 %v5876
        %8362 = vmatprep.subr.mxu0 %v6125
        %8363 = vmatpush2.xpose.msra.mxu0 %v6124
        %8364 = vmatprep.subr.mxu0 %v6117
        %8365 = vmatpush2.xpose.msra.mxu0 %v6116
        %8366 = vmatprep.subr.mxu0 %v6109
        %8367 = vmatpush2.xpose.msra.mxu0 %v6108
        %8368 = vmatprep.subr.mxu0 %v6101
        %8369 = vmatpush2.xpose.msra.mxu0 %v6100
        %8370 = vmatprep.subr.mxu0 %v6093
        %8371 = vmatpush2.xpose.msra.mxu0 %v6092
        %8372 = vmatprep.subr.mxu0 %v6085
        %8373 = vmatpush2.xpose.msra.mxu0 %v6084
        %8374 = vmatprep.subr.mxu0 %v6077
        %8375 = vmatpush2.xpose.msra.mxu0 %v6076
        %8376 = vmatprep.subr.mxu0 %v6069
        %8377 = vmatpush2.xpose.msra.mxu0 %v6068
        %8378 = vmatprep.subr.mxu0 %v6061
        %8379 = vmatpush2.xpose.msra.mxu0 %v6060
        %8380 = vmatprep.subr.mxu0 %v6053
        %8381 = vmatpush2.xpose.msra.mxu0 %v6052
        %8382 = vmatprep.subr.mxu0 %v6045
        %8383 = vmatpush2.xpose.msra.mxu0 %v6044
        %8384 = vmatprep.subr.mxu0 %v6037
        %8385 = vmatpush2.xpose.msra.mxu0 %v6036
        %8386 = vmatprep.subr.mxu0 %v6029
        %8387 = vmatpush2.xpose.msra.mxu0 %v6028
        %8388 = vmatprep.subr.mxu0 %v6021
        %8389 = vmatpush2.xpose.msra.mxu0 %v6020
        %8390 = vmatprep.subr.mxu0 %v6013
        %8391 = vmatpush2.xpose.msra.mxu0 %v6012
        %8392 = vmatprep.subr.mxu0 %v6005
        %8393 = vmatpush2.xpose.msra.mxu0 %v6004
        %8394 = vmatprep.mubr.f32.mxu0 %v959
        %8395 = vmatmul.mubr.f32.gmra.mxu0 %v958
        %v8396 = vpop.f32.mrf.mxu0
        %v8397 = vadd.f32 %v8320, %v8396
        %v8398 = vpop.f32.mrf.mxu0
        %v8399 = vadd.f32 %v8322, %v8398
        %8400 = vmatprep.mubr.f32.mxu0 %v967
        %8401 = vmatmul.mubr.f32.gmra.mxu0 %v966
        %v8402 = vpop.f32.mrf.mxu0
        %v8403 = vadd.f32 %v8326, %v8402
        %v8404 = vpop.f32.mrf.mxu0
        %v8405 = vadd.f32 %v8328, %v8404
        %8406 = vdwg.mxu0
        %8407 = vmatprep.subr.mxu0 %v5999
        %8408 = vmatpush1.xpose.msra.mxu0 %v5998
        %8409 = vmatprep.subr.mxu0 %v5991
        %8410 = vmatpush1.xpose.msra.mxu0 %v5990
        %8411 = vmatprep.subr.mxu0 %v5983
        %8412 = vmatpush1.xpose.msra.mxu0 %v5982
        %8413 = vmatprep.subr.mxu0 %v5975
        %8414 = vmatpush1.xpose.msra.mxu0 %v5974
        %8415 = vmatprep.subr.mxu0 %v5967
        %8416 = vmatpush1.xpose.msra.mxu0 %v5966
        %8417 = vmatprep.subr.mxu0 %v5959
        %8418 = vmatpush1.xpose.msra.mxu0 %v5958
        %8419 = vmatprep.subr.mxu0 %v5951
        %8420 = vmatpush1.xpose.msra.mxu0 %v5950
        %8421 = vmatprep.subr.mxu0 %v5943
        %8422 = vmatpush1.xpose.msra.mxu0 %v5942
        %8423 = vmatprep.subr.mxu0 %v5935
        %8424 = vmatpush1.xpose.msra.mxu0 %v5934
        %8425 = vmatprep.subr.mxu0 %v5927
        %8426 = vmatpush1.xpose.msra.mxu0 %v5926
        %8427 = vmatprep.subr.mxu0 %v5919
        %8428 = vmatpush1.xpose.msra.mxu0 %v5918
        %8429 = vmatprep.subr.mxu0 %v5911
        %8430 = vmatpush1.xpose.msra.mxu0 %v5910
        %8431 = vmatprep.subr.mxu0 %v5903
        %8432 = vmatpush1.xpose.msra.mxu0 %v5902
        %8433 = vmatprep.subr.mxu0 %v5895
        %8434 = vmatpush1.xpose.msra.mxu0 %v5894
        %8435 = vmatprep.subr.mxu0 %v5887
        %8436 = vmatpush1.xpose.msra.mxu0 %v5886
        %8437 = vmatprep.subr.mxu0 %v5879
        %8438 = vmatpush1.xpose.msra.mxu0 %v5878
        %8439 = vmatprep.subr.mxu0 %v6127
        %8440 = vmatpush2.xpose.msra.mxu0 %v6126
        %8441 = vmatprep.subr.mxu0 %v6119
        %8442 = vmatpush2.xpose.msra.mxu0 %v6118
        %8443 = vmatprep.subr.mxu0 %v6111
        %8444 = vmatpush2.xpose.msra.mxu0 %v6110
        %8445 = vmatprep.subr.mxu0 %v6103
        %8446 = vmatpush2.xpose.msra.mxu0 %v6102
        %8447 = vmatprep.subr.mxu0 %v6095
        %8448 = vmatpush2.xpose.msra.mxu0 %v6094
        %8449 = vmatprep.subr.mxu0 %v6087
        %8450 = vmatpush2.xpose.msra.mxu0 %v6086
        %8451 = vmatprep.subr.mxu0 %v6079
        %8452 = vmatpush2.xpose.msra.mxu0 %v6078
        %8453 = vmatprep.subr.mxu0 %v6071
        %8454 = vmatpush2.xpose.msra.mxu0 %v6070
        %8455 = vmatprep.subr.mxu0 %v6063
        %8456 = vmatpush2.xpose.msra.mxu0 %v6062
        %8457 = vmatprep.subr.mxu0 %v6055
        %8458 = vmatpush2.xpose.msra.mxu0 %v6054
        %8459 = vmatprep.subr.mxu0 %v6047
        %8460 = vmatpush2.xpose.msra.mxu0 %v6046
        %8461 = vmatprep.subr.mxu0 %v6039
        %8462 = vmatpush2.xpose.msra.mxu0 %v6038
        %8463 = vmatprep.subr.mxu0 %v6031
        %8464 = vmatpush2.xpose.msra.mxu0 %v6030
        %8465 = vmatprep.subr.mxu0 %v6023
        %8466 = vmatpush2.xpose.msra.mxu0 %v6022
        %8467 = vmatprep.subr.mxu0 %v6015
        %8468 = vmatpush2.xpose.msra.mxu0 %v6014
        %8469 = vmatprep.subr.mxu0 %v6007
        %8470 = vmatpush2.xpose.msra.mxu0 %v6006
        %8471 = vmatprep.mubr.f32.mxu0 %v961
        %8472 = vmatmul.mubr.f32.gmra.mxu0 %v960
        %v8473 = vpop.f32.mrf.mxu0
        %v8474 = vadd.f32 %v8397, %v8473
        %v8475 = vpop.f32.mrf.mxu0
        %v8476 = vadd.f32 %v8399, %v8475
        %8477 = vmatprep.mubr.f32.mxu0 %v969
        %8478 = vmatmul.mubr.f32.gmra.mxu0 %v968
        %v8479 = vpop.f32.mrf.mxu0
        %v8480 = vadd.f32 %v8403, %v8479
        %v8481 = vpop.f32.mrf.mxu0
        %v8482 = vadd.f32 %v8405, %v8481
        %8483 = vdwg.mxu0
        %8484 = vmatprep.subr.mxu0 %v6249
        %8485 = vmatpush1.xpose.msra.mxu0 %v6248
        %8486 = vmatprep.subr.mxu0 %v6241
        %8487 = vmatpush1.xpose.msra.mxu0 %v6240
        %8488 = vmatprep.subr.mxu0 %v6233
        %8489 = vmatpush1.xpose.msra.mxu0 %v6232
        %8490 = vmatprep.subr.mxu0 %v6225
        %8491 = vmatpush1.xpose.msra.mxu0 %v6224
        %8492 = vmatprep.subr.mxu0 %v6217
        %8493 = vmatpush1.xpose.msra.mxu0 %v6216
        %8494 = vmatprep.subr.mxu0 %v6209
        %8495 = vmatpush1.xpose.msra.mxu0 %v6208
        %8496 = vmatprep.subr.mxu0 %v6201
        %8497 = vmatpush1.xpose.msra.mxu0 %v6200
        %8498 = vmatprep.subr.mxu0 %v6193
        %8499 = vmatpush1.xpose.msra.mxu0 %v6192
        %8500 = vmatprep.subr.mxu0 %v6185
        %8501 = vmatpush1.xpose.msra.mxu0 %v6184
        %8502 = vmatprep.subr.mxu0 %v6177
        %8503 = vmatpush1.xpose.msra.mxu0 %v6176
        %8504 = vmatprep.subr.mxu0 %v6169
        %8505 = vmatpush1.xpose.msra.mxu0 %v6168
        %8506 = vmatprep.subr.mxu0 %v6161
        %8507 = vmatpush1.xpose.msra.mxu0 %v6160
        %8508 = vmatprep.subr.mxu0 %v6153
        %8509 = vmatpush1.xpose.msra.mxu0 %v6152
        %8510 = vmatprep.subr.mxu0 %v6145
        %8511 = vmatpush1.xpose.msra.mxu0 %v6144
        %8512 = vmatprep.subr.mxu0 %v6137
        %8513 = vmatpush1.xpose.msra.mxu0 %v6136
        %8514 = vmatprep.subr.mxu0 %v6129
        %8515 = vmatpush1.xpose.msra.mxu0 %v6128
        %8516 = vmatprep.subr.mxu0 %v6377
        %8517 = vmatpush2.xpose.msra.mxu0 %v6376
        %8518 = vmatprep.subr.mxu0 %v6369
        %8519 = vmatpush2.xpose.msra.mxu0 %v6368
        %8520 = vmatprep.subr.mxu0 %v6361
        %8521 = vmatpush2.xpose.msra.mxu0 %v6360
        %8522 = vmatprep.subr.mxu0 %v6353
        %8523 = vmatpush2.xpose.msra.mxu0 %v6352
        %8524 = vmatprep.subr.mxu0 %v6345
        %8525 = vmatpush2.xpose.msra.mxu0 %v6344
        %8526 = vmatprep.subr.mxu0 %v6337
        %8527 = vmatpush2.xpose.msra.mxu0 %v6336
        %8528 = vmatprep.subr.mxu0 %v6329
        %8529 = vmatpush2.xpose.msra.mxu0 %v6328
        %8530 = vmatprep.subr.mxu0 %v6321
        %8531 = vmatpush2.xpose.msra.mxu0 %v6320
        %8532 = vmatprep.subr.mxu0 %v6313
        %8533 = vmatpush2.xpose.msra.mxu0 %v6312
        %8534 = vmatprep.subr.mxu0 %v6305
        %8535 = vmatpush2.xpose.msra.mxu0 %v6304
        %8536 = vmatprep.subr.mxu0 %v6297
        %8537 = vmatpush2.xpose.msra.mxu0 %v6296
        %8538 = vmatprep.subr.mxu0 %v6289
        %8539 = vmatpush2.xpose.msra.mxu0 %v6288
        %8540 = vmatprep.subr.mxu0 %v6281
        %8541 = vmatpush2.xpose.msra.mxu0 %v6280
        %8542 = vmatprep.subr.mxu0 %v6273
        %8543 = vmatpush2.xpose.msra.mxu0 %v6272
        %8544 = vmatprep.subr.mxu0 %v6265
        %8545 = vmatpush2.xpose.msra.mxu0 %v6264
        %8546 = vmatprep.subr.mxu0 %v6257
        %8547 = vmatpush2.xpose.msra.mxu0 %v6256
        %8548 = vmatprep.mubr.f32.mxu0 %v955
        %8549 = vmatmul.mubr.f32.gmra.mxu0 %v954
        %v8550 = vpop.f32.mrf.mxu0
        %v8551 = vadd.f32 0.0, %v8550
        %v8552 = vpop.f32.mrf.mxu0
        %v8553 = vadd.f32 0.0, %v8552
        %8554 = vmatprep.mubr.f32.mxu0 %v963
        %8555 = vmatmul.mubr.f32.gmra.mxu0 %v962
        %v8556 = vpop.f32.mrf.mxu0
        %v8557 = vadd.f32 0.0, %v8556
        %v8558 = vpop.f32.mrf.mxu0
        %v8559 = vadd.f32 0.0, %v8558
        %8560 = vdwg.mxu0
        %8561 = vmatprep.subr.mxu0 %v6251
        %8562 = vmatpush1.xpose.msra.mxu0 %v6250
        %8563 = vmatprep.subr.mxu0 %v6243
        %8564 = vmatpush1.xpose.msra.mxu0 %v6242
        %8565 = vmatprep.subr.mxu0 %v6235
        %8566 = vmatpush1.xpose.msra.mxu0 %v6234
        %8567 = vmatprep.subr.mxu0 %v6227
        %8568 = vmatpush1.xpose.msra.mxu0 %v6226
        %8569 = vmatprep.subr.mxu0 %v6219
        %8570 = vmatpush1.xpose.msra.mxu0 %v6218
        %8571 = vmatprep.subr.mxu0 %v6211
        %8572 = vmatpush1.xpose.msra.mxu0 %v6210
        %8573 = vmatprep.subr.mxu0 %v6203
        %8574 = vmatpush1.xpose.msra.mxu0 %v6202
        %8575 = vmatprep.subr.mxu0 %v6195
        %8576 = vmatpush1.xpose.msra.mxu0 %v6194
        %8577 = vmatprep.subr.mxu0 %v6187
        %8578 = vmatpush1.xpose.msra.mxu0 %v6186
        %8579 = vmatprep.subr.mxu0 %v6179
        %8580 = vmatpush1.xpose.msra.mxu0 %v6178
        %8581 = vmatprep.subr.mxu0 %v6171
        %8582 = vmatpush1.xpose.msra.mxu0 %v6170
        %8583 = vmatprep.subr.mxu0 %v6163
        %8584 = vmatpush1.xpose.msra.mxu0 %v6162
        %8585 = vmatprep.subr.mxu0 %v6155
        %8586 = vmatpush1.xpose.msra.mxu0 %v6154
        %8587 = vmatprep.subr.mxu0 %v6147
        %8588 = vmatpush1.xpose.msra.mxu0 %v6146
        %8589 = vmatprep.subr.mxu0 %v6139
        %8590 = vmatpush1.xpose.msra.mxu0 %v6138
        %8591 = vmatprep.subr.mxu0 %v6131
        %8592 = vmatpush1.xpose.msra.mxu0 %v6130
        %8593 = vmatprep.subr.mxu0 %v6379
        %8594 = vmatpush2.xpose.msra.mxu0 %v6378
        %8595 = vmatprep.subr.mxu0 %v6371
        %8596 = vmatpush2.xpose.msra.mxu0 %v6370
        %8597 = vmatprep.subr.mxu0 %v6363
        %8598 = vmatpush2.xpose.msra.mxu0 %v6362
        %8599 = vmatprep.subr.mxu0 %v6355
        %8600 = vmatpush2.xpose.msra.mxu0 %v6354
        %8601 = vmatprep.subr.mxu0 %v6347
        %8602 = vmatpush2.xpose.msra.mxu0 %v6346
        %8603 = vmatprep.subr.mxu0 %v6339
        %8604 = vmatpush2.xpose.msra.mxu0 %v6338
        %8605 = vmatprep.subr.mxu0 %v6331
        %8606 = vmatpush2.xpose.msra.mxu0 %v6330
        %8607 = vmatprep.subr.mxu0 %v6323
        %8608 = vmatpush2.xpose.msra.mxu0 %v6322
        %8609 = vmatprep.subr.mxu0 %v6315
        %8610 = vmatpush2.xpose.msra.mxu0 %v6314
        %8611 = vmatprep.subr.mxu0 %v6307
        %8612 = vmatpush2.xpose.msra.mxu0 %v6306
        %8613 = vmatprep.subr.mxu0 %v6299
        %8614 = vmatpush2.xpose.msra.mxu0 %v6298
        %8615 = vmatprep.subr.mxu0 %v6291
        %8616 = vmatpush2.xpose.msra.mxu0 %v6290
        %8617 = vmatprep.subr.mxu0 %v6283
        %8618 = vmatpush2.xpose.msra.mxu0 %v6282
        %8619 = vmatprep.subr.mxu0 %v6275
        %8620 = vmatpush2.xpose.msra.mxu0 %v6274
        %8621 = vmatprep.subr.mxu0 %v6267
        %8622 = vmatpush2.xpose.msra.mxu0 %v6266
        %8623 = vmatprep.subr.mxu0 %v6259
        %8624 = vmatpush2.xpose.msra.mxu0 %v6258
        %8625 = vmatprep.mubr.f32.mxu0 %v957
        %8626 = vmatmul.mubr.f32.gmra.mxu0 %v956
        %v8627 = vpop.f32.mrf.mxu0
        %v8628 = vadd.f32 %v8551, %v8627
        %v8629 = vpop.f32.mrf.mxu0
        %v8630 = vadd.f32 %v8553, %v8629
        %8631 = vmatprep.mubr.f32.mxu0 %v965
        %8632 = vmatmul.mubr.f32.gmra.mxu0 %v964
        %v8633 = vpop.f32.mrf.mxu0
        %v8634 = vadd.f32 %v8557, %v8633
        %v8635 = vpop.f32.mrf.mxu0
        %v8636 = vadd.f32 %v8559, %v8635
        %8637 = vdwg.mxu0
        %8638 = vmatprep.subr.mxu0 %v6253
        %8639 = vmatpush1.xpose.msra.mxu0 %v6252
        %8640 = vmatprep.subr.mxu0 %v6245
        %8641 = vmatpush1.xpose.msra.mxu0 %v6244
        %8642 = vmatprep.subr.mxu0 %v6237
        %8643 = vmatpush1.xpose.msra.mxu0 %v6236
        %8644 = vmatprep.subr.mxu0 %v6229
        %8645 = vmatpush1.xpose.msra.mxu0 %v6228
        %8646 = vmatprep.subr.mxu0 %v6221
        %8647 = vmatpush1.xpose.msra.mxu0 %v6220
        %8648 = vmatprep.subr.mxu0 %v6213
        %8649 = vmatpush1.xpose.msra.mxu0 %v6212
        %8650 = vmatprep.subr.mxu0 %v6205
        %8651 = vmatpush1.xpose.msra.mxu0 %v6204
        %8652 = vmatprep.subr.mxu0 %v6197
        %8653 = vmatpush1.xpose.msra.mxu0 %v6196
        %8654 = vmatprep.subr.mxu0 %v6189
        %8655 = vmatpush1.xpose.msra.mxu0 %v6188
        %8656 = vmatprep.subr.mxu0 %v6181
        %8657 = vmatpush1.xpose.msra.mxu0 %v6180
        %8658 = vmatprep.subr.mxu0 %v6173
        %8659 = vmatpush1.xpose.msra.mxu0 %v6172
        %8660 = vmatprep.subr.mxu0 %v6165
        %8661 = vmatpush1.xpose.msra.mxu0 %v6164
        %8662 = vmatprep.subr.mxu0 %v6157
        %8663 = vmatpush1.xpose.msra.mxu0 %v6156
        %8664 = vmatprep.subr.mxu0 %v6149
        %8665 = vmatpush1.xpose.msra.mxu0 %v6148
        %8666 = vmatprep.subr.mxu0 %v6141
        %8667 = vmatpush1.xpose.msra.mxu0 %v6140
        %8668 = vmatprep.subr.mxu0 %v6133
        %8669 = vmatpush1.xpose.msra.mxu0 %v6132
        %8670 = vmatprep.subr.mxu0 %v6381
        %8671 = vmatpush2.xpose.msra.mxu0 %v6380
        %8672 = vmatprep.subr.mxu0 %v6373
        %8673 = vmatpush2.xpose.msra.mxu0 %v6372
        %8674 = vmatprep.subr.mxu0 %v6365
        %8675 = vmatpush2.xpose.msra.mxu0 %v6364
        %8676 = vmatprep.subr.mxu0 %v6357
        %8677 = vmatpush2.xpose.msra.mxu0 %v6356
        %8678 = vmatprep.subr.mxu0 %v6349
        %8679 = vmatpush2.xpose.msra.mxu0 %v6348
        %8680 = vmatprep.subr.mxu0 %v6341
        %8681 = vmatpush2.xpose.msra.mxu0 %v6340
        %8682 = vmatprep.subr.mxu0 %v6333
        %8683 = vmatpush2.xpose.msra.mxu0 %v6332
        %8684 = vmatprep.subr.mxu0 %v6325
        %8685 = vmatpush2.xpose.msra.mxu0 %v6324
        %8686 = vmatprep.subr.mxu0 %v6317
        %8687 = vmatpush2.xpose.msra.mxu0 %v6316
        %8688 = vmatprep.subr.mxu0 %v6309
        %8689 = vmatpush2.xpose.msra.mxu0 %v6308
        %8690 = vmatprep.subr.mxu0 %v6301
        %8691 = vmatpush2.xpose.msra.mxu0 %v6300
        %8692 = vmatprep.subr.mxu0 %v6293
        %8693 = vmatpush2.xpose.msra.mxu0 %v6292
        %8694 = vmatprep.subr.mxu0 %v6285
        %8695 = vmatpush2.xpose.msra.mxu0 %v6284
        %8696 = vmatprep.subr.mxu0 %v6277
        %8697 = vmatpush2.xpose.msra.mxu0 %v6276
        %8698 = vmatprep.subr.mxu0 %v6269
        %8699 = vmatpush2.xpose.msra.mxu0 %v6268
        %8700 = vmatprep.subr.mxu0 %v6261
        %8701 = vmatpush2.xpose.msra.mxu0 %v6260
        %8702 = vmatprep.mubr.f32.mxu0 %v959
        %8703 = vmatmul.mubr.f32.gmra.mxu0 %v958
        %v8704 = vpop.f32.mrf.mxu0
        %v8705 = vadd.f32 %v8628, %v8704
        %v8706 = vpop.f32.mrf.mxu0
        %v8707 = vadd.f32 %v8630, %v8706
        %8708 = vmatprep.mubr.f32.mxu0 %v967
        %8709 = vmatmul.mubr.f32.gmra.mxu0 %v966
        %v8710 = vpop.f32.mrf.mxu0
        %v8711 = vadd.f32 %v8634, %v8710
        %v8712 = vpop.f32.mrf.mxu0
        %v8713 = vadd.f32 %v8636, %v8712
        %8714 = vdwg.mxu0
        %8715 = vmatprep.subr.mxu0 %v6255
        %8716 = vmatpush1.xpose.msra.mxu0 %v6254
        %8717 = vmatprep.subr.mxu0 %v6247
        %8718 = vmatpush1.xpose.msra.mxu0 %v6246
        %8719 = vmatprep.subr.mxu0 %v6239
        %8720 = vmatpush1.xpose.msra.mxu0 %v6238
        %8721 = vmatprep.subr.mxu0 %v6231
        %8722 = vmatpush1.xpose.msra.mxu0 %v6230
        %8723 = vmatprep.subr.mxu0 %v6223
        %8724 = vmatpush1.xpose.msra.mxu0 %v6222
        %8725 = vmatprep.subr.mxu0 %v6215
        %8726 = vmatpush1.xpose.msra.mxu0 %v6214
        %8727 = vmatprep.subr.mxu0 %v6207
        %8728 = vmatpush1.xpose.msra.mxu0 %v6206
        %8729 = vmatprep.subr.mxu0 %v6199
        %8730 = vmatpush1.xpose.msra.mxu0 %v6198
        %8731 = vmatprep.subr.mxu0 %v6191
        %8732 = vmatpush1.xpose.msra.mxu0 %v6190
        %8733 = vmatprep.subr.mxu0 %v6183
        %8734 = vmatpush1.xpose.msra.mxu0 %v6182
        %8735 = vmatprep.subr.mxu0 %v6175
        %8736 = vmatpush1.xpose.msra.mxu0 %v6174
        %8737 = vmatprep.subr.mxu0 %v6167
        %8738 = vmatpush1.xpose.msra.mxu0 %v6166
        %8739 = vmatprep.subr.mxu0 %v6159
        %8740 = vmatpush1.xpose.msra.mxu0 %v6158
        %8741 = vmatprep.subr.mxu0 %v6151
        %8742 = vmatpush1.xpose.msra.mxu0 %v6150
        %8743 = vmatprep.subr.mxu0 %v6143
        %8744 = vmatpush1.xpose.msra.mxu0 %v6142
        %8745 = vmatprep.subr.mxu0 %v6135
        %8746 = vmatpush1.xpose.msra.mxu0 %v6134
        %8747 = vmatprep.subr.mxu0 %v6383
        %8748 = vmatpush2.xpose.msra.mxu0 %v6382
        %8749 = vmatprep.subr.mxu0 %v6375
        %8750 = vmatpush2.xpose.msra.mxu0 %v6374
        %8751 = vmatprep.subr.mxu0 %v6367
        %8752 = vmatpush2.xpose.msra.mxu0 %v6366
        %8753 = vmatprep.subr.mxu0 %v6359
        %8754 = vmatpush2.xpose.msra.mxu0 %v6358
        %8755 = vmatprep.subr.mxu0 %v6351
        %8756 = vmatpush2.xpose.msra.mxu0 %v6350
        %8757 = vmatprep.subr.mxu0 %v6343
        %8758 = vmatpush2.xpose.msra.mxu0 %v6342
        %8759 = vmatprep.subr.mxu0 %v6335
        %8760 = vmatpush2.xpose.msra.mxu0 %v6334
        %8761 = vmatprep.subr.mxu0 %v6327
        %8762 = vmatpush2.xpose.msra.mxu0 %v6326
        %8763 = vmatprep.subr.mxu0 %v6319
        %8764 = vmatpush2.xpose.msra.mxu0 %v6318
        %8765 = vmatprep.subr.mxu0 %v6311
        %8766 = vmatpush2.xpose.msra.mxu0 %v6310
        %8767 = vmatprep.subr.mxu0 %v6303
        %8768 = vmatpush2.xpose.msra.mxu0 %v6302
        %8769 = vmatprep.subr.mxu0 %v6295
        %8770 = vmatpush2.xpose.msra.mxu0 %v6294
        %8771 = vmatprep.subr.mxu0 %v6287
        %8772 = vmatpush2.xpose.msra.mxu0 %v6286
        %8773 = vmatprep.subr.mxu0 %v6279
        %8774 = vmatpush2.xpose.msra.mxu0 %v6278
        %8775 = vmatprep.subr.mxu0 %v6271
        %8776 = vmatpush2.xpose.msra.mxu0 %v6270
        %8777 = vmatprep.subr.mxu0 %v6263
        %8778 = vmatpush2.xpose.msra.mxu0 %v6262
        %8779 = vmatprep.mubr.f32.mxu0 %v961
        %8780 = vmatmul.mubr.f32.gmra.mxu0 %v960
        %v8781 = vpop.f32.mrf.mxu0
        %v8782 = vadd.f32 %v8705, %v8781
        %v8783 = vpop.f32.mrf.mxu0
        %v8784 = vadd.f32 %v8707, %v8783
        %8785 = vmatprep.mubr.f32.mxu0 %v969
        %8786 = vmatmul.mubr.f32.gmra.mxu0 %v968
        %v8787 = vpop.f32.mrf.mxu0
        %v8788 = vadd.f32 %v8711, %v8787
        %v8789 = vpop.f32.mrf.mxu0
        %v8790 = vadd.f32 %v8713, %v8789
        %8791 = vdwg.mxu0
        %s8792 = smul.u32 %s38, 512
        %s8793 = sshra.s32 %s8792, 7
        %s8794 = sand.u32 %s8792, 127
        %s8795 = smul.addr %s8793, 8
        %s8796 = scalar_lea.vmem %s361, %s8795 [#allocation6]
        %v8797 = vld [vmem:[%s8796] sm:$0xff]
        %v8798 = vld [vmem:[%s8796 + $0x8] sm:$0xff]
        %v8799 = vld [vmem:[%s8796 + $0x10] sm:$0xff]
        %v8800 = vld [vmem:[%s8796 + $0x18] sm:$0xff]
        %v8801 = vld [vmem:[%s8796 + $0x40] sm:$0xff]
        %v8802 = vld [vmem:[%s8796 + $0x48] sm:$0xff]
        %v8803 = vld [vmem:[%s8796 + $0x50] sm:$0xff]
        %v8804 = vld [vmem:[%s8796 + $0x58] sm:$0xff]
        %s8805 = sld [smem:[#allocation2]]
        %v8806 = vstv %s8805
        %v8807 = vmul.f32 %v8806, %v8474
        %v8808 = vmul.f32 %v8806, %v8476
        %v8809 = vmul.f32 %v8806, %v8782
        %v8810 = vmul.f32 %v8806, %v8784
        %v8811 = vmul.f32 %v8806, %v8480
        %v8812 = vmul.f32 %v8806, %v8482
        %v8813 = vmul.f32 %v8806, %v8788
        %v8814 = vmul.f32 %v8806, %v8790
        %v8815 = vadd.f32 %v8807, %v8797
        %v8816 = vadd.f32 %v8808, %v8798
        %v8817 = vadd.f32 %v8809, %v8799
        %v8818 = vadd.f32 %v8810, %v8800
        %v8819 = vadd.f32 %v8811, %v8801
        %v8820 = vadd.f32 %v8812, %v8802
        %v8821 = vadd.f32 %v8813, %v8803
        %v8822 = vadd.f32 %v8814, %v8804
        %8823 = vst [vmem:[%s400] sm:$0xff] %v8815
        %8824 = vst [vmem:[%s400 + $0x8] sm:$0xff] %v8816
        %8825 = vst [vmem:[%s400 + $0x10] sm:$0xff] %v8817
        %8826 = vst [vmem:[%s400 + $0x18] sm:$0xff] %v8818
        %8827 = vst [vmem:[%s400 + $0x20] sm:$0xff] %v8819
        %8828 = vst [vmem:[%s400 + $0x28] sm:$0xff] %v8820
        %8829 = vst [vmem:[%s400 + $0x30] sm:$0xff] %v8821
        %8830 = vst [vmem:[%s400 + $0x38] sm:$0xff] %v8822
        %s8831 = sand.u32 %s214, 1
        %s8832 = scalar_lea.sflag [#allocation5], %s8831
        %s8833 = sand.u32 %s214, 1
        %s8834 = smul.addr %s8833, 64
        %s8835 = scalar_lea.vmem [#allocation9], %s8834
        %s8836 = sand.u32 %s242, 1
        %s8837 = scalar_lea.sflag [#allocation11], %s8836
        %s8838 = sand.u32 %s242, 1
        %s8839 = smul.addr %s8838, 2048
        %s8840 = scalar_lea.vmem [#allocation10], %s8839
        // Predicated region
        $region61: #{tpu_custom_call.1} parent=47 // pred_check
          %p8841 = pneg %p224
        $region62: #{tpu_custom_call.1} parent=47 // pred_check_branch
          %8843 = sbr.rel (%p8841) target = $region64
        $region63: #{tpu_custom_call.1} parent=47 // pred_region
          %s8844 = smul.u32 4, %s38
          %s8846 = ssub.s32 1024, 1024
          %8847 = vsyncadd %s8832, %s8846
          %s8848 = smul.addr %s37, 16
          %s8849 = sadd.s32 %s8844, %s8848
          %s8850 = smul.addr %s8849, 128
          %s8851 = scalar_lea.hbm %s7, %s8850
          %s8852 = sshll.u32 %s8835, 4
          %s8853 = int_to_ptr.vmem [resolvable:$true] %s8852
          %8858 = dma.vmem_to_hbm [thread:$0]  %s8853, 1024, %s8851, %s8832, 512, 1024, 32
        $region64: #{tpu_custom_call.1} parent=47 // pred_fallthru
          _
        // Predicated region
        $region65: #{tpu_custom_call.1} parent=47 // pred_check
          %p8859 = pneg %p252
        $region66: #{tpu_custom_call.1} parent=47 // pred_check_branch
          %8861 = sbr.rel (%p8859) target = $region68
        $region67: #{tpu_custom_call.1} parent=47 // pred_region
          %s8862 = smul.u32 64, %s38
          %s8864 = ssub.s32 32768, 32768
          %8865 = vsyncadd %s8837, %s8864
          %s8866 = smul.addr %s8862, 8
          %s8867 = smul.addr %s37, 1024
          %s8868 = sadd.s32 %s8866, %s8867
          %s8869 = smul.addr %s8868, 64
          %s8870 = scalar_lea.hbm %s8, %s8869
          %s8871 = sshll.u32 %s8840, 4
          %s8872 = int_to_ptr.vmem [resolvable:$true] %s8871
          %8877 = dma.vmem_to_hbm [thread:$0]  %s8872, 32768, %s8870, %s8837, 512, 512, 32
        $region68: #{tpu_custom_call.1} parent=47 // pred_fallthru
          _
      $region48: #{tpu_custom_call.1} parent=5 // pred_fallthru
        _
      %p8878 = scmp.le.s32.totalorder 2, %s28
      // Predicated region
      $region69: #{tpu_custom_call.1} parent=5 // pred_check
        %p8879 = pneg %p8878
      $region70: #{tpu_custom_call.1} parent=5 // pred_check_branch
        %8881 = sbr.rel (%p8879) target = $region72
      $region71: #{tpu_custom_call.1} parent=5 // pred_region
        %s8882 = ssub.s32 %s28, 2
        // Predicated region
        $region73: #{tpu_custom_call.1} parent=71 // pred_check
          %p8883 = pneg %p230
        $region74: #{tpu_custom_call.1} parent=71 // pred_check_branch
          %8885 = sbr.rel (%p8883) target = $region76
        $region75: #{tpu_custom_call.1} parent=71 // pred_region
          %s8886 = sand.u32 %s215, 1
          %s8887 = scalar_lea.sflag [#allocation5], %s8886
          %s8888 = sand.u32 %s215, 1
          %s8889 = smul.addr %s8888, 64
          %s8890 = scalar_lea.vmem [#allocation9], %s8889
          %8891 = dma.done %s8887, 1024
        $region76: #{tpu_custom_call.1} parent=71 // pred_fallthru
          _
        // Predicated region
        $region77: #{tpu_custom_call.1} parent=71 // pred_check
          %p8892 = pneg %p258
        $region78: #{tpu_custom_call.1} parent=71 // pred_check_branch
          %8894 = sbr.rel (%p8892) target = $region80
        $region79: #{tpu_custom_call.1} parent=71 // pred_region
          %s8895 = sand.u32 %s243, 1
          %s8896 = scalar_lea.sflag [#allocation11], %s8895
          %s8897 = sand.u32 %s243, 1
          %s8898 = smul.addr %s8897, 2048
          %s8899 = scalar_lea.vmem [#allocation10], %s8898
          %8900 = dma.done %s8896, 32768
        $region80: #{tpu_custom_call.1} parent=71 // pred_fallthru
          _
      $region72: #{tpu_custom_call.1} parent=5 // pred_fallthru
        _
    $region6: #{tpu_custom_call.1} parent=1 // loop_footer
      %s32 = sadd.s32 1, %s28
    $region7: #{tpu_custom_call.1} parent=1 // loop_footer_branch
      %27 = sbr.rel target = $region3
    $region8: #{tpu_custom_call.1} parent=1 // loop_exit
      _
    %8901 = vsyncpa [#allocation4], 1
    %s8902 = scalar_lea.sflag [#allocation4], 1
    %8903 = vsyncpa %s8902, 1
    %8904 = vsyncpa [#allocation7], 1
    %s8905 = scalar_lea.sflag [#allocation7], 1
    %8906 = vsyncpa %s8905, 1
    %8907 = vsyncpa [#allocation5], 1
    %s8908 = scalar_lea.sflag [#allocation5], 1
    %8909 = vsyncpa %s8908, 1
    %8910 = vsyncpa [#allocation11], 1
    %s8911 = scalar_lea.sflag [#allocation11], 1
    %8912 = vsyncpa %s8911, 1

</llo_original>
